<compile_context>
chip_gen: v7x
topology: tpu7x:2x2x1
jax: 0.10.0
libtpu: 0.0.40
codegen_flags: <defaults>
</compile_context>

<pallas_src>
import functools

import jax
import jax.numpy as jnp
from jax import lax
from jax.experimental import pallas as pl
from jax.experimental.pallas import tpu as pltpu


# ---------------------------------------------------------------------------
# helpers
# ---------------------------------------------------------------------------
def _pick_tile_rows(h, w, target_rows=512):
    """Largest divisor `tr` of h with tr*w <= target_rows (>=1)."""
    best = 1
    for tr in range(1, h + 1):
        if h % tr == 0 and tr * w <= target_rows:
            best = tr
    return best


def _fill_padded_image(xp_ref, x_ref, h, w):
    """Write x (h, w, c) into xp_ref (h+4, w+2, c) with zero halo.

    Interior lives at rows [2, h+2), cols [1, w+1); 2 halo rows top/bottom so
    a one-row-overhung tile of the first conv in the fused block kernel never
    indexes out of range.
    """
    xp_ref[...] = jnp.zeros_like(xp_ref)
    xp_ref[2:h + 2, 1:w + 1, :] = x_ref[...]


# ---------------------------------------------------------------------------
# Kernel 1: single 3x3 'same' conv (bias-free), optional fused residual:
#           out = residual + scale * conv(x)
# ---------------------------------------------------------------------------
def _make_conv_kernel(h, w, cin, cout, tr, scale, has_residual):
    def kernel(x_ref, w_ref, *rest):
        if has_residual:
            r_ref, o_ref, xp_ref = rest
        else:
            o_ref, xp_ref = rest

        # Build the zero-padded image in VMEM once per batch element.
        @pl.when(pl.program_id(1) == 0)
        def _():
            _fill_padded_image(xp_ref, x_ref, h, w)

        row0 = pl.program_id(1) * tr

        # Nine accumulated per-tap matmuls (bf16 inputs, f32 accumulate).
        acc = jnp.zeros((tr * w, cout), jnp.float32)
        for ky in range(3):
            for kx in range(3):
                patch = xp_ref[pl.ds(row0 + 1 + ky, tr), pl.ds(kx, w), :]
                patch = patch.reshape(tr * w, cin).astype(jnp.bfloat16)
                acc += jnp.dot(patch, w_ref[ky * 3 + kx],
                               preferred_element_type=jnp.float32)

        if has_residual:
            res = r_ref[...].reshape(tr * w, cout).astype(jnp.float32)
            acc = res + acc * jnp.float32(scale)

        o_ref[...] = acc.reshape(tr, w, cout).astype(o_ref.dtype)

    return kernel


def conv3x3(x, w, *, residual=None, scale=1.0, tile_rows=None):
    """x: (N, H, W, Cin) f32 NHWC; w: (3, 3, Cin, Cout) f32 HWIO.

    3x3 'same' conv, bias-free.  If `residual` is given, returns
    residual + scale * conv(x) (residual written in place via aliasing).
    """
    n, h, ww, cin = x.shape
    cout = w.shape[-1]
    tr = tile_rows if tile_rows is not None else _pick_tile_rows(h, ww)
    assert h % tr == 0, (h, tr)
    n_row_tiles = h // tr
    has_res = residual is not None

    w_taps = w.reshape(9, cin, cout).astype(jnp.bfloat16)
    kernel = _make_conv_kernel(h, ww, cin, cout, tr, scale, has_res)

    in_specs = [
        # Whole (unpadded) image per batch element; block index is constant
        # along the row axis so it is DMA'd once per batch and stays resident.
        pl.BlockSpec((None, h, ww, cin), lambda b, r: (b, 0, 0, 0)),
        pl.BlockSpec((9, cin, cout), lambda b, r: (0, 0, 0)),
    ]
    args = [x, w_taps]
    io_aliases = {}
    if has_res:
        in_specs.append(
            pl.BlockSpec((None, tr, ww, cout), lambda b, r: (b, r, 0, 0)))
        args.append(residual)
        io_aliases = {2: 0}   # write the output in place over the residual

    return pl.pallas_call(
        kernel,
        out_shape=jax.ShapeDtypeStruct((n, h, ww, cout), jnp.float32),
        grid_spec=pltpu.PrefetchScalarGridSpec(
            num_scalar_prefetch=0,
            grid=(n, n_row_tiles),
            in_specs=in_specs,
            out_specs=pl.BlockSpec((None, tr, ww, cout),
                                   lambda b, r: (b, r, 0, 0)),
            scratch_shapes=[pltpu.VMEM((h + 4, ww + 2, cin), jnp.float32)],
        ),
        compiler_params=pltpu.CompilerParams(
            dimension_semantics=("parallel", "arbitrary")),
        input_output_aliases=io_aliases,
    )(*args)


# ---------------------------------------------------------------------------
# Kernel 2: fused ResNet block:  out = x + 0.1 * conv_b(relu(conv_a(x)))
# The intermediate t = relu(conv_a(x)) lives only in a VMEM scratch; each row
# tile recomputes a one-row halo of t so the second conv is exact.
# ---------------------------------------------------------------------------
def _make_block_kernel(h, w, c, tr, n_tiles, scale):
    def kernel(x_ref, wa_ref, wb_ref, o_ref, xp_ref, t_ref):
        r = pl.program_id(1)

        @pl.when(r == 0)
        def _():
            _fill_padded_image(xp_ref, x_ref, h, w)
            t_ref[...] = jnp.zeros_like(t_ref)   # keeps the column halo zero

        row0 = r * tr

        # ---- conv_a + ReLU over the tile rows plus a one-row halo each side.
        acc1 = jnp.zeros(((tr + 2) * w, c), jnp.float32)
        for ky in range(3):
            for kx in range(3):
                patch = xp_ref[pl.ds(row0 + ky, tr + 2), pl.ds(kx, w), :]
                patch = patch.reshape((tr + 2) * w, c).astype(jnp.bfloat16)
                acc1 += jnp.dot(patch, wa_ref[ky * 3 + kx],
                                preferred_element_type=jnp.float32)
        t_vals = jnp.maximum(acc1, 0.0).reshape(tr + 2, w, c)
        t_ref[:, 1:w + 1, :] = t_vals

        # Halo rows outside the image are conv_b's zero padding, not conv_a
        # output — overwrite them with zeros on the boundary tiles.
        @pl.when(r == 0)
        def _():
            t_ref[0:1, :, :] = jnp.zeros((1, w + 2, c), jnp.float32)

        @pl.when(r == n_tiles - 1)
        def _():
            t_ref[tr + 1:tr + 2, :, :] = jnp.zeros((1, w + 2, c), jnp.float32)

        # ---- conv_b (no activation) on t, then residual add in f32.
        acc2 = jnp.zeros((tr * w, c), jnp.float32)
        for ky in range(3):
            for kx in range(3):
                patch = t_ref[ky:ky + tr, kx:kx + w, :]
                patch = patch.reshape(tr * w, c).astype(jnp.bfloat16)
                acc2 += jnp.dot(patch, wb_ref[ky * 3 + kx],
                                preferred_element_type=jnp.float32)

        resid = xp_ref[pl.ds(row0 + 2, tr), pl.ds(1, w), :].reshape(tr * w, c)
        out = resid + jnp.float32(scale) * acc2
        o_ref[...] = out.reshape(tr, w, c).astype(o_ref.dtype)

    return kernel


def resnet_block(x, w_a, w_b, *, scale=0.1, tile_rows=None):
    """x: (N, H, W, C) f32; w_a, w_b: (3, 3, C, C) f32 HWIO."""
    n, h, ww, c = x.shape
    tr = tile_rows if tile_rows is not None else _pick_tile_rows(h, ww)
    assert h % tr == 0, (h, tr)
    n_row_tiles = h // tr

    wa_taps = w_a.reshape(9, c, c).astype(jnp.bfloat16)
    wb_taps = w_b.reshape(9, c, c).astype(jnp.bfloat16)
    kernel = _make_block_kernel(h, ww, c, tr, n_row_tiles, scale)

    return pl.pallas_call(
        kernel,
        out_shape=jax.ShapeDtypeStruct((n, h, ww, c), jnp.float32),
        grid_spec=pltpu.PrefetchScalarGridSpec(
            num_scalar_prefetch=0,
            grid=(n, n_row_tiles),
            in_specs=[
                pl.BlockSpec((None, h, ww, c), lambda b, r: (b, 0, 0, 0)),
                pl.BlockSpec((9, c, c), lambda b, r: (0, 0, 0)),
                pl.BlockSpec((9, c, c), lambda b, r: (0, 0, 0)),
            ],
            out_specs=pl.BlockSpec((None, tr, ww, c),
                                   lambda b, r: (b, r, 0, 0)),
            scratch_shapes=[
                pltpu.VMEM((h + 4, ww + 2, c), jnp.float32),   # padded x
                pltpu.VMEM((tr + 2, ww + 2, c), jnp.float32),  # padded t tile
            ],
        ),
        compiler_params=pltpu.CompilerParams(
            dimension_semantics=("parallel", "arbitrary")),
    )(x, wa_taps, wb_taps)


# ---------------------------------------------------------------------------
# ResNet forward (mirrors the PyTorch module; BatchNorm is Identity since
# conv_layer never enables it, conv bias is False)
# ---------------------------------------------------------------------------
def resnet_forward(input_x_nchw, params, *, tile_rows=None):
    x = jnp.transpose(input_x_nchw, (0, 2, 3, 1))          # NCHW -> NHWC

    l1 = conv3x3(x, params["layer1"], tile_rows=tile_rows)  # layer1 (no act)

    h = l1                                                   # layer2: blocks
    for w_a, w_b in params["blocks"]:
        h = resnet_block(h, w_a, w_b, scale=0.1, tile_rows=tile_rows)

    # layer3 conv, then temp = l3_out + l1_out (fused residual, in-place l1)
    temp = conv3x3(h, params["layer3"], residual=l1, scale=1.0,
                   tile_rows=tile_rows)

    out = conv3x3(temp, params["layer4"], tile_rows=tile_rows)  # layer4

    return jnp.transpose(out, (0, 3, 1, 2))                 # NHWC -> NCHW


# ---------------------------------------------------------------------------
# Deterministic synthetic parameter init (shapes from ResNet.__init__)
# ---------------------------------------------------------------------------
def init_params(key, in_ch, chans, num_of_resblocks):
    n_keys = 3 + 2 * num_of_resblocks
    keys = jax.random.split(key, n_keys)

    def make_w(k, cin, cout):
        s = 1.0 / (9.0 * cin) ** 0.5
        return jax.random.normal(k, (3, 3, cin, cout), jnp.float32) * s

    return {
        "layer1": make_w(keys[0], in_ch, chans),
        "blocks": [
            (make_w(keys[1 + 2 * i], chans, chans),
             make_w(keys[2 + 2 * i], chans, chans))
            for i in range(num_of_resblocks)
        ],
        "layer3": make_w(keys[1 + 2 * num_of_resblocks], chans, chans),
        "layer4": make_w(keys[2 + 2 * num_of_resblocks], chans, in_ch),
    }


# ---------------------------------------------------------------------------
# Pure-JAX f32 reference (lax.conv) for a correctness check
# ---------------------------------------------------------------------------
def _conv_ref(x, w, relu=False, residual=None, scale=1.0):
    y = lax.conv_general_dilated(
        x, w, window_strides=(1, 1), padding="SAME",
        dimension_numbers=("NHWC", "HWIO", "NHWC"))
    if relu:
        y = jnp.maximum(y, 0.0)
    if residual is not None:
        y = residual + y * scale
    return y


def resnet_forward_ref(input_x_nchw, params):
    x = jnp.transpose(input_x_nchw, (0, 2, 3, 1))
    l1 = _conv_ref(x, params["layer1"])
    h = l1
    for w_a, w_b in params["blocks"]:
        t = _conv_ref(h, w_a, relu=True)
        h = _conv_ref(t, w_b, residual=h, scale=0.1)
    temp = _conv_ref(h, params["layer3"], residual=l1, scale=1.0)
    out = _conv_ref(temp, params["layer4"])
    return jnp.transpose(out, (0, 3, 1, 2))


if __name__ == "__main__":
    # Small shapes consistent with ResNet(in_ch=2, chans=..., num_of_resblocks=...)
    N, IN_CH, CHANS, H, W, NUM_RESBLOCKS = 2, 2, 32, 16, 16, 2
    TILE_ROWS = 8   # 2 row tiles per image -> exercises the halo/boundary path

    key = jax.random.PRNGKey(0)
    k_x, k_p = jax.random.split(key)
    input_x = jax.random.normal(k_x, (N, IN_CH, H, W), jnp.float32)  # NCHW
    params = init_params(k_p, IN_CH, CHANS, NUM_RESBLOCKS)

    fwd = jax.jit(functools.partial(resnet_forward, tile_rows=TILE_ROWS))
    out = jax.block_until_ready(fwd(input_x, params))

    ref = jax.block_until_ready(resnet_forward_ref(input_x, params))
    assert out.shape == (N, IN_CH, H, W), out.shape
    # bf16 MXU inputs (f32 accumulate) -> loosened tolerance vs f32 reference.
    assert jnp.allclose(out, ref, atol=5e-2, rtol=5e-2), "mismatch vs reference"

    print("KERNEL_OK")
</pallas_src>

<mosaic_0001>
module attributes {stable_mosaic.version = 11 : i64} {
  func.func @kernel(%arg0: i32, %arg1: i32, %arg2: memref<1x16x16x2xf32, #tpu.memory_space<vmem>>, %arg3: memref<9x2x32xbf16, #tpu.memory_space<vmem>>, %arg4: memref<1x8x16x32xf32, #tpu.memory_space<vmem>>, %arg5: memref<20x18x2xf32, #tpu.memory_space<vmem>>) attributes {dimension_semantics = [#tpu.dimension_semantics<parallel>, #tpu.dimension_semantics<arbitrary>], iteration_bounds = array<i64: 2, 2>, scalar_prefetch = 0 : i64, scratch_operands = 1 : i64, tpu.core_type = #tpu.core_type<tc>, window_params = [{transform_indices = @transform_0, window_bounds = array<i64: 1, 16, 16, 2>}, {pipeline_mode = #tpu.pipeline_mode<synchronous>, transform_indices = @transform_1, window_bounds = array<i64: 9, 2, 32>}, {transform_indices = @transform_2, window_bounds = array<i64: 1, 8, 16, 32>}]} {
    %c0_i32 = arith.constant 0 : i32
    %0 = arith.cmpi eq, %arg1, %c0_i32 : i32
    %1 = arith.extui %0 : i1 to i32
    %c0_i32_0 = arith.constant 0 : i32
    %2 = arith.cmpi ne, %1, %c0_i32_0 : i32
    scf.if %2 {
      %cst_66 = arith.constant 0.000000e+00 : f32
      %99 = vector.broadcast %cst_66 : f32 to vector<20x18x2xf32>
      %c0_67 = arith.constant 0 : index
      %c0_68 = arith.constant 0 : index
      %c0_69 = arith.constant 0 : index
      %100 = vector.load %arg5[%c0_67, %c0_68, %c0_69] : memref<20x18x2xf32, #tpu.memory_space<vmem>>, vector<20x18x2xf32>
      tpu.vector_store %arg5[%c0_67, %c0_68, %c0_69], %99 {strides = array<i32>} : memref<20x18x2xf32, #tpu.memory_space<vmem>>, vector<20x18x2xf32>,
      %c0_70 = arith.constant 0 : index
      %c0_71 = arith.constant 0 : index
      %c0_72 = arith.constant 0 : index
      %c0_73 = arith.constant 0 : index
      %101 = vector.load %arg2[%c0_70, %c0_71, %c0_72, %c0_73] : memref<1x16x16x2xf32, #tpu.memory_space<vmem>>, vector<1x16x16x2xf32>
      %102 = vector.shape_cast %101 : vector<1x16x16x2xf32> to vector<16x16x2xf32>
      %c2_74 = arith.constant 2 : index
      %c1_75 = arith.constant 1 : index
      %c0_76 = arith.constant 0 : index
      %103 = vector.load %arg5[%c2_74, %c1_75, %c0_76] : memref<20x18x2xf32, #tpu.memory_space<vmem>>, vector<16x16x2xf32>
      tpu.vector_store %arg5[%c2_74, %c1_75, %c0_76], %102 {strides = array<i32>} : memref<20x18x2xf32, #tpu.memory_space<vmem>>, vector<16x16x2xf32>,
    } else {
    }
    %c8_i32 = arith.constant 8 : i32
    %3 = arith.muli %arg1, %c8_i32 : i32
    %cst = arith.constant 0.000000e+00 : f32
    %4 = vector.broadcast %cst : f32 to vector<128x32xf32>
    %c1_i32 = arith.constant 1 : i32
    %5 = arith.addi %3, %c1_i32 : i32
    %c0_i32_1 = arith.constant 0 : i32
    %6 = arith.addi %5, %c0_i32_1 : i32
    %7 = arith.index_cast %6 : i32 to index
    %c0 = arith.constant 0 : index
    %c0_2 = arith.constant 0 : index
    %8 = vector.load %arg5[%7, %c0, %c0_2] : memref<20x18x2xf32, #tpu.memory_space<vmem>>, vector<8x16x2xf32>
    %9 = vector.shape_cast %8 : vector<8x16x2xf32> to vector<128x2xf32>
    %10 = arith.truncf %9 : vector<128x2xf32> to vector<128x2xbf16>
    %c0_3 = arith.constant 0 : index
    %c0_4 = arith.constant 0 : index
    %c0_5 = arith.constant 0 : index
    %11 = vector.load %arg3[%c0_3, %c0_4, %c0_5] : memref<9x2x32xbf16, #tpu.memory_space<vmem>>, vector<1x2x32xbf16>
    %12 = vector.shape_cast %11 : vector<1x2x32xbf16> to vector<2x32xbf16>
    %cst_6 = arith.constant dense<0.000000e+00> : vector<128x32xf32>
    %13 = tpu.matmul %10, %12, %cst_6 {dimension_numbers = #tpu.dot_dimension_numbers<[1], [0], [0], [1], [0, 0, 1, 1], [], []>} : vector<128x2xbf16>, vector<2x32xbf16>, vector<128x32xf32> -> vector<128x32xf32>
    %14 = arith.addf %4, %13 : vector<128x32xf32>
    %c1_i32_7 = arith.constant 1 : i32
    %15 = arith.addi %3, %c1_i32_7 : i32
    %c0_i32_8 = arith.constant 0 : i32
    %16 = arith.addi %15, %c0_i32_8 : i32
    %17 = arith.index_cast %16 : i32 to index
    %c1 = arith.constant 1 : index
    %c0_9 = arith.constant 0 : index
    %18 = vector.load %arg5[%17, %c1, %c0_9] : memref<20x18x2xf32, #tpu.memory_space<vmem>>, vector<8x16x2xf32>
    %19 = vector.shape_cast %18 : vector<8x16x2xf32> to vector<128x2xf32>
    %20 = arith.truncf %19 : vector<128x2xf32> to vector<128x2xbf16>
    %c1_10 = arith.constant 1 : index
    %c0_11 = arith.constant 0 : index
    %c0_12 = arith.constant 0 : index
    %21 = vector.load %arg3[%c1_10, %c0_11, %c0_12] : memref<9x2x32xbf16, #tpu.memory_space<vmem>>, vector<1x2x32xbf16>
    %22 = vector.shape_cast %21 : vector<1x2x32xbf16> to vector<2x32xbf16>
    %cst_13 = arith.constant dense<0.000000e+00> : vector<128x32xf32>
    %23 = tpu.matmul %20, %22, %cst_13 {dimension_numbers = #tpu.dot_dimension_numbers<[1], [0], [0], [1], [0, 0, 1, 1], [], []>} : vector<128x2xbf16>, vector<2x32xbf16>, vector<128x32xf32> -> vector<128x32xf32>
    %24 = arith.addf %14, %23 : vector<128x32xf32>
    %c1_i32_14 = arith.constant 1 : i32
    %25 = arith.addi %3, %c1_i32_14 : i32
    %c0_i32_15 = arith.constant 0 : i32
    %26 = arith.addi %25, %c0_i32_15 : i32
    %27 = arith.index_cast %26 : i32 to index
    %c2 = arith.constant 2 : index
    %c0_16 = arith.constant 0 : index
    %28 = vector.load %arg5[%27, %c2, %c0_16] : memref<20x18x2xf32, #tpu.memory_space<vmem>>, vector<8x16x2xf32>
    %29 = vector.shape_cast %28 : vector<8x16x2xf32> to vector<128x2xf32>
    %30 = arith.truncf %29 : vector<128x2xf32> to vector<128x2xbf16>
    %c2_17 = arith.constant 2 : index
    %c0_18 = arith.constant 0 : index
    %c0_19 = arith.constant 0 : index
    %31 = vector.load %arg3[%c2_17, %c0_18, %c0_19] : memref<9x2x32xbf16, #tpu.memory_space<vmem>>, vector<1x2x32xbf16>
    %32 = vector.shape_cast %31 : vector<1x2x32xbf16> to vector<2x32xbf16>
    %cst_20 = arith.constant dense<0.000000e+00> : vector<128x32xf32>
    %33 = tpu.matmul %30, %32, %cst_20 {dimension_numbers = #tpu.dot_dimension_numbers<[1], [0], [0], [1], [0, 0, 1, 1], [], []>} : vector<128x2xbf16>, vector<2x32xbf16>, vector<128x32xf32> -> vector<128x32xf32>
    %34 = arith.addf %24, %33 : vector<128x32xf32>
    %c1_i32_21 = arith.constant 1 : i32
    %35 = arith.addi %3, %c1_i32_21 : i32
    %c1_i32_22 = arith.constant 1 : i32
    %36 = arith.addi %35, %c1_i32_22 : i32
    %37 = arith.index_cast %36 : i32 to index
    %c0_23 = arith.constant 0 : index
    %c0_24 = arith.constant 0 : index
    %38 = vector.load %arg5[%37, %c0_23, %c0_24] : memref<20x18x2xf32, #tpu.memory_space<vmem>>, vector<8x16x2xf32>
    %39 = vector.shape_cast %38 : vector<8x16x2xf32> to vector<128x2xf32>
    %40 = arith.truncf %39 : vector<128x2xf32> to vector<128x2xbf16>
    %c3 = arith.constant 3 : index
    %c0_25 = arith.constant 0 : index
    %c0_26 = arith.constant 0 : index
    %41 = vector.load %arg3[%c3, %c0_25, %c0_26] : memref<9x2x32xbf16, #tpu.memory_space<vmem>>, vector<1x2x32xbf16>
    %42 = vector.shape_cast %41 : vector<1x2x32xbf16> to vector<2x32xbf16>
    %cst_27 = arith.constant dense<0.000000e+00> : vector<128x32xf32>
    %43 = tpu.matmul %40, %42, %cst_27 {dimension_numbers = #tpu.dot_dimension_numbers<[1], [0], [0], [1], [0, 0, 1, 1], [], []>} : vector<128x2xbf16>, vector<2x32xbf16>, vector<128x32xf32> -> vector<128x32xf32>
    %44 = arith.addf %34, %43 : vector<128x32xf32>
    %c1_i32_28 = arith.constant 1 : i32
    %45 = arith.addi %3, %c1_i32_28 : i32
    %c1_i32_29 = arith.constant 1 : i32
    %46 = arith.addi %45, %c1_i32_29 : i32
    %47 = arith.index_cast %46 : i32 to index
    %c1_30 = arith.constant 1 : index
    %c0_31 = arith.constant 0 : index
    %48 = vector.load %arg5[%47, %c1_30, %c0_31] : memref<20x18x2xf32, #tpu.memory_space<vmem>>, vector<8x16x2xf32>
    %49 = vector.shape_cast %48 : vector<8x16x2xf32> to vector<128x2xf32>
    %50 = arith.truncf %49 : vector<128x2xf32> to vector<128x2xbf16>
    %c4 = arith.constant 4 : index
    %c0_32 = arith.constant 0 : index
    %c0_33 = arith.constant 0 : index
    %51 = vector.load %arg3[%c4, %c0_32, %c0_33] : memref<9x2x32xbf16, #tpu.memory_space<vmem>>, vector<1x2x32xbf16>
    %52 = vector.shape_cast %51 : vector<1x2x32xbf16> to vector<2x32xbf16>
    %cst_34 = arith.constant dense<0.000000e+00> : vector<128x32xf32>
    %53 = tpu.matmul %50, %52, %cst_34 {dimension_numbers = #tpu.dot_dimension_numbers<[1], [0], [0], [1], [0, 0, 1, 1], [], []>} : vector<128x2xbf16>, vector<2x32xbf16>, vector<128x32xf32> -> vector<128x32xf32>
    %54 = arith.addf %44, %53 : vector<128x32xf32>
    %c1_i32_35 = arith.constant 1 : i32
    %55 = arith.addi %3, %c1_i32_35 : i32
    %c1_i32_36 = arith.constant 1 : i32
    %56 = arith.addi %55, %c1_i32_36 : i32
    %57 = arith.index_cast %56 : i32 to index
    %c2_37 = arith.constant 2 : index
    %c0_38 = arith.constant 0 : index
    %58 = vector.load %arg5[%57, %c2_37, %c0_38] : memref<20x18x2xf32, #tpu.memory_space<vmem>>, vector<8x16x2xf32>
    %59 = vector.shape_cast %58 : vector<8x16x2xf32> to vector<128x2xf32>
    %60 = arith.truncf %59 : vector<128x2xf32> to vector<128x2xbf16>
    %c5 = arith.constant 5 : index
    %c0_39 = arith.constant 0 : index
    %c0_40 = arith.constant 0 : index
    %61 = vector.load %arg3[%c5, %c0_39, %c0_40] : memref<9x2x32xbf16, #tpu.memory_space<vmem>>, vector<1x2x32xbf16>
    %62 = vector.shape_cast %61 : vector<1x2x32xbf16> to vector<2x32xbf16>
    %cst_41 = arith.constant dense<0.000000e+00> : vector<128x32xf32>
    %63 = tpu.matmul %60, %62, %cst_41 {dimension_numbers = #tpu.dot_dimension_numbers<[1], [0], [0], [1], [0, 0, 1, 1], [], []>} : vector<128x2xbf16>, vector<2x32xbf16>, vector<128x32xf32> -> vector<128x32xf32>
    %64 = arith.addf %54, %63 : vector<128x32xf32>
    %c1_i32_42 = arith.constant 1 : i32
    %65 = arith.addi %3, %c1_i32_42 : i32
    %c2_i32 = arith.constant 2 : i32
    %66 = arith.addi %65, %c2_i32 : i32
    %67 = arith.index_cast %66 : i32 to index
    %c0_43 = arith.constant 0 : index
    %c0_44 = arith.constant 0 : index
    %68 = vector.load %arg5[%67, %c0_43, %c0_44] : memref<20x18x2xf32, #tpu.memory_space<vmem>>, vector<8x16x2xf32>
    %69 = vector.shape_cast %68 : vector<8x16x2xf32> to vector<128x2xf32>
    %70 = arith.truncf %69 : vector<128x2xf32> to vector<128x2xbf16>
    %c6 = arith.constant 6 : index
    %c0_45 = arith.constant 0 : index
    %c0_46 = arith.constant 0 : index
    %71 = vector.load %arg3[%c6, %c0_45, %c0_46] : memref<9x2x32xbf16, #tpu.memory_space<vmem>>, vector<1x2x32xbf16>
    %72 = vector.shape_cast %71 : vector<1x2x32xbf16> to vector<2x32xbf16>
    %cst_47 = arith.constant dense<0.000000e+00> : vector<128x32xf32>
    %73 = tpu.matmul %70, %72, %cst_47 {dimension_numbers = #tpu.dot_dimension_numbers<[1], [0], [0], [1], [0, 0, 1, 1], [], []>} : vector<128x2xbf16>, vector<2x32xbf16>, vector<128x32xf32> -> vector<128x32xf32>
    %74 = arith.addf %64, %73 : vector<128x32xf32>
    %c1_i32_48 = arith.constant 1 : i32
    %75 = arith.addi %3, %c1_i32_48 : i32
    %c2_i32_49 = arith.constant 2 : i32
    %76 = arith.addi %75, %c2_i32_49 : i32
    %77 = arith.index_cast %76 : i32 to index
    %c1_50 = arith.constant 1 : index
    %c0_51 = arith.constant 0 : index
    %78 = vector.load %arg5[%77, %c1_50, %c0_51] : memref<20x18x2xf32, #tpu.memory_space<vmem>>, vector<8x16x2xf32>
    %79 = vector.shape_cast %78 : vector<8x16x2xf32> to vector<128x2xf32>
    %80 = arith.truncf %79 : vector<128x2xf32> to vector<128x2xbf16>
    %c7 = arith.constant 7 : index
    %c0_52 = arith.constant 0 : index
    %c0_53 = arith.constant 0 : index
    %81 = vector.load %arg3[%c7, %c0_52, %c0_53] : memref<9x2x32xbf16, #tpu.memory_space<vmem>>, vector<1x2x32xbf16>
    %82 = vector.shape_cast %81 : vector<1x2x32xbf16> to vector<2x32xbf16>
    %cst_54 = arith.constant dense<0.000000e+00> : vector<128x32xf32>
    %83 = tpu.matmul %80, %82, %cst_54 {dimension_numbers = #tpu.dot_dimension_numbers<[1], [0], [0], [1], [0, 0, 1, 1], [], []>} : vector<128x2xbf16>, vector<2x32xbf16>, vector<128x32xf32> -> vector<128x32xf32>
    %84 = arith.addf %74, %83 : vector<128x32xf32>
    %c1_i32_55 = arith.constant 1 : i32
    %85 = arith.addi %3, %c1_i32_55 : i32
    %c2_i32_56 = arith.constant 2 : i32
    %86 = arith.addi %85, %c2_i32_56 : i32
    %87 = arith.index_cast %86 : i32 to index
    %c2_57 = arith.constant 2 : index
    %c0_58 = arith.constant 0 : index
    %88 = vector.load %arg5[%87, %c2_57, %c0_58] : memref<20x18x2xf32, #tpu.memory_space<vmem>>, vector<8x16x2xf32>
    %89 = vector.shape_cast %88 : vector<8x16x2xf32> to vector<128x2xf32>
    %90 = arith.truncf %89 : vector<128x2xf32> to vector<128x2xbf16>
    %c8 = arith.constant 8 : index
    %c0_59 = arith.constant 0 : index
    %c0_60 = arith.constant 0 : index
    %91 = vector.load %arg3[%c8, %c0_59, %c0_60] : memref<9x2x32xbf16, #tpu.memory_space<vmem>>, vector<1x2x32xbf16>
    %92 = vector.shape_cast %91 : vector<1x2x32xbf16> to vector<2x32xbf16>
    %cst_61 = arith.constant dense<0.000000e+00> : vector<128x32xf32>
    %93 = tpu.matmul %90, %92, %cst_61 {dimension_numbers = #tpu.dot_dimension_numbers<[1], [0], [0], [1], [0, 0, 1, 1], [], []>} : vector<128x2xbf16>, vector<2x32xbf16>, vector<128x32xf32> -> vector<128x32xf32>
    %94 = arith.addf %84, %93 : vector<128x32xf32>
    %95 = vector.shape_cast %94 : vector<128x32xf32> to vector<8x16x32xf32>
    %c0_62 = arith.constant 0 : index
    %c0_63 = arith.constant 0 : index
    %c0_64 = arith.constant 0 : index
    %c0_65 = arith.constant 0 : index
    %96 = vector.load %arg4[%c0_62, %c0_63, %c0_64, %c0_65] : memref<1x8x16x32xf32, #tpu.memory_space<vmem>>, vector<1x8x16x32xf32>
    %97 = vector.shape_cast %96 : vector<1x8x16x32xf32> to vector<8x16x32xf32>
    %98 = vector.shape_cast %95 : vector<8x16x32xf32> to vector<1x8x16x32xf32>
    tpu.vector_store %arg4[%c0_62, %c0_63, %c0_64, %c0_65], %98 {strides = array<i32>} : memref<1x8x16x32xf32, #tpu.memory_space<vmem>>, vector<1x8x16x32xf32>,
    return
  }
  func.func @transform_0(%arg0: i32, %arg1: i32) -> (i32, i32, i32, i32) {
    %c0_i32 = arith.constant 0 : i32
    %c0_i32_0 = arith.constant 0 : i32
    %c0_i32_1 = arith.constant 0 : i32
    %c0_i32_2 = arith.constant 0 : i32
    return %arg0, %c0_i32, %c0_i32_0, %c0_i32_1 : i32, i32, i32, i32
  }
  func.func @transform_1(%arg0: i32, %arg1: i32) -> (i32, i32, i32) {
    %c0_i32 = arith.constant 0 : i32
    %c0_i32_0 = arith.constant 0 : i32
    %c0_i32_1 = arith.constant 0 : i32
    %c0_i32_2 = arith.constant 0 : i32
    return %c0_i32, %c0_i32_0, %c0_i32_1 : i32, i32, i32
  }
  func.func @transform_2(%arg0: i32, %arg1: i32) -> (i32, i32, i32, i32) {
    %c0_i32 = arith.constant 0 : i32
    %c0_i32_0 = arith.constant 0 : i32
    %c0_i32_1 = arith.constant 0 : i32
    return %arg0, %arg1, %c0_i32, %c0_i32_0 : i32, i32, i32, i32
  }
}

module attributes {stable_mosaic.version = 11 : i64} {
  func.func @kernel(%arg0: i32, %arg1: i32, %arg2: memref<1x16x16x32xf32, #tpu.memory_space<vmem>>, %arg3: memref<9x32x32xbf16, #tpu.memory_space<vmem>>, %arg4: memref<9x32x32xbf16, #tpu.memory_space<vmem>>, %arg5: memref<1x8x16x32xf32, #tpu.memory_space<vmem>>, %arg6: memref<20x18x32xf32, #tpu.memory_space<vmem>>, %arg7: memref<10x18x32xf32, #tpu.memory_space<vmem>>) attributes {dimension_semantics = [#tpu.dimension_semantics<parallel>, #tpu.dimension_semantics<arbitrary>], iteration_bounds = array<i64: 2, 2>, scalar_prefetch = 0 : i64, scratch_operands = 2 : i64, tpu.core_type = #tpu.core_type<tc>, window_params = [{transform_indices = @transform_0, window_bounds = array<i64: 1, 16, 16, 32>}, {pipeline_mode = #tpu.pipeline_mode<synchronous>, transform_indices = @transform_1, window_bounds = array<i64: 9, 32, 32>}, {pipeline_mode = #tpu.pipeline_mode<synchronous>, transform_indices = @transform_2, window_bounds = array<i64: 9, 32, 32>}, {transform_indices = @transform_3, window_bounds = array<i64: 1, 8, 16, 32>}]} {
    %c0_i32 = arith.constant 0 : i32
    %0 = arith.cmpi eq, %arg1, %c0_i32 : i32
    %1 = arith.extui %0 : i1 to i32
    %c0_i32_0 = arith.constant 0 : i32
    %2 = arith.cmpi ne, %1, %c0_i32_0 : i32
    scf.if %2 {
      %cst_133 = arith.constant 0.000000e+00 : f32
      %171 = vector.broadcast %cst_133 : f32 to vector<20x18x32xf32>
      %c0_134 = arith.constant 0 : index
      %c0_135 = arith.constant 0 : index
      %c0_136 = arith.constant 0 : index
      %172 = vector.load %arg6[%c0_134, %c0_135, %c0_136] : memref<20x18x32xf32, #tpu.memory_space<vmem>>, vector<20x18x32xf32>
      tpu.vector_store %arg6[%c0_134, %c0_135, %c0_136], %171 {strides = array<i32>} : memref<20x18x32xf32, #tpu.memory_space<vmem>>, vector<20x18x32xf32>,
      %c0_137 = arith.constant 0 : index
      %c0_138 = arith.constant 0 : index
      %c0_139 = arith.constant 0 : index
      %c0_140 = arith.constant 0 : index
      %173 = vector.load %arg2[%c0_137, %c0_138, %c0_139, %c0_140] : memref<1x16x16x32xf32, #tpu.memory_space<vmem>>, vector<1x16x16x32xf32>
      %174 = vector.shape_cast %173 : vector<1x16x16x32xf32> to vector<16x16x32xf32>
      %c2_141 = arith.constant 2 : index
      %c1_142 = arith.constant 1 : index
      %c0_143 = arith.constant 0 : index
      %175 = vector.load %arg6[%c2_141, %c1_142, %c0_143] : memref<20x18x32xf32, #tpu.memory_space<vmem>>, vector<16x16x32xf32>
      tpu.vector_store %arg6[%c2_141, %c1_142, %c0_143], %174 {strides = array<i32>} : memref<20x18x32xf32, #tpu.memory_space<vmem>>, vector<16x16x32xf32>,
      %cst_144 = arith.constant 0.000000e+00 : f32
      %176 = vector.broadcast %cst_144 : f32 to vector<10x18x32xf32>
      %c0_145 = arith.constant 0 : index
      %c0_146 = arith.constant 0 : index
      %c0_147 = arith.constant 0 : index
      %177 = vector.load %arg7[%c0_145, %c0_146, %c0_147] : memref<10x18x32xf32, #tpu.memory_space<vmem>>, vector<10x18x32xf32>
      tpu.vector_store %arg7[%c0_145, %c0_146, %c0_147], %176 {strides = array<i32>} : memref<10x18x32xf32, #tpu.memory_space<vmem>>, vector<10x18x32xf32>,
    } else {
    }
    %c8_i32 = arith.constant 8 : i32
    %3 = arith.muli %arg1, %c8_i32 : i32
    %cst = arith.constant 0.000000e+00 : f32
    %4 = vector.broadcast %cst : f32 to vector<160x32xf32>
    %c0_i32_1 = arith.constant 0 : i32
    %5 = arith.addi %3, %c0_i32_1 : i32
    %6 = arith.index_cast %5 : i32 to index
    %c0 = arith.constant 0 : index
    %c0_2 = arith.constant 0 : index
    %7 = vector.load %arg6[%6, %c0, %c0_2] : memref<20x18x32xf32, #tpu.memory_space<vmem>>, vector<10x16x32xf32>
    %8 = vector.shape_cast %7 : vector<10x16x32xf32> to vector<160x32xf32>
    %9 = arith.truncf %8 : vector<160x32xf32> to vector<160x32xbf16>
    %c0_3 = arith.constant 0 : index
    %c0_4 = arith.constant 0 : index
    %c0_5 = arith.constant 0 : index
    %10 = vector.load %arg3[%c0_3, %c0_4, %c0_5] : memref<9x32x32xbf16, #tpu.memory_space<vmem>>, vector<1x32x32xbf16>
    %11 = vector.shape_cast %10 : vector<1x32x32xbf16> to vector<32x32xbf16>
    %cst_6 = arith.constant dense<0.000000e+00> : vector<160x32xf32>
    %12 = tpu.matmul %9, %11, %cst_6 {dimension_numbers = #tpu.dot_dimension_numbers<[1], [0], [0], [1], [0, 0, 1, 1], [], []>} : vector<160x32xbf16>, vector<32x32xbf16>, vector<160x32xf32> -> vector<160x32xf32>
    %13 = arith.addf %4, %12 : vector<160x32xf32>
    %c0_i32_7 = arith.constant 0 : i32
    %14 = arith.addi %3, %c0_i32_7 : i32
    %15 = arith.index_cast %14 : i32 to index
    %c1 = arith.constant 1 : index
    %c0_8 = arith.constant 0 : index
    %16 = vector.load %arg6[%15, %c1, %c0_8] : memref<20x18x32xf32, #tpu.memory_space<vmem>>, vector<10x16x32xf32>
    %17 = vector.shape_cast %16 : vector<10x16x32xf32> to vector<160x32xf32>
    %18 = arith.truncf %17 : vector<160x32xf32> to vector<160x32xbf16>
    %c1_9 = arith.constant 1 : index
    %c0_10 = arith.constant 0 : index
    %c0_11 = arith.constant 0 : index
    %19 = vector.load %arg3[%c1_9, %c0_10, %c0_11] : memref<9x32x32xbf16, #tpu.memory_space<vmem>>, vector<1x32x32xbf16>
    %20 = vector.shape_cast %19 : vector<1x32x32xbf16> to vector<32x32xbf16>
    %cst_12 = arith.constant dense<0.000000e+00> : vector<160x32xf32>
    %21 = tpu.matmul %18, %20, %cst_12 {dimension_numbers = #tpu.dot_dimension_numbers<[1], [0], [0], [1], [0, 0, 1, 1], [], []>} : vector<160x32xbf16>, vector<32x32xbf16>, vector<160x32xf32> -> vector<160x32xf32>
    %22 = arith.addf %13, %21 : vector<160x32xf32>
    %c0_i32_13 = arith.constant 0 : i32
    %23 = arith.addi %3, %c0_i32_13 : i32
    %24 = arith.index_cast %23 : i32 to index
    %c2 = arith.constant 2 : index
    %c0_14 = arith.constant 0 : index
    %25 = vector.load %arg6[%24, %c2, %c0_14] : memref<20x18x32xf32, #tpu.memory_space<vmem>>, vector<10x16x32xf32>
    %26 = vector.shape_cast %25 : vector<10x16x32xf32> to vector<160x32xf32>
    %27 = arith.truncf %26 : vector<160x32xf32> to vector<160x32xbf16>
    %c2_15 = arith.constant 2 : index
    %c0_16 = arith.constant 0 : index
    %c0_17 = arith.constant 0 : index
    %28 = vector.load %arg3[%c2_15, %c0_16, %c0_17] : memref<9x32x32xbf16, #tpu.memory_space<vmem>>, vector<1x32x32xbf16>
    %29 = vector.shape_cast %28 : vector<1x32x32xbf16> to vector<32x32xbf16>
    %cst_18 = arith.constant dense<0.000000e+00> : vector<160x32xf32>
    %30 = tpu.matmul %27, %29, %cst_18 {dimension_numbers = #tpu.dot_dimension_numbers<[1], [0], [0], [1], [0, 0, 1, 1], [], []>} : vector<160x32xbf16>, vector<32x32xbf16>, vector<160x32xf32> -> vector<160x32xf32>
    %31 = arith.addf %22, %30 : vector<160x32xf32>
    %c1_i32 = arith.constant 1 : i32
    %32 = arith.addi %3, %c1_i32 : i32
    %33 = arith.index_cast %32 : i32 to index
    %c0_19 = arith.constant 0 : index
    %c0_20 = arith.constant 0 : index
    %34 = vector.load %arg6[%33, %c0_19, %c0_20] : memref<20x18x32xf32, #tpu.memory_space<vmem>>, vector<10x16x32xf32>
    %35 = vector.shape_cast %34 : vector<10x16x32xf32> to vector<160x32xf32>
    %36 = arith.truncf %35 : vector<160x32xf32> to vector<160x32xbf16>
    %c3 = arith.constant 3 : index
    %c0_21 = arith.constant 0 : index
    %c0_22 = arith.constant 0 : index
    %37 = vector.load %arg3[%c3, %c0_21, %c0_22] : memref<9x32x32xbf16, #tpu.memory_space<vmem>>, vector<1x32x32xbf16>
    %38 = vector.shape_cast %37 : vector<1x32x32xbf16> to vector<32x32xbf16>
    %cst_23 = arith.constant dense<0.000000e+00> : vector<160x32xf32>
    %39 = tpu.matmul %36, %38, %cst_23 {dimension_numbers = #tpu.dot_dimension_numbers<[1], [0], [0], [1], [0, 0, 1, 1], [], []>} : vector<160x32xbf16>, vector<32x32xbf16>, vector<160x32xf32> -> vector<160x32xf32>
    %40 = arith.addf %31, %39 : vector<160x32xf32>
    %c1_i32_24 = arith.constant 1 : i32
    %41 = arith.addi %3, %c1_i32_24 : i32
    %42 = arith.index_cast %41 : i32 to index
    %c1_25 = arith.constant 1 : index
    %c0_26 = arith.constant 0 : index
    %43 = vector.load %arg6[%42, %c1_25, %c0_26] : memref<20x18x32xf32, #tpu.memory_space<vmem>>, vector<10x16x32xf32>
    %44 = vector.shape_cast %43 : vector<10x16x32xf32> to vector<160x32xf32>
    %45 = arith.truncf %44 : vector<160x32xf32> to vector<160x32xbf16>
    %c4 = arith.constant 4 : index
    %c0_27 = arith.constant 0 : index
    %c0_28 = arith.constant 0 : index
    %46 = vector.load %arg3[%c4, %c0_27, %c0_28] : memref<9x32x32xbf16, #tpu.memory_space<vmem>>, vector<1x32x32xbf16>
    %47 = vector.shape_cast %46 : vector<1x32x32xbf16> to vector<32x32xbf16>
    %cst_29 = arith.constant dense<0.000000e+00> : vector<160x32xf32>
    %48 = tpu.matmul %45, %47, %cst_29 {dimension_numbers = #tpu.dot_dimension_numbers<[1], [0], [0], [1], [0, 0, 1, 1], [], []>} : vector<160x32xbf16>, vector<32x32xbf16>, vector<160x32xf32> -> vector<160x32xf32>
    %49 = arith.addf %40, %48 : vector<160x32xf32>
    %c1_i32_30 = arith.constant 1 : i32
    %50 = arith.addi %3, %c1_i32_30 : i32
    %51 = arith.index_cast %50 : i32 to index
    %c2_31 = arith.constant 2 : index
    %c0_32 = arith.constant 0 : index
    %52 = vector.load %arg6[%51, %c2_31, %c0_32] : memref<20x18x32xf32, #tpu.memory_space<vmem>>, vector<10x16x32xf32>
    %53 = vector.shape_cast %52 : vector<10x16x32xf32> to vector<160x32xf32>
    %54 = arith.truncf %53 : vector<160x32xf32> to vector<160x32xbf16>
    %c5 = arith.constant 5 : index
    %c0_33 = arith.constant 0 : index
    %c0_34 = arith.constant 0 : index
    %55 = vector.load %arg3[%c5, %c0_33, %c0_34] : memref<9x32x32xbf16, #tpu.memory_space<vmem>>, vector<1x32x32xbf16>
    %56 = vector.shape_cast %55 : vector<1x32x32xbf16> to vector<32x32xbf16>
    %cst_35 = arith.constant dense<0.000000e+00> : vector<160x32xf32>
    %57 = tpu.matmul %54, %56, %cst_35 {dimension_numbers = #tpu.dot_dimension_numbers<[1], [0], [0], [1], [0, 0, 1, 1], [], []>} : vector<160x32xbf16>, vector<32x32xbf16>, vector<160x32xf32> -> vector<160x32xf32>
    %58 = arith.addf %49, %57 : vector<160x32xf32>
    %c2_i32 = arith.constant 2 : i32
    %59 = arith.addi %3, %c2_i32 : i32
    %60 = arith.index_cast %59 : i32 to index
    %c0_36 = arith.constant 0 : index
    %c0_37 = arith.constant 0 : index
    %61 = vector.load %arg6[%60, %c0_36, %c0_37] : memref<20x18x32xf32, #tpu.memory_space<vmem>>, vector<10x16x32xf32>
    %62 = vector.shape_cast %61 : vector<10x16x32xf32> to vector<160x32xf32>
    %63 = arith.truncf %62 : vector<160x32xf32> to vector<160x32xbf16>
    %c6 = arith.constant 6 : index
    %c0_38 = arith.constant 0 : index
    %c0_39 = arith.constant 0 : index
    %64 = vector.load %arg3[%c6, %c0_38, %c0_39] : memref<9x32x32xbf16, #tpu.memory_space<vmem>>, vector<1x32x32xbf16>
    %65 = vector.shape_cast %64 : vector<1x32x32xbf16> to vector<32x32xbf16>
    %cst_40 = arith.constant dense<0.000000e+00> : vector<160x32xf32>
    %66 = tpu.matmul %63, %65, %cst_40 {dimension_numbers = #tpu.dot_dimension_numbers<[1], [0], [0], [1], [0, 0, 1, 1], [], []>} : vector<160x32xbf16>, vector<32x32xbf16>, vector<160x32xf32> -> vector<160x32xf32>
    %67 = arith.addf %58, %66 : vector<160x32xf32>
    %c2_i32_41 = arith.constant 2 : i32
    %68 = arith.addi %3, %c2_i32_41 : i32
    %69 = arith.index_cast %68 : i32 to index
    %c1_42 = arith.constant 1 : index
    %c0_43 = arith.constant 0 : index
    %70 = vector.load %arg6[%69, %c1_42, %c0_43] : memref<20x18x32xf32, #tpu.memory_space<vmem>>, vector<10x16x32xf32>
    %71 = vector.shape_cast %70 : vector<10x16x32xf32> to vector<160x32xf32>
    %72 = arith.truncf %71 : vector<160x32xf32> to vector<160x32xbf16>
    %c7 = arith.constant 7 : index
    %c0_44 = arith.constant 0 : index
    %c0_45 = arith.constant 0 : index
    %73 = vector.load %arg3[%c7, %c0_44, %c0_45] : memref<9x32x32xbf16, #tpu.memory_space<vmem>>, vector<1x32x32xbf16>
    %74 = vector.shape_cast %73 : vector<1x32x32xbf16> to vector<32x32xbf16>
    %cst_46 = arith.constant dense<0.000000e+00> : vector<160x32xf32>
    %75 = tpu.matmul %72, %74, %cst_46 {dimension_numbers = #tpu.dot_dimension_numbers<[1], [0], [0], [1], [0, 0, 1, 1], [], []>} : vector<160x32xbf16>, vector<32x32xbf16>, vector<160x32xf32> -> vector<160x32xf32>
    %76 = arith.addf %67, %75 : vector<160x32xf32>
    %c2_i32_47 = arith.constant 2 : i32
    %77 = arith.addi %3, %c2_i32_47 : i32
    %78 = arith.index_cast %77 : i32 to index
    %c2_48 = arith.constant 2 : index
    %c0_49 = arith.constant 0 : index
    %79 = vector.load %arg6[%78, %c2_48, %c0_49] : memref<20x18x32xf32, #tpu.memory_space<vmem>>, vector<10x16x32xf32>
    %80 = vector.shape_cast %79 : vector<10x16x32xf32> to vector<160x32xf32>
    %81 = arith.truncf %80 : vector<160x32xf32> to vector<160x32xbf16>
    %c8 = arith.constant 8 : index
    %c0_50 = arith.constant 0 : index
    %c0_51 = arith.constant 0 : index
    %82 = vector.load %arg3[%c8, %c0_50, %c0_51] : memref<9x32x32xbf16, #tpu.memory_space<vmem>>, vector<1x32x32xbf16>
    %83 = vector.shape_cast %82 : vector<1x32x32xbf16> to vector<32x32xbf16>
    %cst_52 = arith.constant dense<0.000000e+00> : vector<160x32xf32>
    %84 = tpu.matmul %81, %83, %cst_52 {dimension_numbers = #tpu.dot_dimension_numbers<[1], [0], [0], [1], [0, 0, 1, 1], [], []>} : vector<160x32xbf16>, vector<32x32xbf16>, vector<160x32xf32> -> vector<160x32xf32>
    %85 = arith.addf %76, %84 : vector<160x32xf32>
    %cst_53 = arith.constant 0.000000e+00 : f32
    %86 = vector.broadcast %cst_53 : f32 to vector<160x32xf32>
    %87 = arith.maximumf %85, %86 : vector<160x32xf32>
    %88 = vector.shape_cast %87 : vector<160x32xf32> to vector<10x16x32xf32>
    %c0_54 = arith.constant 0 : index
    %c1_55 = arith.constant 1 : index
    %c0_56 = arith.constant 0 : index
    %89 = vector.load %arg7[%c0_54, %c1_55, %c0_56] : memref<10x18x32xf32, #tpu.memory_space<vmem>>, vector<10x16x32xf32>
    tpu.vector_store %arg7[%c0_54, %c1_55, %c0_56], %88 {strides = array<i32>} : memref<10x18x32xf32, #tpu.memory_space<vmem>>, vector<10x16x32xf32>,
    %c0_i32_57 = arith.constant 0 : i32
    %90 = arith.cmpi eq, %arg1, %c0_i32_57 : i32
    %91 = arith.extui %90 : i1 to i32
    %c0_i32_58 = arith.constant 0 : i32
    %92 = arith.cmpi ne, %91, %c0_i32_58 : i32
    scf.if %92 {
      %cst_133 = arith.constant 0.000000e+00 : f32
      %171 = vector.broadcast %cst_133 : f32 to vector<1x18x32xf32>
      %c0_134 = arith.constant 0 : index
      %c0_135 = arith.constant 0 : index
      %c0_136 = arith.constant 0 : index
      %172 = vector.load %arg7[%c0_134, %c0_135, %c0_136] : memref<10x18x32xf32, #tpu.memory_space<vmem>>, vector<1x18x32xf32>
      tpu.vector_store %arg7[%c0_134, %c0_135, %c0_136], %171 {strides = array<i32>} : memref<10x18x32xf32, #tpu.memory_space<vmem>>, vector<1x18x32xf32>,
    } else {
    }
    %c1_i32_59 = arith.constant 1 : i32
    %93 = arith.cmpi eq, %arg1, %c1_i32_59 : i32
    %94 = arith.extui %93 : i1 to i32
    %c0_i32_60 = arith.constant 0 : i32
    %95 = arith.cmpi ne, %94, %c0_i32_60 : i32
    scf.if %95 {
      %cst_133 = arith.constant 0.000000e+00 : f32
      %171 = vector.broadcast %cst_133 : f32 to vector<1x18x32xf32>
      %c9 = arith.constant 9 : index
      %c0_134 = arith.constant 0 : index
      %c0_135 = arith.constant 0 : index
      %172 = vector.load %arg7[%c9, %c0_134, %c0_135] : memref<10x18x32xf32, #tpu.memory_space<vmem>>, vector<1x18x32xf32>
      tpu.vector_store %arg7[%c9, %c0_134, %c0_135], %171 {strides = array<i32>} : memref<10x18x32xf32, #tpu.memory_space<vmem>>, vector<1x18x32xf32>,
    } else {
    }
    %cst_61 = arith.constant 0.000000e+00 : f32
    %96 = vector.broadcast %cst_61 : f32 to vector<128x32xf32>
    %c0_62 = arith.constant 0 : index
    %c0_63 = arith.constant 0 : index
    %c0_64 = arith.constant 0 : index
    %97 = vector.load %arg7[%c0_62, %c0_63, %c0_64] : memref<10x18x32xf32, #tpu.memory_space<vmem>>, vector<8x16x32xf32>
    %98 = vector.shape_cast %97 : vector<8x16x32xf32> to vector<128x32xf32>
    %99 = arith.truncf %98 : vector<128x32xf32> to vector<128x32xbf16>
    %c0_65 = arith.constant 0 : index
    %c0_66 = arith.constant 0 : index
    %c0_67 = arith.constant 0 : index
    %100 = vector.load %arg4[%c0_65, %c0_66, %c0_67] : memref<9x32x32xbf16, #tpu.memory_space<vmem>>, vector<1x32x32xbf16>
    %101 = vector.shape_cast %100 : vector<1x32x32xbf16> to vector<32x32xbf16>
    %cst_68 = arith.constant dense<0.000000e+00> : vector<128x32xf32>
    %102 = tpu.matmul %99, %101, %cst_68 {dimension_numbers = #tpu.dot_dimension_numbers<[1], [0], [0], [1], [0, 0, 1, 1], [], []>} : vector<128x32xbf16>, vector<32x32xbf16>, vector<128x32xf32> -> vector<128x32xf32>
    %103 = arith.addf %96, %102 : vector<128x32xf32>
    %c0_69 = arith.constant 0 : index
    %c1_70 = arith.constant 1 : index
    %c0_71 = arith.constant 0 : index
    %104 = vector.load %arg7[%c0_69, %c1_70, %c0_71] : memref<10x18x32xf32, #tpu.memory_space<vmem>>, vector<8x16x32xf32>
    %105 = vector.shape_cast %104 : vector<8x16x32xf32> to vector<128x32xf32>
    %106 = arith.truncf %105 : vector<128x32xf32> to vector<128x32xbf16>
    %c1_72 = arith.constant 1 : index
    %c0_73 = arith.constant 0 : index
    %c0_74 = arith.constant 0 : index
    %107 = vector.load %arg4[%c1_72, %c0_73, %c0_74] : memref<9x32x32xbf16, #tpu.memory_space<vmem>>, vector<1x32x32xbf16>
    %108 = vector.shape_cast %107 : vector<1x32x32xbf16> to vector<32x32xbf16>
    %cst_75 = arith.constant dense<0.000000e+00> : vector<128x32xf32>
    %109 = tpu.matmul %106, %108, %cst_75 {dimension_numbers = #tpu.dot_dimension_numbers<[1], [0], [0], [1], [0, 0, 1, 1], [], []>} : vector<128x32xbf16>, vector<32x32xbf16>, vector<128x32xf32> -> vector<128x32xf32>
    %110 = arith.addf %103, %109 : vector<128x32xf32>
    %c0_76 = arith.constant 0 : index
    %c2_77 = arith.constant 2 : index
    %c0_78 = arith.constant 0 : index
    %111 = vector.load %arg7[%c0_76, %c2_77, %c0_78] : memref<10x18x32xf32, #tpu.memory_space<vmem>>, vector<8x16x32xf32>
    %112 = vector.shape_cast %111 : vector<8x16x32xf32> to vector<128x32xf32>
    %113 = arith.truncf %112 : vector<128x32xf32> to vector<128x32xbf16>
    %c2_79 = arith.constant 2 : index
    %c0_80 = arith.constant 0 : index
    %c0_81 = arith.constant 0 : index
    %114 = vector.load %arg4[%c2_79, %c0_80, %c0_81] : memref<9x32x32xbf16, #tpu.memory_space<vmem>>, vector<1x32x32xbf16>
    %115 = vector.shape_cast %114 : vector<1x32x32xbf16> to vector<32x32xbf16>
    %cst_82 = arith.constant dense<0.000000e+00> : vector<128x32xf32>
    %116 = tpu.matmul %113, %115, %cst_82 {dimension_numbers = #tpu.dot_dimension_numbers<[1], [0], [0], [1], [0, 0, 1, 1], [], []>} : vector<128x32xbf16>, vector<32x32xbf16>, vector<128x32xf32> -> vector<128x32xf32>
    %117 = arith.addf %110, %116 : vector<128x32xf32>
    %c1_83 = arith.constant 1 : index
    %c0_84 = arith.constant 0 : index
    %c0_85 = arith.constant 0 : index
    %118 = vector.load %arg7[%c1_83, %c0_84, %c0_85] : memref<10x18x32xf32, #tpu.memory_space<vmem>>, vector<8x16x32xf32>
    %119 = vector.shape_cast %118 : vector<8x16x32xf32> to vector<128x32xf32>
    %120 = arith.truncf %119 : vector<128x32xf32> to vector<128x32xbf16>
    %c3_86 = arith.constant 3 : index
    %c0_87 = arith.constant 0 : index
    %c0_88 = arith.constant 0 : index
    %121 = vector.load %arg4[%c3_86, %c0_87, %c0_88] : memref<9x32x32xbf16, #tpu.memory_space<vmem>>, vector<1x32x32xbf16>
    %122 = vector.shape_cast %121 : vector<1x32x32xbf16> to vector<32x32xbf16>
    %cst_89 = arith.constant dense<0.000000e+00> : vector<128x32xf32>
    %123 = tpu.matmul %120, %122, %cst_89 {dimension_numbers = #tpu.dot_dimension_numbers<[1], [0], [0], [1], [0, 0, 1, 1], [], []>} : vector<128x32xbf16>, vector<32x32xbf16>, vector<128x32xf32> -> vector<128x32xf32>
    %124 = arith.addf %117, %123 : vector<128x32xf32>
    %c1_90 = arith.constant 1 : index
    %c1_91 = arith.constant 1 : index
    %c0_92 = arith.constant 0 : index
    %125 = vector.load %arg7[%c1_90, %c1_91, %c0_92] : memref<10x18x32xf32, #tpu.memory_space<vmem>>, vector<8x16x32xf32>
    %126 = vector.shape_cast %125 : vector<8x16x32xf32> to vector<128x32xf32>
    %127 = arith.truncf %126 : vector<128x32xf32> to vector<128x32xbf16>
    %c4_93 = arith.constant 4 : index
    %c0_94 = arith.constant 0 : index
    %c0_95 = arith.constant 0 : index
    %128 = vector.load %arg4[%c4_93, %c0_94, %c0_95] : memref<9x32x32xbf16, #tpu.memory_space<vmem>>, vector<1x32x32xbf16>
    %129 = vector.shape_cast %128 : vector<1x32x32xbf16> to vector<32x32xbf16>
    %cst_96 = arith.constant dense<0.000000e+00> : vector<128x32xf32>
    %130 = tpu.matmul %127, %129, %cst_96 {dimension_numbers = #tpu.dot_dimension_numbers<[1], [0], [0], [1], [0, 0, 1, 1], [], []>} : vector<128x32xbf16>, vector<32x32xbf16>, vector<128x32xf32> -> vector<128x32xf32>
    %131 = arith.addf %124, %130 : vector<128x32xf32>
    %c1_97 = arith.constant 1 : index
    %c2_98 = arith.constant 2 : index
    %c0_99 = arith.constant 0 : index
    %132 = vector.load %arg7[%c1_97, %c2_98, %c0_99] : memref<10x18x32xf32, #tpu.memory_space<vmem>>, vector<8x16x32xf32>
    %133 = vector.shape_cast %132 : vector<8x16x32xf32> to vector<128x32xf32>
    %134 = arith.truncf %133 : vector<128x32xf32> to vector<128x32xbf16>
    %c5_100 = arith.constant 5 : index
    %c0_101 = arith.constant 0 : index
    %c0_102 = arith.constant 0 : index
    %135 = vector.load %arg4[%c5_100, %c0_101, %c0_102] : memref<9x32x32xbf16, #tpu.memory_space<vmem>>, vector<1x32x32xbf16>
    %136 = vector.shape_cast %135 : vector<1x32x32xbf16> to vector<32x32xbf16>
    %cst_103 = arith.constant dense<0.000000e+00> : vector<128x32xf32>
    %137 = tpu.matmul %134, %136, %cst_103 {dimension_numbers = #tpu.dot_dimension_numbers<[1], [0], [0], [1], [0, 0, 1, 1], [], []>} : vector<128x32xbf16>, vector<32x32xbf16>, vector<128x32xf32> -> vector<128x32xf32>
    %138 = arith.addf %131, %137 : vector<128x32xf32>
    %c2_104 = arith.constant 2 : index
    %c0_105 = arith.constant 0 : index
    %c0_106 = arith.constant 0 : index
    %139 = vector.load %arg7[%c2_104, %c0_105, %c0_106] : memref<10x18x32xf32, #tpu.memory_space<vmem>>, vector<8x16x32xf32>
    %140 = vector.shape_cast %139 : vector<8x16x32xf32> to vector<128x32xf32>
    %141 = arith.truncf %140 : vector<128x32xf32> to vector<128x32xbf16>
    %c6_107 = arith.constant 6 : index
    %c0_108 = arith.constant 0 : index
    %c0_109 = arith.constant 0 : index
    %142 = vector.load %arg4[%c6_107, %c0_108, %c0_109] : memref<9x32x32xbf16, #tpu.memory_space<vmem>>, vector<1x32x32xbf16>
    %143 = vector.shape_cast %142 : vector<1x32x32xbf16> to vector<32x32xbf16>
    %cst_110 = arith.constant dense<0.000000e+00> : vector<128x32xf32>
    %144 = tpu.matmul %141, %143, %cst_110 {dimension_numbers = #tpu.dot_dimension_numbers<[1], [0], [0], [1], [0, 0, 1, 1], [], []>} : vector<128x32xbf16>, vector<32x32xbf16>, vector<128x32xf32> -> vector<128x32xf32>
    %145 = arith.addf %138, %144 : vector<128x32xf32>
    %c2_111 = arith.constant 2 : index
    %c1_112 = arith.constant 1 : index
    %c0_113 = arith.constant 0 : index
    %146 = vector.load %arg7[%c2_111, %c1_112, %c0_113] : memref<10x18x32xf32, #tpu.memory_space<vmem>>, vector<8x16x32xf32>
    %147 = vector.shape_cast %146 : vector<8x16x32xf32> to vector<128x32xf32>
    %148 = arith.truncf %147 : vector<128x32xf32> to vector<128x32xbf16>
    %c7_114 = arith.constant 7 : index
    %c0_115 = arith.constant 0 : index
    %c0_116 = arith.constant 0 : index
    %149 = vector.load %arg4[%c7_114, %c0_115, %c0_116] : memref<9x32x32xbf16, #tpu.memory_space<vmem>>, vector<1x32x32xbf16>
    %150 = vector.shape_cast %149 : vector<1x32x32xbf16> to vector<32x32xbf16>
    %cst_117 = arith.constant dense<0.000000e+00> : vector<128x32xf32>
    %151 = tpu.matmul %148, %150, %cst_117 {dimension_numbers = #tpu.dot_dimension_numbers<[1], [0], [0], [1], [0, 0, 1, 1], [], []>} : vector<128x32xbf16>, vector<32x32xbf16>, vector<128x32xf32> -> vector<128x32xf32>
    %152 = arith.addf %145, %151 : vector<128x32xf32>
    %c2_118 = arith.constant 2 : index
    %c2_119 = arith.constant 2 : index
    %c0_120 = arith.constant 0 : index
    %153 = vector.load %arg7[%c2_118, %c2_119, %c0_120] : memref<10x18x32xf32, #tpu.memory_space<vmem>>, vector<8x16x32xf32>
    %154 = vector.shape_cast %153 : vector<8x16x32xf32> to vector<128x32xf32>
    %155 = arith.truncf %154 : vector<128x32xf32> to vector<128x32xbf16>
    %c8_121 = arith.constant 8 : index
    %c0_122 = arith.constant 0 : index
    %c0_123 = arith.constant 0 : index
    %156 = vector.load %arg4[%c8_121, %c0_122, %c0_123] : memref<9x32x32xbf16, #tpu.memory_space<vmem>>, vector<1x32x32xbf16>
    %157 = vector.shape_cast %156 : vector<1x32x32xbf16> to vector<32x32xbf16>
    %cst_124 = arith.constant dense<0.000000e+00> : vector<128x32xf32>
    %158 = tpu.matmul %155, %157, %cst_124 {dimension_numbers = #tpu.dot_dimension_numbers<[1], [0], [0], [1], [0, 0, 1, 1], [], []>} : vector<128x32xbf16>, vector<32x32xbf16>, vector<128x32xf32> -> vector<128x32xf32>
    %159 = arith.addf %152, %158 : vector<128x32xf32>
    %c2_i32_125 = arith.constant 2 : i32
    %160 = arith.addi %3, %c2_i32_125 : i32
    %161 = arith.index_cast %160 : i32 to index
    %c1_126 = arith.constant 1 : index
    %c0_127 = arith.constant 0 : index
    %162 = vector.load %arg6[%161, %c1_126, %c0_127] : memref<20x18x32xf32, #tpu.memory_space<vmem>>, vector<8x16x32xf32>
    %163 = vector.shape_cast %162 : vector<8x16x32xf32> to vector<128x32xf32>
    %cst_128 = arith.constant 1.000000e-01 : f32
    %164 = vector.broadcast %cst_128 : f32 to vector<128x32xf32>
    %165 = arith.mulf %164, %159 : vector<128x32xf32>
    %166 = arith.addf %163, %165 : vector<128x32xf32>
    %167 = vector.shape_cast %166 : vector<128x32xf32> to vector<8x16x32xf32>
    %c0_129 = arith.constant 0 : index
    %c0_130 = arith.constant 0 : index
    %c0_131 = arith.constant 0 : index
    %c0_132 = arith.constant 0 : index
    %168 = vector.load %arg5[%c0_129, %c0_130, %c0_131, %c0_132] : memref<1x8x16x32xf32, #tpu.memory_space<vmem>>, vector<1x8x16x32xf32>
    %169 = vector.shape_cast %168 : vector<1x8x16x32xf32> to vector<8x16x32xf32>
    %170 = vector.shape_cast %167 : vector<8x16x32xf32> to vector<1x8x16x32xf32>
    tpu.vector_store %arg5[%c0_129, %c0_130, %c0_131, %c0_132], %170 {strides = array<i32>} : memref<1x8x16x32xf32, #tpu.memory_space<vmem>>, vector<1x8x16x32xf32>,
    return
  }
  func.func @transform_0(%arg0: i32, %arg1: i32) -> (i32, i32, i32, i32) {
    %c0_i32 = arith.constant 0 : i32
    %c0_i32_0 = arith.constant 0 : i32
    %c0_i32_1 = arith.constant 0 : i32
    %c0_i32_2 = arith.constant 0 : i32
    return %arg0, %c0_i32, %c0_i32_0, %c0_i32_1 : i32, i32, i32, i32
  }
  func.func @transform_1(%arg0: i32, %arg1: i32) -> (i32, i32, i32) {
    %c0_i32 = arith.constant 0 : i32
    %c0_i32_0 = arith.constant 0 : i32
    %c0_i32_1 = arith.constant 0 : i32
    %c0_i32_2 = arith.constant 0 : i32
    return %c0_i32, %c0_i32_0, %c0_i32_1 : i32, i32, i32
  }
  func.func @transform_2(%arg0: i32, %arg1: i32) -> (i32, i32, i32) {
    %c0_i32 = arith.constant 0 : i32
    %c0_i32_0 = arith.constant 0 : i32
    %c0_i32_1 = arith.constant 0 : i32
    %c0_i32_2 = arith.constant 0 : i32
    return %c0_i32, %c0_i32_0, %c0_i32_1 : i32, i32, i32
  }
  func.func @transform_3(%arg0: i32, %arg1: i32) -> (i32, i32, i32, i32) {
    %c0_i32 = arith.constant 0 : i32
    %c0_i32_0 = arith.constant 0 : i32
    %c0_i32_1 = arith.constant 0 : i32
    return %arg0, %arg1, %c0_i32, %c0_i32_0 : i32, i32, i32, i32
  }
}

module attributes {stable_mosaic.version = 11 : i64} {
  func.func @kernel(%arg0: i32, %arg1: i32, %arg2: memref<1x16x16x32xf32, #tpu.memory_space<vmem>>, %arg3: memref<9x32x32xbf16, #tpu.memory_space<vmem>>, %arg4: memref<1x8x16x32xf32, #tpu.memory_space<vmem>>, %arg5: memref<1x8x16x32xf32, #tpu.memory_space<vmem>>, %arg6: memref<20x18x32xf32, #tpu.memory_space<vmem>>) attributes {dimension_semantics = [#tpu.dimension_semantics<parallel>, #tpu.dimension_semantics<arbitrary>], iteration_bounds = array<i64: 2, 2>, scalar_prefetch = 0 : i64, scratch_operands = 1 : i64, tpu.core_type = #tpu.core_type<tc>, window_params = [{transform_indices = @transform_0, window_bounds = array<i64: 1, 16, 16, 32>}, {pipeline_mode = #tpu.pipeline_mode<synchronous>, transform_indices = @transform_1, window_bounds = array<i64: 9, 32, 32>}, {transform_indices = @transform_2, window_bounds = array<i64: 1, 8, 16, 32>}, {transform_indices = @transform_3, window_bounds = array<i64: 1, 8, 16, 32>}]} {
    %c0_i32 = arith.constant 0 : i32
    %0 = arith.cmpi eq, %arg1, %c0_i32 : i32
    %1 = arith.extui %0 : i1 to i32
    %c0_i32_0 = arith.constant 0 : i32
    %2 = arith.cmpi ne, %1, %c0_i32_0 : i32
    scf.if %2 {
      %cst_71 = arith.constant 0.000000e+00 : f32
      %105 = vector.broadcast %cst_71 : f32 to vector<20x18x32xf32>
      %c0_72 = arith.constant 0 : index
      %c0_73 = arith.constant 0 : index
      %c0_74 = arith.constant 0 : index
      %106 = vector.load %arg6[%c0_72, %c0_73, %c0_74] : memref<20x18x32xf32, #tpu.memory_space<vmem>>, vector<20x18x32xf32>
      tpu.vector_store %arg6[%c0_72, %c0_73, %c0_74], %105 {strides = array<i32>} : memref<20x18x32xf32, #tpu.memory_space<vmem>>, vector<20x18x32xf32>,
      %c0_75 = arith.constant 0 : index
      %c0_76 = arith.constant 0 : index
      %c0_77 = arith.constant 0 : index
      %c0_78 = arith.constant 0 : index
      %107 = vector.load %arg2[%c0_75, %c0_76, %c0_77, %c0_78] : memref<1x16x16x32xf32, #tpu.memory_space<vmem>>, vector<1x16x16x32xf32>
      %108 = vector.shape_cast %107 : vector<1x16x16x32xf32> to vector<16x16x32xf32>
      %c2_79 = arith.constant 2 : index
      %c1_80 = arith.constant 1 : index
      %c0_81 = arith.constant 0 : index
      %109 = vector.load %arg6[%c2_79, %c1_80, %c0_81] : memref<20x18x32xf32, #tpu.memory_space<vmem>>, vector<16x16x32xf32>
      tpu.vector_store %arg6[%c2_79, %c1_80, %c0_81], %108 {strides = array<i32>} : memref<20x18x32xf32, #tpu.memory_space<vmem>>, vector<16x16x32xf32>,
    } else {
    }
    %c8_i32 = arith.constant 8 : i32
    %3 = arith.muli %arg1, %c8_i32 : i32
    %cst = arith.constant 0.000000e+00 : f32
    %4 = vector.broadcast %cst : f32 to vector<128x32xf32>
    %c1_i32 = arith.constant 1 : i32
    %5 = arith.addi %3, %c1_i32 : i32
    %c0_i32_1 = arith.constant 0 : i32
    %6 = arith.addi %5, %c0_i32_1 : i32
    %7 = arith.index_cast %6 : i32 to index
    %c0 = arith.constant 0 : index
    %c0_2 = arith.constant 0 : index
    %8 = vector.load %arg6[%7, %c0, %c0_2] : memref<20x18x32xf32, #tpu.memory_space<vmem>>, vector<8x16x32xf32>
    %9 = vector.shape_cast %8 : vector<8x16x32xf32> to vector<128x32xf32>
    %10 = arith.truncf %9 : vector<128x32xf32> to vector<128x32xbf16>
    %c0_3 = arith.constant 0 : index
    %c0_4 = arith.constant 0 : index
    %c0_5 = arith.constant 0 : index
    %11 = vector.load %arg3[%c0_3, %c0_4, %c0_5] : memref<9x32x32xbf16, #tpu.memory_space<vmem>>, vector<1x32x32xbf16>
    %12 = vector.shape_cast %11 : vector<1x32x32xbf16> to vector<32x32xbf16>
    %cst_6 = arith.constant dense<0.000000e+00> : vector<128x32xf32>
    %13 = tpu.matmul %10, %12, %cst_6 {dimension_numbers = #tpu.dot_dimension_numbers<[1], [0], [0], [1], [0, 0, 1, 1], [], []>} : vector<128x32xbf16>, vector<32x32xbf16>, vector<128x32xf32> -> vector<128x32xf32>
    %14 = arith.addf %4, %13 : vector<128x32xf32>
    %c1_i32_7 = arith.constant 1 : i32
    %15 = arith.addi %3, %c1_i32_7 : i32
    %c0_i32_8 = arith.constant 0 : i32
    %16 = arith.addi %15, %c0_i32_8 : i32
    %17 = arith.index_cast %16 : i32 to index
    %c1 = arith.constant 1 : index
    %c0_9 = arith.constant 0 : index
    %18 = vector.load %arg6[%17, %c1, %c0_9] : memref<20x18x32xf32, #tpu.memory_space<vmem>>, vector<8x16x32xf32>
    %19 = vector.shape_cast %18 : vector<8x16x32xf32> to vector<128x32xf32>
    %20 = arith.truncf %19 : vector<128x32xf32> to vector<128x32xbf16>
    %c1_10 = arith.constant 1 : index
    %c0_11 = arith.constant 0 : index
    %c0_12 = arith.constant 0 : index
    %21 = vector.load %arg3[%c1_10, %c0_11, %c0_12] : memref<9x32x32xbf16, #tpu.memory_space<vmem>>, vector<1x32x32xbf16>
    %22 = vector.shape_cast %21 : vector<1x32x32xbf16> to vector<32x32xbf16>
    %cst_13 = arith.constant dense<0.000000e+00> : vector<128x32xf32>
    %23 = tpu.matmul %20, %22, %cst_13 {dimension_numbers = #tpu.dot_dimension_numbers<[1], [0], [0], [1], [0, 0, 1, 1], [], []>} : vector<128x32xbf16>, vector<32x32xbf16>, vector<128x32xf32> -> vector<128x32xf32>
    %24 = arith.addf %14, %23 : vector<128x32xf32>
    %c1_i32_14 = arith.constant 1 : i32
    %25 = arith.addi %3, %c1_i32_14 : i32
    %c0_i32_15 = arith.constant 0 : i32
    %26 = arith.addi %25, %c0_i32_15 : i32
    %27 = arith.index_cast %26 : i32 to index
    %c2 = arith.constant 2 : index
    %c0_16 = arith.constant 0 : index
    %28 = vector.load %arg6[%27, %c2, %c0_16] : memref<20x18x32xf32, #tpu.memory_space<vmem>>, vector<8x16x32xf32>
    %29 = vector.shape_cast %28 : vector<8x16x32xf32> to vector<128x32xf32>
    %30 = arith.truncf %29 : vector<128x32xf32> to vector<128x32xbf16>
    %c2_17 = arith.constant 2 : index
    %c0_18 = arith.constant 0 : index
    %c0_19 = arith.constant 0 : index
    %31 = vector.load %arg3[%c2_17, %c0_18, %c0_19] : memref<9x32x32xbf16, #tpu.memory_space<vmem>>, vector<1x32x32xbf16>
    %32 = vector.shape_cast %31 : vector<1x32x32xbf16> to vector<32x32xbf16>
    %cst_20 = arith.constant dense<0.000000e+00> : vector<128x32xf32>
    %33 = tpu.matmul %30, %32, %cst_20 {dimension_numbers = #tpu.dot_dimension_numbers<[1], [0], [0], [1], [0, 0, 1, 1], [], []>} : vector<128x32xbf16>, vector<32x32xbf16>, vector<128x32xf32> -> vector<128x32xf32>
    %34 = arith.addf %24, %33 : vector<128x32xf32>
    %c1_i32_21 = arith.constant 1 : i32
    %35 = arith.addi %3, %c1_i32_21 : i32
    %c1_i32_22 = arith.constant 1 : i32
    %36 = arith.addi %35, %c1_i32_22 : i32
    %37 = arith.index_cast %36 : i32 to index
    %c0_23 = arith.constant 0 : index
    %c0_24 = arith.constant 0 : index
    %38 = vector.load %arg6[%37, %c0_23, %c0_24] : memref<20x18x32xf32, #tpu.memory_space<vmem>>, vector<8x16x32xf32>
    %39 = vector.shape_cast %38 : vector<8x16x32xf32> to vector<128x32xf32>
    %40 = arith.truncf %39 : vector<128x32xf32> to vector<128x32xbf16>
    %c3 = arith.constant 3 : index
    %c0_25 = arith.constant 0 : index
    %c0_26 = arith.constant 0 : index
    %41 = vector.load %arg3[%c3, %c0_25, %c0_26] : memref<9x32x32xbf16, #tpu.memory_space<vmem>>, vector<1x32x32xbf16>
    %42 = vector.shape_cast %41 : vector<1x32x32xbf16> to vector<32x32xbf16>
    %cst_27 = arith.constant dense<0.000000e+00> : vector<128x32xf32>
    %43 = tpu.matmul %40, %42, %cst_27 {dimension_numbers = #tpu.dot_dimension_numbers<[1], [0], [0], [1], [0, 0, 1, 1], [], []>} : vector<128x32xbf16>, vector<32x32xbf16>, vector<128x32xf32> -> vector<128x32xf32>
    %44 = arith.addf %34, %43 : vector<128x32xf32>
    %c1_i32_28 = arith.constant 1 : i32
    %45 = arith.addi %3, %c1_i32_28 : i32
    %c1_i32_29 = arith.constant 1 : i32
    %46 = arith.addi %45, %c1_i32_29 : i32
    %47 = arith.index_cast %46 : i32 to index
    %c1_30 = arith.constant 1 : index
    %c0_31 = arith.constant 0 : index
    %48 = vector.load %arg6[%47, %c1_30, %c0_31] : memref<20x18x32xf32, #tpu.memory_space<vmem>>, vector<8x16x32xf32>
    %49 = vector.shape_cast %48 : vector<8x16x32xf32> to vector<128x32xf32>
    %50 = arith.truncf %49 : vector<128x32xf32> to vector<128x32xbf16>
    %c4 = arith.constant 4 : index
    %c0_32 = arith.constant 0 : index
    %c0_33 = arith.constant 0 : index
    %51 = vector.load %arg3[%c4, %c0_32, %c0_33] : memref<9x32x32xbf16, #tpu.memory_space<vmem>>, vector<1x32x32xbf16>
    %52 = vector.shape_cast %51 : vector<1x32x32xbf16> to vector<32x32xbf16>
    %cst_34 = arith.constant dense<0.000000e+00> : vector<128x32xf32>
    %53 = tpu.matmul %50, %52, %cst_34 {dimension_numbers = #tpu.dot_dimension_numbers<[1], [0], [0], [1], [0, 0, 1, 1], [], []>} : vector<128x32xbf16>, vector<32x32xbf16>, vector<128x32xf32> -> vector<128x32xf32>
    %54 = arith.addf %44, %53 : vector<128x32xf32>
    %c1_i32_35 = arith.constant 1 : i32
    %55 = arith.addi %3, %c1_i32_35 : i32
    %c1_i32_36 = arith.constant 1 : i32
    %56 = arith.addi %55, %c1_i32_36 : i32
    %57 = arith.index_cast %56 : i32 to index
    %c2_37 = arith.constant 2 : index
    %c0_38 = arith.constant 0 : index
    %58 = vector.load %arg6[%57, %c2_37, %c0_38] : memref<20x18x32xf32, #tpu.memory_space<vmem>>, vector<8x16x32xf32>
    %59 = vector.shape_cast %58 : vector<8x16x32xf32> to vector<128x32xf32>
    %60 = arith.truncf %59 : vector<128x32xf32> to vector<128x32xbf16>
    %c5 = arith.constant 5 : index
    %c0_39 = arith.constant 0 : index
    %c0_40 = arith.constant 0 : index
    %61 = vector.load %arg3[%c5, %c0_39, %c0_40] : memref<9x32x32xbf16, #tpu.memory_space<vmem>>, vector<1x32x32xbf16>
    %62 = vector.shape_cast %61 : vector<1x32x32xbf16> to vector<32x32xbf16>
    %cst_41 = arith.constant dense<0.000000e+00> : vector<128x32xf32>
    %63 = tpu.matmul %60, %62, %cst_41 {dimension_numbers = #tpu.dot_dimension_numbers<[1], [0], [0], [1], [0, 0, 1, 1], [], []>} : vector<128x32xbf16>, vector<32x32xbf16>, vector<128x32xf32> -> vector<128x32xf32>
    %64 = arith.addf %54, %63 : vector<128x32xf32>
    %c1_i32_42 = arith.constant 1 : i32
    %65 = arith.addi %3, %c1_i32_42 : i32
    %c2_i32 = arith.constant 2 : i32
    %66 = arith.addi %65, %c2_i32 : i32
    %67 = arith.index_cast %66 : i32 to index
    %c0_43 = arith.constant 0 : index
    %c0_44 = arith.constant 0 : index
    %68 = vector.load %arg6[%67, %c0_43, %c0_44] : memref<20x18x32xf32, #tpu.memory_space<vmem>>, vector<8x16x32xf32>
    %69 = vector.shape_cast %68 : vector<8x16x32xf32> to vector<128x32xf32>
    %70 = arith.truncf %69 : vector<128x32xf32> to vector<128x32xbf16>
    %c6 = arith.constant 6 : index
    %c0_45 = arith.constant 0 : index
    %c0_46 = arith.constant 0 : index
    %71 = vector.load %arg3[%c6, %c0_45, %c0_46] : memref<9x32x32xbf16, #tpu.memory_space<vmem>>, vector<1x32x32xbf16>
    %72 = vector.shape_cast %71 : vector<1x32x32xbf16> to vector<32x32xbf16>
    %cst_47 = arith.constant dense<0.000000e+00> : vector<128x32xf32>
    %73 = tpu.matmul %70, %72, %cst_47 {dimension_numbers = #tpu.dot_dimension_numbers<[1], [0], [0], [1], [0, 0, 1, 1], [], []>} : vector<128x32xbf16>, vector<32x32xbf16>, vector<128x32xf32> -> vector<128x32xf32>
    %74 = arith.addf %64, %73 : vector<128x32xf32>
    %c1_i32_48 = arith.constant 1 : i32
    %75 = arith.addi %3, %c1_i32_48 : i32
    %c2_i32_49 = arith.constant 2 : i32
    %76 = arith.addi %75, %c2_i32_49 : i32
    %77 = arith.index_cast %76 : i32 to index
    %c1_50 = arith.constant 1 : index
    %c0_51 = arith.constant 0 : index
    %78 = vector.load %arg6[%77, %c1_50, %c0_51] : memref<20x18x32xf32, #tpu.memory_space<vmem>>, vector<8x16x32xf32>
    %79 = vector.shape_cast %78 : vector<8x16x32xf32> to vector<128x32xf32>
    %80 = arith.truncf %79 : vector<128x32xf32> to vector<128x32xbf16>
    %c7 = arith.constant 7 : index
    %c0_52 = arith.constant 0 : index
    %c0_53 = arith.constant 0 : index
    %81 = vector.load %arg3[%c7, %c0_52, %c0_53] : memref<9x32x32xbf16, #tpu.memory_space<vmem>>, vector<1x32x32xbf16>
    %82 = vector.shape_cast %81 : vector<1x32x32xbf16> to vector<32x32xbf16>
    %cst_54 = arith.constant dense<0.000000e+00> : vector<128x32xf32>
    %83 = tpu.matmul %80, %82, %cst_54 {dimension_numbers = #tpu.dot_dimension_numbers<[1], [0], [0], [1], [0, 0, 1, 1], [], []>} : vector<128x32xbf16>, vector<32x32xbf16>, vector<128x32xf32> -> vector<128x32xf32>
    %84 = arith.addf %74, %83 : vector<128x32xf32>
    %c1_i32_55 = arith.constant 1 : i32
    %85 = arith.addi %3, %c1_i32_55 : i32
    %c2_i32_56 = arith.constant 2 : i32
    %86 = arith.addi %85, %c2_i32_56 : i32
    %87 = arith.index_cast %86 : i32 to index
    %c2_57 = arith.constant 2 : index
    %c0_58 = arith.constant 0 : index
    %88 = vector.load %arg6[%87, %c2_57, %c0_58] : memref<20x18x32xf32, #tpu.memory_space<vmem>>, vector<8x16x32xf32>
    %89 = vector.shape_cast %88 : vector<8x16x32xf32> to vector<128x32xf32>
    %90 = arith.truncf %89 : vector<128x32xf32> to vector<128x32xbf16>
    %c8 = arith.constant 8 : index
    %c0_59 = arith.constant 0 : index
    %c0_60 = arith.constant 0 : index
    %91 = vector.load %arg3[%c8, %c0_59, %c0_60] : memref<9x32x32xbf16, #tpu.memory_space<vmem>>, vector<1x32x32xbf16>
    %92 = vector.shape_cast %91 : vector<1x32x32xbf16> to vector<32x32xbf16>
    %cst_61 = arith.constant dense<0.000000e+00> : vector<128x32xf32>
    %93 = tpu.matmul %90, %92, %cst_61 {dimension_numbers = #tpu.dot_dimension_numbers<[1], [0], [0], [1], [0, 0, 1, 1], [], []>} : vector<128x32xbf16>, vector<32x32xbf16>, vector<128x32xf32> -> vector<128x32xf32>
    %94 = arith.addf %84, %93 : vector<128x32xf32>
    %c0_62 = arith.constant 0 : index
    %c0_63 = arith.constant 0 : index
    %c0_64 = arith.constant 0 : index
    %c0_65 = arith.constant 0 : index
    %95 = vector.load %arg4[%c0_62, %c0_63, %c0_64, %c0_65] : memref<1x8x16x32xf32, #tpu.memory_space<vmem>>, vector<1x8x16x32xf32>
    %96 = vector.shape_cast %95 : vector<1x8x16x32xf32> to vector<8x16x32xf32>
    %97 = vector.shape_cast %96 : vector<8x16x32xf32> to vector<128x32xf32>
    %cst_66 = arith.constant 1.000000e+00 : f32
    %98 = vector.broadcast %cst_66 : f32 to vector<128x32xf32>
    %99 = arith.mulf %94, %98 : vector<128x32xf32>
    %100 = arith.addf %97, %99 : vector<128x32xf32>
    %101 = vector.shape_cast %100 : vector<128x32xf32> to vector<8x16x32xf32>
    %c0_67 = arith.constant 0 : index
    %c0_68 = arith.constant 0 : index
    %c0_69 = arith.constant 0 : index
    %c0_70 = arith.constant 0 : index
    %102 = vector.load %arg5[%c0_67, %c0_68, %c0_69, %c0_70] : memref<1x8x16x32xf32, #tpu.memory_space<vmem>>, vector<1x8x16x32xf32>
    %103 = vector.shape_cast %102 : vector<1x8x16x32xf32> to vector<8x16x32xf32>
    %104 = vector.shape_cast %101 : vector<8x16x32xf32> to vector<1x8x16x32xf32>
    tpu.vector_store %arg5[%c0_67, %c0_68, %c0_69, %c0_70], %104 {strides = array<i32>} : memref<1x8x16x32xf32, #tpu.memory_space<vmem>>, vector<1x8x16x32xf32>,
    return
  }
  func.func @transform_0(%arg0: i32, %arg1: i32) -> (i32, i32, i32, i32) {
    %c0_i32 = arith.constant 0 : i32
    %c0_i32_0 = arith.constant 0 : i32
    %c0_i32_1 = arith.constant 0 : i32
    %c0_i32_2 = arith.constant 0 : i32
    return %arg0, %c0_i32, %c0_i32_0, %c0_i32_1 : i32, i32, i32, i32
  }
  func.func @transform_1(%arg0: i32, %arg1: i32) -> (i32, i32, i32) {
    %c0_i32 = arith.constant 0 : i32
    %c0_i32_0 = arith.constant 0 : i32
    %c0_i32_1 = arith.constant 0 : i32
    %c0_i32_2 = arith.constant 0 : i32
    return %c0_i32, %c0_i32_0, %c0_i32_1 : i32, i32, i32
  }
  func.func @transform_2(%arg0: i32, %arg1: i32) -> (i32, i32, i32, i32) {
    %c0_i32 = arith.constant 0 : i32
    %c0_i32_0 = arith.constant 0 : i32
    %c0_i32_1 = arith.constant 0 : i32
    return %arg0, %arg1, %c0_i32, %c0_i32_0 : i32, i32, i32, i32
  }
  func.func @transform_3(%arg0: i32, %arg1: i32) -> (i32, i32, i32, i32) {
    %c0_i32 = arith.constant 0 : i32
    %c0_i32_0 = arith.constant 0 : i32
    %c0_i32_1 = arith.constant 0 : i32
    return %arg0, %arg1, %c0_i32, %c0_i32_0 : i32, i32, i32, i32
  }
}

module attributes {stable_mosaic.version = 11 : i64} {
  func.func @kernel(%arg0: i32, %arg1: i32, %arg2: memref<1x16x16x32xf32, #tpu.memory_space<vmem>>, %arg3: memref<9x32x2xbf16, #tpu.memory_space<vmem>>, %arg4: memref<1x8x16x2xf32, #tpu.memory_space<vmem>>, %arg5: memref<20x18x32xf32, #tpu.memory_space<vmem>>) attributes {dimension_semantics = [#tpu.dimension_semantics<parallel>, #tpu.dimension_semantics<arbitrary>], iteration_bounds = array<i64: 2, 2>, scalar_prefetch = 0 : i64, scratch_operands = 1 : i64, tpu.core_type = #tpu.core_type<tc>, window_params = [{transform_indices = @transform_0, window_bounds = array<i64: 1, 16, 16, 32>}, {pipeline_mode = #tpu.pipeline_mode<synchronous>, transform_indices = @transform_1, window_bounds = array<i64: 9, 32, 2>}, {transform_indices = @transform_2, window_bounds = array<i64: 1, 8, 16, 2>}]} {
    %c0_i32 = arith.constant 0 : i32
    %0 = arith.cmpi eq, %arg1, %c0_i32 : i32
    %1 = arith.extui %0 : i1 to i32
    %c0_i32_0 = arith.constant 0 : i32
    %2 = arith.cmpi ne, %1, %c0_i32_0 : i32
    scf.if %2 {
      %cst_66 = arith.constant 0.000000e+00 : f32
      %99 = vector.broadcast %cst_66 : f32 to vector<20x18x32xf32>
      %c0_67 = arith.constant 0 : index
      %c0_68 = arith.constant 0 : index
      %c0_69 = arith.constant 0 : index
      %100 = vector.load %arg5[%c0_67, %c0_68, %c0_69] : memref<20x18x32xf32, #tpu.memory_space<vmem>>, vector<20x18x32xf32>
      tpu.vector_store %arg5[%c0_67, %c0_68, %c0_69], %99 {strides = array<i32>} : memref<20x18x32xf32, #tpu.memory_space<vmem>>, vector<20x18x32xf32>,
      %c0_70 = arith.constant 0 : index
      %c0_71 = arith.constant 0 : index
      %c0_72 = arith.constant 0 : index
      %c0_73 = arith.constant 0 : index
      %101 = vector.load %arg2[%c0_70, %c0_71, %c0_72, %c0_73] : memref<1x16x16x32xf32, #tpu.memory_space<vmem>>, vector<1x16x16x32xf32>
      %102 = vector.shape_cast %101 : vector<1x16x16x32xf32> to vector<16x16x32xf32>
      %c2_74 = arith.constant 2 : index
      %c1_75 = arith.constant 1 : index
      %c0_76 = arith.constant 0 : index
      %103 = vector.load %arg5[%c2_74, %c1_75, %c0_76] : memref<20x18x32xf32, #tpu.memory_space<vmem>>, vector<16x16x32xf32>
      tpu.vector_store %arg5[%c2_74, %c1_75, %c0_76], %102 {strides = array<i32>} : memref<20x18x32xf32, #tpu.memory_space<vmem>>, vector<16x16x32xf32>,
    } else {
    }
    %c8_i32 = arith.constant 8 : i32
    %3 = arith.muli %arg1, %c8_i32 : i32
    %cst = arith.constant 0.000000e+00 : f32
    %4 = vector.broadcast %cst : f32 to vector<128x2xf32>
    %c1_i32 = arith.constant 1 : i32
    %5 = arith.addi %3, %c1_i32 : i32
    %c0_i32_1 = arith.constant 0 : i32
    %6 = arith.addi %5, %c0_i32_1 : i32
    %7 = arith.index_cast %6 : i32 to index
    %c0 = arith.constant 0 : index
    %c0_2 = arith.constant 0 : index
    %8 = vector.load %arg5[%7, %c0, %c0_2] : memref<20x18x32xf32, #tpu.memory_space<vmem>>, vector<8x16x32xf32>
    %9 = vector.shape_cast %8 : vector<8x16x32xf32> to vector<128x32xf32>
    %10 = arith.truncf %9 : vector<128x32xf32> to vector<128x32xbf16>
    %c0_3 = arith.constant 0 : index
    %c0_4 = arith.constant 0 : index
    %c0_5 = arith.constant 0 : index
    %11 = vector.load %arg3[%c0_3, %c0_4, %c0_5] : memref<9x32x2xbf16, #tpu.memory_space<vmem>>, vector<1x32x2xbf16>
    %12 = vector.shape_cast %11 : vector<1x32x2xbf16> to vector<32x2xbf16>
    %cst_6 = arith.constant dense<0.000000e+00> : vector<128x2xf32>
    %13 = tpu.matmul %10, %12, %cst_6 {dimension_numbers = #tpu.dot_dimension_numbers<[1], [0], [0], [1], [0, 0, 1, 1], [], []>} : vector<128x32xbf16>, vector<32x2xbf16>, vector<128x2xf32> -> vector<128x2xf32>
    %14 = arith.addf %4, %13 : vector<128x2xf32>
    %c1_i32_7 = arith.constant 1 : i32
    %15 = arith.addi %3, %c1_i32_7 : i32
    %c0_i32_8 = arith.constant 0 : i32
    %16 = arith.addi %15, %c0_i32_8 : i32
    %17 = arith.index_cast %16 : i32 to index
    %c1 = arith.constant 1 : index
    %c0_9 = arith.constant 0 : index
    %18 = vector.load %arg5[%17, %c1, %c0_9] : memref<20x18x32xf32, #tpu.memory_space<vmem>>, vector<8x16x32xf32>
    %19 = vector.shape_cast %18 : vector<8x16x32xf32> to vector<128x32xf32>
    %20 = arith.truncf %19 : vector<128x32xf32> to vector<128x32xbf16>
    %c1_10 = arith.constant 1 : index
    %c0_11 = arith.constant 0 : index
    %c0_12 = arith.constant 0 : index
    %21 = vector.load %arg3[%c1_10, %c0_11, %c0_12] : memref<9x32x2xbf16, #tpu.memory_space<vmem>>, vector<1x32x2xbf16>
    %22 = vector.shape_cast %21 : vector<1x32x2xbf16> to vector<32x2xbf16>
    %cst_13 = arith.constant dense<0.000000e+00> : vector<128x2xf32>
    %23 = tpu.matmul %20, %22, %cst_13 {dimension_numbers = #tpu.dot_dimension_numbers<[1], [0], [0], [1], [0, 0, 1, 1], [], []>} : vector<128x32xbf16>, vector<32x2xbf16>, vector<128x2xf32> -> vector<128x2xf32>
    %24 = arith.addf %14, %23 : vector<128x2xf32>
    %c1_i32_14 = arith.constant 1 : i32
    %25 = arith.addi %3, %c1_i32_14 : i32
    %c0_i32_15 = arith.constant 0 : i32
    %26 = arith.addi %25, %c0_i32_15 : i32
    %27 = arith.index_cast %26 : i32 to index
    %c2 = arith.constant 2 : index
    %c0_16 = arith.constant 0 : index
    %28 = vector.load %arg5[%27, %c2, %c0_16] : memref<20x18x32xf32, #tpu.memory_space<vmem>>, vector<8x16x32xf32>
    %29 = vector.shape_cast %28 : vector<8x16x32xf32> to vector<128x32xf32>
    %30 = arith.truncf %29 : vector<128x32xf32> to vector<128x32xbf16>
    %c2_17 = arith.constant 2 : index
    %c0_18 = arith.constant 0 : index
    %c0_19 = arith.constant 0 : index
    %31 = vector.load %arg3[%c2_17, %c0_18, %c0_19] : memref<9x32x2xbf16, #tpu.memory_space<vmem>>, vector<1x32x2xbf16>
    %32 = vector.shape_cast %31 : vector<1x32x2xbf16> to vector<32x2xbf16>
    %cst_20 = arith.constant dense<0.000000e+00> : vector<128x2xf32>
    %33 = tpu.matmul %30, %32, %cst_20 {dimension_numbers = #tpu.dot_dimension_numbers<[1], [0], [0], [1], [0, 0, 1, 1], [], []>} : vector<128x32xbf16>, vector<32x2xbf16>, vector<128x2xf32> -> vector<128x2xf32>
    %34 = arith.addf %24, %33 : vector<128x2xf32>
    %c1_i32_21 = arith.constant 1 : i32
    %35 = arith.addi %3, %c1_i32_21 : i32
    %c1_i32_22 = arith.constant 1 : i32
    %36 = arith.addi %35, %c1_i32_22 : i32
    %37 = arith.index_cast %36 : i32 to index
    %c0_23 = arith.constant 0 : index
    %c0_24 = arith.constant 0 : index
    %38 = vector.load %arg5[%37, %c0_23, %c0_24] : memref<20x18x32xf32, #tpu.memory_space<vmem>>, vector<8x16x32xf32>
    %39 = vector.shape_cast %38 : vector<8x16x32xf32> to vector<128x32xf32>
    %40 = arith.truncf %39 : vector<128x32xf32> to vector<128x32xbf16>
    %c3 = arith.constant 3 : index
    %c0_25 = arith.constant 0 : index
    %c0_26 = arith.constant 0 : index
    %41 = vector.load %arg3[%c3, %c0_25, %c0_26] : memref<9x32x2xbf16, #tpu.memory_space<vmem>>, vector<1x32x2xbf16>
    %42 = vector.shape_cast %41 : vector<1x32x2xbf16> to vector<32x2xbf16>
    %cst_27 = arith.constant dense<0.000000e+00> : vector<128x2xf32>
    %43 = tpu.matmul %40, %42, %cst_27 {dimension_numbers = #tpu.dot_dimension_numbers<[1], [0], [0], [1], [0, 0, 1, 1], [], []>} : vector<128x32xbf16>, vector<32x2xbf16>, vector<128x2xf32> -> vector<128x2xf32>
    %44 = arith.addf %34, %43 : vector<128x2xf32>
    %c1_i32_28 = arith.constant 1 : i32
    %45 = arith.addi %3, %c1_i32_28 : i32
    %c1_i32_29 = arith.constant 1 : i32
    %46 = arith.addi %45, %c1_i32_29 : i32
    %47 = arith.index_cast %46 : i32 to index
    %c1_30 = arith.constant 1 : index
    %c0_31 = arith.constant 0 : index
    %48 = vector.load %arg5[%47, %c1_30, %c0_31] : memref<20x18x32xf32, #tpu.memory_space<vmem>>, vector<8x16x32xf32>
    %49 = vector.shape_cast %48 : vector<8x16x32xf32> to vector<128x32xf32>
    %50 = arith.truncf %49 : vector<128x32xf32> to vector<128x32xbf16>
    %c4 = arith.constant 4 : index
    %c0_32 = arith.constant 0 : index
    %c0_33 = arith.constant 0 : index
    %51 = vector.load %arg3[%c4, %c0_32, %c0_33] : memref<9x32x2xbf16, #tpu.memory_space<vmem>>, vector<1x32x2xbf16>
    %52 = vector.shape_cast %51 : vector<1x32x2xbf16> to vector<32x2xbf16>
    %cst_34 = arith.constant dense<0.000000e+00> : vector<128x2xf32>
    %53 = tpu.matmul %50, %52, %cst_34 {dimension_numbers = #tpu.dot_dimension_numbers<[1], [0], [0], [1], [0, 0, 1, 1], [], []>} : vector<128x32xbf16>, vector<32x2xbf16>, vector<128x2xf32> -> vector<128x2xf32>
    %54 = arith.addf %44, %53 : vector<128x2xf32>
    %c1_i32_35 = arith.constant 1 : i32
    %55 = arith.addi %3, %c1_i32_35 : i32
    %c1_i32_36 = arith.constant 1 : i32
    %56 = arith.addi %55, %c1_i32_36 : i32
    %57 = arith.index_cast %56 : i32 to index
    %c2_37 = arith.constant 2 : index
    %c0_38 = arith.constant 0 : index
    %58 = vector.load %arg5[%57, %c2_37, %c0_38] : memref<20x18x32xf32, #tpu.memory_space<vmem>>, vector<8x16x32xf32>
    %59 = vector.shape_cast %58 : vector<8x16x32xf32> to vector<128x32xf32>
    %60 = arith.truncf %59 : vector<128x32xf32> to vector<128x32xbf16>
    %c5 = arith.constant 5 : index
    %c0_39 = arith.constant 0 : index
    %c0_40 = arith.constant 0 : index
    %61 = vector.load %arg3[%c5, %c0_39, %c0_40] : memref<9x32x2xbf16, #tpu.memory_space<vmem>>, vector<1x32x2xbf16>
    %62 = vector.shape_cast %61 : vector<1x32x2xbf16> to vector<32x2xbf16>
    %cst_41 = arith.constant dense<0.000000e+00> : vector<128x2xf32>
    %63 = tpu.matmul %60, %62, %cst_41 {dimension_numbers = #tpu.dot_dimension_numbers<[1], [0], [0], [1], [0, 0, 1, 1], [], []>} : vector<128x32xbf16>, vector<32x2xbf16>, vector<128x2xf32> -> vector<128x2xf32>
    %64 = arith.addf %54, %63 : vector<128x2xf32>
    %c1_i32_42 = arith.constant 1 : i32
    %65 = arith.addi %3, %c1_i32_42 : i32
    %c2_i32 = arith.constant 2 : i32
    %66 = arith.addi %65, %c2_i32 : i32
    %67 = arith.index_cast %66 : i32 to index
    %c0_43 = arith.constant 0 : index
    %c0_44 = arith.constant 0 : index
    %68 = vector.load %arg5[%67, %c0_43, %c0_44] : memref<20x18x32xf32, #tpu.memory_space<vmem>>, vector<8x16x32xf32>
    %69 = vector.shape_cast %68 : vector<8x16x32xf32> to vector<128x32xf32>
    %70 = arith.truncf %69 : vector<128x32xf32> to vector<128x32xbf16>
    %c6 = arith.constant 6 : index
    %c0_45 = arith.constant 0 : index
    %c0_46 = arith.constant 0 : index
    %71 = vector.load %arg3[%c6, %c0_45, %c0_46] : memref<9x32x2xbf16, #tpu.memory_space<vmem>>, vector<1x32x2xbf16>
    %72 = vector.shape_cast %71 : vector<1x32x2xbf16> to vector<32x2xbf16>
    %cst_47 = arith.constant dense<0.000000e+00> : vector<128x2xf32>
    %73 = tpu.matmul %70, %72, %cst_47 {dimension_numbers = #tpu.dot_dimension_numbers<[1], [0], [0], [1], [0, 0, 1, 1], [], []>} : vector<128x32xbf16>, vector<32x2xbf16>, vector<128x2xf32> -> vector<128x2xf32>
    %74 = arith.addf %64, %73 : vector<128x2xf32>
    %c1_i32_48 = arith.constant 1 : i32
    %75 = arith.addi %3, %c1_i32_48 : i32
    %c2_i32_49 = arith.constant 2 : i32
    %76 = arith.addi %75, %c2_i32_49 : i32
    %77 = arith.index_cast %76 : i32 to index
    %c1_50 = arith.constant 1 : index
    %c0_51 = arith.constant 0 : index
    %78 = vector.load %arg5[%77, %c1_50, %c0_51] : memref<20x18x32xf32, #tpu.memory_space<vmem>>, vector<8x16x32xf32>
    %79 = vector.shape_cast %78 : vector<8x16x32xf32> to vector<128x32xf32>
    %80 = arith.truncf %79 : vector<128x32xf32> to vector<128x32xbf16>
    %c7 = arith.constant 7 : index
    %c0_52 = arith.constant 0 : index
    %c0_53 = arith.constant 0 : index
    %81 = vector.load %arg3[%c7, %c0_52, %c0_53] : memref<9x32x2xbf16, #tpu.memory_space<vmem>>, vector<1x32x2xbf16>
    %82 = vector.shape_cast %81 : vector<1x32x2xbf16> to vector<32x2xbf16>
    %cst_54 = arith.constant dense<0.000000e+00> : vector<128x2xf32>
    %83 = tpu.matmul %80, %82, %cst_54 {dimension_numbers = #tpu.dot_dimension_numbers<[1], [0], [0], [1], [0, 0, 1, 1], [], []>} : vector<128x32xbf16>, vector<32x2xbf16>, vector<128x2xf32> -> vector<128x2xf32>
    %84 = arith.addf %74, %83 : vector<128x2xf32>
    %c1_i32_55 = arith.constant 1 : i32
    %85 = arith.addi %3, %c1_i32_55 : i32
    %c2_i32_56 = arith.constant 2 : i32
    %86 = arith.addi %85, %c2_i32_56 : i32
    %87 = arith.index_cast %86 : i32 to index
    %c2_57 = arith.constant 2 : index
    %c0_58 = arith.constant 0 : index
    %88 = vector.load %arg5[%87, %c2_57, %c0_58] : memref<20x18x32xf32, #tpu.memory_space<vmem>>, vector<8x16x32xf32>
    %89 = vector.shape_cast %88 : vector<8x16x32xf32> to vector<128x32xf32>
    %90 = arith.truncf %89 : vector<128x32xf32> to vector<128x32xbf16>
    %c8 = arith.constant 8 : index
    %c0_59 = arith.constant 0 : index
    %c0_60 = arith.constant 0 : index
    %91 = vector.load %arg3[%c8, %c0_59, %c0_60] : memref<9x32x2xbf16, #tpu.memory_space<vmem>>, vector<1x32x2xbf16>
    %92 = vector.shape_cast %91 : vector<1x32x2xbf16> to vector<32x2xbf16>
    %cst_61 = arith.constant dense<0.000000e+00> : vector<128x2xf32>
    %93 = tpu.matmul %90, %92, %cst_61 {dimension_numbers = #tpu.dot_dimension_numbers<[1], [0], [0], [1], [0, 0, 1, 1], [], []>} : vector<128x32xbf16>, vector<32x2xbf16>, vector<128x2xf32> -> vector<128x2xf32>
    %94 = arith.addf %84, %93 : vector<128x2xf32>
    %95 = vector.shape_cast %94 : vector<128x2xf32> to vector<8x16x2xf32>
    %c0_62 = arith.constant 0 : index
    %c0_63 = arith.constant 0 : index
    %c0_64 = arith.constant 0 : index
    %c0_65 = arith.constant 0 : index
    %96 = vector.load %arg4[%c0_62, %c0_63, %c0_64, %c0_65] : memref<1x8x16x2xf32, #tpu.memory_space<vmem>>, vector<1x8x16x2xf32>
    %97 = vector.shape_cast %96 : vector<1x8x16x2xf32> to vector<8x16x2xf32>
    %98 = vector.shape_cast %95 : vector<8x16x2xf32> to vector<1x8x16x2xf32>
    tpu.vector_store %arg4[%c0_62, %c0_63, %c0_64, %c0_65], %98 {strides = array<i32>} : memref<1x8x16x2xf32, #tpu.memory_space<vmem>>, vector<1x8x16x2xf32>,
    return
  }
  func.func @transform_0(%arg0: i32, %arg1: i32) -> (i32, i32, i32, i32) {
    %c0_i32 = arith.constant 0 : i32
    %c0_i32_0 = arith.constant 0 : i32
    %c0_i32_1 = arith.constant 0 : i32
    %c0_i32_2 = arith.constant 0 : i32
    return %arg0, %c0_i32, %c0_i32_0, %c0_i32_1 : i32, i32, i32, i32
  }
  func.func @transform_1(%arg0: i32, %arg1: i32) -> (i32, i32, i32) {
    %c0_i32 = arith.constant 0 : i32
    %c0_i32_0 = arith.constant 0 : i32
    %c0_i32_1 = arith.constant 0 : i32
    %c0_i32_2 = arith.constant 0 : i32
    return %c0_i32, %c0_i32_0, %c0_i32_1 : i32, i32, i32
  }
  func.func @transform_2(%arg0: i32, %arg1: i32) -> (i32, i32, i32, i32) {
    %c0_i32 = arith.constant 0 : i32
    %c0_i32_0 = arith.constant 0 : i32
    %c0_i32_1 = arith.constant 0 : i32
    return %arg0, %arg1, %c0_i32, %c0_i32_0 : i32, i32, i32, i32
  }
}

</mosaic_0001>

<llo_original>
// kernel: resnet_forward.9
$region0: #{resnet_forward.9}
  #allocation0 [shape = 'u32[]', space=smem, size = 0x4, offset = 0x4, fixed_abs, tag = 'smem constant byte address 0x4 - core index']
  #allocation1 [shape = 'u32[144,128]{1,0:T(1,128)}', space=vmem, size = 0x12000, scoped, tag = 'internal scratch']
  #allocation2 [shape = 'f32[20,18,32]{2,1,0:T(8,128)}', space=vmem, size = 0x3c000, scoped, tag = 'scratch operand']
  %s0 = inlined_call_operand.vmem [shape: f32[2,16,16,32], index: 0, kind: input, shape index: {}]
  %s1 = inlined_call_operand.vmem [shape: bf16[9,32,2], index: 1, kind: input, shape index: {}]
  %s2 = inlined_call_operand.vmem [shape: f32[2,16,16,2], index: 2, kind: output, shape index: {}]
  %s3 = sld [smem:[#allocation0]]
  $region45: #{resnet_forward.9} parent=0
    _
  %s5 = ssub.s32 1, %s3
  %s6 = scalar_select 0, %s5, %s3
  loop: start=0, step=1, limit=6
  $region2: #{resnet_forward.9} parent=0 // loop_pre_header
    _
  $region3: #{resnet_forward.9} parent=0 // loop_header
    %s8 = sphi 0, %s12
    %p9 = scmp.ge.s32.totalorder %s8, 6
    %s15 = sphi 0, %s27
    %s16 = sphi 0, %s23
    %s17 = sphi 0, %s15
    %s18 = sphi 0, %s16
    %s19 = sphi 0, %s17
    %s20 = sphi 0, %s18
    %s30 = sphi 0, %s32
    %s33 = sphi 0, %s30
    %s34 = sphi 0, %s33
    %s50 = sphi 0, %s34
    %s54 = sphi 0, %s54
    %s56 = sphi 0, %s54
    %s57 = sphi 0, %s56
    %s71 = sphi 0, %s57
    %s79 = sphi 0, %s81
    %s82 = sphi 0, %s79
    %s83 = sphi 0, %s82
    %s99 = sphi 0, %s83
  $region4: #{resnet_forward.9} parent=0 // loop_header_branch
    %11 = sbr.rel (%p9) target = $region8
  $region5: #{resnet_forward.9} parent=0 // loop_body
    %s13 = ssub.s32 %s8, 1
    %s14 = ssub.s32 %s8, 2
    %s21 = sadd.s32 1, %s16
    %p22 = scmp.ge.s32.totalorder %s21, 2
    %s23 = scalar_select %p22, 0, %s21
    %s24 = sadd.s32 1, %s15
    %s25 = scalar_select %p22, %s24, %s15
    %p26 = scmp.ge.s32.totalorder %s25, 2
    %s27 = scalar_select %p26, 0, %s25
    %s28 = ssub.s32 %s15, %s27
    %p29 = scmp.eq.s32.totalorder %s28, 0
    %s31 = sadd.s32 %s30, 1
    %s32 = scalar_select %p29, %s30, %s31
    %p35 = pneg %p29
    %p36 = scmp.eq.s32.totalorder %s8, 3
    %p37 = por %p35, %p36
    %p38 = scmp.ne.s32.totalorder %s30, %s33
    %p39 = scmp.eq.s32.totalorder %s8, 0
    %p40 = por %p38, %p39
    %p41 = scmp.ne.s32.totalorder %s30, %s33
    %p42 = scmp.eq.s32.totalorder %s13, 3
    %p43 = por %p41, %p42
    %p44 = scmp.ne.s32.totalorder %s33, %s34
    %p45 = scmp.eq.s32.totalorder %s13, 0
    %p46 = por %p44, %p45
    %p47 = scmp.ne.s32.totalorder %s33, %s34
    %p48 = scmp.eq.s32.totalorder %s14, 3
    %p49 = por %p47, %p48
    %p51 = scmp.ne.s32.totalorder %s34, %s50
    %p52 = scmp.eq.s32.totalorder %s14, 0
    %p53 = por %p51, %p52
    %s55 = sadd.s32 %s54, 1
    %p58 = scmp.eq.s32.totalorder %s8, 3
    %p59 = scmp.ne.s32.totalorder %s54, %s56
    %p60 = scmp.eq.s32.totalorder %s8, 0
    %p61 = por %p59, %p60
    %p62 = scmp.ne.s32.totalorder %s54, %s56
    %p63 = scmp.eq.s32.totalorder %s13, 3
    %p64 = por %p62, %p63
    %p65 = scmp.ne.s32.totalorder %s56, %s57
    %p66 = scmp.eq.s32.totalorder %s13, 0
    %p67 = por %p65, %p66
    %p68 = scmp.ne.s32.totalorder %s56, %s57
    %p69 = scmp.eq.s32.totalorder %s14, 3
    %p70 = por %p68, %p69
    %p72 = scmp.ne.s32.totalorder %s57, %s71
    %p73 = scmp.eq.s32.totalorder %s14, 0
    %p74 = por %p72, %p73
    %s75 = ssub.s32 %s15, %s27
    %s76 = ssub.s32 %s16, %s23
    %s77 = sor.u32 %s75, %s76
    %p78 = scmp.eq.s32.totalorder %s77, 0
    %s80 = sadd.s32 %s79, 1
    %s81 = scalar_select %p78, %s79, %s80
    %p84 = pneg %p78
    %p85 = scmp.eq.s32.totalorder %s8, 3
    %p86 = por %p84, %p85
    %p87 = scmp.ne.s32.totalorder %s79, %s82
    %p88 = scmp.eq.s32.totalorder %s8, 0
    %p89 = por %p87, %p88
    %p90 = scmp.ne.s32.totalorder %s79, %s82
    %p91 = scmp.eq.s32.totalorder %s13, 3
    %p92 = por %p90, %p91
    %p93 = scmp.ne.s32.totalorder %s82, %s83
    %p94 = scmp.eq.s32.totalorder %s13, 0
    %p95 = por %p93, %p94
    %p96 = scmp.ne.s32.totalorder %s82, %s83
    %p97 = scmp.eq.s32.totalorder %s14, 3
    %p98 = por %p96, %p97
    %p100 = scmp.ne.s32.totalorder %s83, %s99
    %p101 = scmp.eq.s32.totalorder %s14, 0
    %p102 = por %p100, %p101
    %p103 = scmp.le.s32.totalorder 1, %s8
    %p104 = scmp.lt.s32.totalorder %s8, 5
    %p105 = pnand %p103, %p104
    %p106 = pneg %p105
    // Predicated region
    $region9: #{resnet_forward.9} parent=5 // pred_check
      _
    $region10: #{resnet_forward.9} parent=5 // pred_check_branch
      %108 = sbr.rel (%p105) target = $region12
    $region11: #{resnet_forward.9} parent=5 // pred_region
      %s109 = ssub.s32 %s8, 1
      // Predicated region
      $region13: #{resnet_forward.9} parent=11 // pred_check
        %p110 = pneg %p67
      $region14: #{resnet_forward.9} parent=11 // pred_check_branch
        %112 = sbr.rel (%p110) target = $region16
      $region15: #{resnet_forward.9} parent=11 // pred_region
        _
      $region16: #{resnet_forward.9} parent=11 // pred_fallthru
        _
    $region12: #{resnet_forward.9} parent=5 // pred_fallthru
      _
    %p113 = scmp.lt.s32.totalorder %s8, 4
    // Predicated region
    $region17: #{resnet_forward.9} parent=5 // pred_check
      %p114 = pneg %p113
    $region18: #{resnet_forward.9} parent=5 // pred_check_branch
      %116 = sbr.rel (%p114) target = $region20
    $region19: #{resnet_forward.9} parent=5 // pred_region
      // Predicated region
      $region21: #{resnet_forward.9} parent=19 // pred_check
        %p117 = pneg %p40
      $region22: #{resnet_forward.9} parent=19 // pred_check_branch
        %119 = sbr.rel (%p117) target = $region24
      $region23: #{resnet_forward.9} parent=19 // pred_region
        %p120 = scmp.lt.s32.totalorder %s15, 1
        %s121 = scalar_select %p120, %s15, 1
        %s122 = smul.addr %s121, 32
        %s123 = smul.addr %s122, 8
        %s124 = scalar_lea.vmem %s0, %s123
      $region24: #{resnet_forward.9} parent=19 // pred_fallthru
        _
    $region20: #{resnet_forward.9} parent=5 // pred_fallthru
      _
    %p125 = scmp.le.s32.totalorder 1, %s8
    %p126 = scmp.lt.s32.totalorder %s8, 5
    %p127 = pnand %p125, %p126
    %p128 = pneg %p127
    // Predicated region
    $region25: #{resnet_forward.9} parent=5 // pred_check
      _
    $region26: #{resnet_forward.9} parent=5 // pred_check_branch
      %130 = sbr.rel (%p127) target = $region28
    $region27: #{resnet_forward.9} parent=5 // pred_region
      %s131 = ssub.s32 %s8, 1
      %p132 = scmp.lt.s32.totalorder %s17, 1
      %s133 = scalar_select %p132, %s17, 1
      %s134 = smul.addr %s133, 32
      %s135 = smul.addr %s134, 8
      %s136 = scalar_lea.vmem %s0, %s135
      %p137 = pneg %p46
      %p138 = pneg %p43
      %p139 = pneg %p67
      %p140 = pneg %p64
      %p141 = pneg %p95
      %p142 = pneg %p92
      %s143 = smul.u32 8, %s18
      %p144 = scmp.lt.s32.totalorder %s17, 1
      %s145 = scalar_select %p144, %s17, 1
      %p146 = scmp.lt.s32.totalorder %s143, 15
      %s147 = scalar_select %p146, %s143, 15
      %s148 = smul.addr %s147, 2
      %s149 = smul.addr %s145, 32
      %s150 = sadd.s32 %s148, %s149
      %s151 = smul.addr %s150, 8
      %s152 = scalar_lea.vmem %s2, %s151
      %p153 = scmp.lt.s32.totalorder %s17, 1
      %s154 = scalar_select %p153, %s17, 1
      %s155 = smul.addr %s154, 32
      %s156 = smul.addr %s155, 8
      %s157 = scalar_lea.vmem %s0, %s156
      %s158 = smul.u32 8, %s18
      %p159 = scmp.lt.s32.totalorder %s17, 1
      %s160 = scalar_select %p159, %s17, 1
      %p161 = scmp.lt.s32.totalorder %s158, 15
      %s162 = scalar_select %p161, %s158, 15
      %s163 = smul.addr %s162, 2
      %s164 = smul.addr %s160, 32
      %s165 = sadd.s32 %s163, %s164
      %s166 = smul.addr %s165, 8
      %s167 = scalar_lea.vmem %s2, %s166
      %s168 = smul.u32 8, %s18
      %p170 = scmp.eq.s32.totalorder %s18, 0
      // Predicated region
      $region29: #{resnet_forward.9} parent=27 // pred_check
        %p171 = pneg %p170
      $region30: #{resnet_forward.9} parent=27 // pred_check_branch
        %173 = sbr.rel (%p171) target = $region32
      $region31: #{resnet_forward.9} parent=27 // pred_region
        %vm174 = vcmask 261120
        %175 = vst.msk [vmem:[#allocation2] sm:$0xff] %vm174, 0.0
        %176 = vst.msk [vmem:[#allocation2 + $0x8] sm:$0xff] %vm174, 0.0
        %vm177 = vcmask 254976
        %178 = vst.msk [vmem:[#allocation2 + $0x10] sm:$0x3] %vm177, 0.0
        %179 = vst.msk [vmem:[#allocation2 + $0x18] sm:$0xff] %vm174, 0.0
        %180 = vst.msk [vmem:[#allocation2 + $0x20] sm:$0xff] %vm174, 0.0
        %181 = vst.msk [vmem:[#allocation2 + $0x28] sm:$0x3] %vm177, 0.0
        %182 = vst.msk [vmem:[#allocation2 + $0x30] sm:$0xff] %vm174, 0.0
        %183 = vst.msk [vmem:[#allocation2 + $0x38] sm:$0xff] %vm174, 0.0
        %184 = vst.msk [vmem:[#allocation2 + $0x40] sm:$0x3] %vm177, 0.0
        %185 = vst.msk [vmem:[#allocation2 + $0x48] sm:$0xff] %vm174, 0.0
        %186 = vst.msk [vmem:[#allocation2 + $0x50] sm:$0xff] %vm174, 0.0
        %187 = vst.msk [vmem:[#allocation2 + $0x58] sm:$0x3] %vm177, 0.0
        %188 = vst.msk [vmem:[#allocation2 + $0x60] sm:$0xff] %vm174, 0.0
        %189 = vst.msk [vmem:[#allocation2 + $0x68] sm:$0xff] %vm174, 0.0
        %190 = vst.msk [vmem:[#allocation2 + $0x70] sm:$0x3] %vm177, 0.0
        %191 = vst.msk [vmem:[#allocation2 + $0x78] sm:$0xff] %vm174, 0.0
        %192 = vst.msk [vmem:[#allocation2 + $0x80] sm:$0xff] %vm174, 0.0
        %193 = vst.msk [vmem:[#allocation2 + $0x88] sm:$0x3] %vm177, 0.0
        %194 = vst.msk [vmem:[#allocation2 + $0x90] sm:$0xff] %vm174, 0.0
        %195 = vst.msk [vmem:[#allocation2 + $0x98] sm:$0xff] %vm174, 0.0
        %196 = vst.msk [vmem:[#allocation2 + $0xa0] sm:$0x3] %vm177, 0.0
        %197 = vst.msk [vmem:[#allocation2 + $0xa8] sm:$0xff] %vm174, 0.0
        %198 = vst.msk [vmem:[#allocation2 + $0xb0] sm:$0xff] %vm174, 0.0
        %199 = vst.msk [vmem:[#allocation2 + $0xb8] sm:$0x3] %vm177, 0.0
        %200 = vst.msk [vmem:[#allocation2 + $0xc0] sm:$0xff] %vm174, 0.0
        %201 = vst.msk [vmem:[#allocation2 + $0xc8] sm:$0xff] %vm174, 0.0
        %202 = vst.msk [vmem:[#allocation2 + $0xd0] sm:$0x3] %vm177, 0.0
        %203 = vst.msk [vmem:[#allocation2 + $0xd8] sm:$0xff] %vm174, 0.0
        %204 = vst.msk [vmem:[#allocation2 + $0xe0] sm:$0xff] %vm174, 0.0
        %205 = vst.msk [vmem:[#allocation2 + $0xe8] sm:$0x3] %vm177, 0.0
        %206 = vst.msk [vmem:[#allocation2 + $0xf0] sm:$0xff] %vm174, 0.0
        %207 = vst.msk [vmem:[#allocation2 + $0xf8] sm:$0xff] %vm174, 0.0
        %208 = vst.msk [vmem:[#allocation2 + $0x100] sm:$0x3] %vm177, 0.0
        %209 = vst.msk [vmem:[#allocation2 + $0x108] sm:$0xff] %vm174, 0.0
        %210 = vst.msk [vmem:[#allocation2 + $0x110] sm:$0xff] %vm174, 0.0
        %211 = vst.msk [vmem:[#allocation2 + $0x118] sm:$0x3] %vm177, 0.0
        %212 = vst.msk [vmem:[#allocation2 + $0x120] sm:$0xff] %vm174, 0.0
        %213 = vst.msk [vmem:[#allocation2 + $0x128] sm:$0xff] %vm174, 0.0
        %214 = vst.msk [vmem:[#allocation2 + $0x130] sm:$0x3] %vm177, 0.0
        %215 = vst.msk [vmem:[#allocation2 + $0x138] sm:$0xff] %vm174, 0.0
        %216 = vst.msk [vmem:[#allocation2 + $0x140] sm:$0xff] %vm174, 0.0
        %217 = vst.msk [vmem:[#allocation2 + $0x148] sm:$0x3] %vm177, 0.0
        %218 = vst.msk [vmem:[#allocation2 + $0x150] sm:$0xff] %vm174, 0.0
        %219 = vst.msk [vmem:[#allocation2 + $0x158] sm:$0xff] %vm174, 0.0
        %220 = vst.msk [vmem:[#allocation2 + $0x160] sm:$0x3] %vm177, 0.0
        %221 = vst.msk [vmem:[#allocation2 + $0x168] sm:$0xff] %vm174, 0.0
        %222 = vst.msk [vmem:[#allocation2 + $0x170] sm:$0xff] %vm174, 0.0
        %223 = vst.msk [vmem:[#allocation2 + $0x178] sm:$0x3] %vm177, 0.0
        %224 = vst.msk [vmem:[#allocation2 + $0x180] sm:$0xff] %vm174, 0.0
        %225 = vst.msk [vmem:[#allocation2 + $0x188] sm:$0xff] %vm174, 0.0
        %226 = vst.msk [vmem:[#allocation2 + $0x190] sm:$0x3] %vm177, 0.0
        %227 = vst.msk [vmem:[#allocation2 + $0x198] sm:$0xff] %vm174, 0.0
        %228 = vst.msk [vmem:[#allocation2 + $0x1a0] sm:$0xff] %vm174, 0.0
        %229 = vst.msk [vmem:[#allocation2 + $0x1a8] sm:$0x3] %vm177, 0.0
        %230 = vst.msk [vmem:[#allocation2 + $0x1b0] sm:$0xff] %vm174, 0.0
        %231 = vst.msk [vmem:[#allocation2 + $0x1b8] sm:$0xff] %vm174, 0.0
        %232 = vst.msk [vmem:[#allocation2 + $0x1c0] sm:$0x3] %vm177, 0.0
        %233 = vst.msk [vmem:[#allocation2 + $0x1c8] sm:$0xff] %vm174, 0.0
        %234 = vst.msk [vmem:[#allocation2 + $0x1d0] sm:$0xff] %vm174, 0.0
        %235 = vst.msk [vmem:[#allocation2 + $0x1d8] sm:$0x3] %vm177, 0.0
        %v236 = vld [vmem:[%s157] sm:$0xff]
        %v237 = vld [vmem:[%s157 + $0x8] sm:$0xff]
        %v238 = vld [vmem:[%s157 + $0x10] sm:$0xff]
        %v239 = vld [vmem:[%s157 + $0x18] sm:$0xff]
        %v240 = vld [vmem:[%s157 + $0x20] sm:$0xff]
        %v241 = vld [vmem:[%s157 + $0x28] sm:$0xff]
        %v242 = vld [vmem:[%s157 + $0x30] sm:$0xff]
        %v243 = vld [vmem:[%s157 + $0x38] sm:$0xff]
        %v244 = vld [vmem:[%s157 + $0x40] sm:$0xff]
        %v245 = vld [vmem:[%s157 + $0x48] sm:$0xff]
        %v246 = vld [vmem:[%s157 + $0x50] sm:$0xff]
        %v247 = vld [vmem:[%s157 + $0x58] sm:$0xff]
        %v248 = vld [vmem:[%s157 + $0x60] sm:$0xff]
        %v249 = vld [vmem:[%s157 + $0x68] sm:$0xff]
        %v250 = vld [vmem:[%s157 + $0x70] sm:$0xff]
        %v251 = vld [vmem:[%s157 + $0x78] sm:$0xff]
        %v252 = vld [vmem:[%s157 + $0x80] sm:$0xff]
        %v253 = vld [vmem:[%s157 + $0x88] sm:$0xff]
        %v254 = vld [vmem:[%s157 + $0x90] sm:$0xff]
        %v255 = vld [vmem:[%s157 + $0x98] sm:$0xff]
        %v256 = vld [vmem:[%s157 + $0xa0] sm:$0xff]
        %v257 = vld [vmem:[%s157 + $0xa8] sm:$0xff]
        %v258 = vld [vmem:[%s157 + $0xb0] sm:$0xff]
        %v259 = vld [vmem:[%s157 + $0xb8] sm:$0xff]
        %v260 = vld [vmem:[%s157 + $0xc0] sm:$0xff]
        %v261 = vld [vmem:[%s157 + $0xc8] sm:$0xff]
        %v262 = vld [vmem:[%s157 + $0xd0] sm:$0xff]
        %v263 = vld [vmem:[%s157 + $0xd8] sm:$0xff]
        %v264 = vld [vmem:[%s157 + $0xe0] sm:$0xff]
        %v265 = vld [vmem:[%s157 + $0xe8] sm:$0xff]
        %v266 = vld [vmem:[%s157 + $0xf0] sm:$0xff]
        %v267 = vld [vmem:[%s157 + $0xf8] sm:$0xff]
        %s268 = scalar_lea.vmem [#allocation2], 48
        %269 = vst.msk [vmem:[%s268 + $0x1] sm:$0xff] %vm174, %v236
        %270 = vst.msk [vmem:[%s268 + $0x9] sm:$0xff] %vm174, %v237
        %271 = vst.msk [vmem:[%s268 + $0x19] sm:$0xff] %vm174, %v238
        %272 = vst.msk [vmem:[%s268 + $0x21] sm:$0xff] %vm174, %v239
        %273 = vst.msk [vmem:[%s268 + $0x31] sm:$0xff] %vm174, %v240
        %274 = vst.msk [vmem:[%s268 + $0x39] sm:$0xff] %vm174, %v241
        %275 = vst.msk [vmem:[%s268 + $0x49] sm:$0xff] %vm174, %v242
        %276 = vst.msk [vmem:[%s268 + $0x51] sm:$0xff] %vm174, %v243
        %277 = vst.msk [vmem:[%s268 + $0x61] sm:$0xff] %vm174, %v244
        %278 = vst.msk [vmem:[%s268 + $0x69] sm:$0xff] %vm174, %v245
        %279 = vst.msk [vmem:[%s268 + $0x79] sm:$0xff] %vm174, %v246
        %280 = vst.msk [vmem:[%s268 + $0x81] sm:$0xff] %vm174, %v247
        %281 = vst.msk [vmem:[%s268 + $0x91] sm:$0xff] %vm174, %v248
        %282 = vst.msk [vmem:[%s268 + $0x99] sm:$0xff] %vm174, %v249
        %283 = vst.msk [vmem:[%s268 + $0xa9] sm:$0xff] %vm174, %v250
        %284 = vst.msk [vmem:[%s268 + $0xb1] sm:$0xff] %vm174, %v251
        %285 = vst.msk [vmem:[%s268 + $0xc1] sm:$0xff] %vm174, %v252
        %286 = vst.msk [vmem:[%s268 + $0xc9] sm:$0xff] %vm174, %v253
        %287 = vst.msk [vmem:[%s268 + $0xd9] sm:$0xff] %vm174, %v254
        %288 = vst.msk [vmem:[%s268 + $0xe1] sm:$0xff] %vm174, %v255
        %289 = vst.msk [vmem:[%s268 + $0xf1] sm:$0xff] %vm174, %v256
        %290 = vst.msk [vmem:[%s268 + $0xf9] sm:$0xff] %vm174, %v257
        %291 = vst.msk [vmem:[%s268 + $0x109] sm:$0xff] %vm174, %v258
        %292 = vst.msk [vmem:[%s268 + $0x111] sm:$0xff] %vm174, %v259
        %293 = vst.msk [vmem:[%s268 + $0x121] sm:$0xff] %vm174, %v260
        %294 = vst.msk [vmem:[%s268 + $0x129] sm:$0xff] %vm174, %v261
        %295 = vst.msk [vmem:[%s268 + $0x139] sm:$0xff] %vm174, %v262
        %296 = vst.msk [vmem:[%s268 + $0x141] sm:$0xff] %vm174, %v263
        %297 = vst.msk [vmem:[%s268 + $0x151] sm:$0xff] %vm174, %v264
        %298 = vst.msk [vmem:[%s268 + $0x159] sm:$0xff] %vm174, %v265
        %299 = vst.msk [vmem:[%s268 + $0x169] sm:$0xff] %vm174, %v266
        %300 = vst.msk [vmem:[%s268 + $0x171] sm:$0xff] %vm174, %v267
      $region32: #{resnet_forward.9} parent=27 // pred_fallthru
        _
      %s301 = smul.u32 %s18, 8
      %s302 = sadd.s32 %s301, 1
      %s303 = smul.u32 %s302, 24
      %s304 = scalar_lea.vmem [#allocation2], %s303
      %v305 = vld [vmem:[%s304] sm:$0xff]
      %v306 = vld [vmem:[%s304 + $0x8] sm:$0xff]
      %v307 = vld [vmem:[%s304 + $0x18] sm:$0xff]
      %v308 = vld [vmem:[%s304 + $0x20] sm:$0xff]
      %v309 = vld [vmem:[%s304 + $0x30] sm:$0xff]
      %v310 = vld [vmem:[%s304 + $0x38] sm:$0xff]
      %v311 = vld [vmem:[%s304 + $0x48] sm:$0xff]
      %v312 = vld [vmem:[%s304 + $0x50] sm:$0xff]
      %v313 = vld [vmem:[%s304 + $0x60] sm:$0xff]
      %v314 = vld [vmem:[%s304 + $0x68] sm:$0xff]
      %v315 = vld [vmem:[%s304 + $0x78] sm:$0xff]
      %v316 = vld [vmem:[%s304 + $0x80] sm:$0xff]
      %v317 = vld [vmem:[%s304 + $0x90] sm:$0xff]
      %v318 = vld [vmem:[%s304 + $0x98] sm:$0xff]
      %v319 = vld [vmem:[%s304 + $0xa8] sm:$0xff]
      %v320 = vld [vmem:[%s304 + $0xb0] sm:$0xff]
      %v321 = vpack.c.bf16 %v306, %v305
      %v322 = vpack.c.bf16 %v308, %v307
      %v323 = vpack.c.bf16 %v310, %v309
      %v324 = vpack.c.bf16 %v312, %v311
      %v325 = vpack.c.bf16 %v314, %v313
      %v326 = vpack.c.bf16 %v316, %v315
      %v327 = vpack.c.bf16 %v318, %v317
      %v328 = vpack.c.bf16 %v320, %v319
      %v329 = vld [vmem:[%s1] sm:$0xf]
      %v330 = vld [vmem:[%s1 + $0x4] sm:$0xf]
      %v331 = vld [vmem:[%s1 + $0x8] sm:$0xf]
      %v332 = vld [vmem:[%s1 + $0xc] sm:$0xf]
      %v333 = vld [vmem:[%s304 + $0x1] sm:$0xff]
      %v334 = vld [vmem:[%s304 + $0x9] sm:$0xff]
      %v335 = vld [vmem:[%s304 + $0x19] sm:$0xff]
      %v336 = vld [vmem:[%s304 + $0x21] sm:$0xff]
      %v337 = vld [vmem:[%s304 + $0x31] sm:$0xff]
      %v338 = vld [vmem:[%s304 + $0x39] sm:$0xff]
      %v339 = vld [vmem:[%s304 + $0x49] sm:$0xff]
      %v340 = vld [vmem:[%s304 + $0x51] sm:$0xff]
      %v341 = vld [vmem:[%s304 + $0x61] sm:$0xff]
      %v342 = vld [vmem:[%s304 + $0x69] sm:$0xff]
      %v343 = vld [vmem:[%s304 + $0x79] sm:$0xff]
      %v344 = vld [vmem:[%s304 + $0x81] sm:$0xff]
      %v345 = vld [vmem:[%s304 + $0x91] sm:$0xff]
      %v346 = vld [vmem:[%s304 + $0x99] sm:$0xff]
      %v347 = vld [vmem:[%s304 + $0xa9] sm:$0xff]
      %v348 = vld [vmem:[%s304 + $0xb1] sm:$0xff]
      %v349 = vpack.c.bf16 %v334, %v333
      %v350 = vpack.c.bf16 %v336, %v335
      %v351 = vpack.c.bf16 %v338, %v337
      %v352 = vpack.c.bf16 %v340, %v339
      %v353 = vpack.c.bf16 %v342, %v341
      %v354 = vpack.c.bf16 %v344, %v343
      %v355 = vpack.c.bf16 %v346, %v345
      %v356 = vpack.c.bf16 %v348, %v347
      %s357 = scalar_lea.vmem %s1, 16
      %v358 = vld [vmem:[%s357] sm:$0xf]
      %v359 = vld [vmem:[%s357 + $0x4] sm:$0xf]
      %v360 = vld [vmem:[%s357 + $0x8] sm:$0xf]
      %v361 = vld [vmem:[%s357 + $0xc] sm:$0xf]
      %v366 = vunpack.c.l.b16 %v358
      %v367 = vunpack.c.l.b16 %v359
      %v368 = vunpack.c.l.b16 %v360
      %v369 = vunpack.c.l.b16 %v361
      %v370 = vpack.c.b16 %v367, %v366
      %v371 = vpack.c.b16 %v369, %v368
      %vm374 = vcmask 261120
      %v376 = vsel %vm374, %v349, 0
      %v379 = vsel %vm374, %v350, 0
      %v382 = vsel %vm374, %v351, 0
      %v385 = vsel %vm374, %v352, 0
      %v388 = vsel %vm374, %v353, 0
      %v391 = vsel %vm374, %v354, 0
      %v394 = vsel %vm374, %v355, 0
      %v397 = vsel %vm374, %v356, 0
      %399 = vmatprep.subr.bf16.mxu0 0
      %400 = vmatpush1.bf16.msra.mxu0 %v370
      %401 = vmatprep.subr.bf16.mxu0 0
      %402 = vmatpush1.bf16.msra.mxu0 %v371
      %403 = vmatprep.subr.bf16.mxu0 0
      %404 = vmatpush1.bf16.msra.mxu0 0
      %405 = vmatprep.subr.bf16.mxu0 0
      %406 = vmatpush1.bf16.msra.mxu0 0
      %407 = vmatprep.subr.bf16.mxu0 0
      %408 = vmatpush1.bf16.msra.mxu0 0
      %409 = vmatprep.subr.bf16.mxu0 0
      %410 = vmatpush1.bf16.msra.mxu0 0
      %411 = vmatprep.subr.bf16.mxu0 0
      %412 = vmatpush1.bf16.msra.mxu0 0
      %413 = vmatprep.subr.bf16.mxu0 0
      %414 = vmatpush1.bf16.msra.mxu0 0
      %415 = vmatprep.subr.bf16.mxu0 0
      %416 = vmatpush1.bf16.msra.mxu0 0
      %417 = vmatprep.subr.bf16.mxu0 0
      %418 = vmatpush1.bf16.msra.mxu0 0
      %419 = vmatprep.subr.bf16.mxu0 0
      %420 = vmatpush1.bf16.msra.mxu0 0
      %421 = vmatprep.subr.bf16.mxu0 0
      %422 = vmatpush1.bf16.msra.mxu0 0
      %423 = vmatprep.subr.bf16.mxu0 0
      %424 = vmatpush1.bf16.msra.mxu0 0
      %425 = vmatprep.subr.bf16.mxu0 0
      %426 = vmatpush1.bf16.msra.mxu0 0
      %427 = vmatprep.subr.bf16.mxu0 0
      %428 = vmatpush1.bf16.msra.mxu0 0
      %429 = vmatprep.subr.bf16.mxu0 0
      %430 = vmatpush1.bf16.msra.mxu0 0
      %431 = vmatprep.mubr.bf16.mxu0 0
      %432 = vmatmul.mubr.bf16.gmra.mrb[0].mxu0 %v376
      %v433 = vpop.f32.mrb[0].mxu0
      %v434 = vadd.f32 0.0, %v433
      %v435 = vpop.f32.mrb[0].mxu0
      %v436 = vpop.f32.mrb[0].mxu0
      %v437 = vadd.f32 0.0, %v436
      %v438 = vpop.f32.mrb[0].mxu0
      %439 = vmatprep.mubr.bf16.mxu0 0
      %440 = vmatmul.mubr.bf16.gmra.mrb[0].mxu0 %v379
      %v441 = vpop.f32.mrb[0].mxu0
      %v442 = vadd.f32 0.0, %v441
      %v443 = vpop.f32.mrb[0].mxu0
      %v444 = vpop.f32.mrb[0].mxu0
      %v445 = vadd.f32 0.0, %v444
      %v446 = vpop.f32.mrb[0].mxu0
      %447 = vmatprep.mubr.bf16.mxu0 0
      %448 = vmatmul.mubr.bf16.gmra.mrb[0].mxu0 %v382
      %v449 = vpop.f32.mrb[0].mxu0
      %v450 = vadd.f32 0.0, %v449
      %v451 = vpop.f32.mrb[0].mxu0
      %v452 = vpop.f32.mrb[0].mxu0
      %v453 = vadd.f32 0.0, %v452
      %v454 = vpop.f32.mrb[0].mxu0
      %455 = vmatprep.mubr.bf16.mxu0 0
      %456 = vmatmul.mubr.bf16.gmra.mrb[0].mxu0 %v385
      %v457 = vpop.f32.mrb[0].mxu0
      %v458 = vadd.f32 0.0, %v457
      %v459 = vpop.f32.mrb[0].mxu0
      %v460 = vpop.f32.mrb[0].mxu0
      %v461 = vadd.f32 0.0, %v460
      %v462 = vpop.f32.mrb[0].mxu0
      %463 = vmatprep.mubr.bf16.mxu0 0
      %464 = vmatmul.mubr.bf16.gmra.mrb[0].mxu0 %v388
      %v465 = vpop.f32.mrb[0].mxu0
      %v466 = vadd.f32 0.0, %v465
      %v467 = vpop.f32.mrb[0].mxu0
      %v468 = vpop.f32.mrb[0].mxu0
      %v469 = vadd.f32 0.0, %v468
      %v470 = vpop.f32.mrb[0].mxu0
      %471 = vmatprep.mubr.bf16.mxu0 0
      %472 = vmatmul.mubr.bf16.gmra.mrb[0].mxu0 %v391
      %v473 = vpop.f32.mrb[0].mxu0
      %v474 = vadd.f32 0.0, %v473
      %v475 = vpop.f32.mrb[0].mxu0
      %v476 = vpop.f32.mrb[0].mxu0
      %v477 = vadd.f32 0.0, %v476
      %v478 = vpop.f32.mrb[0].mxu0
      %479 = vmatprep.mubr.bf16.mxu0 0
      %480 = vmatmul.mubr.bf16.gmra.mrb[0].mxu0 %v394
      %v481 = vpop.f32.mrb[0].mxu0
      %v482 = vadd.f32 0.0, %v481
      %v483 = vpop.f32.mrb[0].mxu0
      %v484 = vpop.f32.mrb[0].mxu0
      %v485 = vadd.f32 0.0, %v484
      %v486 = vpop.f32.mrb[0].mxu0
      %487 = vmatprep.mubr.bf16.mxu0 0
      %488 = vmatmul.mubr.bf16.gmra.mrb[0].mxu0 %v397
      %v489 = vpop.f32.mrb[0].mxu0
      %v490 = vadd.f32 0.0, %v489
      %v491 = vpop.f32.mrb[0].mxu0
      %v492 = vpop.f32.mrb[0].mxu0
      %v493 = vadd.f32 0.0, %v492
      %v494 = vpop.f32.mrb[0].mxu0
      %495 = vdwg.mxu0
      %v500 = vunpack.c.l.b16 %v329
      %v501 = vunpack.c.l.b16 %v330
      %v502 = vunpack.c.l.b16 %v331
      %v503 = vunpack.c.l.b16 %v332
      %v504 = vpack.c.b16 %v501, %v500
      %v505 = vpack.c.b16 %v503, %v502
      %v509 = vsel %vm374, %v321, 0
      %v512 = vsel %vm374, %v322, 0
      %v515 = vsel %vm374, %v323, 0
      %v518 = vsel %vm374, %v324, 0
      %v521 = vsel %vm374, %v325, 0
      %v524 = vsel %vm374, %v326, 0
      %v527 = vsel %vm374, %v327, 0
      %v530 = vsel %vm374, %v328, 0
      %532 = vmatprep.subr.bf16.mxu0 0
      %533 = vmatpush1.bf16.msra.mxu0 %v504
      %534 = vmatprep.subr.bf16.mxu0 0
      %535 = vmatpush1.bf16.msra.mxu0 %v505
      %536 = vmatprep.subr.bf16.mxu0 0
      %537 = vmatpush1.bf16.msra.mxu0 0
      %538 = vmatprep.subr.bf16.mxu0 0
      %539 = vmatpush1.bf16.msra.mxu0 0
      %540 = vmatprep.subr.bf16.mxu0 0
      %541 = vmatpush1.bf16.msra.mxu0 0
      %542 = vmatprep.subr.bf16.mxu0 0
      %543 = vmatpush1.bf16.msra.mxu0 0
      %544 = vmatprep.subr.bf16.mxu0 0
      %545 = vmatpush1.bf16.msra.mxu0 0
      %546 = vmatprep.subr.bf16.mxu0 0
      %547 = vmatpush1.bf16.msra.mxu0 0
      %548 = vmatprep.subr.bf16.mxu0 0
      %549 = vmatpush1.bf16.msra.mxu0 0
      %550 = vmatprep.subr.bf16.mxu0 0
      %551 = vmatpush1.bf16.msra.mxu0 0
      %552 = vmatprep.subr.bf16.mxu0 0
      %553 = vmatpush1.bf16.msra.mxu0 0
      %554 = vmatprep.subr.bf16.mxu0 0
      %555 = vmatpush1.bf16.msra.mxu0 0
      %556 = vmatprep.subr.bf16.mxu0 0
      %557 = vmatpush1.bf16.msra.mxu0 0
      %558 = vmatprep.subr.bf16.mxu0 0
      %559 = vmatpush1.bf16.msra.mxu0 0
      %560 = vmatprep.subr.bf16.mxu0 0
      %561 = vmatpush1.bf16.msra.mxu0 0
      %562 = vmatprep.subr.bf16.mxu0 0
      %563 = vmatpush1.bf16.msra.mxu0 0
      %564 = vmatprep.mubr.bf16.mxu0 0
      %565 = vmatmul.mubr.bf16.gmra.mrb[0].mxu0 %v509
      %v566 = vpop.f32.mrb[0].mxu0
      %v567 = vadd.f32 %v434, %v566
      %v568 = vpop.f32.mrb[0].mxu0
      %v569 = vpop.f32.mrb[0].mxu0
      %v570 = vadd.f32 %v437, %v569
      %v571 = vpop.f32.mrb[0].mxu0
      %572 = vmatprep.mubr.bf16.mxu0 0
      %573 = vmatmul.mubr.bf16.gmra.mrb[0].mxu0 %v512
      %v574 = vpop.f32.mrb[0].mxu0
      %v575 = vadd.f32 %v442, %v574
      %v576 = vpop.f32.mrb[0].mxu0
      %v577 = vpop.f32.mrb[0].mxu0
      %v578 = vadd.f32 %v445, %v577
      %v579 = vpop.f32.mrb[0].mxu0
      %580 = vmatprep.mubr.bf16.mxu0 0
      %581 = vmatmul.mubr.bf16.gmra.mrb[0].mxu0 %v515
      %v582 = vpop.f32.mrb[0].mxu0
      %v583 = vadd.f32 %v450, %v582
      %v584 = vpop.f32.mrb[0].mxu0
      %v585 = vpop.f32.mrb[0].mxu0
      %v586 = vadd.f32 %v453, %v585
      %v587 = vpop.f32.mrb[0].mxu0
      %588 = vmatprep.mubr.bf16.mxu0 0
      %589 = vmatmul.mubr.bf16.gmra.mrb[0].mxu0 %v518
      %v590 = vpop.f32.mrb[0].mxu0
      %v591 = vadd.f32 %v458, %v590
      %v592 = vpop.f32.mrb[0].mxu0
      %v593 = vpop.f32.mrb[0].mxu0
      %v594 = vadd.f32 %v461, %v593
      %v595 = vpop.f32.mrb[0].mxu0
      %596 = vmatprep.mubr.bf16.mxu0 0
      %597 = vmatmul.mubr.bf16.gmra.mrb[0].mxu0 %v521
      %v598 = vpop.f32.mrb[0].mxu0
      %v599 = vadd.f32 %v466, %v598
      %v600 = vpop.f32.mrb[0].mxu0
      %v601 = vpop.f32.mrb[0].mxu0
      %v602 = vadd.f32 %v469, %v601
      %v603 = vpop.f32.mrb[0].mxu0
      %604 = vmatprep.mubr.bf16.mxu0 0
      %605 = vmatmul.mubr.bf16.gmra.mrb[0].mxu0 %v524
      %v606 = vpop.f32.mrb[0].mxu0
      %v607 = vadd.f32 %v474, %v606
      %v608 = vpop.f32.mrb[0].mxu0
      %v609 = vpop.f32.mrb[0].mxu0
      %v610 = vadd.f32 %v477, %v609
      %v611 = vpop.f32.mrb[0].mxu0
      %612 = vmatprep.mubr.bf16.mxu0 0
      %613 = vmatmul.mubr.bf16.gmra.mrb[0].mxu0 %v527
      %v614 = vpop.f32.mrb[0].mxu0
      %v615 = vadd.f32 %v482, %v614
      %v616 = vpop.f32.mrb[0].mxu0
      %v617 = vpop.f32.mrb[0].mxu0
      %v618 = vadd.f32 %v485, %v617
      %v619 = vpop.f32.mrb[0].mxu0
      %620 = vmatprep.mubr.bf16.mxu0 0
      %621 = vmatmul.mubr.bf16.gmra.mrb[0].mxu0 %v530
      %v622 = vpop.f32.mrb[0].mxu0
      %v623 = vadd.f32 %v490, %v622
      %v624 = vpop.f32.mrb[0].mxu0
      %v625 = vpop.f32.mrb[0].mxu0
      %v626 = vadd.f32 %v493, %v625
      %v627 = vpop.f32.mrb[0].mxu0
      %628 = vdwg.mxu0
      %v629 = vld [vmem:[%s304 + $0x2] sm:$0xff]
      %v630 = vld [vmem:[%s304 + $0xa] sm:$0xff]
      %v631 = vld [vmem:[%s304 + $0x1a] sm:$0xff]
      %v632 = vld [vmem:[%s304 + $0x22] sm:$0xff]
      %v633 = vld [vmem:[%s304 + $0x32] sm:$0xff]
      %v634 = vld [vmem:[%s304 + $0x3a] sm:$0xff]
      %v635 = vld [vmem:[%s304 + $0x4a] sm:$0xff]
      %v636 = vld [vmem:[%s304 + $0x52] sm:$0xff]
      %v637 = vld [vmem:[%s304 + $0x62] sm:$0xff]
      %v638 = vld [vmem:[%s304 + $0x6a] sm:$0xff]
      %v639 = vld [vmem:[%s304 + $0x7a] sm:$0xff]
      %v640 = vld [vmem:[%s304 + $0x82] sm:$0xff]
      %v641 = vld [vmem:[%s304 + $0x92] sm:$0xff]
      %v642 = vld [vmem:[%s304 + $0x9a] sm:$0xff]
      %v643 = vld [vmem:[%s304 + $0xaa] sm:$0xff]
      %v644 = vld [vmem:[%s304 + $0xb2] sm:$0xff]
      %v645 = vpack.c.bf16 %v630, %v629
      %v646 = vpack.c.bf16 %v632, %v631
      %v647 = vpack.c.bf16 %v634, %v633
      %v648 = vpack.c.bf16 %v636, %v635
      %v649 = vpack.c.bf16 %v638, %v637
      %v650 = vpack.c.bf16 %v640, %v639
      %v651 = vpack.c.bf16 %v642, %v641
      %v652 = vpack.c.bf16 %v644, %v643
      %s653 = scalar_lea.vmem %s1, 32
      %v654 = vld [vmem:[%s653] sm:$0xf]
      %v655 = vld [vmem:[%s653 + $0x4] sm:$0xf]
      %v656 = vld [vmem:[%s653 + $0x8] sm:$0xf]
      %v657 = vld [vmem:[%s653 + $0xc] sm:$0xf]
      %v662 = vunpack.c.l.b16 %v654
      %v663 = vunpack.c.l.b16 %v655
      %v664 = vunpack.c.l.b16 %v656
      %v665 = vunpack.c.l.b16 %v657
      %v666 = vpack.c.b16 %v663, %v662
      %v667 = vpack.c.b16 %v665, %v664
      %v671 = vsel %vm374, %v645, 0
      %v674 = vsel %vm374, %v646, 0
      %v677 = vsel %vm374, %v647, 0
      %v680 = vsel %vm374, %v648, 0
      %v683 = vsel %vm374, %v649, 0
      %v686 = vsel %vm374, %v650, 0
      %v689 = vsel %vm374, %v651, 0
      %v692 = vsel %vm374, %v652, 0
      %694 = vmatprep.subr.bf16.mxu0 0
      %695 = vmatpush1.bf16.msra.mxu0 %v666
      %696 = vmatprep.subr.bf16.mxu0 0
      %697 = vmatpush1.bf16.msra.mxu0 %v667
      %698 = vmatprep.subr.bf16.mxu0 0
      %699 = vmatpush1.bf16.msra.mxu0 0
      %700 = vmatprep.subr.bf16.mxu0 0
      %701 = vmatpush1.bf16.msra.mxu0 0
      %702 = vmatprep.subr.bf16.mxu0 0
      %703 = vmatpush1.bf16.msra.mxu0 0
      %704 = vmatprep.subr.bf16.mxu0 0
      %705 = vmatpush1.bf16.msra.mxu0 0
      %706 = vmatprep.subr.bf16.mxu0 0
      %707 = vmatpush1.bf16.msra.mxu0 0
      %708 = vmatprep.subr.bf16.mxu0 0
      %709 = vmatpush1.bf16.msra.mxu0 0
      %710 = vmatprep.subr.bf16.mxu0 0
      %711 = vmatpush1.bf16.msra.mxu0 0
      %712 = vmatprep.subr.bf16.mxu0 0
      %713 = vmatpush1.bf16.msra.mxu0 0
      %714 = vmatprep.subr.bf16.mxu0 0
      %715 = vmatpush1.bf16.msra.mxu0 0
      %716 = vmatprep.subr.bf16.mxu0 0
      %717 = vmatpush1.bf16.msra.mxu0 0
      %718 = vmatprep.subr.bf16.mxu0 0
      %719 = vmatpush1.bf16.msra.mxu0 0
      %720 = vmatprep.subr.bf16.mxu0 0
      %721 = vmatpush1.bf16.msra.mxu0 0
      %722 = vmatprep.subr.bf16.mxu0 0
      %723 = vmatpush1.bf16.msra.mxu0 0
      %724 = vmatprep.subr.bf16.mxu0 0
      %725 = vmatpush1.bf16.msra.mxu0 0
      %726 = vmatprep.mubr.bf16.mxu0 0
      %727 = vmatmul.mubr.bf16.gmra.mrb[0].mxu0 %v671
      %v728 = vpop.f32.mrb[0].mxu0
      %v729 = vadd.f32 0.0, %v728
      %v730 = vpop.f32.mrb[0].mxu0
      %v731 = vpop.f32.mrb[0].mxu0
      %v732 = vadd.f32 0.0, %v731
      %v733 = vpop.f32.mrb[0].mxu0
      %734 = vmatprep.mubr.bf16.mxu0 0
      %735 = vmatmul.mubr.bf16.gmra.mrb[0].mxu0 %v674
      %v736 = vpop.f32.mrb[0].mxu0
      %v737 = vadd.f32 0.0, %v736
      %v738 = vpop.f32.mrb[0].mxu0
      %v739 = vpop.f32.mrb[0].mxu0
      %v740 = vadd.f32 0.0, %v739
      %v741 = vpop.f32.mrb[0].mxu0
      %742 = vmatprep.mubr.bf16.mxu0 0
      %743 = vmatmul.mubr.bf16.gmra.mrb[0].mxu0 %v677
      %v744 = vpop.f32.mrb[0].mxu0
      %v745 = vadd.f32 0.0, %v744
      %v746 = vpop.f32.mrb[0].mxu0
      %v747 = vpop.f32.mrb[0].mxu0
      %v748 = vadd.f32 0.0, %v747
      %v749 = vpop.f32.mrb[0].mxu0
      %750 = vmatprep.mubr.bf16.mxu0 0
      %751 = vmatmul.mubr.bf16.gmra.mrb[0].mxu0 %v680
      %v752 = vpop.f32.mrb[0].mxu0
      %v753 = vadd.f32 0.0, %v752
      %v754 = vpop.f32.mrb[0].mxu0
      %v755 = vpop.f32.mrb[0].mxu0
      %v756 = vadd.f32 0.0, %v755
      %v757 = vpop.f32.mrb[0].mxu0
      %758 = vmatprep.mubr.bf16.mxu0 0
      %759 = vmatmul.mubr.bf16.gmra.mrb[0].mxu0 %v683
      %v760 = vpop.f32.mrb[0].mxu0
      %v761 = vadd.f32 0.0, %v760
      %v762 = vpop.f32.mrb[0].mxu0
      %v763 = vpop.f32.mrb[0].mxu0
      %v764 = vadd.f32 0.0, %v763
      %v765 = vpop.f32.mrb[0].mxu0
      %766 = vmatprep.mubr.bf16.mxu0 0
      %767 = vmatmul.mubr.bf16.gmra.mrb[0].mxu0 %v686
      %v768 = vpop.f32.mrb[0].mxu0
      %v769 = vadd.f32 0.0, %v768
      %v770 = vpop.f32.mrb[0].mxu0
      %v771 = vpop.f32.mrb[0].mxu0
      %v772 = vadd.f32 0.0, %v771
      %v773 = vpop.f32.mrb[0].mxu0
      %774 = vmatprep.mubr.bf16.mxu0 0
      %775 = vmatmul.mubr.bf16.gmra.mrb[0].mxu0 %v689
      %v776 = vpop.f32.mrb[0].mxu0
      %v777 = vadd.f32 0.0, %v776
      %v778 = vpop.f32.mrb[0].mxu0
      %v779 = vpop.f32.mrb[0].mxu0
      %v780 = vadd.f32 0.0, %v779
      %v781 = vpop.f32.mrb[0].mxu0
      %782 = vmatprep.mubr.bf16.mxu0 0
      %783 = vmatmul.mubr.bf16.gmra.mrb[0].mxu0 %v692
      %v784 = vpop.f32.mrb[0].mxu0
      %v785 = vadd.f32 0.0, %v784
      %v786 = vpop.f32.mrb[0].mxu0
      %v787 = vpop.f32.mrb[0].mxu0
      %v788 = vadd.f32 0.0, %v787
      %v789 = vpop.f32.mrb[0].mxu0
      %790 = vdwg.mxu0
      %v791 = vadd.f32 %v567, %v729
      %v792 = vadd.f32 %v570, %v732
      %v793 = vadd.f32 %v575, %v737
      %v794 = vadd.f32 %v578, %v740
      %v795 = vadd.f32 %v583, %v745
      %v796 = vadd.f32 %v586, %v748
      %v797 = vadd.f32 %v591, %v753
      %v798 = vadd.f32 %v594, %v756
      %v799 = vadd.f32 %v599, %v761
      %v800 = vadd.f32 %v602, %v764
      %v801 = vadd.f32 %v607, %v769
      %v802 = vadd.f32 %v610, %v772
      %v803 = vadd.f32 %v615, %v777
      %v804 = vadd.f32 %v618, %v780
      %v805 = vadd.f32 %v623, %v785
      %v806 = vadd.f32 %v626, %v788
      %s807 = sadd.s32 %s301, 2
      %s808 = smul.u32 %s807, 24
      %s809 = scalar_lea.vmem [#allocation2], %s808
      %v810 = vld [vmem:[%s809] sm:$0xff]
      %v811 = vld [vmem:[%s809 + $0x8] sm:$0xff]
      %v812 = vld [vmem:[%s809 + $0x18] sm:$0xff]
      %v813 = vld [vmem:[%s809 + $0x20] sm:$0xff]
      %v814 = vld [vmem:[%s809 + $0x30] sm:$0xff]
      %v815 = vld [vmem:[%s809 + $0x38] sm:$0xff]
      %v816 = vld [vmem:[%s809 + $0x48] sm:$0xff]
      %v817 = vld [vmem:[%s809 + $0x50] sm:$0xff]
      %v818 = vld [vmem:[%s809 + $0x60] sm:$0xff]
      %v819 = vld [vmem:[%s809 + $0x68] sm:$0xff]
      %v820 = vld [vmem:[%s809 + $0x78] sm:$0xff]
      %v821 = vld [vmem:[%s809 + $0x80] sm:$0xff]
      %v822 = vld [vmem:[%s809 + $0x90] sm:$0xff]
      %v823 = vld [vmem:[%s809 + $0x98] sm:$0xff]
      %v824 = vld [vmem:[%s809 + $0xa8] sm:$0xff]
      %v825 = vld [vmem:[%s809 + $0xb0] sm:$0xff]
      %v826 = vpack.c.bf16 %v811, %v810
      %v827 = vpack.c.bf16 %v813, %v812
      %v828 = vpack.c.bf16 %v815, %v814
      %v829 = vpack.c.bf16 %v817, %v816
      %v830 = vpack.c.bf16 %v819, %v818
      %v831 = vpack.c.bf16 %v821, %v820
      %v832 = vpack.c.bf16 %v823, %v822
      %v833 = vpack.c.bf16 %v825, %v824
      %s834 = scalar_lea.vmem %s1, 48
      %v835 = vld [vmem:[%s834] sm:$0xf]
      %v836 = vld [vmem:[%s834 + $0x4] sm:$0xf]
      %v837 = vld [vmem:[%s834 + $0x8] sm:$0xf]
      %v838 = vld [vmem:[%s834 + $0xc] sm:$0xf]
      %v843 = vunpack.c.l.b16 %v835
      %v844 = vunpack.c.l.b16 %v836
      %v845 = vunpack.c.l.b16 %v837
      %v846 = vunpack.c.l.b16 %v838
      %v847 = vpack.c.b16 %v844, %v843
      %v848 = vpack.c.b16 %v846, %v845
      %v852 = vsel %vm374, %v826, 0
      %v855 = vsel %vm374, %v827, 0
      %v858 = vsel %vm374, %v828, 0
      %v861 = vsel %vm374, %v829, 0
      %v864 = vsel %vm374, %v830, 0
      %v867 = vsel %vm374, %v831, 0
      %v870 = vsel %vm374, %v832, 0
      %v873 = vsel %vm374, %v833, 0
      %875 = vmatprep.subr.bf16.mxu0 0
      %876 = vmatpush1.bf16.msra.mxu0 %v847
      %877 = vmatprep.subr.bf16.mxu0 0
      %878 = vmatpush1.bf16.msra.mxu0 %v848
      %879 = vmatprep.subr.bf16.mxu0 0
      %880 = vmatpush1.bf16.msra.mxu0 0
      %881 = vmatprep.subr.bf16.mxu0 0
      %882 = vmatpush1.bf16.msra.mxu0 0
      %883 = vmatprep.subr.bf16.mxu0 0
      %884 = vmatpush1.bf16.msra.mxu0 0
      %885 = vmatprep.subr.bf16.mxu0 0
      %886 = vmatpush1.bf16.msra.mxu0 0
      %887 = vmatprep.subr.bf16.mxu0 0
      %888 = vmatpush1.bf16.msra.mxu0 0
      %889 = vmatprep.subr.bf16.mxu0 0
      %890 = vmatpush1.bf16.msra.mxu0 0
      %891 = vmatprep.subr.bf16.mxu0 0
      %892 = vmatpush1.bf16.msra.mxu0 0
      %893 = vmatprep.subr.bf16.mxu0 0
      %894 = vmatpush1.bf16.msra.mxu0 0
      %895 = vmatprep.subr.bf16.mxu0 0
      %896 = vmatpush1.bf16.msra.mxu0 0
      %897 = vmatprep.subr.bf16.mxu0 0
      %898 = vmatpush1.bf16.msra.mxu0 0
      %899 = vmatprep.subr.bf16.mxu0 0
      %900 = vmatpush1.bf16.msra.mxu0 0
      %901 = vmatprep.subr.bf16.mxu0 0
      %902 = vmatpush1.bf16.msra.mxu0 0
      %903 = vmatprep.subr.bf16.mxu0 0
      %904 = vmatpush1.bf16.msra.mxu0 0
      %905 = vmatprep.subr.bf16.mxu0 0
      %906 = vmatpush1.bf16.msra.mxu0 0
      %907 = vmatprep.mubr.bf16.mxu0 0
      %908 = vmatmul.mubr.bf16.gmra.mrb[0].mxu0 %v852
      %v909 = vpop.f32.mrb[0].mxu0
      %v910 = vadd.f32 0.0, %v909
      %v911 = vpop.f32.mrb[0].mxu0
      %v912 = vpop.f32.mrb[0].mxu0
      %v913 = vadd.f32 0.0, %v912
      %v914 = vpop.f32.mrb[0].mxu0
      %915 = vmatprep.mubr.bf16.mxu0 0
      %916 = vmatmul.mubr.bf16.gmra.mrb[0].mxu0 %v855
      %v917 = vpop.f32.mrb[0].mxu0
      %v918 = vadd.f32 0.0, %v917
      %v919 = vpop.f32.mrb[0].mxu0
      %v920 = vpop.f32.mrb[0].mxu0
      %v921 = vadd.f32 0.0, %v920
      %v922 = vpop.f32.mrb[0].mxu0
      %923 = vmatprep.mubr.bf16.mxu0 0
      %924 = vmatmul.mubr.bf16.gmra.mrb[0].mxu0 %v858
      %v925 = vpop.f32.mrb[0].mxu0
      %v926 = vadd.f32 0.0, %v925
      %v927 = vpop.f32.mrb[0].mxu0
      %v928 = vpop.f32.mrb[0].mxu0
      %v929 = vadd.f32 0.0, %v928
      %v930 = vpop.f32.mrb[0].mxu0
      %931 = vmatprep.mubr.bf16.mxu0 0
      %932 = vmatmul.mubr.bf16.gmra.mrb[0].mxu0 %v861
      %v933 = vpop.f32.mrb[0].mxu0
      %v934 = vadd.f32 0.0, %v933
      %v935 = vpop.f32.mrb[0].mxu0
      %v936 = vpop.f32.mrb[0].mxu0
      %v937 = vadd.f32 0.0, %v936
      %v938 = vpop.f32.mrb[0].mxu0
      %939 = vmatprep.mubr.bf16.mxu0 0
      %940 = vmatmul.mubr.bf16.gmra.mrb[0].mxu0 %v864
      %v941 = vpop.f32.mrb[0].mxu0
      %v942 = vadd.f32 0.0, %v941
      %v943 = vpop.f32.mrb[0].mxu0
      %v944 = vpop.f32.mrb[0].mxu0
      %v945 = vadd.f32 0.0, %v944
      %v946 = vpop.f32.mrb[0].mxu0
      %947 = vmatprep.mubr.bf16.mxu0 0
      %948 = vmatmul.mubr.bf16.gmra.mrb[0].mxu0 %v867
      %v949 = vpop.f32.mrb[0].mxu0
      %v950 = vadd.f32 0.0, %v949
      %v951 = vpop.f32.mrb[0].mxu0
      %v952 = vpop.f32.mrb[0].mxu0
      %v953 = vadd.f32 0.0, %v952
      %v954 = vpop.f32.mrb[0].mxu0
      %955 = vmatprep.mubr.bf16.mxu0 0
      %956 = vmatmul.mubr.bf16.gmra.mrb[0].mxu0 %v870
      %v957 = vpop.f32.mrb[0].mxu0
      %v958 = vadd.f32 0.0, %v957
      %v959 = vpop.f32.mrb[0].mxu0
      %v960 = vpop.f32.mrb[0].mxu0
      %v961 = vadd.f32 0.0, %v960
      %v962 = vpop.f32.mrb[0].mxu0
      %963 = vmatprep.mubr.bf16.mxu0 0
      %964 = vmatmul.mubr.bf16.gmra.mrb[0].mxu0 %v873
      %v965 = vpop.f32.mrb[0].mxu0
      %v966 = vadd.f32 0.0, %v965
      %v967 = vpop.f32.mrb[0].mxu0
      %v968 = vpop.f32.mrb[0].mxu0
      %v969 = vadd.f32 0.0, %v968
      %v970 = vpop.f32.mrb[0].mxu0
      %971 = vdwg.mxu0
      %v972 = vadd.f32 %v791, %v910
      %v973 = vadd.f32 %v792, %v913
      %v974 = vadd.f32 %v793, %v918
      %v975 = vadd.f32 %v794, %v921
      %v976 = vadd.f32 %v795, %v926
      %v977 = vadd.f32 %v796, %v929
      %v978 = vadd.f32 %v797, %v934
      %v979 = vadd.f32 %v798, %v937
      %v980 = vadd.f32 %v799, %v942
      %v981 = vadd.f32 %v800, %v945
      %v982 = vadd.f32 %v801, %v950
      %v983 = vadd.f32 %v802, %v953
      %v984 = vadd.f32 %v803, %v958
      %v985 = vadd.f32 %v804, %v961
      %v986 = vadd.f32 %v805, %v966
      %v987 = vadd.f32 %v806, %v969
      %v988 = vld [vmem:[%s809 + $0x1] sm:$0xff]
      %v989 = vld [vmem:[%s809 + $0x9] sm:$0xff]
      %v990 = vld [vmem:[%s809 + $0x19] sm:$0xff]
      %v991 = vld [vmem:[%s809 + $0x21] sm:$0xff]
      %v992 = vld [vmem:[%s809 + $0x31] sm:$0xff]
      %v993 = vld [vmem:[%s809 + $0x39] sm:$0xff]
      %v994 = vld [vmem:[%s809 + $0x49] sm:$0xff]
      %v995 = vld [vmem:[%s809 + $0x51] sm:$0xff]
      %v996 = vld [vmem:[%s809 + $0x61] sm:$0xff]
      %v997 = vld [vmem:[%s809 + $0x69] sm:$0xff]
      %v998 = vld [vmem:[%s809 + $0x79] sm:$0xff]
      %v999 = vld [vmem:[%s809 + $0x81] sm:$0xff]
      %v1000 = vld [vmem:[%s809 + $0x91] sm:$0xff]
      %v1001 = vld [vmem:[%s809 + $0x99] sm:$0xff]
      %v1002 = vld [vmem:[%s809 + $0xa9] sm:$0xff]
      %v1003 = vld [vmem:[%s809 + $0xb1] sm:$0xff]
      %v1004 = vpack.c.bf16 %v989, %v988
      %v1005 = vpack.c.bf16 %v991, %v990
      %v1006 = vpack.c.bf16 %v993, %v992
      %v1007 = vpack.c.bf16 %v995, %v994
      %v1008 = vpack.c.bf16 %v997, %v996
      %v1009 = vpack.c.bf16 %v999, %v998
      %v1010 = vpack.c.bf16 %v1001, %v1000
      %v1011 = vpack.c.bf16 %v1003, %v1002
      %s1012 = scalar_lea.vmem %s1, 64
      %v1013 = vld [vmem:[%s1012] sm:$0xf]
      %v1014 = vld [vmem:[%s1012 + $0x4] sm:$0xf]
      %v1015 = vld [vmem:[%s1012 + $0x8] sm:$0xf]
      %v1016 = vld [vmem:[%s1012 + $0xc] sm:$0xf]
      %v1021 = vunpack.c.l.b16 %v1013
      %v1022 = vunpack.c.l.b16 %v1014
      %v1023 = vunpack.c.l.b16 %v1015
      %v1024 = vunpack.c.l.b16 %v1016
      %v1025 = vpack.c.b16 %v1022, %v1021
      %v1026 = vpack.c.b16 %v1024, %v1023
      %v1030 = vsel %vm374, %v1004, 0
      %v1033 = vsel %vm374, %v1005, 0
      %v1036 = vsel %vm374, %v1006, 0
      %v1039 = vsel %vm374, %v1007, 0
      %v1042 = vsel %vm374, %v1008, 0
      %v1045 = vsel %vm374, %v1009, 0
      %v1048 = vsel %vm374, %v1010, 0
      %v1051 = vsel %vm374, %v1011, 0
      %1053 = vmatprep.subr.bf16.mxu0 0
      %1054 = vmatpush1.bf16.msra.mxu0 %v1025
      %1055 = vmatprep.subr.bf16.mxu0 0
      %1056 = vmatpush1.bf16.msra.mxu0 %v1026
      %1057 = vmatprep.subr.bf16.mxu0 0
      %1058 = vmatpush1.bf16.msra.mxu0 0
      %1059 = vmatprep.subr.bf16.mxu0 0
      %1060 = vmatpush1.bf16.msra.mxu0 0
      %1061 = vmatprep.subr.bf16.mxu0 0
      %1062 = vmatpush1.bf16.msra.mxu0 0
      %1063 = vmatprep.subr.bf16.mxu0 0
      %1064 = vmatpush1.bf16.msra.mxu0 0
      %1065 = vmatprep.subr.bf16.mxu0 0
      %1066 = vmatpush1.bf16.msra.mxu0 0
      %1067 = vmatprep.subr.bf16.mxu0 0
      %1068 = vmatpush1.bf16.msra.mxu0 0
      %1069 = vmatprep.subr.bf16.mxu0 0
      %1070 = vmatpush1.bf16.msra.mxu0 0
      %1071 = vmatprep.subr.bf16.mxu0 0
      %1072 = vmatpush1.bf16.msra.mxu0 0
      %1073 = vmatprep.subr.bf16.mxu0 0
      %1074 = vmatpush1.bf16.msra.mxu0 0
      %1075 = vmatprep.subr.bf16.mxu0 0
      %1076 = vmatpush1.bf16.msra.mxu0 0
      %1077 = vmatprep.subr.bf16.mxu0 0
      %1078 = vmatpush1.bf16.msra.mxu0 0
      %1079 = vmatprep.subr.bf16.mxu0 0
      %1080 = vmatpush1.bf16.msra.mxu0 0
      %1081 = vmatprep.subr.bf16.mxu0 0
      %1082 = vmatpush1.bf16.msra.mxu0 0
      %1083 = vmatprep.subr.bf16.mxu0 0
      %1084 = vmatpush1.bf16.msra.mxu0 0
      %1085 = vmatprep.mubr.bf16.mxu0 0
      %1086 = vmatmul.mubr.bf16.gmra.mrb[0].mxu0 %v1030
      %v1087 = vpop.f32.mrb[0].mxu0
      %v1088 = vadd.f32 0.0, %v1087
      %v1089 = vpop.f32.mrb[0].mxu0
      %v1090 = vpop.f32.mrb[0].mxu0
      %v1091 = vadd.f32 0.0, %v1090
      %v1092 = vpop.f32.mrb[0].mxu0
      %1093 = vmatprep.mubr.bf16.mxu0 0
      %1094 = vmatmul.mubr.bf16.gmra.mrb[0].mxu0 %v1033
      %v1095 = vpop.f32.mrb[0].mxu0
      %v1096 = vadd.f32 0.0, %v1095
      %v1097 = vpop.f32.mrb[0].mxu0
      %v1098 = vpop.f32.mrb[0].mxu0
      %v1099 = vadd.f32 0.0, %v1098
      %v1100 = vpop.f32.mrb[0].mxu0
      %1101 = vmatprep.mubr.bf16.mxu0 0
      %1102 = vmatmul.mubr.bf16.gmra.mrb[0].mxu0 %v1036
      %v1103 = vpop.f32.mrb[0].mxu0
      %v1104 = vadd.f32 0.0, %v1103
      %v1105 = vpop.f32.mrb[0].mxu0
      %v1106 = vpop.f32.mrb[0].mxu0
      %v1107 = vadd.f32 0.0, %v1106
      %v1108 = vpop.f32.mrb[0].mxu0
      %1109 = vmatprep.mubr.bf16.mxu0 0
      %1110 = vmatmul.mubr.bf16.gmra.mrb[0].mxu0 %v1039
      %v1111 = vpop.f32.mrb[0].mxu0
      %v1112 = vadd.f32 0.0, %v1111
      %v1113 = vpop.f32.mrb[0].mxu0
      %v1114 = vpop.f32.mrb[0].mxu0
      %v1115 = vadd.f32 0.0, %v1114
      %v1116 = vpop.f32.mrb[0].mxu0
      %1117 = vmatprep.mubr.bf16.mxu0 0
      %1118 = vmatmul.mubr.bf16.gmra.mrb[0].mxu0 %v1042
      %v1119 = vpop.f32.mrb[0].mxu0
      %v1120 = vadd.f32 0.0, %v1119
      %v1121 = vpop.f32.mrb[0].mxu0
      %v1122 = vpop.f32.mrb[0].mxu0
      %v1123 = vadd.f32 0.0, %v1122
      %v1124 = vpop.f32.mrb[0].mxu0
      %1125 = vmatprep.mubr.bf16.mxu0 0
      %1126 = vmatmul.mubr.bf16.gmra.mrb[0].mxu0 %v1045
      %v1127 = vpop.f32.mrb[0].mxu0
      %v1128 = vadd.f32 0.0, %v1127
      %v1129 = vpop.f32.mrb[0].mxu0
      %v1130 = vpop.f32.mrb[0].mxu0
      %v1131 = vadd.f32 0.0, %v1130
      %v1132 = vpop.f32.mrb[0].mxu0
      %1133 = vmatprep.mubr.bf16.mxu0 0
      %1134 = vmatmul.mubr.bf16.gmra.mrb[0].mxu0 %v1048
      %v1135 = vpop.f32.mrb[0].mxu0
      %v1136 = vadd.f32 0.0, %v1135
      %v1137 = vpop.f32.mrb[0].mxu0
      %v1138 = vpop.f32.mrb[0].mxu0
      %v1139 = vadd.f32 0.0, %v1138
      %v1140 = vpop.f32.mrb[0].mxu0
      %1141 = vmatprep.mubr.bf16.mxu0 0
      %1142 = vmatmul.mubr.bf16.gmra.mrb[0].mxu0 %v1051
      %v1143 = vpop.f32.mrb[0].mxu0
      %v1144 = vadd.f32 0.0, %v1143
      %v1145 = vpop.f32.mrb[0].mxu0
      %v1146 = vpop.f32.mrb[0].mxu0
      %v1147 = vadd.f32 0.0, %v1146
      %v1148 = vpop.f32.mrb[0].mxu0
      %1149 = vdwg.mxu0
      %v1150 = vadd.f32 %v972, %v1088
      %v1151 = vadd.f32 %v973, %v1091
      %v1152 = vadd.f32 %v974, %v1096
      %v1153 = vadd.f32 %v975, %v1099
      %v1154 = vadd.f32 %v976, %v1104
      %v1155 = vadd.f32 %v977, %v1107
      %v1156 = vadd.f32 %v978, %v1112
      %v1157 = vadd.f32 %v979, %v1115
      %v1158 = vadd.f32 %v980, %v1120
      %v1159 = vadd.f32 %v981, %v1123
      %v1160 = vadd.f32 %v982, %v1128
      %v1161 = vadd.f32 %v983, %v1131
      %v1162 = vadd.f32 %v984, %v1136
      %v1163 = vadd.f32 %v985, %v1139
      %v1164 = vadd.f32 %v986, %v1144
      %v1165 = vadd.f32 %v987, %v1147
      %v1166 = vld [vmem:[%s809 + $0x2] sm:$0xff]
      %v1167 = vld [vmem:[%s809 + $0xa] sm:$0xff]
      %v1168 = vld [vmem:[%s809 + $0x1a] sm:$0xff]
      %v1169 = vld [vmem:[%s809 + $0x22] sm:$0xff]
      %v1170 = vld [vmem:[%s809 + $0x32] sm:$0xff]
      %v1171 = vld [vmem:[%s809 + $0x3a] sm:$0xff]
      %v1172 = vld [vmem:[%s809 + $0x4a] sm:$0xff]
      %v1173 = vld [vmem:[%s809 + $0x52] sm:$0xff]
      %v1174 = vld [vmem:[%s809 + $0x62] sm:$0xff]
      %v1175 = vld [vmem:[%s809 + $0x6a] sm:$0xff]
      %v1176 = vld [vmem:[%s809 + $0x7a] sm:$0xff]
      %v1177 = vld [vmem:[%s809 + $0x82] sm:$0xff]
      %v1178 = vld [vmem:[%s809 + $0x92] sm:$0xff]
      %v1179 = vld [vmem:[%s809 + $0x9a] sm:$0xff]
      %v1180 = vld [vmem:[%s809 + $0xaa] sm:$0xff]
      %v1181 = vld [vmem:[%s809 + $0xb2] sm:$0xff]
      %v1182 = vpack.c.bf16 %v1167, %v1166
      %v1183 = vpack.c.bf16 %v1169, %v1168
      %v1184 = vpack.c.bf16 %v1171, %v1170
      %v1185 = vpack.c.bf16 %v1173, %v1172
      %v1186 = vpack.c.bf16 %v1175, %v1174
      %v1187 = vpack.c.bf16 %v1177, %v1176
      %v1188 = vpack.c.bf16 %v1179, %v1178
      %v1189 = vpack.c.bf16 %v1181, %v1180
      %s1190 = scalar_lea.vmem %s1, 80
      %v1191 = vld [vmem:[%s1190] sm:$0xf]
      %v1192 = vld [vmem:[%s1190 + $0x4] sm:$0xf]
      %v1193 = vld [vmem:[%s1190 + $0x8] sm:$0xf]
      %v1194 = vld [vmem:[%s1190 + $0xc] sm:$0xf]
      %v1199 = vunpack.c.l.b16 %v1191
      %v1200 = vunpack.c.l.b16 %v1192
      %v1201 = vunpack.c.l.b16 %v1193
      %v1202 = vunpack.c.l.b16 %v1194
      %v1203 = vpack.c.b16 %v1200, %v1199
      %v1204 = vpack.c.b16 %v1202, %v1201
      %v1208 = vsel %vm374, %v1182, 0
      %v1211 = vsel %vm374, %v1183, 0
      %v1214 = vsel %vm374, %v1184, 0
      %v1217 = vsel %vm374, %v1185, 0
      %v1220 = vsel %vm374, %v1186, 0
      %v1223 = vsel %vm374, %v1187, 0
      %v1226 = vsel %vm374, %v1188, 0
      %v1229 = vsel %vm374, %v1189, 0
      %1231 = vmatprep.subr.bf16.mxu0 0
      %1232 = vmatpush1.bf16.msra.mxu0 %v1203
      %1233 = vmatprep.subr.bf16.mxu0 0
      %1234 = vmatpush1.bf16.msra.mxu0 %v1204
      %1235 = vmatprep.subr.bf16.mxu0 0
      %1236 = vmatpush1.bf16.msra.mxu0 0
      %1237 = vmatprep.subr.bf16.mxu0 0
      %1238 = vmatpush1.bf16.msra.mxu0 0
      %1239 = vmatprep.subr.bf16.mxu0 0
      %1240 = vmatpush1.bf16.msra.mxu0 0
      %1241 = vmatprep.subr.bf16.mxu0 0
      %1242 = vmatpush1.bf16.msra.mxu0 0
      %1243 = vmatprep.subr.bf16.mxu0 0
      %1244 = vmatpush1.bf16.msra.mxu0 0
      %1245 = vmatprep.subr.bf16.mxu0 0
      %1246 = vmatpush1.bf16.msra.mxu0 0
      %1247 = vmatprep.subr.bf16.mxu0 0
      %1248 = vmatpush1.bf16.msra.mxu0 0
      %1249 = vmatprep.subr.bf16.mxu0 0
      %1250 = vmatpush1.bf16.msra.mxu0 0
      %1251 = vmatprep.subr.bf16.mxu0 0
      %1252 = vmatpush1.bf16.msra.mxu0 0
      %1253 = vmatprep.subr.bf16.mxu0 0
      %1254 = vmatpush1.bf16.msra.mxu0 0
      %1255 = vmatprep.subr.bf16.mxu0 0
      %1256 = vmatpush1.bf16.msra.mxu0 0
      %1257 = vmatprep.subr.bf16.mxu0 0
      %1258 = vmatpush1.bf16.msra.mxu0 0
      %1259 = vmatprep.subr.bf16.mxu0 0
      %1260 = vmatpush1.bf16.msra.mxu0 0
      %1261 = vmatprep.subr.bf16.mxu0 0
      %1262 = vmatpush1.bf16.msra.mxu0 0
      %1263 = vmatprep.mubr.bf16.mxu0 0
      %1264 = vmatmul.mubr.bf16.gmra.mrb[0].mxu0 %v1208
      %v1265 = vpop.f32.mrb[0].mxu0
      %v1266 = vadd.f32 0.0, %v1265
      %v1267 = vpop.f32.mrb[0].mxu0
      %v1268 = vpop.f32.mrb[0].mxu0
      %v1269 = vadd.f32 0.0, %v1268
      %v1270 = vpop.f32.mrb[0].mxu0
      %1271 = vmatprep.mubr.bf16.mxu0 0
      %1272 = vmatmul.mubr.bf16.gmra.mrb[0].mxu0 %v1211
      %v1273 = vpop.f32.mrb[0].mxu0
      %v1274 = vadd.f32 0.0, %v1273
      %v1275 = vpop.f32.mrb[0].mxu0
      %v1276 = vpop.f32.mrb[0].mxu0
      %v1277 = vadd.f32 0.0, %v1276
      %v1278 = vpop.f32.mrb[0].mxu0
      %1279 = vmatprep.mubr.bf16.mxu0 0
      %1280 = vmatmul.mubr.bf16.gmra.mrb[0].mxu0 %v1214
      %v1281 = vpop.f32.mrb[0].mxu0
      %v1282 = vadd.f32 0.0, %v1281
      %v1283 = vpop.f32.mrb[0].mxu0
      %v1284 = vpop.f32.mrb[0].mxu0
      %v1285 = vadd.f32 0.0, %v1284
      %v1286 = vpop.f32.mrb[0].mxu0
      %1287 = vmatprep.mubr.bf16.mxu0 0
      %1288 = vmatmul.mubr.bf16.gmra.mrb[0].mxu0 %v1217
      %v1289 = vpop.f32.mrb[0].mxu0
      %v1290 = vadd.f32 0.0, %v1289
      %v1291 = vpop.f32.mrb[0].mxu0
      %v1292 = vpop.f32.mrb[0].mxu0
      %v1293 = vadd.f32 0.0, %v1292
      %v1294 = vpop.f32.mrb[0].mxu0
      %1295 = vmatprep.mubr.bf16.mxu0 0
      %1296 = vmatmul.mubr.bf16.gmra.mrb[0].mxu0 %v1220
      %v1297 = vpop.f32.mrb[0].mxu0
      %v1298 = vadd.f32 0.0, %v1297
      %v1299 = vpop.f32.mrb[0].mxu0
      %v1300 = vpop.f32.mrb[0].mxu0
      %v1301 = vadd.f32 0.0, %v1300
      %v1302 = vpop.f32.mrb[0].mxu0
      %1303 = vmatprep.mubr.bf16.mxu0 0
      %1304 = vmatmul.mubr.bf16.gmra.mrb[0].mxu0 %v1223
      %v1305 = vpop.f32.mrb[0].mxu0
      %v1306 = vadd.f32 0.0, %v1305
      %v1307 = vpop.f32.mrb[0].mxu0
      %v1308 = vpop.f32.mrb[0].mxu0
      %v1309 = vadd.f32 0.0, %v1308
      %v1310 = vpop.f32.mrb[0].mxu0
      %1311 = vmatprep.mubr.bf16.mxu0 0
      %1312 = vmatmul.mubr.bf16.gmra.mrb[0].mxu0 %v1226
      %v1313 = vpop.f32.mrb[0].mxu0
      %v1314 = vadd.f32 0.0, %v1313
      %v1315 = vpop.f32.mrb[0].mxu0
      %v1316 = vpop.f32.mrb[0].mxu0
      %v1317 = vadd.f32 0.0, %v1316
      %v1318 = vpop.f32.mrb[0].mxu0
      %1319 = vmatprep.mubr.bf16.mxu0 0
      %1320 = vmatmul.mubr.bf16.gmra.mrb[0].mxu0 %v1229
      %v1321 = vpop.f32.mrb[0].mxu0
      %v1322 = vadd.f32 0.0, %v1321
      %v1323 = vpop.f32.mrb[0].mxu0
      %v1324 = vpop.f32.mrb[0].mxu0
      %v1325 = vadd.f32 0.0, %v1324
      %v1326 = vpop.f32.mrb[0].mxu0
      %1327 = vdwg.mxu0
      %v1328 = vadd.f32 %v1150, %v1266
      %v1329 = vadd.f32 %v1151, %v1269
      %v1330 = vadd.f32 %v1152, %v1274
      %v1331 = vadd.f32 %v1153, %v1277
      %v1332 = vadd.f32 %v1154, %v1282
      %v1333 = vadd.f32 %v1155, %v1285
      %v1334 = vadd.f32 %v1156, %v1290
      %v1335 = vadd.f32 %v1157, %v1293
      %v1336 = vadd.f32 %v1158, %v1298
      %v1337 = vadd.f32 %v1159, %v1301
      %v1338 = vadd.f32 %v1160, %v1306
      %v1339 = vadd.f32 %v1161, %v1309
      %v1340 = vadd.f32 %v1162, %v1314
      %v1341 = vadd.f32 %v1163, %v1317
      %v1342 = vadd.f32 %v1164, %v1322
      %v1343 = vadd.f32 %v1165, %v1325
      %s1344 = sadd.s32 %s301, 3
      %s1345 = smul.u32 %s1344, 24
      %s1346 = scalar_lea.vmem [#allocation2], %s1345
      %v1347 = vld [vmem:[%s1346] sm:$0xff]
      %v1348 = vld [vmem:[%s1346 + $0x8] sm:$0xff]
      %v1349 = vld [vmem:[%s1346 + $0x18] sm:$0xff]
      %v1350 = vld [vmem:[%s1346 + $0x20] sm:$0xff]
      %v1351 = vld [vmem:[%s1346 + $0x30] sm:$0xff]
      %v1352 = vld [vmem:[%s1346 + $0x38] sm:$0xff]
      %v1353 = vld [vmem:[%s1346 + $0x48] sm:$0xff]
      %v1354 = vld [vmem:[%s1346 + $0x50] sm:$0xff]
      %v1355 = vld [vmem:[%s1346 + $0x60] sm:$0xff]
      %v1356 = vld [vmem:[%s1346 + $0x68] sm:$0xff]
      %v1357 = vld [vmem:[%s1346 + $0x78] sm:$0xff]
      %v1358 = vld [vmem:[%s1346 + $0x80] sm:$0xff]
      %v1359 = vld [vmem:[%s1346 + $0x90] sm:$0xff]
      %v1360 = vld [vmem:[%s1346 + $0x98] sm:$0xff]
      %v1361 = vld [vmem:[%s1346 + $0xa8] sm:$0xff]
      %v1362 = vld [vmem:[%s1346 + $0xb0] sm:$0xff]
      %v1363 = vpack.c.bf16 %v1348, %v1347
      %v1364 = vpack.c.bf16 %v1350, %v1349
      %v1365 = vpack.c.bf16 %v1352, %v1351
      %v1366 = vpack.c.bf16 %v1354, %v1353
      %v1367 = vpack.c.bf16 %v1356, %v1355
      %v1368 = vpack.c.bf16 %v1358, %v1357
      %v1369 = vpack.c.bf16 %v1360, %v1359
      %v1370 = vpack.c.bf16 %v1362, %v1361
      %s1371 = scalar_lea.vmem %s1, 96
      %v1372 = vld [vmem:[%s1371] sm:$0xf]
      %v1373 = vld [vmem:[%s1371 + $0x4] sm:$0xf]
      %v1374 = vld [vmem:[%s1371 + $0x8] sm:$0xf]
      %v1375 = vld [vmem:[%s1371 + $0xc] sm:$0xf]
      %v1380 = vunpack.c.l.b16 %v1372
      %v1381 = vunpack.c.l.b16 %v1373
      %v1382 = vunpack.c.l.b16 %v1374
      %v1383 = vunpack.c.l.b16 %v1375
      %v1384 = vpack.c.b16 %v1381, %v1380
      %v1385 = vpack.c.b16 %v1383, %v1382
      %v1389 = vsel %vm374, %v1363, 0
      %v1392 = vsel %vm374, %v1364, 0
      %v1395 = vsel %vm374, %v1365, 0
      %v1398 = vsel %vm374, %v1366, 0
      %v1401 = vsel %vm374, %v1367, 0
      %v1404 = vsel %vm374, %v1368, 0
      %v1407 = vsel %vm374, %v1369, 0
      %v1410 = vsel %vm374, %v1370, 0
      %1412 = vmatprep.subr.bf16.mxu0 0
      %1413 = vmatpush1.bf16.msra.mxu0 %v1384
      %1414 = vmatprep.subr.bf16.mxu0 0
      %1415 = vmatpush1.bf16.msra.mxu0 %v1385
      %1416 = vmatprep.subr.bf16.mxu0 0
      %1417 = vmatpush1.bf16.msra.mxu0 0
      %1418 = vmatprep.subr.bf16.mxu0 0
      %1419 = vmatpush1.bf16.msra.mxu0 0
      %1420 = vmatprep.subr.bf16.mxu0 0
      %1421 = vmatpush1.bf16.msra.mxu0 0
      %1422 = vmatprep.subr.bf16.mxu0 0
      %1423 = vmatpush1.bf16.msra.mxu0 0
      %1424 = vmatprep.subr.bf16.mxu0 0
      %1425 = vmatpush1.bf16.msra.mxu0 0
      %1426 = vmatprep.subr.bf16.mxu0 0
      %1427 = vmatpush1.bf16.msra.mxu0 0
      %1428 = vmatprep.subr.bf16.mxu0 0
      %1429 = vmatpush1.bf16.msra.mxu0 0
      %1430 = vmatprep.subr.bf16.mxu0 0
      %1431 = vmatpush1.bf16.msra.mxu0 0
      %1432 = vmatprep.subr.bf16.mxu0 0
      %1433 = vmatpush1.bf16.msra.mxu0 0
      %1434 = vmatprep.subr.bf16.mxu0 0
      %1435 = vmatpush1.bf16.msra.mxu0 0
      %1436 = vmatprep.subr.bf16.mxu0 0
      %1437 = vmatpush1.bf16.msra.mxu0 0
      %1438 = vmatprep.subr.bf16.mxu0 0
      %1439 = vmatpush1.bf16.msra.mxu0 0
      %1440 = vmatprep.subr.bf16.mxu0 0
      %1441 = vmatpush1.bf16.msra.mxu0 0
      %1442 = vmatprep.subr.bf16.mxu0 0
      %1443 = vmatpush1.bf16.msra.mxu0 0
      %1444 = vmatprep.mubr.bf16.mxu0 0
      %1445 = vmatmul.mubr.bf16.gmra.mrb[0].mxu0 %v1389
      %v1446 = vpop.f32.mrb[0].mxu0
      %v1447 = vadd.f32 0.0, %v1446
      %v1448 = vpop.f32.mrb[0].mxu0
      %v1449 = vpop.f32.mrb[0].mxu0
      %v1450 = vadd.f32 0.0, %v1449
      %v1451 = vpop.f32.mrb[0].mxu0
      %1452 = vmatprep.mubr.bf16.mxu0 0
      %1453 = vmatmul.mubr.bf16.gmra.mrb[0].mxu0 %v1392
      %v1454 = vpop.f32.mrb[0].mxu0
      %v1455 = vadd.f32 0.0, %v1454
      %v1456 = vpop.f32.mrb[0].mxu0
      %v1457 = vpop.f32.mrb[0].mxu0
      %v1458 = vadd.f32 0.0, %v1457
      %v1459 = vpop.f32.mrb[0].mxu0
      %1460 = vmatprep.mubr.bf16.mxu0 0
      %1461 = vmatmul.mubr.bf16.gmra.mrb[0].mxu0 %v1395
      %v1462 = vpop.f32.mrb[0].mxu0
      %v1463 = vadd.f32 0.0, %v1462
      %v1464 = vpop.f32.mrb[0].mxu0
      %v1465 = vpop.f32.mrb[0].mxu0
      %v1466 = vadd.f32 0.0, %v1465
      %v1467 = vpop.f32.mrb[0].mxu0
      %1468 = vmatprep.mubr.bf16.mxu0 0
      %1469 = vmatmul.mubr.bf16.gmra.mrb[0].mxu0 %v1398
      %v1470 = vpop.f32.mrb[0].mxu0
      %v1471 = vadd.f32 0.0, %v1470
      %v1472 = vpop.f32.mrb[0].mxu0
      %v1473 = vpop.f32.mrb[0].mxu0
      %v1474 = vadd.f32 0.0, %v1473
      %v1475 = vpop.f32.mrb[0].mxu0
      %1476 = vmatprep.mubr.bf16.mxu0 0
      %1477 = vmatmul.mubr.bf16.gmra.mrb[0].mxu0 %v1401
      %v1478 = vpop.f32.mrb[0].mxu0
      %v1479 = vadd.f32 0.0, %v1478
      %v1480 = vpop.f32.mrb[0].mxu0
      %v1481 = vpop.f32.mrb[0].mxu0
      %v1482 = vadd.f32 0.0, %v1481
      %v1483 = vpop.f32.mrb[0].mxu0
      %1484 = vmatprep.mubr.bf16.mxu0 0
      %1485 = vmatmul.mubr.bf16.gmra.mrb[0].mxu0 %v1404
      %v1486 = vpop.f32.mrb[0].mxu0
      %v1487 = vadd.f32 0.0, %v1486
      %v1488 = vpop.f32.mrb[0].mxu0
      %v1489 = vpop.f32.mrb[0].mxu0
      %v1490 = vadd.f32 0.0, %v1489
      %v1491 = vpop.f32.mrb[0].mxu0
      %1492 = vmatprep.mubr.bf16.mxu0 0
      %1493 = vmatmul.mubr.bf16.gmra.mrb[0].mxu0 %v1407
      %v1494 = vpop.f32.mrb[0].mxu0
      %v1495 = vadd.f32 0.0, %v1494
      %v1496 = vpop.f32.mrb[0].mxu0
      %v1497 = vpop.f32.mrb[0].mxu0
      %v1498 = vadd.f32 0.0, %v1497
      %v1499 = vpop.f32.mrb[0].mxu0
      %1500 = vmatprep.mubr.bf16.mxu0 0
      %1501 = vmatmul.mubr.bf16.gmra.mrb[0].mxu0 %v1410
      %v1502 = vpop.f32.mrb[0].mxu0
      %v1503 = vadd.f32 0.0, %v1502
      %v1504 = vpop.f32.mrb[0].mxu0
      %v1505 = vpop.f32.mrb[0].mxu0
      %v1506 = vadd.f32 0.0, %v1505
      %v1507 = vpop.f32.mrb[0].mxu0
      %1508 = vdwg.mxu0
      %v1509 = vadd.f32 %v1328, %v1447
      %v1510 = vadd.f32 %v1329, %v1450
      %v1511 = vadd.f32 %v1330, %v1455
      %v1512 = vadd.f32 %v1331, %v1458
      %v1513 = vadd.f32 %v1332, %v1463
      %v1514 = vadd.f32 %v1333, %v1466
      %v1515 = vadd.f32 %v1334, %v1471
      %v1516 = vadd.f32 %v1335, %v1474
      %v1517 = vadd.f32 %v1336, %v1479
      %v1518 = vadd.f32 %v1337, %v1482
      %v1519 = vadd.f32 %v1338, %v1487
      %v1520 = vadd.f32 %v1339, %v1490
      %v1521 = vadd.f32 %v1340, %v1495
      %v1522 = vadd.f32 %v1341, %v1498
      %v1523 = vadd.f32 %v1342, %v1503
      %v1524 = vadd.f32 %v1343, %v1506
      %v1525 = vld [vmem:[%s1346 + $0x1] sm:$0xff]
      %v1526 = vld [vmem:[%s1346 + $0x9] sm:$0xff]
      %v1527 = vld [vmem:[%s1346 + $0x19] sm:$0xff]
      %v1528 = vld [vmem:[%s1346 + $0x21] sm:$0xff]
      %v1529 = vld [vmem:[%s1346 + $0x31] sm:$0xff]
      %v1530 = vld [vmem:[%s1346 + $0x39] sm:$0xff]
      %v1531 = vld [vmem:[%s1346 + $0x49] sm:$0xff]
      %v1532 = vld [vmem:[%s1346 + $0x51] sm:$0xff]
      %v1533 = vld [vmem:[%s1346 + $0x61] sm:$0xff]
      %v1534 = vld [vmem:[%s1346 + $0x69] sm:$0xff]
      %v1535 = vld [vmem:[%s1346 + $0x79] sm:$0xff]
      %v1536 = vld [vmem:[%s1346 + $0x81] sm:$0xff]
      %v1537 = vld [vmem:[%s1346 + $0x91] sm:$0xff]
      %v1538 = vld [vmem:[%s1346 + $0x99] sm:$0xff]
      %v1539 = vld [vmem:[%s1346 + $0xa9] sm:$0xff]
      %v1540 = vld [vmem:[%s1346 + $0xb1] sm:$0xff]
      %v1541 = vpack.c.bf16 %v1526, %v1525
      %v1542 = vpack.c.bf16 %v1528, %v1527
      %v1543 = vpack.c.bf16 %v1530, %v1529
      %v1544 = vpack.c.bf16 %v1532, %v1531
      %v1545 = vpack.c.bf16 %v1534, %v1533
      %v1546 = vpack.c.bf16 %v1536, %v1535
      %v1547 = vpack.c.bf16 %v1538, %v1537
      %v1548 = vpack.c.bf16 %v1540, %v1539
      %s1549 = scalar_lea.vmem %s1, 112
      %v1550 = vld [vmem:[%s1549] sm:$0xf]
      %v1551 = vld [vmem:[%s1549 + $0x4] sm:$0xf]
      %v1552 = vld [vmem:[%s1549 + $0x8] sm:$0xf]
      %v1553 = vld [vmem:[%s1549 + $0xc] sm:$0xf]
      %v1558 = vunpack.c.l.b16 %v1550
      %v1559 = vunpack.c.l.b16 %v1551
      %v1560 = vunpack.c.l.b16 %v1552
      %v1561 = vunpack.c.l.b16 %v1553
      %v1562 = vpack.c.b16 %v1559, %v1558
      %v1563 = vpack.c.b16 %v1561, %v1560
      %v1567 = vsel %vm374, %v1541, 0
      %v1570 = vsel %vm374, %v1542, 0
      %v1573 = vsel %vm374, %v1543, 0
      %v1576 = vsel %vm374, %v1544, 0
      %v1579 = vsel %vm374, %v1545, 0
      %v1582 = vsel %vm374, %v1546, 0
      %v1585 = vsel %vm374, %v1547, 0
      %v1588 = vsel %vm374, %v1548, 0
      %1590 = vmatprep.subr.bf16.mxu0 0
      %1591 = vmatpush1.bf16.msra.mxu0 %v1562
      %1592 = vmatprep.subr.bf16.mxu0 0
      %1593 = vmatpush1.bf16.msra.mxu0 %v1563
      %1594 = vmatprep.subr.bf16.mxu0 0
      %1595 = vmatpush1.bf16.msra.mxu0 0
      %1596 = vmatprep.subr.bf16.mxu0 0
      %1597 = vmatpush1.bf16.msra.mxu0 0
      %1598 = vmatprep.subr.bf16.mxu0 0
      %1599 = vmatpush1.bf16.msra.mxu0 0
      %1600 = vmatprep.subr.bf16.mxu0 0
      %1601 = vmatpush1.bf16.msra.mxu0 0
      %1602 = vmatprep.subr.bf16.mxu0 0
      %1603 = vmatpush1.bf16.msra.mxu0 0
      %1604 = vmatprep.subr.bf16.mxu0 0
      %1605 = vmatpush1.bf16.msra.mxu0 0
      %1606 = vmatprep.subr.bf16.mxu0 0
      %1607 = vmatpush1.bf16.msra.mxu0 0
      %1608 = vmatprep.subr.bf16.mxu0 0
      %1609 = vmatpush1.bf16.msra.mxu0 0
      %1610 = vmatprep.subr.bf16.mxu0 0
      %1611 = vmatpush1.bf16.msra.mxu0 0
      %1612 = vmatprep.subr.bf16.mxu0 0
      %1613 = vmatpush1.bf16.msra.mxu0 0
      %1614 = vmatprep.subr.bf16.mxu0 0
      %1615 = vmatpush1.bf16.msra.mxu0 0
      %1616 = vmatprep.subr.bf16.mxu0 0
      %1617 = vmatpush1.bf16.msra.mxu0 0
      %1618 = vmatprep.subr.bf16.mxu0 0
      %1619 = vmatpush1.bf16.msra.mxu0 0
      %1620 = vmatprep.subr.bf16.mxu0 0
      %1621 = vmatpush1.bf16.msra.mxu0 0
      %1622 = vmatprep.mubr.bf16.mxu0 0
      %1623 = vmatmul.mubr.bf16.gmra.mrb[0].mxu0 %v1567
      %v1624 = vpop.f32.mrb[0].mxu0
      %v1625 = vadd.f32 0.0, %v1624
      %v1626 = vpop.f32.mrb[0].mxu0
      %v1627 = vpop.f32.mrb[0].mxu0
      %v1628 = vadd.f32 0.0, %v1627
      %v1629 = vpop.f32.mrb[0].mxu0
      %1630 = vmatprep.mubr.bf16.mxu0 0
      %1631 = vmatmul.mubr.bf16.gmra.mrb[0].mxu0 %v1570
      %v1632 = vpop.f32.mrb[0].mxu0
      %v1633 = vadd.f32 0.0, %v1632
      %v1634 = vpop.f32.mrb[0].mxu0
      %v1635 = vpop.f32.mrb[0].mxu0
      %v1636 = vadd.f32 0.0, %v1635
      %v1637 = vpop.f32.mrb[0].mxu0
      %1638 = vmatprep.mubr.bf16.mxu0 0
      %1639 = vmatmul.mubr.bf16.gmra.mrb[0].mxu0 %v1573
      %v1640 = vpop.f32.mrb[0].mxu0
      %v1641 = vadd.f32 0.0, %v1640
      %v1642 = vpop.f32.mrb[0].mxu0
      %v1643 = vpop.f32.mrb[0].mxu0
      %v1644 = vadd.f32 0.0, %v1643
      %v1645 = vpop.f32.mrb[0].mxu0
      %1646 = vmatprep.mubr.bf16.mxu0 0
      %1647 = vmatmul.mubr.bf16.gmra.mrb[0].mxu0 %v1576
      %v1648 = vpop.f32.mrb[0].mxu0
      %v1649 = vadd.f32 0.0, %v1648
      %v1650 = vpop.f32.mrb[0].mxu0
      %v1651 = vpop.f32.mrb[0].mxu0
      %v1652 = vadd.f32 0.0, %v1651
      %v1653 = vpop.f32.mrb[0].mxu0
      %1654 = vmatprep.mubr.bf16.mxu0 0
      %1655 = vmatmul.mubr.bf16.gmra.mrb[0].mxu0 %v1579
      %v1656 = vpop.f32.mrb[0].mxu0
      %v1657 = vadd.f32 0.0, %v1656
      %v1658 = vpop.f32.mrb[0].mxu0
      %v1659 = vpop.f32.mrb[0].mxu0
      %v1660 = vadd.f32 0.0, %v1659
      %v1661 = vpop.f32.mrb[0].mxu0
      %1662 = vmatprep.mubr.bf16.mxu0 0
      %1663 = vmatmul.mubr.bf16.gmra.mrb[0].mxu0 %v1582
      %v1664 = vpop.f32.mrb[0].mxu0
      %v1665 = vadd.f32 0.0, %v1664
      %v1666 = vpop.f32.mrb[0].mxu0
      %v1667 = vpop.f32.mrb[0].mxu0
      %v1668 = vadd.f32 0.0, %v1667
      %v1669 = vpop.f32.mrb[0].mxu0
      %1670 = vmatprep.mubr.bf16.mxu0 0
      %1671 = vmatmul.mubr.bf16.gmra.mrb[0].mxu0 %v1585
      %v1672 = vpop.f32.mrb[0].mxu0
      %v1673 = vadd.f32 0.0, %v1672
      %v1674 = vpop.f32.mrb[0].mxu0
      %v1675 = vpop.f32.mrb[0].mxu0
      %v1676 = vadd.f32 0.0, %v1675
      %v1677 = vpop.f32.mrb[0].mxu0
      %1678 = vmatprep.mubr.bf16.mxu0 0
      %1679 = vmatmul.mubr.bf16.gmra.mrb[0].mxu0 %v1588
      %v1680 = vpop.f32.mrb[0].mxu0
      %v1681 = vadd.f32 0.0, %v1680
      %v1682 = vpop.f32.mrb[0].mxu0
      %v1683 = vpop.f32.mrb[0].mxu0
      %v1684 = vadd.f32 0.0, %v1683
      %v1685 = vpop.f32.mrb[0].mxu0
      %1686 = vdwg.mxu0
      %v1687 = vadd.f32 %v1509, %v1625
      %v1688 = vadd.f32 %v1510, %v1628
      %v1689 = vadd.f32 %v1511, %v1633
      %v1690 = vadd.f32 %v1512, %v1636
      %v1691 = vadd.f32 %v1513, %v1641
      %v1692 = vadd.f32 %v1514, %v1644
      %v1693 = vadd.f32 %v1515, %v1649
      %v1694 = vadd.f32 %v1516, %v1652
      %v1695 = vadd.f32 %v1517, %v1657
      %v1696 = vadd.f32 %v1518, %v1660
      %v1697 = vadd.f32 %v1519, %v1665
      %v1698 = vadd.f32 %v1520, %v1668
      %v1699 = vadd.f32 %v1521, %v1673
      %v1700 = vadd.f32 %v1522, %v1676
      %v1701 = vadd.f32 %v1523, %v1681
      %v1702 = vadd.f32 %v1524, %v1684
      %v1703 = vld [vmem:[%s1346 + $0x2] sm:$0xff]
      %v1704 = vld [vmem:[%s1346 + $0xa] sm:$0xff]
      %v1705 = vld [vmem:[%s1346 + $0x1a] sm:$0xff]
      %v1706 = vld [vmem:[%s1346 + $0x22] sm:$0xff]
      %v1707 = vld [vmem:[%s1346 + $0x32] sm:$0xff]
      %v1708 = vld [vmem:[%s1346 + $0x3a] sm:$0xff]
      %v1709 = vld [vmem:[%s1346 + $0x4a] sm:$0xff]
      %v1710 = vld [vmem:[%s1346 + $0x52] sm:$0xff]
      %v1711 = vld [vmem:[%s1346 + $0x62] sm:$0xff]
      %v1712 = vld [vmem:[%s1346 + $0x6a] sm:$0xff]
      %v1713 = vld [vmem:[%s1346 + $0x7a] sm:$0xff]
      %v1714 = vld [vmem:[%s1346 + $0x82] sm:$0xff]
      %v1715 = vld [vmem:[%s1346 + $0x92] sm:$0xff]
      %v1716 = vld [vmem:[%s1346 + $0x9a] sm:$0xff]
      %v1717 = vld [vmem:[%s1346 + $0xaa] sm:$0xff]
      %v1718 = vld [vmem:[%s1346 + $0xb2] sm:$0xff]
      %v1719 = vpack.c.bf16 %v1704, %v1703
      %v1720 = vpack.c.bf16 %v1706, %v1705
      %v1721 = vpack.c.bf16 %v1708, %v1707
      %v1722 = vpack.c.bf16 %v1710, %v1709
      %v1723 = vpack.c.bf16 %v1712, %v1711
      %v1724 = vpack.c.bf16 %v1714, %v1713
      %v1725 = vpack.c.bf16 %v1716, %v1715
      %v1726 = vpack.c.bf16 %v1718, %v1717
      %s1727 = scalar_lea.vmem %s1, 128
      %v1728 = vld [vmem:[%s1727] sm:$0xf]
      %v1729 = vld [vmem:[%s1727 + $0x4] sm:$0xf]
      %v1730 = vld [vmem:[%s1727 + $0x8] sm:$0xf]
      %v1731 = vld [vmem:[%s1727 + $0xc] sm:$0xf]
      %v1736 = vunpack.c.l.b16 %v1728
      %v1737 = vunpack.c.l.b16 %v1729
      %v1738 = vunpack.c.l.b16 %v1730
      %v1739 = vunpack.c.l.b16 %v1731
      %v1740 = vpack.c.b16 %v1737, %v1736
      %v1741 = vpack.c.b16 %v1739, %v1738
      %v1745 = vsel %vm374, %v1719, 0
      %v1748 = vsel %vm374, %v1720, 0
      %v1751 = vsel %vm374, %v1721, 0
      %v1754 = vsel %vm374, %v1722, 0
      %v1757 = vsel %vm374, %v1723, 0
      %v1760 = vsel %vm374, %v1724, 0
      %v1763 = vsel %vm374, %v1725, 0
      %v1766 = vsel %vm374, %v1726, 0
      %1768 = vmatprep.subr.bf16.mxu0 0
      %1769 = vmatpush1.bf16.msra.mxu0 %v1740
      %1770 = vmatprep.subr.bf16.mxu0 0
      %1771 = vmatpush1.bf16.msra.mxu0 %v1741
      %1772 = vmatprep.subr.bf16.mxu0 0
      %1773 = vmatpush1.bf16.msra.mxu0 0
      %1774 = vmatprep.subr.bf16.mxu0 0
      %1775 = vmatpush1.bf16.msra.mxu0 0
      %1776 = vmatprep.subr.bf16.mxu0 0
      %1777 = vmatpush1.bf16.msra.mxu0 0
      %1778 = vmatprep.subr.bf16.mxu0 0
      %1779 = vmatpush1.bf16.msra.mxu0 0
      %1780 = vmatprep.subr.bf16.mxu0 0
      %1781 = vmatpush1.bf16.msra.mxu0 0
      %1782 = vmatprep.subr.bf16.mxu0 0
      %1783 = vmatpush1.bf16.msra.mxu0 0
      %1784 = vmatprep.subr.bf16.mxu0 0
      %1785 = vmatpush1.bf16.msra.mxu0 0
      %1786 = vmatprep.subr.bf16.mxu0 0
      %1787 = vmatpush1.bf16.msra.mxu0 0
      %1788 = vmatprep.subr.bf16.mxu0 0
      %1789 = vmatpush1.bf16.msra.mxu0 0
      %1790 = vmatprep.subr.bf16.mxu0 0
      %1791 = vmatpush1.bf16.msra.mxu0 0
      %1792 = vmatprep.subr.bf16.mxu0 0
      %1793 = vmatpush1.bf16.msra.mxu0 0
      %1794 = vmatprep.subr.bf16.mxu0 0
      %1795 = vmatpush1.bf16.msra.mxu0 0
      %1796 = vmatprep.subr.bf16.mxu0 0
      %1797 = vmatpush1.bf16.msra.mxu0 0
      %1798 = vmatprep.subr.bf16.mxu0 0
      %1799 = vmatpush1.bf16.msra.mxu0 0
      %1800 = vmatprep.mubr.bf16.mxu0 0
      %1801 = vmatmul.mubr.bf16.gmra.mrb[0].mxu0 %v1745
      %v1802 = vpop.f32.mrb[0].mxu0
      %v1803 = vadd.f32 0.0, %v1802
      %v1804 = vpop.f32.mrb[0].mxu0
      %v1805 = vpop.f32.mrb[0].mxu0
      %v1806 = vadd.f32 0.0, %v1805
      %v1807 = vpop.f32.mrb[0].mxu0
      %1808 = vmatprep.mubr.bf16.mxu0 0
      %1809 = vmatmul.mubr.bf16.gmra.mrb[0].mxu0 %v1748
      %v1810 = vpop.f32.mrb[0].mxu0
      %v1811 = vadd.f32 0.0, %v1810
      %v1812 = vpop.f32.mrb[0].mxu0
      %v1813 = vpop.f32.mrb[0].mxu0
      %v1814 = vadd.f32 0.0, %v1813
      %v1815 = vpop.f32.mrb[0].mxu0
      %1816 = vmatprep.mubr.bf16.mxu0 0
      %1817 = vmatmul.mubr.bf16.gmra.mrb[0].mxu0 %v1751
      %v1818 = vpop.f32.mrb[0].mxu0
      %v1819 = vadd.f32 0.0, %v1818
      %v1820 = vpop.f32.mrb[0].mxu0
      %v1821 = vpop.f32.mrb[0].mxu0
      %v1822 = vadd.f32 0.0, %v1821
      %v1823 = vpop.f32.mrb[0].mxu0
      %1824 = vmatprep.mubr.bf16.mxu0 0
      %1825 = vmatmul.mubr.bf16.gmra.mrb[0].mxu0 %v1754
      %v1826 = vpop.f32.mrb[0].mxu0
      %v1827 = vadd.f32 0.0, %v1826
      %v1828 = vpop.f32.mrb[0].mxu0
      %v1829 = vpop.f32.mrb[0].mxu0
      %v1830 = vadd.f32 0.0, %v1829
      %v1831 = vpop.f32.mrb[0].mxu0
      %1832 = vmatprep.mubr.bf16.mxu0 0
      %1833 = vmatmul.mubr.bf16.gmra.mrb[0].mxu0 %v1757
      %v1834 = vpop.f32.mrb[0].mxu0
      %v1835 = vadd.f32 0.0, %v1834
      %v1836 = vpop.f32.mrb[0].mxu0
      %v1837 = vpop.f32.mrb[0].mxu0
      %v1838 = vadd.f32 0.0, %v1837
      %v1839 = vpop.f32.mrb[0].mxu0
      %1840 = vmatprep.mubr.bf16.mxu0 0
      %1841 = vmatmul.mubr.bf16.gmra.mrb[0].mxu0 %v1760
      %v1842 = vpop.f32.mrb[0].mxu0
      %v1843 = vadd.f32 0.0, %v1842
      %v1844 = vpop.f32.mrb[0].mxu0
      %v1845 = vpop.f32.mrb[0].mxu0
      %v1846 = vadd.f32 0.0, %v1845
      %v1847 = vpop.f32.mrb[0].mxu0
      %1848 = vmatprep.mubr.bf16.mxu0 0
      %1849 = vmatmul.mubr.bf16.gmra.mrb[0].mxu0 %v1763
      %v1850 = vpop.f32.mrb[0].mxu0
      %v1851 = vadd.f32 0.0, %v1850
      %v1852 = vpop.f32.mrb[0].mxu0
      %v1853 = vpop.f32.mrb[0].mxu0
      %v1854 = vadd.f32 0.0, %v1853
      %v1855 = vpop.f32.mrb[0].mxu0
      %1856 = vmatprep.mubr.bf16.mxu0 0
      %1857 = vmatmul.mubr.bf16.gmra.mrb[0].mxu0 %v1766
      %v1858 = vpop.f32.mrb[0].mxu0
      %v1859 = vadd.f32 0.0, %v1858
      %v1860 = vpop.f32.mrb[0].mxu0
      %v1861 = vpop.f32.mrb[0].mxu0
      %v1862 = vadd.f32 0.0, %v1861
      %v1863 = vpop.f32.mrb[0].mxu0
      %1864 = vdwg.mxu0
      %v1865 = vadd.f32 %v1687, %v1803
      %v1866 = vadd.f32 %v1688, %v1806
      %v1867 = vadd.f32 %v1689, %v1811
      %v1868 = vadd.f32 %v1690, %v1814
      %v1869 = vadd.f32 %v1691, %v1819
      %v1870 = vadd.f32 %v1692, %v1822
      %v1871 = vadd.f32 %v1693, %v1827
      %v1872 = vadd.f32 %v1694, %v1830
      %v1873 = vadd.f32 %v1695, %v1835
      %v1874 = vadd.f32 %v1696, %v1838
      %v1875 = vadd.f32 %v1697, %v1843
      %v1876 = vadd.f32 %v1698, %v1846
      %v1877 = vadd.f32 %v1699, %v1851
      %v1878 = vadd.f32 %v1700, %v1854
      %v1879 = vadd.f32 %v1701, %v1859
      %v1880 = vadd.f32 %v1702, %v1862
      %vm1881 = vcmask 15360
      %1882 = vst.msk [vmem:[%s167] sm:$0xff] %vm1881, %v1865
      %1883 = vst.msk [vmem:[%s167 + $0x8] sm:$0xff] %vm1881, %v1866
      %1884 = vst.msk [vmem:[%s167 + $0x10] sm:$0xff] %vm1881, %v1867
      %1885 = vst.msk [vmem:[%s167 + $0x18] sm:$0xff] %vm1881, %v1868
      %1886 = vst.msk [vmem:[%s167 + $0x20] sm:$0xff] %vm1881, %v1869
      %1887 = vst.msk [vmem:[%s167 + $0x28] sm:$0xff] %vm1881, %v1870
      %1888 = vst.msk [vmem:[%s167 + $0x30] sm:$0xff] %vm1881, %v1871
      %1889 = vst.msk [vmem:[%s167 + $0x38] sm:$0xff] %vm1881, %v1872
      %1890 = vst.msk [vmem:[%s167 + $0x40] sm:$0xff] %vm1881, %v1873
      %1891 = vst.msk [vmem:[%s167 + $0x48] sm:$0xff] %vm1881, %v1874
      %1892 = vst.msk [vmem:[%s167 + $0x50] sm:$0xff] %vm1881, %v1875
      %1893 = vst.msk [vmem:[%s167 + $0x58] sm:$0xff] %vm1881, %v1876
      %1894 = vst.msk [vmem:[%s167 + $0x60] sm:$0xff] %vm1881, %v1877
      %1895 = vst.msk [vmem:[%s167 + $0x68] sm:$0xff] %vm1881, %v1878
      %1896 = vst.msk [vmem:[%s167 + $0x70] sm:$0xff] %vm1881, %v1879
      %1897 = vst.msk [vmem:[%s167 + $0x78] sm:$0xff] %vm1881, %v1880
      %s1898 = smul.u32 8, %s18
      %p1899 = scmp.lt.s32.totalorder %s17, 1
      %s1900 = scalar_select %p1899, %s17, 1
      %p1901 = scmp.lt.s32.totalorder %s1898, 15
      %s1902 = scalar_select %p1901, %s1898, 15
      %s1903 = smul.addr %s1902, 2
      %s1904 = smul.addr %s1900, 32
      %s1905 = sadd.s32 %s1903, %s1904
      %s1906 = smul.addr %s1905, 8
      %s1907 = scalar_lea.vmem %s2, %s1906
      // Predicated region
      $region33: #{resnet_forward.9} parent=27 // pred_check
        %p1908 = pneg %p92
      $region34: #{resnet_forward.9} parent=27 // pred_check_branch
        %1910 = sbr.rel (%p1908) target = $region36
      $region35: #{resnet_forward.9} parent=27 // pred_region
        %s1911 = smul.u32 8, %s18
      $region36: #{resnet_forward.9} parent=27 // pred_fallthru
        _
    $region28: #{resnet_forward.9} parent=5 // pred_fallthru
      _
    %p1912 = scmp.le.s32.totalorder 2, %s8
    // Predicated region
    $region37: #{resnet_forward.9} parent=5 // pred_check
      %p1913 = pneg %p1912
    $region38: #{resnet_forward.9} parent=5 // pred_check_branch
      %1915 = sbr.rel (%p1913) target = $region40
    $region39: #{resnet_forward.9} parent=5 // pred_region
      %s1916 = ssub.s32 %s8, 2
      // Predicated region
      $region41: #{resnet_forward.9} parent=39 // pred_check
        %p1917 = pneg %p98
      $region42: #{resnet_forward.9} parent=39 // pred_check_branch
        %1919 = sbr.rel (%p1917) target = $region44
      $region43: #{resnet_forward.9} parent=39 // pred_region
        %s1920 = smul.u32 8, %s20
        %p1921 = scmp.lt.s32.totalorder %s19, 1
        %s1922 = scalar_select %p1921, %s19, 1
        %p1923 = scmp.lt.s32.totalorder %s1920, 15
        %s1924 = scalar_select %p1923, %s1920, 15
        %s1925 = smul.addr %s1924, 2
        %s1926 = smul.addr %s1922, 32
        %s1927 = sadd.s32 %s1925, %s1926
        %s1928 = smul.addr %s1927, 8
        %s1929 = scalar_lea.vmem %s2, %s1928
      $region44: #{resnet_forward.9} parent=39 // pred_fallthru
        _
    $region40: #{resnet_forward.9} parent=5 // pred_fallthru
      _
  $region6: #{resnet_forward.9} parent=0 // loop_footer
    %s12 = sadd.s32 1, %s8
  $region7: #{resnet_forward.9} parent=0 // loop_footer_branch
    %7 = sbr.rel target = $region3
  $region8: #{resnet_forward.9} parent=0 // loop_exit
    _

// kernel: resnet_forward.5
$region0: #{resnet_forward.5}
  #allocation0 [shape = 'u32[]', space=smem, size = 0x4, offset = 0x4, fixed_abs, tag = 'smem constant byte address 0x4 - core index']
  #allocation1 [shape = 'u32[144,128]{1,0:T(1,128)}', space=vmem, size = 0x12000, scoped, tag = 'internal scratch']
  #allocation2 [shape = 'f32[20,18,2]{2,1,0:T(8,128)}', space=vmem, size = 0x3c000, scoped, tag = 'scratch operand']
  %s0 = inlined_call_operand.vmem [shape: f32[2,16,16,2], index: 0, kind: input, shape index: {}]
  %s1 = inlined_call_operand.vmem [shape: bf16[9,2,32], index: 1, kind: input, shape index: {}]
  %s2 = inlined_call_operand.vmem [shape: f32[2,16,16,32], index: 2, kind: output, shape index: {}]
  %s3 = sld [smem:[#allocation0]]
  $region45: #{resnet_forward.5} parent=0
    _
  %s5 = ssub.s32 1, %s3
  %s6 = scalar_select 0, %s5, %s3
  loop: start=0, step=1, limit=6
  $region2: #{resnet_forward.5} parent=0 // loop_pre_header
    _
  $region3: #{resnet_forward.5} parent=0 // loop_header
    %s8 = sphi 0, %s12
    %p9 = scmp.ge.s32.totalorder %s8, 6
    %s15 = sphi 0, %s27
    %s16 = sphi 0, %s23
    %s17 = sphi 0, %s15
    %s18 = sphi 0, %s16
    %s19 = sphi 0, %s17
    %s20 = sphi 0, %s18
    %s30 = sphi 0, %s32
    %s33 = sphi 0, %s30
    %s34 = sphi 0, %s33
    %s50 = sphi 0, %s34
    %s54 = sphi 0, %s54
    %s56 = sphi 0, %s54
    %s57 = sphi 0, %s56
    %s71 = sphi 0, %s57
    %s79 = sphi 0, %s81
    %s82 = sphi 0, %s79
    %s83 = sphi 0, %s82
    %s99 = sphi 0, %s83
  $region4: #{resnet_forward.5} parent=0 // loop_header_branch
    %11 = sbr.rel (%p9) target = $region8
  $region5: #{resnet_forward.5} parent=0 // loop_body
    %s13 = ssub.s32 %s8, 1
    %s14 = ssub.s32 %s8, 2
    %s21 = sadd.s32 1, %s16
    %p22 = scmp.ge.s32.totalorder %s21, 2
    %s23 = scalar_select %p22, 0, %s21
    %s24 = sadd.s32 1, %s15
    %s25 = scalar_select %p22, %s24, %s15
    %p26 = scmp.ge.s32.totalorder %s25, 2
    %s27 = scalar_select %p26, 0, %s25
    %s28 = ssub.s32 %s15, %s27
    %p29 = scmp.eq.s32.totalorder %s28, 0
    %s31 = sadd.s32 %s30, 1
    %s32 = scalar_select %p29, %s30, %s31
    %p35 = pneg %p29
    %p36 = scmp.eq.s32.totalorder %s8, 3
    %p37 = por %p35, %p36
    %p38 = scmp.ne.s32.totalorder %s30, %s33
    %p39 = scmp.eq.s32.totalorder %s8, 0
    %p40 = por %p38, %p39
    %p41 = scmp.ne.s32.totalorder %s30, %s33
    %p42 = scmp.eq.s32.totalorder %s13, 3
    %p43 = por %p41, %p42
    %p44 = scmp.ne.s32.totalorder %s33, %s34
    %p45 = scmp.eq.s32.totalorder %s13, 0
    %p46 = por %p44, %p45
    %p47 = scmp.ne.s32.totalorder %s33, %s34
    %p48 = scmp.eq.s32.totalorder %s14, 3
    %p49 = por %p47, %p48
    %p51 = scmp.ne.s32.totalorder %s34, %s50
    %p52 = scmp.eq.s32.totalorder %s14, 0
    %p53 = por %p51, %p52
    %s55 = sadd.s32 %s54, 1
    %p58 = scmp.eq.s32.totalorder %s8, 3
    %p59 = scmp.ne.s32.totalorder %s54, %s56
    %p60 = scmp.eq.s32.totalorder %s8, 0
    %p61 = por %p59, %p60
    %p62 = scmp.ne.s32.totalorder %s54, %s56
    %p63 = scmp.eq.s32.totalorder %s13, 3
    %p64 = por %p62, %p63
    %p65 = scmp.ne.s32.totalorder %s56, %s57
    %p66 = scmp.eq.s32.totalorder %s13, 0
    %p67 = por %p65, %p66
    %p68 = scmp.ne.s32.totalorder %s56, %s57
    %p69 = scmp.eq.s32.totalorder %s14, 3
    %p70 = por %p68, %p69
    %p72 = scmp.ne.s32.totalorder %s57, %s71
    %p73 = scmp.eq.s32.totalorder %s14, 0
    %p74 = por %p72, %p73
    %s75 = ssub.s32 %s15, %s27
    %s76 = ssub.s32 %s16, %s23
    %s77 = sor.u32 %s75, %s76
    %p78 = scmp.eq.s32.totalorder %s77, 0
    %s80 = sadd.s32 %s79, 1
    %s81 = scalar_select %p78, %s79, %s80
    %p84 = pneg %p78
    %p85 = scmp.eq.s32.totalorder %s8, 3
    %p86 = por %p84, %p85
    %p87 = scmp.ne.s32.totalorder %s79, %s82
    %p88 = scmp.eq.s32.totalorder %s8, 0
    %p89 = por %p87, %p88
    %p90 = scmp.ne.s32.totalorder %s79, %s82
    %p91 = scmp.eq.s32.totalorder %s13, 3
    %p92 = por %p90, %p91
    %p93 = scmp.ne.s32.totalorder %s82, %s83
    %p94 = scmp.eq.s32.totalorder %s13, 0
    %p95 = por %p93, %p94
    %p96 = scmp.ne.s32.totalorder %s82, %s83
    %p97 = scmp.eq.s32.totalorder %s14, 3
    %p98 = por %p96, %p97
    %p100 = scmp.ne.s32.totalorder %s83, %s99
    %p101 = scmp.eq.s32.totalorder %s14, 0
    %p102 = por %p100, %p101
    %p103 = scmp.le.s32.totalorder 1, %s8
    %p104 = scmp.lt.s32.totalorder %s8, 5
    %p105 = pnand %p103, %p104
    %p106 = pneg %p105
    // Predicated region
    $region9: #{resnet_forward.5} parent=5 // pred_check
      _
    $region10: #{resnet_forward.5} parent=5 // pred_check_branch
      %108 = sbr.rel (%p105) target = $region12
    $region11: #{resnet_forward.5} parent=5 // pred_region
      %s109 = ssub.s32 %s8, 1
      // Predicated region
      $region13: #{resnet_forward.5} parent=11 // pred_check
        %p110 = pneg %p67
      $region14: #{resnet_forward.5} parent=11 // pred_check_branch
        %112 = sbr.rel (%p110) target = $region16
      $region15: #{resnet_forward.5} parent=11 // pred_region
        _
      $region16: #{resnet_forward.5} parent=11 // pred_fallthru
        _
    $region12: #{resnet_forward.5} parent=5 // pred_fallthru
      _
    %p113 = scmp.lt.s32.totalorder %s8, 4
    // Predicated region
    $region17: #{resnet_forward.5} parent=5 // pred_check
      %p114 = pneg %p113
    $region18: #{resnet_forward.5} parent=5 // pred_check_branch
      %116 = sbr.rel (%p114) target = $region20
    $region19: #{resnet_forward.5} parent=5 // pred_region
      // Predicated region
      $region21: #{resnet_forward.5} parent=19 // pred_check
        %p117 = pneg %p40
      $region22: #{resnet_forward.5} parent=19 // pred_check_branch
        %119 = sbr.rel (%p117) target = $region24
      $region23: #{resnet_forward.5} parent=19 // pred_region
        %p120 = scmp.lt.s32.totalorder %s15, 1
        %s121 = scalar_select %p120, %s15, 1
        %s122 = smul.addr %s121, 32
        %s123 = smul.addr %s122, 8
        %s124 = scalar_lea.vmem %s0, %s123
      $region24: #{resnet_forward.5} parent=19 // pred_fallthru
        _
    $region20: #{resnet_forward.5} parent=5 // pred_fallthru
      _
    %p125 = scmp.le.s32.totalorder 1, %s8
    %p126 = scmp.lt.s32.totalorder %s8, 5
    %p127 = pnand %p125, %p126
    %p128 = pneg %p127
    // Predicated region
    $region25: #{resnet_forward.5} parent=5 // pred_check
      _
    $region26: #{resnet_forward.5} parent=5 // pred_check_branch
      %130 = sbr.rel (%p127) target = $region28
    $region27: #{resnet_forward.5} parent=5 // pred_region
      %s131 = ssub.s32 %s8, 1
      %p132 = scmp.lt.s32.totalorder %s17, 1
      %s133 = scalar_select %p132, %s17, 1
      %s134 = smul.addr %s133, 32
      %s135 = smul.addr %s134, 8
      %s136 = scalar_lea.vmem %s0, %s135
      %p137 = pneg %p46
      %p138 = pneg %p43
      %p139 = pneg %p67
      %p140 = pneg %p64
      %p141 = pneg %p95
      %p142 = pneg %p92
      %s143 = smul.u32 8, %s18
      %p144 = scmp.lt.s32.totalorder %s17, 1
      %s145 = scalar_select %p144, %s17, 1
      %p146 = scmp.lt.s32.totalorder %s143, 15
      %s147 = scalar_select %p146, %s143, 15
      %s148 = smul.addr %s147, 2
      %s149 = smul.addr %s145, 32
      %s150 = sadd.s32 %s148, %s149
      %s151 = smul.addr %s150, 8
      %s152 = scalar_lea.vmem %s2, %s151
      %p153 = scmp.lt.s32.totalorder %s17, 1
      %s154 = scalar_select %p153, %s17, 1
      %s155 = smul.addr %s154, 32
      %s156 = smul.addr %s155, 8
      %s157 = scalar_lea.vmem %s0, %s156
      %s158 = smul.u32 8, %s18
      %p159 = scmp.lt.s32.totalorder %s17, 1
      %s160 = scalar_select %p159, %s17, 1
      %p161 = scmp.lt.s32.totalorder %s158, 15
      %s162 = scalar_select %p161, %s158, 15
      %s163 = smul.addr %s162, 2
      %s164 = smul.addr %s160, 32
      %s165 = sadd.s32 %s163, %s164
      %s166 = smul.addr %s165, 8
      %s167 = scalar_lea.vmem %s2, %s166
      %s168 = smul.u32 8, %s18
      %p170 = scmp.eq.s32.totalorder %s18, 0
      // Predicated region
      $region29: #{resnet_forward.5} parent=27 // pred_check
        %p171 = pneg %p170
      $region30: #{resnet_forward.5} parent=27 // pred_check_branch
        %173 = sbr.rel (%p171) target = $region32
      $region31: #{resnet_forward.5} parent=27 // pred_region
        %vm174 = vcmask 15360
        %175 = vst.msk [vmem:[#allocation2] sm:$0xff] %vm174, 0.0
        %176 = vst.msk [vmem:[#allocation2 + $0x8] sm:$0xff] %vm174, 0.0
        %vm177 = vcmask 9216
        %178 = vst.msk [vmem:[#allocation2 + $0x10] sm:$0x3] %vm177, 0.0
        %179 = vst.msk [vmem:[#allocation2 + $0x18] sm:$0xff] %vm174, 0.0
        %180 = vst.msk [vmem:[#allocation2 + $0x20] sm:$0xff] %vm174, 0.0
        %181 = vst.msk [vmem:[#allocation2 + $0x28] sm:$0x3] %vm177, 0.0
        %182 = vst.msk [vmem:[#allocation2 + $0x30] sm:$0xff] %vm174, 0.0
        %183 = vst.msk [vmem:[#allocation2 + $0x38] sm:$0xff] %vm174, 0.0
        %184 = vst.msk [vmem:[#allocation2 + $0x40] sm:$0x3] %vm177, 0.0
        %185 = vst.msk [vmem:[#allocation2 + $0x48] sm:$0xff] %vm174, 0.0
        %186 = vst.msk [vmem:[#allocation2 + $0x50] sm:$0xff] %vm174, 0.0
        %187 = vst.msk [vmem:[#allocation2 + $0x58] sm:$0x3] %vm177, 0.0
        %188 = vst.msk [vmem:[#allocation2 + $0x60] sm:$0xff] %vm174, 0.0
        %189 = vst.msk [vmem:[#allocation2 + $0x68] sm:$0xff] %vm174, 0.0
        %190 = vst.msk [vmem:[#allocation2 + $0x70] sm:$0x3] %vm177, 0.0
        %191 = vst.msk [vmem:[#allocation2 + $0x78] sm:$0xff] %vm174, 0.0
        %192 = vst.msk [vmem:[#allocation2 + $0x80] sm:$0xff] %vm174, 0.0
        %193 = vst.msk [vmem:[#allocation2 + $0x88] sm:$0x3] %vm177, 0.0
        %194 = vst.msk [vmem:[#allocation2 + $0x90] sm:$0xff] %vm174, 0.0
        %195 = vst.msk [vmem:[#allocation2 + $0x98] sm:$0xff] %vm174, 0.0
        %196 = vst.msk [vmem:[#allocation2 + $0xa0] sm:$0x3] %vm177, 0.0
        %197 = vst.msk [vmem:[#allocation2 + $0xa8] sm:$0xff] %vm174, 0.0
        %198 = vst.msk [vmem:[#allocation2 + $0xb0] sm:$0xff] %vm174, 0.0
        %199 = vst.msk [vmem:[#allocation2 + $0xb8] sm:$0x3] %vm177, 0.0
        %200 = vst.msk [vmem:[#allocation2 + $0xc0] sm:$0xff] %vm174, 0.0
        %201 = vst.msk [vmem:[#allocation2 + $0xc8] sm:$0xff] %vm174, 0.0
        %202 = vst.msk [vmem:[#allocation2 + $0xd0] sm:$0x3] %vm177, 0.0
        %203 = vst.msk [vmem:[#allocation2 + $0xd8] sm:$0xff] %vm174, 0.0
        %204 = vst.msk [vmem:[#allocation2 + $0xe0] sm:$0xff] %vm174, 0.0
        %205 = vst.msk [vmem:[#allocation2 + $0xe8] sm:$0x3] %vm177, 0.0
        %206 = vst.msk [vmem:[#allocation2 + $0xf0] sm:$0xff] %vm174, 0.0
        %207 = vst.msk [vmem:[#allocation2 + $0xf8] sm:$0xff] %vm174, 0.0
        %208 = vst.msk [vmem:[#allocation2 + $0x100] sm:$0x3] %vm177, 0.0
        %209 = vst.msk [vmem:[#allocation2 + $0x108] sm:$0xff] %vm174, 0.0
        %210 = vst.msk [vmem:[#allocation2 + $0x110] sm:$0xff] %vm174, 0.0
        %211 = vst.msk [vmem:[#allocation2 + $0x118] sm:$0x3] %vm177, 0.0
        %212 = vst.msk [vmem:[#allocation2 + $0x120] sm:$0xff] %vm174, 0.0
        %213 = vst.msk [vmem:[#allocation2 + $0x128] sm:$0xff] %vm174, 0.0
        %214 = vst.msk [vmem:[#allocation2 + $0x130] sm:$0x3] %vm177, 0.0
        %215 = vst.msk [vmem:[#allocation2 + $0x138] sm:$0xff] %vm174, 0.0
        %216 = vst.msk [vmem:[#allocation2 + $0x140] sm:$0xff] %vm174, 0.0
        %217 = vst.msk [vmem:[#allocation2 + $0x148] sm:$0x3] %vm177, 0.0
        %218 = vst.msk [vmem:[#allocation2 + $0x150] sm:$0xff] %vm174, 0.0
        %219 = vst.msk [vmem:[#allocation2 + $0x158] sm:$0xff] %vm174, 0.0
        %220 = vst.msk [vmem:[#allocation2 + $0x160] sm:$0x3] %vm177, 0.0
        %221 = vst.msk [vmem:[#allocation2 + $0x168] sm:$0xff] %vm174, 0.0
        %222 = vst.msk [vmem:[#allocation2 + $0x170] sm:$0xff] %vm174, 0.0
        %223 = vst.msk [vmem:[#allocation2 + $0x178] sm:$0x3] %vm177, 0.0
        %224 = vst.msk [vmem:[#allocation2 + $0x180] sm:$0xff] %vm174, 0.0
        %225 = vst.msk [vmem:[#allocation2 + $0x188] sm:$0xff] %vm174, 0.0
        %226 = vst.msk [vmem:[#allocation2 + $0x190] sm:$0x3] %vm177, 0.0
        %227 = vst.msk [vmem:[#allocation2 + $0x198] sm:$0xff] %vm174, 0.0
        %228 = vst.msk [vmem:[#allocation2 + $0x1a0] sm:$0xff] %vm174, 0.0
        %229 = vst.msk [vmem:[#allocation2 + $0x1a8] sm:$0x3] %vm177, 0.0
        %230 = vst.msk [vmem:[#allocation2 + $0x1b0] sm:$0xff] %vm174, 0.0
        %231 = vst.msk [vmem:[#allocation2 + $0x1b8] sm:$0xff] %vm174, 0.0
        %232 = vst.msk [vmem:[#allocation2 + $0x1c0] sm:$0x3] %vm177, 0.0
        %233 = vst.msk [vmem:[#allocation2 + $0x1c8] sm:$0xff] %vm174, 0.0
        %234 = vst.msk [vmem:[#allocation2 + $0x1d0] sm:$0xff] %vm174, 0.0
        %235 = vst.msk [vmem:[#allocation2 + $0x1d8] sm:$0x3] %vm177, 0.0
        %v236 = vld [vmem:[%s157] sm:$0xff]
        %v237 = vld [vmem:[%s157 + $0x8] sm:$0xff]
        %v238 = vld [vmem:[%s157 + $0x10] sm:$0xff]
        %v239 = vld [vmem:[%s157 + $0x18] sm:$0xff]
        %v240 = vld [vmem:[%s157 + $0x20] sm:$0xff]
        %v241 = vld [vmem:[%s157 + $0x28] sm:$0xff]
        %v242 = vld [vmem:[%s157 + $0x30] sm:$0xff]
        %v243 = vld [vmem:[%s157 + $0x38] sm:$0xff]
        %v244 = vld [vmem:[%s157 + $0x40] sm:$0xff]
        %v245 = vld [vmem:[%s157 + $0x48] sm:$0xff]
        %v246 = vld [vmem:[%s157 + $0x50] sm:$0xff]
        %v247 = vld [vmem:[%s157 + $0x58] sm:$0xff]
        %v248 = vld [vmem:[%s157 + $0x60] sm:$0xff]
        %v249 = vld [vmem:[%s157 + $0x68] sm:$0xff]
        %v250 = vld [vmem:[%s157 + $0x70] sm:$0xff]
        %v251 = vld [vmem:[%s157 + $0x78] sm:$0xff]
        %v252 = vld [vmem:[%s157 + $0x80] sm:$0xff]
        %v253 = vld [vmem:[%s157 + $0x88] sm:$0xff]
        %v254 = vld [vmem:[%s157 + $0x90] sm:$0xff]
        %v255 = vld [vmem:[%s157 + $0x98] sm:$0xff]
        %v256 = vld [vmem:[%s157 + $0xa0] sm:$0xff]
        %v257 = vld [vmem:[%s157 + $0xa8] sm:$0xff]
        %v258 = vld [vmem:[%s157 + $0xb0] sm:$0xff]
        %v259 = vld [vmem:[%s157 + $0xb8] sm:$0xff]
        %v260 = vld [vmem:[%s157 + $0xc0] sm:$0xff]
        %v261 = vld [vmem:[%s157 + $0xc8] sm:$0xff]
        %v262 = vld [vmem:[%s157 + $0xd0] sm:$0xff]
        %v263 = vld [vmem:[%s157 + $0xd8] sm:$0xff]
        %v264 = vld [vmem:[%s157 + $0xe0] sm:$0xff]
        %v265 = vld [vmem:[%s157 + $0xe8] sm:$0xff]
        %v266 = vld [vmem:[%s157 + $0xf0] sm:$0xff]
        %v267 = vld [vmem:[%s157 + $0xf8] sm:$0xff]
        %s268 = scalar_lea.vmem [#allocation2], 48
        %269 = vst.msk [vmem:[%s268 + $0x1] sm:$0xff] %vm174, %v236
        %270 = vst.msk [vmem:[%s268 + $0x9] sm:$0xff] %vm174, %v237
        %271 = vst.msk [vmem:[%s268 + $0x19] sm:$0xff] %vm174, %v238
        %272 = vst.msk [vmem:[%s268 + $0x21] sm:$0xff] %vm174, %v239
        %273 = vst.msk [vmem:[%s268 + $0x31] sm:$0xff] %vm174, %v240
        %274 = vst.msk [vmem:[%s268 + $0x39] sm:$0xff] %vm174, %v241
        %275 = vst.msk [vmem:[%s268 + $0x49] sm:$0xff] %vm174, %v242
        %276 = vst.msk [vmem:[%s268 + $0x51] sm:$0xff] %vm174, %v243
        %277 = vst.msk [vmem:[%s268 + $0x61] sm:$0xff] %vm174, %v244
        %278 = vst.msk [vmem:[%s268 + $0x69] sm:$0xff] %vm174, %v245
        %279 = vst.msk [vmem:[%s268 + $0x79] sm:$0xff] %vm174, %v246
        %280 = vst.msk [vmem:[%s268 + $0x81] sm:$0xff] %vm174, %v247
        %281 = vst.msk [vmem:[%s268 + $0x91] sm:$0xff] %vm174, %v248
        %282 = vst.msk [vmem:[%s268 + $0x99] sm:$0xff] %vm174, %v249
        %283 = vst.msk [vmem:[%s268 + $0xa9] sm:$0xff] %vm174, %v250
        %284 = vst.msk [vmem:[%s268 + $0xb1] sm:$0xff] %vm174, %v251
        %285 = vst.msk [vmem:[%s268 + $0xc1] sm:$0xff] %vm174, %v252
        %286 = vst.msk [vmem:[%s268 + $0xc9] sm:$0xff] %vm174, %v253
        %287 = vst.msk [vmem:[%s268 + $0xd9] sm:$0xff] %vm174, %v254
        %288 = vst.msk [vmem:[%s268 + $0xe1] sm:$0xff] %vm174, %v255
        %289 = vst.msk [vmem:[%s268 + $0xf1] sm:$0xff] %vm174, %v256
        %290 = vst.msk [vmem:[%s268 + $0xf9] sm:$0xff] %vm174, %v257
        %291 = vst.msk [vmem:[%s268 + $0x109] sm:$0xff] %vm174, %v258
        %292 = vst.msk [vmem:[%s268 + $0x111] sm:$0xff] %vm174, %v259
        %293 = vst.msk [vmem:[%s268 + $0x121] sm:$0xff] %vm174, %v260
        %294 = vst.msk [vmem:[%s268 + $0x129] sm:$0xff] %vm174, %v261
        %295 = vst.msk [vmem:[%s268 + $0x139] sm:$0xff] %vm174, %v262
        %296 = vst.msk [vmem:[%s268 + $0x141] sm:$0xff] %vm174, %v263
        %297 = vst.msk [vmem:[%s268 + $0x151] sm:$0xff] %vm174, %v264
        %298 = vst.msk [vmem:[%s268 + $0x159] sm:$0xff] %vm174, %v265
        %299 = vst.msk [vmem:[%s268 + $0x169] sm:$0xff] %vm174, %v266
        %300 = vst.msk [vmem:[%s268 + $0x171] sm:$0xff] %vm174, %v267
      $region32: #{resnet_forward.5} parent=27 // pred_fallthru
        _
      %s301 = smul.u32 %s18, 8
      %s302 = sadd.s32 %s301, 1
      %s303 = smul.u32 %s302, 24
      %s304 = scalar_lea.vmem [#allocation2], %s303
      %v305 = vld [vmem:[%s304] sm:$0xff]
      %v306 = vld [vmem:[%s304 + $0x8] sm:$0xff]
      %v307 = vld [vmem:[%s304 + $0x18] sm:$0xff]
      %v308 = vld [vmem:[%s304 + $0x20] sm:$0xff]
      %v309 = vld [vmem:[%s304 + $0x30] sm:$0xff]
      %v310 = vld [vmem:[%s304 + $0x38] sm:$0xff]
      %v311 = vld [vmem:[%s304 + $0x48] sm:$0xff]
      %v312 = vld [vmem:[%s304 + $0x50] sm:$0xff]
      %v313 = vld [vmem:[%s304 + $0x60] sm:$0xff]
      %v314 = vld [vmem:[%s304 + $0x68] sm:$0xff]
      %v315 = vld [vmem:[%s304 + $0x78] sm:$0xff]
      %v316 = vld [vmem:[%s304 + $0x80] sm:$0xff]
      %v317 = vld [vmem:[%s304 + $0x90] sm:$0xff]
      %v318 = vld [vmem:[%s304 + $0x98] sm:$0xff]
      %v319 = vld [vmem:[%s304 + $0xa8] sm:$0xff]
      %v320 = vld [vmem:[%s304 + $0xb0] sm:$0xff]
      %v321 = vpack.c.bf16 %v306, %v305
      %v322 = vpack.c.bf16 %v308, %v307
      %v323 = vpack.c.bf16 %v310, %v309
      %v324 = vpack.c.bf16 %v312, %v311
      %v325 = vpack.c.bf16 %v314, %v313
      %v326 = vpack.c.bf16 %v316, %v315
      %v327 = vpack.c.bf16 %v318, %v317
      %v328 = vpack.c.bf16 %v320, %v319
      %v329 = vld [vmem:[%s1] sm:$0x1]
      %v330 = vld [vmem:[%s304 + $0x1] sm:$0xff]
      %v331 = vld [vmem:[%s304 + $0x9] sm:$0xff]
      %v332 = vld [vmem:[%s304 + $0x19] sm:$0xff]
      %v333 = vld [vmem:[%s304 + $0x21] sm:$0xff]
      %v334 = vld [vmem:[%s304 + $0x31] sm:$0xff]
      %v335 = vld [vmem:[%s304 + $0x39] sm:$0xff]
      %v336 = vld [vmem:[%s304 + $0x49] sm:$0xff]
      %v337 = vld [vmem:[%s304 + $0x51] sm:$0xff]
      %v338 = vld [vmem:[%s304 + $0x61] sm:$0xff]
      %v339 = vld [vmem:[%s304 + $0x69] sm:$0xff]
      %v340 = vld [vmem:[%s304 + $0x79] sm:$0xff]
      %v341 = vld [vmem:[%s304 + $0x81] sm:$0xff]
      %v342 = vld [vmem:[%s304 + $0x91] sm:$0xff]
      %v343 = vld [vmem:[%s304 + $0x99] sm:$0xff]
      %v344 = vld [vmem:[%s304 + $0xa9] sm:$0xff]
      %v345 = vld [vmem:[%s304 + $0xb1] sm:$0xff]
      %v346 = vpack.c.bf16 %v331, %v330
      %v347 = vpack.c.bf16 %v333, %v332
      %v348 = vpack.c.bf16 %v335, %v334
      %v349 = vpack.c.bf16 %v337, %v336
      %v350 = vpack.c.bf16 %v339, %v338
      %v351 = vpack.c.bf16 %v341, %v340
      %v352 = vpack.c.bf16 %v343, %v342
      %v353 = vpack.c.bf16 %v345, %v344
      %s354 = scalar_lea.vmem %s1, 1
      %v355 = vld [vmem:[%s354] sm:$0x1]
      %vm356 = vcmask 15360
      %v358 = vsel %vm356, %v346, 0
      %v361 = vsel %vm356, %v347, 0
      %v364 = vsel %vm356, %v348, 0
      %v367 = vsel %vm356, %v349, 0
      %v370 = vsel %vm356, %v350, 0
      %v373 = vsel %vm356, %v351, 0
      %v376 = vsel %vm356, %v352, 0
      %v379 = vsel %vm356, %v353, 0
      %vm381 = vcmask 1040384
      %v383 = vsel %vm381, %v355, 0
      %385 = vmatprep.subr.bf16.mxu0 0
      %386 = vmatpush1.bf16.msra.mxu0 %v383
      %387 = vmatprep.subr.bf16.mxu0 0
      %388 = vmatpush1.bf16.msra.mxu0 0
      %389 = vmatprep.subr.bf16.mxu0 0
      %390 = vmatpush1.bf16.msra.mxu0 0
      %391 = vmatprep.subr.bf16.mxu0 0
      %392 = vmatpush1.bf16.msra.mxu0 0
      %393 = vmatprep.subr.bf16.mxu0 0
      %394 = vmatpush1.bf16.msra.mxu0 0
      %395 = vmatprep.subr.bf16.mxu0 0
      %396 = vmatpush1.bf16.msra.mxu0 0
      %397 = vmatprep.subr.bf16.mxu0 0
      %398 = vmatpush1.bf16.msra.mxu0 0
      %399 = vmatprep.subr.bf16.mxu0 0
      %400 = vmatpush1.bf16.msra.mxu0 0
      %401 = vmatprep.subr.bf16.mxu0 0
      %402 = vmatpush1.bf16.msra.mxu0 0
      %403 = vmatprep.subr.bf16.mxu0 0
      %404 = vmatpush1.bf16.msra.mxu0 0
      %405 = vmatprep.subr.bf16.mxu0 0
      %406 = vmatpush1.bf16.msra.mxu0 0
      %407 = vmatprep.subr.bf16.mxu0 0
      %408 = vmatpush1.bf16.msra.mxu0 0
      %409 = vmatprep.subr.bf16.mxu0 0
      %410 = vmatpush1.bf16.msra.mxu0 0
      %411 = vmatprep.subr.bf16.mxu0 0
      %412 = vmatpush1.bf16.msra.mxu0 0
      %413 = vmatprep.subr.bf16.mxu0 0
      %414 = vmatpush1.bf16.msra.mxu0 0
      %415 = vmatprep.subr.bf16.mxu0 0
      %416 = vmatpush1.bf16.msra.mxu0 0
      %417 = vmatprep.mubr.bf16.mxu0 0
      %418 = vmatmul.mubr.bf16.gmra.mrb[0].mxu0 %v358
      %v419 = vpop.f32.mrb[0].mxu0
      %v420 = vadd.f32 0.0, %v419
      %v421 = vpop.f32.mrb[0].mxu0
      %v422 = vpop.f32.mrb[0].mxu0
      %v423 = vadd.f32 0.0, %v422
      %v424 = vpop.f32.mrb[0].mxu0
      %425 = vmatprep.mubr.bf16.mxu0 0
      %426 = vmatmul.mubr.bf16.gmra.mrb[0].mxu0 %v361
      %v427 = vpop.f32.mrb[0].mxu0
      %v428 = vadd.f32 0.0, %v427
      %v429 = vpop.f32.mrb[0].mxu0
      %v430 = vpop.f32.mrb[0].mxu0
      %v431 = vadd.f32 0.0, %v430
      %v432 = vpop.f32.mrb[0].mxu0
      %433 = vmatprep.mubr.bf16.mxu0 0
      %434 = vmatmul.mubr.bf16.gmra.mrb[0].mxu0 %v364
      %v435 = vpop.f32.mrb[0].mxu0
      %v436 = vadd.f32 0.0, %v435
      %v437 = vpop.f32.mrb[0].mxu0
      %v438 = vpop.f32.mrb[0].mxu0
      %v439 = vadd.f32 0.0, %v438
      %v440 = vpop.f32.mrb[0].mxu0
      %441 = vmatprep.mubr.bf16.mxu0 0
      %442 = vmatmul.mubr.bf16.gmra.mrb[0].mxu0 %v367
      %v443 = vpop.f32.mrb[0].mxu0
      %v444 = vadd.f32 0.0, %v443
      %v445 = vpop.f32.mrb[0].mxu0
      %v446 = vpop.f32.mrb[0].mxu0
      %v447 = vadd.f32 0.0, %v446
      %v448 = vpop.f32.mrb[0].mxu0
      %449 = vmatprep.mubr.bf16.mxu0 0
      %450 = vmatmul.mubr.bf16.gmra.mrb[0].mxu0 %v370
      %v451 = vpop.f32.mrb[0].mxu0
      %v452 = vadd.f32 0.0, %v451
      %v453 = vpop.f32.mrb[0].mxu0
      %v454 = vpop.f32.mrb[0].mxu0
      %v455 = vadd.f32 0.0, %v454
      %v456 = vpop.f32.mrb[0].mxu0
      %457 = vmatprep.mubr.bf16.mxu0 0
      %458 = vmatmul.mubr.bf16.gmra.mrb[0].mxu0 %v373
      %v459 = vpop.f32.mrb[0].mxu0
      %v460 = vadd.f32 0.0, %v459
      %v461 = vpop.f32.mrb[0].mxu0
      %v462 = vpop.f32.mrb[0].mxu0
      %v463 = vadd.f32 0.0, %v462
      %v464 = vpop.f32.mrb[0].mxu0
      %465 = vmatprep.mubr.bf16.mxu0 0
      %466 = vmatmul.mubr.bf16.gmra.mrb[0].mxu0 %v376
      %v467 = vpop.f32.mrb[0].mxu0
      %v468 = vadd.f32 0.0, %v467
      %v469 = vpop.f32.mrb[0].mxu0
      %v470 = vpop.f32.mrb[0].mxu0
      %v471 = vadd.f32 0.0, %v470
      %v472 = vpop.f32.mrb[0].mxu0
      %473 = vmatprep.mubr.bf16.mxu0 0
      %474 = vmatmul.mubr.bf16.gmra.mrb[0].mxu0 %v379
      %v475 = vpop.f32.mrb[0].mxu0
      %v476 = vadd.f32 0.0, %v475
      %v477 = vpop.f32.mrb[0].mxu0
      %v478 = vpop.f32.mrb[0].mxu0
      %v479 = vadd.f32 0.0, %v478
      %v480 = vpop.f32.mrb[0].mxu0
      %481 = vdwg.mxu0
      %v483 = vsel %vm356, %v321, 0
      %v486 = vsel %vm356, %v322, 0
      %v489 = vsel %vm356, %v323, 0
      %v492 = vsel %vm356, %v324, 0
      %v495 = vsel %vm356, %v325, 0
      %v498 = vsel %vm356, %v326, 0
      %v501 = vsel %vm356, %v327, 0
      %v504 = vsel %vm356, %v328, 0
      %v507 = vsel %vm381, %v329, 0
      %509 = vmatprep.subr.bf16.mxu0 0
      %510 = vmatpush1.bf16.msra.mxu0 %v507
      %511 = vmatprep.subr.bf16.mxu0 0
      %512 = vmatpush1.bf16.msra.mxu0 0
      %513 = vmatprep.subr.bf16.mxu0 0
      %514 = vmatpush1.bf16.msra.mxu0 0
      %515 = vmatprep.subr.bf16.mxu0 0
      %516 = vmatpush1.bf16.msra.mxu0 0
      %517 = vmatprep.subr.bf16.mxu0 0
      %518 = vmatpush1.bf16.msra.mxu0 0
      %519 = vmatprep.subr.bf16.mxu0 0
      %520 = vmatpush1.bf16.msra.mxu0 0
      %521 = vmatprep.subr.bf16.mxu0 0
      %522 = vmatpush1.bf16.msra.mxu0 0
      %523 = vmatprep.subr.bf16.mxu0 0
      %524 = vmatpush1.bf16.msra.mxu0 0
      %525 = vmatprep.subr.bf16.mxu0 0
      %526 = vmatpush1.bf16.msra.mxu0 0
      %527 = vmatprep.subr.bf16.mxu0 0
      %528 = vmatpush1.bf16.msra.mxu0 0
      %529 = vmatprep.subr.bf16.mxu0 0
      %530 = vmatpush1.bf16.msra.mxu0 0
      %531 = vmatprep.subr.bf16.mxu0 0
      %532 = vmatpush1.bf16.msra.mxu0 0
      %533 = vmatprep.subr.bf16.mxu0 0
      %534 = vmatpush1.bf16.msra.mxu0 0
      %535 = vmatprep.subr.bf16.mxu0 0
      %536 = vmatpush1.bf16.msra.mxu0 0
      %537 = vmatprep.subr.bf16.mxu0 0
      %538 = vmatpush1.bf16.msra.mxu0 0
      %539 = vmatprep.subr.bf16.mxu0 0
      %540 = vmatpush1.bf16.msra.mxu0 0
      %541 = vmatprep.mubr.bf16.mxu0 0
      %542 = vmatmul.mubr.bf16.gmra.mrb[0].mxu0 %v483
      %v543 = vpop.f32.mrb[0].mxu0
      %v544 = vadd.f32 %v420, %v543
      %v545 = vpop.f32.mrb[0].mxu0
      %v546 = vpop.f32.mrb[0].mxu0
      %v547 = vadd.f32 %v423, %v546
      %v548 = vpop.f32.mrb[0].mxu0
      %549 = vmatprep.mubr.bf16.mxu0 0
      %550 = vmatmul.mubr.bf16.gmra.mrb[0].mxu0 %v486
      %v551 = vpop.f32.mrb[0].mxu0
      %v552 = vadd.f32 %v428, %v551
      %v553 = vpop.f32.mrb[0].mxu0
      %v554 = vpop.f32.mrb[0].mxu0
      %v555 = vadd.f32 %v431, %v554
      %v556 = vpop.f32.mrb[0].mxu0
      %557 = vmatprep.mubr.bf16.mxu0 0
      %558 = vmatmul.mubr.bf16.gmra.mrb[0].mxu0 %v489
      %v559 = vpop.f32.mrb[0].mxu0
      %v560 = vadd.f32 %v436, %v559
      %v561 = vpop.f32.mrb[0].mxu0
      %v562 = vpop.f32.mrb[0].mxu0
      %v563 = vadd.f32 %v439, %v562
      %v564 = vpop.f32.mrb[0].mxu0
      %565 = vmatprep.mubr.bf16.mxu0 0
      %566 = vmatmul.mubr.bf16.gmra.mrb[0].mxu0 %v492
      %v567 = vpop.f32.mrb[0].mxu0
      %v568 = vadd.f32 %v444, %v567
      %v569 = vpop.f32.mrb[0].mxu0
      %v570 = vpop.f32.mrb[0].mxu0
      %v571 = vadd.f32 %v447, %v570
      %v572 = vpop.f32.mrb[0].mxu0
      %573 = vmatprep.mubr.bf16.mxu0 0
      %574 = vmatmul.mubr.bf16.gmra.mrb[0].mxu0 %v495
      %v575 = vpop.f32.mrb[0].mxu0
      %v576 = vadd.f32 %v452, %v575
      %v577 = vpop.f32.mrb[0].mxu0
      %v578 = vpop.f32.mrb[0].mxu0
      %v579 = vadd.f32 %v455, %v578
      %v580 = vpop.f32.mrb[0].mxu0
      %581 = vmatprep.mubr.bf16.mxu0 0
      %582 = vmatmul.mubr.bf16.gmra.mrb[0].mxu0 %v498
      %v583 = vpop.f32.mrb[0].mxu0
      %v584 = vadd.f32 %v460, %v583
      %v585 = vpop.f32.mrb[0].mxu0
      %v586 = vpop.f32.mrb[0].mxu0
      %v587 = vadd.f32 %v463, %v586
      %v588 = vpop.f32.mrb[0].mxu0
      %589 = vmatprep.mubr.bf16.mxu0 0
      %590 = vmatmul.mubr.bf16.gmra.mrb[0].mxu0 %v501
      %v591 = vpop.f32.mrb[0].mxu0
      %v592 = vadd.f32 %v468, %v591
      %v593 = vpop.f32.mrb[0].mxu0
      %v594 = vpop.f32.mrb[0].mxu0
      %v595 = vadd.f32 %v471, %v594
      %v596 = vpop.f32.mrb[0].mxu0
      %597 = vmatprep.mubr.bf16.mxu0 0
      %598 = vmatmul.mubr.bf16.gmra.mrb[0].mxu0 %v504
      %v599 = vpop.f32.mrb[0].mxu0
      %v600 = vadd.f32 %v476, %v599
      %v601 = vpop.f32.mrb[0].mxu0
      %v602 = vpop.f32.mrb[0].mxu0
      %v603 = vadd.f32 %v479, %v602
      %v604 = vpop.f32.mrb[0].mxu0
      %605 = vdwg.mxu0
      %v606 = vld [vmem:[%s304 + $0x2] sm:$0xff]
      %v607 = vld [vmem:[%s304 + $0xa] sm:$0xff]
      %v608 = vld [vmem:[%s304 + $0x1a] sm:$0xff]
      %v609 = vld [vmem:[%s304 + $0x22] sm:$0xff]
      %v610 = vld [vmem:[%s304 + $0x32] sm:$0xff]
      %v611 = vld [vmem:[%s304 + $0x3a] sm:$0xff]
      %v612 = vld [vmem:[%s304 + $0x4a] sm:$0xff]
      %v613 = vld [vmem:[%s304 + $0x52] sm:$0xff]
      %v614 = vld [vmem:[%s304 + $0x62] sm:$0xff]
      %v615 = vld [vmem:[%s304 + $0x6a] sm:$0xff]
      %v616 = vld [vmem:[%s304 + $0x7a] sm:$0xff]
      %v617 = vld [vmem:[%s304 + $0x82] sm:$0xff]
      %v618 = vld [vmem:[%s304 + $0x92] sm:$0xff]
      %v619 = vld [vmem:[%s304 + $0x9a] sm:$0xff]
      %v620 = vld [vmem:[%s304 + $0xaa] sm:$0xff]
      %v621 = vld [vmem:[%s304 + $0xb2] sm:$0xff]
      %v622 = vpack.c.bf16 %v607, %v606
      %v623 = vpack.c.bf16 %v609, %v608
      %v624 = vpack.c.bf16 %v611, %v610
      %v625 = vpack.c.bf16 %v613, %v612
      %v626 = vpack.c.bf16 %v615, %v614
      %v627 = vpack.c.bf16 %v617, %v616
      %v628 = vpack.c.bf16 %v619, %v618
      %v629 = vpack.c.bf16 %v621, %v620
      %s630 = scalar_lea.vmem %s1, 2
      %v631 = vld [vmem:[%s630] sm:$0x1]
      %v633 = vsel %vm356, %v622, 0
      %v636 = vsel %vm356, %v623, 0
      %v639 = vsel %vm356, %v624, 0
      %v642 = vsel %vm356, %v625, 0
      %v645 = vsel %vm356, %v626, 0
      %v648 = vsel %vm356, %v627, 0
      %v651 = vsel %vm356, %v628, 0
      %v654 = vsel %vm356, %v629, 0
      %v657 = vsel %vm381, %v631, 0
      %659 = vmatprep.subr.bf16.mxu0 0
      %660 = vmatpush1.bf16.msra.mxu0 %v657
      %661 = vmatprep.subr.bf16.mxu0 0
      %662 = vmatpush1.bf16.msra.mxu0 0
      %663 = vmatprep.subr.bf16.mxu0 0
      %664 = vmatpush1.bf16.msra.mxu0 0
      %665 = vmatprep.subr.bf16.mxu0 0
      %666 = vmatpush1.bf16.msra.mxu0 0
      %667 = vmatprep.subr.bf16.mxu0 0
      %668 = vmatpush1.bf16.msra.mxu0 0
      %669 = vmatprep.subr.bf16.mxu0 0
      %670 = vmatpush1.bf16.msra.mxu0 0
      %671 = vmatprep.subr.bf16.mxu0 0
      %672 = vmatpush1.bf16.msra.mxu0 0
      %673 = vmatprep.subr.bf16.mxu0 0
      %674 = vmatpush1.bf16.msra.mxu0 0
      %675 = vmatprep.subr.bf16.mxu0 0
      %676 = vmatpush1.bf16.msra.mxu0 0
      %677 = vmatprep.subr.bf16.mxu0 0
      %678 = vmatpush1.bf16.msra.mxu0 0
      %679 = vmatprep.subr.bf16.mxu0 0
      %680 = vmatpush1.bf16.msra.mxu0 0
      %681 = vmatprep.subr.bf16.mxu0 0
      %682 = vmatpush1.bf16.msra.mxu0 0
      %683 = vmatprep.subr.bf16.mxu0 0
      %684 = vmatpush1.bf16.msra.mxu0 0
      %685 = vmatprep.subr.bf16.mxu0 0
      %686 = vmatpush1.bf16.msra.mxu0 0
      %687 = vmatprep.subr.bf16.mxu0 0
      %688 = vmatpush1.bf16.msra.mxu0 0
      %689 = vmatprep.subr.bf16.mxu0 0
      %690 = vmatpush1.bf16.msra.mxu0 0
      %691 = vmatprep.mubr.bf16.mxu0 0
      %692 = vmatmul.mubr.bf16.gmra.mrb[0].mxu0 %v633
      %v693 = vpop.f32.mrb[0].mxu0
      %v694 = vadd.f32 0.0, %v693
      %v695 = vpop.f32.mrb[0].mxu0
      %v696 = vpop.f32.mrb[0].mxu0
      %v697 = vadd.f32 0.0, %v696
      %v698 = vpop.f32.mrb[0].mxu0
      %699 = vmatprep.mubr.bf16.mxu0 0
      %700 = vmatmul.mubr.bf16.gmra.mrb[0].mxu0 %v636
      %v701 = vpop.f32.mrb[0].mxu0
      %v702 = vadd.f32 0.0, %v701
      %v703 = vpop.f32.mrb[0].mxu0
      %v704 = vpop.f32.mrb[0].mxu0
      %v705 = vadd.f32 0.0, %v704
      %v706 = vpop.f32.mrb[0].mxu0
      %707 = vmatprep.mubr.bf16.mxu0 0
      %708 = vmatmul.mubr.bf16.gmra.mrb[0].mxu0 %v639
      %v709 = vpop.f32.mrb[0].mxu0
      %v710 = vadd.f32 0.0, %v709
      %v711 = vpop.f32.mrb[0].mxu0
      %v712 = vpop.f32.mrb[0].mxu0
      %v713 = vadd.f32 0.0, %v712
      %v714 = vpop.f32.mrb[0].mxu0
      %715 = vmatprep.mubr.bf16.mxu0 0
      %716 = vmatmul.mubr.bf16.gmra.mrb[0].mxu0 %v642
      %v717 = vpop.f32.mrb[0].mxu0
      %v718 = vadd.f32 0.0, %v717
      %v719 = vpop.f32.mrb[0].mxu0
      %v720 = vpop.f32.mrb[0].mxu0
      %v721 = vadd.f32 0.0, %v720
      %v722 = vpop.f32.mrb[0].mxu0
      %723 = vmatprep.mubr.bf16.mxu0 0
      %724 = vmatmul.mubr.bf16.gmra.mrb[0].mxu0 %v645
      %v725 = vpop.f32.mrb[0].mxu0
      %v726 = vadd.f32 0.0, %v725
      %v727 = vpop.f32.mrb[0].mxu0
      %v728 = vpop.f32.mrb[0].mxu0
      %v729 = vadd.f32 0.0, %v728
      %v730 = vpop.f32.mrb[0].mxu0
      %731 = vmatprep.mubr.bf16.mxu0 0
      %732 = vmatmul.mubr.bf16.gmra.mrb[0].mxu0 %v648
      %v733 = vpop.f32.mrb[0].mxu0
      %v734 = vadd.f32 0.0, %v733
      %v735 = vpop.f32.mrb[0].mxu0
      %v736 = vpop.f32.mrb[0].mxu0
      %v737 = vadd.f32 0.0, %v736
      %v738 = vpop.f32.mrb[0].mxu0
      %739 = vmatprep.mubr.bf16.mxu0 0
      %740 = vmatmul.mubr.bf16.gmra.mrb[0].mxu0 %v651
      %v741 = vpop.f32.mrb[0].mxu0
      %v742 = vadd.f32 0.0, %v741
      %v743 = vpop.f32.mrb[0].mxu0
      %v744 = vpop.f32.mrb[0].mxu0
      %v745 = vadd.f32 0.0, %v744
      %v746 = vpop.f32.mrb[0].mxu0
      %747 = vmatprep.mubr.bf16.mxu0 0
      %748 = vmatmul.mubr.bf16.gmra.mrb[0].mxu0 %v654
      %v749 = vpop.f32.mrb[0].mxu0
      %v750 = vadd.f32 0.0, %v749
      %v751 = vpop.f32.mrb[0].mxu0
      %v752 = vpop.f32.mrb[0].mxu0
      %v753 = vadd.f32 0.0, %v752
      %v754 = vpop.f32.mrb[0].mxu0
      %755 = vdwg.mxu0
      %v756 = vadd.f32 %v544, %v694
      %v757 = vadd.f32 %v547, %v697
      %v758 = vadd.f32 %v552, %v702
      %v759 = vadd.f32 %v555, %v705
      %v760 = vadd.f32 %v560, %v710
      %v761 = vadd.f32 %v563, %v713
      %v762 = vadd.f32 %v568, %v718
      %v763 = vadd.f32 %v571, %v721
      %v764 = vadd.f32 %v576, %v726
      %v765 = vadd.f32 %v579, %v729
      %v766 = vadd.f32 %v584, %v734
      %v767 = vadd.f32 %v587, %v737
      %v768 = vadd.f32 %v592, %v742
      %v769 = vadd.f32 %v595, %v745
      %v770 = vadd.f32 %v600, %v750
      %v771 = vadd.f32 %v603, %v753
      %s772 = sadd.s32 %s301, 2
      %s773 = smul.u32 %s772, 24
      %s774 = scalar_lea.vmem [#allocation2], %s773
      %v775 = vld [vmem:[%s774] sm:$0xff]
      %v776 = vld [vmem:[%s774 + $0x8] sm:$0xff]
      %v777 = vld [vmem:[%s774 + $0x18] sm:$0xff]
      %v778 = vld [vmem:[%s774 + $0x20] sm:$0xff]
      %v779 = vld [vmem:[%s774 + $0x30] sm:$0xff]
      %v780 = vld [vmem:[%s774 + $0x38] sm:$0xff]
      %v781 = vld [vmem:[%s774 + $0x48] sm:$0xff]
      %v782 = vld [vmem:[%s774 + $0x50] sm:$0xff]
      %v783 = vld [vmem:[%s774 + $0x60] sm:$0xff]
      %v784 = vld [vmem:[%s774 + $0x68] sm:$0xff]
      %v785 = vld [vmem:[%s774 + $0x78] sm:$0xff]
      %v786 = vld [vmem:[%s774 + $0x80] sm:$0xff]
      %v787 = vld [vmem:[%s774 + $0x90] sm:$0xff]
      %v788 = vld [vmem:[%s774 + $0x98] sm:$0xff]
      %v789 = vld [vmem:[%s774 + $0xa8] sm:$0xff]
      %v790 = vld [vmem:[%s774 + $0xb0] sm:$0xff]
      %v791 = vpack.c.bf16 %v776, %v775
      %v792 = vpack.c.bf16 %v778, %v777
      %v793 = vpack.c.bf16 %v780, %v779
      %v794 = vpack.c.bf16 %v782, %v781
      %v795 = vpack.c.bf16 %v784, %v783
      %v796 = vpack.c.bf16 %v786, %v785
      %v797 = vpack.c.bf16 %v788, %v787
      %v798 = vpack.c.bf16 %v790, %v789
      %s799 = scalar_lea.vmem %s1, 3
      %v800 = vld [vmem:[%s799] sm:$0x1]
      %v802 = vsel %vm356, %v791, 0
      %v805 = vsel %vm356, %v792, 0
      %v808 = vsel %vm356, %v793, 0
      %v811 = vsel %vm356, %v794, 0
      %v814 = vsel %vm356, %v795, 0
      %v817 = vsel %vm356, %v796, 0
      %v820 = vsel %vm356, %v797, 0
      %v823 = vsel %vm356, %v798, 0
      %v826 = vsel %vm381, %v800, 0
      %828 = vmatprep.subr.bf16.mxu0 0
      %829 = vmatpush1.bf16.msra.mxu0 %v826
      %830 = vmatprep.subr.bf16.mxu0 0
      %831 = vmatpush1.bf16.msra.mxu0 0
      %832 = vmatprep.subr.bf16.mxu0 0
      %833 = vmatpush1.bf16.msra.mxu0 0
      %834 = vmatprep.subr.bf16.mxu0 0
      %835 = vmatpush1.bf16.msra.mxu0 0
      %836 = vmatprep.subr.bf16.mxu0 0
      %837 = vmatpush1.bf16.msra.mxu0 0
      %838 = vmatprep.subr.bf16.mxu0 0
      %839 = vmatpush1.bf16.msra.mxu0 0
      %840 = vmatprep.subr.bf16.mxu0 0
      %841 = vmatpush1.bf16.msra.mxu0 0
      %842 = vmatprep.subr.bf16.mxu0 0
      %843 = vmatpush1.bf16.msra.mxu0 0
      %844 = vmatprep.subr.bf16.mxu0 0
      %845 = vmatpush1.bf16.msra.mxu0 0
      %846 = vmatprep.subr.bf16.mxu0 0
      %847 = vmatpush1.bf16.msra.mxu0 0
      %848 = vmatprep.subr.bf16.mxu0 0
      %849 = vmatpush1.bf16.msra.mxu0 0
      %850 = vmatprep.subr.bf16.mxu0 0
      %851 = vmatpush1.bf16.msra.mxu0 0
      %852 = vmatprep.subr.bf16.mxu0 0
      %853 = vmatpush1.bf16.msra.mxu0 0
      %854 = vmatprep.subr.bf16.mxu0 0
      %855 = vmatpush1.bf16.msra.mxu0 0
      %856 = vmatprep.subr.bf16.mxu0 0
      %857 = vmatpush1.bf16.msra.mxu0 0
      %858 = vmatprep.subr.bf16.mxu0 0
      %859 = vmatpush1.bf16.msra.mxu0 0
      %860 = vmatprep.mubr.bf16.mxu0 0
      %861 = vmatmul.mubr.bf16.gmra.mrb[0].mxu0 %v802
      %v862 = vpop.f32.mrb[0].mxu0
      %v863 = vadd.f32 0.0, %v862
      %v864 = vpop.f32.mrb[0].mxu0
      %v865 = vpop.f32.mrb[0].mxu0
      %v866 = vadd.f32 0.0, %v865
      %v867 = vpop.f32.mrb[0].mxu0
      %868 = vmatprep.mubr.bf16.mxu0 0
      %869 = vmatmul.mubr.bf16.gmra.mrb[0].mxu0 %v805
      %v870 = vpop.f32.mrb[0].mxu0
      %v871 = vadd.f32 0.0, %v870
      %v872 = vpop.f32.mrb[0].mxu0
      %v873 = vpop.f32.mrb[0].mxu0
      %v874 = vadd.f32 0.0, %v873
      %v875 = vpop.f32.mrb[0].mxu0
      %876 = vmatprep.mubr.bf16.mxu0 0
      %877 = vmatmul.mubr.bf16.gmra.mrb[0].mxu0 %v808
      %v878 = vpop.f32.mrb[0].mxu0
      %v879 = vadd.f32 0.0, %v878
      %v880 = vpop.f32.mrb[0].mxu0
      %v881 = vpop.f32.mrb[0].mxu0
      %v882 = vadd.f32 0.0, %v881
      %v883 = vpop.f32.mrb[0].mxu0
      %884 = vmatprep.mubr.bf16.mxu0 0
      %885 = vmatmul.mubr.bf16.gmra.mrb[0].mxu0 %v811
      %v886 = vpop.f32.mrb[0].mxu0
      %v887 = vadd.f32 0.0, %v886
      %v888 = vpop.f32.mrb[0].mxu0
      %v889 = vpop.f32.mrb[0].mxu0
      %v890 = vadd.f32 0.0, %v889
      %v891 = vpop.f32.mrb[0].mxu0
      %892 = vmatprep.mubr.bf16.mxu0 0
      %893 = vmatmul.mubr.bf16.gmra.mrb[0].mxu0 %v814
      %v894 = vpop.f32.mrb[0].mxu0
      %v895 = vadd.f32 0.0, %v894
      %v896 = vpop.f32.mrb[0].mxu0
      %v897 = vpop.f32.mrb[0].mxu0
      %v898 = vadd.f32 0.0, %v897
      %v899 = vpop.f32.mrb[0].mxu0
      %900 = vmatprep.mubr.bf16.mxu0 0
      %901 = vmatmul.mubr.bf16.gmra.mrb[0].mxu0 %v817
      %v902 = vpop.f32.mrb[0].mxu0
      %v903 = vadd.f32 0.0, %v902
      %v904 = vpop.f32.mrb[0].mxu0
      %v905 = vpop.f32.mrb[0].mxu0
      %v906 = vadd.f32 0.0, %v905
      %v907 = vpop.f32.mrb[0].mxu0
      %908 = vmatprep.mubr.bf16.mxu0 0
      %909 = vmatmul.mubr.bf16.gmra.mrb[0].mxu0 %v820
      %v910 = vpop.f32.mrb[0].mxu0
      %v911 = vadd.f32 0.0, %v910
      %v912 = vpop.f32.mrb[0].mxu0
      %v913 = vpop.f32.mrb[0].mxu0
      %v914 = vadd.f32 0.0, %v913
      %v915 = vpop.f32.mrb[0].mxu0
      %916 = vmatprep.mubr.bf16.mxu0 0
      %917 = vmatmul.mubr.bf16.gmra.mrb[0].mxu0 %v823
      %v918 = vpop.f32.mrb[0].mxu0
      %v919 = vadd.f32 0.0, %v918
      %v920 = vpop.f32.mrb[0].mxu0
      %v921 = vpop.f32.mrb[0].mxu0
      %v922 = vadd.f32 0.0, %v921
      %v923 = vpop.f32.mrb[0].mxu0
      %924 = vdwg.mxu0
      %v925 = vadd.f32 %v756, %v863
      %v926 = vadd.f32 %v757, %v866
      %v927 = vadd.f32 %v758, %v871
      %v928 = vadd.f32 %v759, %v874
      %v929 = vadd.f32 %v760, %v879
      %v930 = vadd.f32 %v761, %v882
      %v931 = vadd.f32 %v762, %v887
      %v932 = vadd.f32 %v763, %v890
      %v933 = vadd.f32 %v764, %v895
      %v934 = vadd.f32 %v765, %v898
      %v935 = vadd.f32 %v766, %v903
      %v936 = vadd.f32 %v767, %v906
      %v937 = vadd.f32 %v768, %v911
      %v938 = vadd.f32 %v769, %v914
      %v939 = vadd.f32 %v770, %v919
      %v940 = vadd.f32 %v771, %v922
      %v941 = vld [vmem:[%s774 + $0x1] sm:$0xff]
      %v942 = vld [vmem:[%s774 + $0x9] sm:$0xff]
      %v943 = vld [vmem:[%s774 + $0x19] sm:$0xff]
      %v944 = vld [vmem:[%s774 + $0x21] sm:$0xff]
      %v945 = vld [vmem:[%s774 + $0x31] sm:$0xff]
      %v946 = vld [vmem:[%s774 + $0x39] sm:$0xff]
      %v947 = vld [vmem:[%s774 + $0x49] sm:$0xff]
      %v948 = vld [vmem:[%s774 + $0x51] sm:$0xff]
      %v949 = vld [vmem:[%s774 + $0x61] sm:$0xff]
      %v950 = vld [vmem:[%s774 + $0x69] sm:$0xff]
      %v951 = vld [vmem:[%s774 + $0x79] sm:$0xff]
      %v952 = vld [vmem:[%s774 + $0x81] sm:$0xff]
      %v953 = vld [vmem:[%s774 + $0x91] sm:$0xff]
      %v954 = vld [vmem:[%s774 + $0x99] sm:$0xff]
      %v955 = vld [vmem:[%s774 + $0xa9] sm:$0xff]
      %v956 = vld [vmem:[%s774 + $0xb1] sm:$0xff]
      %v957 = vpack.c.bf16 %v942, %v941
      %v958 = vpack.c.bf16 %v944, %v943
      %v959 = vpack.c.bf16 %v946, %v945
      %v960 = vpack.c.bf16 %v948, %v947
      %v961 = vpack.c.bf16 %v950, %v949
      %v962 = vpack.c.bf16 %v952, %v951
      %v963 = vpack.c.bf16 %v954, %v953
      %v964 = vpack.c.bf16 %v956, %v955
      %s965 = scalar_lea.vmem %s1, 4
      %v966 = vld [vmem:[%s965] sm:$0x1]
      %v968 = vsel %vm356, %v957, 0
      %v971 = vsel %vm356, %v958, 0
      %v974 = vsel %vm356, %v959, 0
      %v977 = vsel %vm356, %v960, 0
      %v980 = vsel %vm356, %v961, 0
      %v983 = vsel %vm356, %v962, 0
      %v986 = vsel %vm356, %v963, 0
      %v989 = vsel %vm356, %v964, 0
      %v992 = vsel %vm381, %v966, 0
      %994 = vmatprep.subr.bf16.mxu0 0
      %995 = vmatpush1.bf16.msra.mxu0 %v992
      %996 = vmatprep.subr.bf16.mxu0 0
      %997 = vmatpush1.bf16.msra.mxu0 0
      %998 = vmatprep.subr.bf16.mxu0 0
      %999 = vmatpush1.bf16.msra.mxu0 0
      %1000 = vmatprep.subr.bf16.mxu0 0
      %1001 = vmatpush1.bf16.msra.mxu0 0
      %1002 = vmatprep.subr.bf16.mxu0 0
      %1003 = vmatpush1.bf16.msra.mxu0 0
      %1004 = vmatprep.subr.bf16.mxu0 0
      %1005 = vmatpush1.bf16.msra.mxu0 0
      %1006 = vmatprep.subr.bf16.mxu0 0
      %1007 = vmatpush1.bf16.msra.mxu0 0
      %1008 = vmatprep.subr.bf16.mxu0 0
      %1009 = vmatpush1.bf16.msra.mxu0 0
      %1010 = vmatprep.subr.bf16.mxu0 0
      %1011 = vmatpush1.bf16.msra.mxu0 0
      %1012 = vmatprep.subr.bf16.mxu0 0
      %1013 = vmatpush1.bf16.msra.mxu0 0
      %1014 = vmatprep.subr.bf16.mxu0 0
      %1015 = vmatpush1.bf16.msra.mxu0 0
      %1016 = vmatprep.subr.bf16.mxu0 0
      %1017 = vmatpush1.bf16.msra.mxu0 0
      %1018 = vmatprep.subr.bf16.mxu0 0
      %1019 = vmatpush1.bf16.msra.mxu0 0
      %1020 = vmatprep.subr.bf16.mxu0 0
      %1021 = vmatpush1.bf16.msra.mxu0 0
      %1022 = vmatprep.subr.bf16.mxu0 0
      %1023 = vmatpush1.bf16.msra.mxu0 0
      %1024 = vmatprep.subr.bf16.mxu0 0
      %1025 = vmatpush1.bf16.msra.mxu0 0
      %1026 = vmatprep.mubr.bf16.mxu0 0
      %1027 = vmatmul.mubr.bf16.gmra.mrb[0].mxu0 %v968
      %v1028 = vpop.f32.mrb[0].mxu0
      %v1029 = vadd.f32 0.0, %v1028
      %v1030 = vpop.f32.mrb[0].mxu0
      %v1031 = vpop.f32.mrb[0].mxu0
      %v1032 = vadd.f32 0.0, %v1031
      %v1033 = vpop.f32.mrb[0].mxu0
      %1034 = vmatprep.mubr.bf16.mxu0 0
      %1035 = vmatmul.mubr.bf16.gmra.mrb[0].mxu0 %v971
      %v1036 = vpop.f32.mrb[0].mxu0
      %v1037 = vadd.f32 0.0, %v1036
      %v1038 = vpop.f32.mrb[0].mxu0
      %v1039 = vpop.f32.mrb[0].mxu0
      %v1040 = vadd.f32 0.0, %v1039
      %v1041 = vpop.f32.mrb[0].mxu0
      %1042 = vmatprep.mubr.bf16.mxu0 0
      %1043 = vmatmul.mubr.bf16.gmra.mrb[0].mxu0 %v974
      %v1044 = vpop.f32.mrb[0].mxu0
      %v1045 = vadd.f32 0.0, %v1044
      %v1046 = vpop.f32.mrb[0].mxu0
      %v1047 = vpop.f32.mrb[0].mxu0
      %v1048 = vadd.f32 0.0, %v1047
      %v1049 = vpop.f32.mrb[0].mxu0
      %1050 = vmatprep.mubr.bf16.mxu0 0
      %1051 = vmatmul.mubr.bf16.gmra.mrb[0].mxu0 %v977
      %v1052 = vpop.f32.mrb[0].mxu0
      %v1053 = vadd.f32 0.0, %v1052
      %v1054 = vpop.f32.mrb[0].mxu0
      %v1055 = vpop.f32.mrb[0].mxu0
      %v1056 = vadd.f32 0.0, %v1055
      %v1057 = vpop.f32.mrb[0].mxu0
      %1058 = vmatprep.mubr.bf16.mxu0 0
      %1059 = vmatmul.mubr.bf16.gmra.mrb[0].mxu0 %v980
      %v1060 = vpop.f32.mrb[0].mxu0
      %v1061 = vadd.f32 0.0, %v1060
      %v1062 = vpop.f32.mrb[0].mxu0
      %v1063 = vpop.f32.mrb[0].mxu0
      %v1064 = vadd.f32 0.0, %v1063
      %v1065 = vpop.f32.mrb[0].mxu0
      %1066 = vmatprep.mubr.bf16.mxu0 0
      %1067 = vmatmul.mubr.bf16.gmra.mrb[0].mxu0 %v983
      %v1068 = vpop.f32.mrb[0].mxu0
      %v1069 = vadd.f32 0.0, %v1068
      %v1070 = vpop.f32.mrb[0].mxu0
      %v1071 = vpop.f32.mrb[0].mxu0
      %v1072 = vadd.f32 0.0, %v1071
      %v1073 = vpop.f32.mrb[0].mxu0
      %1074 = vmatprep.mubr.bf16.mxu0 0
      %1075 = vmatmul.mubr.bf16.gmra.mrb[0].mxu0 %v986
      %v1076 = vpop.f32.mrb[0].mxu0
      %v1077 = vadd.f32 0.0, %v1076
      %v1078 = vpop.f32.mrb[0].mxu0
      %v1079 = vpop.f32.mrb[0].mxu0
      %v1080 = vadd.f32 0.0, %v1079
      %v1081 = vpop.f32.mrb[0].mxu0
      %1082 = vmatprep.mubr.bf16.mxu0 0
      %1083 = vmatmul.mubr.bf16.gmra.mrb[0].mxu0 %v989
      %v1084 = vpop.f32.mrb[0].mxu0
      %v1085 = vadd.f32 0.0, %v1084
      %v1086 = vpop.f32.mrb[0].mxu0
      %v1087 = vpop.f32.mrb[0].mxu0
      %v1088 = vadd.f32 0.0, %v1087
      %v1089 = vpop.f32.mrb[0].mxu0
      %1090 = vdwg.mxu0
      %v1091 = vadd.f32 %v925, %v1029
      %v1092 = vadd.f32 %v926, %v1032
      %v1093 = vadd.f32 %v927, %v1037
      %v1094 = vadd.f32 %v928, %v1040
      %v1095 = vadd.f32 %v929, %v1045
      %v1096 = vadd.f32 %v930, %v1048
      %v1097 = vadd.f32 %v931, %v1053
      %v1098 = vadd.f32 %v932, %v1056
      %v1099 = vadd.f32 %v933, %v1061
      %v1100 = vadd.f32 %v934, %v1064
      %v1101 = vadd.f32 %v935, %v1069
      %v1102 = vadd.f32 %v936, %v1072
      %v1103 = vadd.f32 %v937, %v1077
      %v1104 = vadd.f32 %v938, %v1080
      %v1105 = vadd.f32 %v939, %v1085
      %v1106 = vadd.f32 %v940, %v1088
      %v1107 = vld [vmem:[%s774 + $0x2] sm:$0xff]
      %v1108 = vld [vmem:[%s774 + $0xa] sm:$0xff]
      %v1109 = vld [vmem:[%s774 + $0x1a] sm:$0xff]
      %v1110 = vld [vmem:[%s774 + $0x22] sm:$0xff]
      %v1111 = vld [vmem:[%s774 + $0x32] sm:$0xff]
      %v1112 = vld [vmem:[%s774 + $0x3a] sm:$0xff]
      %v1113 = vld [vmem:[%s774 + $0x4a] sm:$0xff]
      %v1114 = vld [vmem:[%s774 + $0x52] sm:$0xff]
      %v1115 = vld [vmem:[%s774 + $0x62] sm:$0xff]
      %v1116 = vld [vmem:[%s774 + $0x6a] sm:$0xff]
      %v1117 = vld [vmem:[%s774 + $0x7a] sm:$0xff]
      %v1118 = vld [vmem:[%s774 + $0x82] sm:$0xff]
      %v1119 = vld [vmem:[%s774 + $0x92] sm:$0xff]
      %v1120 = vld [vmem:[%s774 + $0x9a] sm:$0xff]
      %v1121 = vld [vmem:[%s774 + $0xaa] sm:$0xff]
      %v1122 = vld [vmem:[%s774 + $0xb2] sm:$0xff]
      %v1123 = vpack.c.bf16 %v1108, %v1107
      %v1124 = vpack.c.bf16 %v1110, %v1109
      %v1125 = vpack.c.bf16 %v1112, %v1111
      %v1126 = vpack.c.bf16 %v1114, %v1113
      %v1127 = vpack.c.bf16 %v1116, %v1115
      %v1128 = vpack.c.bf16 %v1118, %v1117
      %v1129 = vpack.c.bf16 %v1120, %v1119
      %v1130 = vpack.c.bf16 %v1122, %v1121
      %s1131 = scalar_lea.vmem %s1, 5
      %v1132 = vld [vmem:[%s1131] sm:$0x1]
      %v1134 = vsel %vm356, %v1123, 0
      %v1137 = vsel %vm356, %v1124, 0
      %v1140 = vsel %vm356, %v1125, 0
      %v1143 = vsel %vm356, %v1126, 0
      %v1146 = vsel %vm356, %v1127, 0
      %v1149 = vsel %vm356, %v1128, 0
      %v1152 = vsel %vm356, %v1129, 0
      %v1155 = vsel %vm356, %v1130, 0
      %v1158 = vsel %vm381, %v1132, 0
      %1160 = vmatprep.subr.bf16.mxu0 0
      %1161 = vmatpush1.bf16.msra.mxu0 %v1158
      %1162 = vmatprep.subr.bf16.mxu0 0
      %1163 = vmatpush1.bf16.msra.mxu0 0
      %1164 = vmatprep.subr.bf16.mxu0 0
      %1165 = vmatpush1.bf16.msra.mxu0 0
      %1166 = vmatprep.subr.bf16.mxu0 0
      %1167 = vmatpush1.bf16.msra.mxu0 0
      %1168 = vmatprep.subr.bf16.mxu0 0
      %1169 = vmatpush1.bf16.msra.mxu0 0
      %1170 = vmatprep.subr.bf16.mxu0 0
      %1171 = vmatpush1.bf16.msra.mxu0 0
      %1172 = vmatprep.subr.bf16.mxu0 0
      %1173 = vmatpush1.bf16.msra.mxu0 0
      %1174 = vmatprep.subr.bf16.mxu0 0
      %1175 = vmatpush1.bf16.msra.mxu0 0
      %1176 = vmatprep.subr.bf16.mxu0 0
      %1177 = vmatpush1.bf16.msra.mxu0 0
      %1178 = vmatprep.subr.bf16.mxu0 0
      %1179 = vmatpush1.bf16.msra.mxu0 0
      %1180 = vmatprep.subr.bf16.mxu0 0
      %1181 = vmatpush1.bf16.msra.mxu0 0
      %1182 = vmatprep.subr.bf16.mxu0 0
      %1183 = vmatpush1.bf16.msra.mxu0 0
      %1184 = vmatprep.subr.bf16.mxu0 0
      %1185 = vmatpush1.bf16.msra.mxu0 0
      %1186 = vmatprep.subr.bf16.mxu0 0
      %1187 = vmatpush1.bf16.msra.mxu0 0
      %1188 = vmatprep.subr.bf16.mxu0 0
      %1189 = vmatpush1.bf16.msra.mxu0 0
      %1190 = vmatprep.subr.bf16.mxu0 0
      %1191 = vmatpush1.bf16.msra.mxu0 0
      %1192 = vmatprep.mubr.bf16.mxu0 0
      %1193 = vmatmul.mubr.bf16.gmra.mrb[0].mxu0 %v1134
      %v1194 = vpop.f32.mrb[0].mxu0
      %v1195 = vadd.f32 0.0, %v1194
      %v1196 = vpop.f32.mrb[0].mxu0
      %v1197 = vpop.f32.mrb[0].mxu0
      %v1198 = vadd.f32 0.0, %v1197
      %v1199 = vpop.f32.mrb[0].mxu0
      %1200 = vmatprep.mubr.bf16.mxu0 0
      %1201 = vmatmul.mubr.bf16.gmra.mrb[0].mxu0 %v1137
      %v1202 = vpop.f32.mrb[0].mxu0
      %v1203 = vadd.f32 0.0, %v1202
      %v1204 = vpop.f32.mrb[0].mxu0
      %v1205 = vpop.f32.mrb[0].mxu0
      %v1206 = vadd.f32 0.0, %v1205
      %v1207 = vpop.f32.mrb[0].mxu0
      %1208 = vmatprep.mubr.bf16.mxu0 0
      %1209 = vmatmul.mubr.bf16.gmra.mrb[0].mxu0 %v1140
      %v1210 = vpop.f32.mrb[0].mxu0
      %v1211 = vadd.f32 0.0, %v1210
      %v1212 = vpop.f32.mrb[0].mxu0
      %v1213 = vpop.f32.mrb[0].mxu0
      %v1214 = vadd.f32 0.0, %v1213
      %v1215 = vpop.f32.mrb[0].mxu0
      %1216 = vmatprep.mubr.bf16.mxu0 0
      %1217 = vmatmul.mubr.bf16.gmra.mrb[0].mxu0 %v1143
      %v1218 = vpop.f32.mrb[0].mxu0
      %v1219 = vadd.f32 0.0, %v1218
      %v1220 = vpop.f32.mrb[0].mxu0
      %v1221 = vpop.f32.mrb[0].mxu0
      %v1222 = vadd.f32 0.0, %v1221
      %v1223 = vpop.f32.mrb[0].mxu0
      %1224 = vmatprep.mubr.bf16.mxu0 0
      %1225 = vmatmul.mubr.bf16.gmra.mrb[0].mxu0 %v1146
      %v1226 = vpop.f32.mrb[0].mxu0
      %v1227 = vadd.f32 0.0, %v1226
      %v1228 = vpop.f32.mrb[0].mxu0
      %v1229 = vpop.f32.mrb[0].mxu0
      %v1230 = vadd.f32 0.0, %v1229
      %v1231 = vpop.f32.mrb[0].mxu0
      %1232 = vmatprep.mubr.bf16.mxu0 0
      %1233 = vmatmul.mubr.bf16.gmra.mrb[0].mxu0 %v1149
      %v1234 = vpop.f32.mrb[0].mxu0
      %v1235 = vadd.f32 0.0, %v1234
      %v1236 = vpop.f32.mrb[0].mxu0
      %v1237 = vpop.f32.mrb[0].mxu0
      %v1238 = vadd.f32 0.0, %v1237
      %v1239 = vpop.f32.mrb[0].mxu0
      %1240 = vmatprep.mubr.bf16.mxu0 0
      %1241 = vmatmul.mubr.bf16.gmra.mrb[0].mxu0 %v1152
      %v1242 = vpop.f32.mrb[0].mxu0
      %v1243 = vadd.f32 0.0, %v1242
      %v1244 = vpop.f32.mrb[0].mxu0
      %v1245 = vpop.f32.mrb[0].mxu0
      %v1246 = vadd.f32 0.0, %v1245
      %v1247 = vpop.f32.mrb[0].mxu0
      %1248 = vmatprep.mubr.bf16.mxu0 0
      %1249 = vmatmul.mubr.bf16.gmra.mrb[0].mxu0 %v1155
      %v1250 = vpop.f32.mrb[0].mxu0
      %v1251 = vadd.f32 0.0, %v1250
      %v1252 = vpop.f32.mrb[0].mxu0
      %v1253 = vpop.f32.mrb[0].mxu0
      %v1254 = vadd.f32 0.0, %v1253
      %v1255 = vpop.f32.mrb[0].mxu0
      %1256 = vdwg.mxu0
      %v1257 = vadd.f32 %v1091, %v1195
      %v1258 = vadd.f32 %v1092, %v1198
      %v1259 = vadd.f32 %v1093, %v1203
      %v1260 = vadd.f32 %v1094, %v1206
      %v1261 = vadd.f32 %v1095, %v1211
      %v1262 = vadd.f32 %v1096, %v1214
      %v1263 = vadd.f32 %v1097, %v1219
      %v1264 = vadd.f32 %v1098, %v1222
      %v1265 = vadd.f32 %v1099, %v1227
      %v1266 = vadd.f32 %v1100, %v1230
      %v1267 = vadd.f32 %v1101, %v1235
      %v1268 = vadd.f32 %v1102, %v1238
      %v1269 = vadd.f32 %v1103, %v1243
      %v1270 = vadd.f32 %v1104, %v1246
      %v1271 = vadd.f32 %v1105, %v1251
      %v1272 = vadd.f32 %v1106, %v1254
      %s1273 = sadd.s32 %s301, 3
      %s1274 = smul.u32 %s1273, 24
      %s1275 = scalar_lea.vmem [#allocation2], %s1274
      %v1276 = vld [vmem:[%s1275] sm:$0xff]
      %v1277 = vld [vmem:[%s1275 + $0x8] sm:$0xff]
      %v1278 = vld [vmem:[%s1275 + $0x18] sm:$0xff]
      %v1279 = vld [vmem:[%s1275 + $0x20] sm:$0xff]
      %v1280 = vld [vmem:[%s1275 + $0x30] sm:$0xff]
      %v1281 = vld [vmem:[%s1275 + $0x38] sm:$0xff]
      %v1282 = vld [vmem:[%s1275 + $0x48] sm:$0xff]
      %v1283 = vld [vmem:[%s1275 + $0x50] sm:$0xff]
      %v1284 = vld [vmem:[%s1275 + $0x60] sm:$0xff]
      %v1285 = vld [vmem:[%s1275 + $0x68] sm:$0xff]
      %v1286 = vld [vmem:[%s1275 + $0x78] sm:$0xff]
      %v1287 = vld [vmem:[%s1275 + $0x80] sm:$0xff]
      %v1288 = vld [vmem:[%s1275 + $0x90] sm:$0xff]
      %v1289 = vld [vmem:[%s1275 + $0x98] sm:$0xff]
      %v1290 = vld [vmem:[%s1275 + $0xa8] sm:$0xff]
      %v1291 = vld [vmem:[%s1275 + $0xb0] sm:$0xff]
      %v1292 = vpack.c.bf16 %v1277, %v1276
      %v1293 = vpack.c.bf16 %v1279, %v1278
      %v1294 = vpack.c.bf16 %v1281, %v1280
      %v1295 = vpack.c.bf16 %v1283, %v1282
      %v1296 = vpack.c.bf16 %v1285, %v1284
      %v1297 = vpack.c.bf16 %v1287, %v1286
      %v1298 = vpack.c.bf16 %v1289, %v1288
      %v1299 = vpack.c.bf16 %v1291, %v1290
      %s1300 = scalar_lea.vmem %s1, 6
      %v1301 = vld [vmem:[%s1300] sm:$0x1]
      %v1303 = vsel %vm356, %v1292, 0
      %v1306 = vsel %vm356, %v1293, 0
      %v1309 = vsel %vm356, %v1294, 0
      %v1312 = vsel %vm356, %v1295, 0
      %v1315 = vsel %vm356, %v1296, 0
      %v1318 = vsel %vm356, %v1297, 0
      %v1321 = vsel %vm356, %v1298, 0
      %v1324 = vsel %vm356, %v1299, 0
      %v1327 = vsel %vm381, %v1301, 0
      %1329 = vmatprep.subr.bf16.mxu0 0
      %1330 = vmatpush1.bf16.msra.mxu0 %v1327
      %1331 = vmatprep.subr.bf16.mxu0 0
      %1332 = vmatpush1.bf16.msra.mxu0 0
      %1333 = vmatprep.subr.bf16.mxu0 0
      %1334 = vmatpush1.bf16.msra.mxu0 0
      %1335 = vmatprep.subr.bf16.mxu0 0
      %1336 = vmatpush1.bf16.msra.mxu0 0
      %1337 = vmatprep.subr.bf16.mxu0 0
      %1338 = vmatpush1.bf16.msra.mxu0 0
      %1339 = vmatprep.subr.bf16.mxu0 0
      %1340 = vmatpush1.bf16.msra.mxu0 0
      %1341 = vmatprep.subr.bf16.mxu0 0
      %1342 = vmatpush1.bf16.msra.mxu0 0
      %1343 = vmatprep.subr.bf16.mxu0 0
      %1344 = vmatpush1.bf16.msra.mxu0 0
      %1345 = vmatprep.subr.bf16.mxu0 0
      %1346 = vmatpush1.bf16.msra.mxu0 0
      %1347 = vmatprep.subr.bf16.mxu0 0
      %1348 = vmatpush1.bf16.msra.mxu0 0
      %1349 = vmatprep.subr.bf16.mxu0 0
      %1350 = vmatpush1.bf16.msra.mxu0 0
      %1351 = vmatprep.subr.bf16.mxu0 0
      %1352 = vmatpush1.bf16.msra.mxu0 0
      %1353 = vmatprep.subr.bf16.mxu0 0
      %1354 = vmatpush1.bf16.msra.mxu0 0
      %1355 = vmatprep.subr.bf16.mxu0 0
      %1356 = vmatpush1.bf16.msra.mxu0 0
      %1357 = vmatprep.subr.bf16.mxu0 0
      %1358 = vmatpush1.bf16.msra.mxu0 0
      %1359 = vmatprep.subr.bf16.mxu0 0
      %1360 = vmatpush1.bf16.msra.mxu0 0
      %1361 = vmatprep.mubr.bf16.mxu0 0
      %1362 = vmatmul.mubr.bf16.gmra.mrb[0].mxu0 %v1303
      %v1363 = vpop.f32.mrb[0].mxu0
      %v1364 = vadd.f32 0.0, %v1363
      %v1365 = vpop.f32.mrb[0].mxu0
      %v1366 = vpop.f32.mrb[0].mxu0
      %v1367 = vadd.f32 0.0, %v1366
      %v1368 = vpop.f32.mrb[0].mxu0
      %1369 = vmatprep.mubr.bf16.mxu0 0
      %1370 = vmatmul.mubr.bf16.gmra.mrb[0].mxu0 %v1306
      %v1371 = vpop.f32.mrb[0].mxu0
      %v1372 = vadd.f32 0.0, %v1371
      %v1373 = vpop.f32.mrb[0].mxu0
      %v1374 = vpop.f32.mrb[0].mxu0
      %v1375 = vadd.f32 0.0, %v1374
      %v1376 = vpop.f32.mrb[0].mxu0
      %1377 = vmatprep.mubr.bf16.mxu0 0
      %1378 = vmatmul.mubr.bf16.gmra.mrb[0].mxu0 %v1309
      %v1379 = vpop.f32.mrb[0].mxu0
      %v1380 = vadd.f32 0.0, %v1379
      %v1381 = vpop.f32.mrb[0].mxu0
      %v1382 = vpop.f32.mrb[0].mxu0
      %v1383 = vadd.f32 0.0, %v1382
      %v1384 = vpop.f32.mrb[0].mxu0
      %1385 = vmatprep.mubr.bf16.mxu0 0
      %1386 = vmatmul.mubr.bf16.gmra.mrb[0].mxu0 %v1312
      %v1387 = vpop.f32.mrb[0].mxu0
      %v1388 = vadd.f32 0.0, %v1387
      %v1389 = vpop.f32.mrb[0].mxu0
      %v1390 = vpop.f32.mrb[0].mxu0
      %v1391 = vadd.f32 0.0, %v1390
      %v1392 = vpop.f32.mrb[0].mxu0
      %1393 = vmatprep.mubr.bf16.mxu0 0
      %1394 = vmatmul.mubr.bf16.gmra.mrb[0].mxu0 %v1315
      %v1395 = vpop.f32.mrb[0].mxu0
      %v1396 = vadd.f32 0.0, %v1395
      %v1397 = vpop.f32.mrb[0].mxu0
      %v1398 = vpop.f32.mrb[0].mxu0
      %v1399 = vadd.f32 0.0, %v1398
      %v1400 = vpop.f32.mrb[0].mxu0
      %1401 = vmatprep.mubr.bf16.mxu0 0
      %1402 = vmatmul.mubr.bf16.gmra.mrb[0].mxu0 %v1318
      %v1403 = vpop.f32.mrb[0].mxu0
      %v1404 = vadd.f32 0.0, %v1403
      %v1405 = vpop.f32.mrb[0].mxu0
      %v1406 = vpop.f32.mrb[0].mxu0
      %v1407 = vadd.f32 0.0, %v1406
      %v1408 = vpop.f32.mrb[0].mxu0
      %1409 = vmatprep.mubr.bf16.mxu0 0
      %1410 = vmatmul.mubr.bf16.gmra.mrb[0].mxu0 %v1321
      %v1411 = vpop.f32.mrb[0].mxu0
      %v1412 = vadd.f32 0.0, %v1411
      %v1413 = vpop.f32.mrb[0].mxu0
      %v1414 = vpop.f32.mrb[0].mxu0
      %v1415 = vadd.f32 0.0, %v1414
      %v1416 = vpop.f32.mrb[0].mxu0
      %1417 = vmatprep.mubr.bf16.mxu0 0
      %1418 = vmatmul.mubr.bf16.gmra.mrb[0].mxu0 %v1324
      %v1419 = vpop.f32.mrb[0].mxu0
      %v1420 = vadd.f32 0.0, %v1419
      %v1421 = vpop.f32.mrb[0].mxu0
      %v1422 = vpop.f32.mrb[0].mxu0
      %v1423 = vadd.f32 0.0, %v1422
      %v1424 = vpop.f32.mrb[0].mxu0
      %1425 = vdwg.mxu0
      %v1426 = vadd.f32 %v1257, %v1364
      %v1427 = vadd.f32 %v1258, %v1367
      %v1428 = vadd.f32 %v1259, %v1372
      %v1429 = vadd.f32 %v1260, %v1375
      %v1430 = vadd.f32 %v1261, %v1380
      %v1431 = vadd.f32 %v1262, %v1383
      %v1432 = vadd.f32 %v1263, %v1388
      %v1433 = vadd.f32 %v1264, %v1391
      %v1434 = vadd.f32 %v1265, %v1396
      %v1435 = vadd.f32 %v1266, %v1399
      %v1436 = vadd.f32 %v1267, %v1404
      %v1437 = vadd.f32 %v1268, %v1407
      %v1438 = vadd.f32 %v1269, %v1412
      %v1439 = vadd.f32 %v1270, %v1415
      %v1440 = vadd.f32 %v1271, %v1420
      %v1441 = vadd.f32 %v1272, %v1423
      %v1442 = vld [vmem:[%s1275 + $0x1] sm:$0xff]
      %v1443 = vld [vmem:[%s1275 + $0x9] sm:$0xff]
      %v1444 = vld [vmem:[%s1275 + $0x19] sm:$0xff]
      %v1445 = vld [vmem:[%s1275 + $0x21] sm:$0xff]
      %v1446 = vld [vmem:[%s1275 + $0x31] sm:$0xff]
      %v1447 = vld [vmem:[%s1275 + $0x39] sm:$0xff]
      %v1448 = vld [vmem:[%s1275 + $0x49] sm:$0xff]
      %v1449 = vld [vmem:[%s1275 + $0x51] sm:$0xff]
      %v1450 = vld [vmem:[%s1275 + $0x61] sm:$0xff]
      %v1451 = vld [vmem:[%s1275 + $0x69] sm:$0xff]
      %v1452 = vld [vmem:[%s1275 + $0x79] sm:$0xff]
      %v1453 = vld [vmem:[%s1275 + $0x81] sm:$0xff]
      %v1454 = vld [vmem:[%s1275 + $0x91] sm:$0xff]
      %v1455 = vld [vmem:[%s1275 + $0x99] sm:$0xff]
      %v1456 = vld [vmem:[%s1275 + $0xa9] sm:$0xff]
      %v1457 = vld [vmem:[%s1275 + $0xb1] sm:$0xff]
      %v1458 = vpack.c.bf16 %v1443, %v1442
      %v1459 = vpack.c.bf16 %v1445, %v1444
      %v1460 = vpack.c.bf16 %v1447, %v1446
      %v1461 = vpack.c.bf16 %v1449, %v1448
      %v1462 = vpack.c.bf16 %v1451, %v1450
      %v1463 = vpack.c.bf16 %v1453, %v1452
      %v1464 = vpack.c.bf16 %v1455, %v1454
      %v1465 = vpack.c.bf16 %v1457, %v1456
      %s1466 = scalar_lea.vmem %s1, 7
      %v1467 = vld [vmem:[%s1466] sm:$0x1]
      %v1469 = vsel %vm356, %v1458, 0
      %v1472 = vsel %vm356, %v1459, 0
      %v1475 = vsel %vm356, %v1460, 0
      %v1478 = vsel %vm356, %v1461, 0
      %v1481 = vsel %vm356, %v1462, 0
      %v1484 = vsel %vm356, %v1463, 0
      %v1487 = vsel %vm356, %v1464, 0
      %v1490 = vsel %vm356, %v1465, 0
      %v1493 = vsel %vm381, %v1467, 0
      %1495 = vmatprep.subr.bf16.mxu0 0
      %1496 = vmatpush1.bf16.msra.mxu0 %v1493
      %1497 = vmatprep.subr.bf16.mxu0 0
      %1498 = vmatpush1.bf16.msra.mxu0 0
      %1499 = vmatprep.subr.bf16.mxu0 0
      %1500 = vmatpush1.bf16.msra.mxu0 0
      %1501 = vmatprep.subr.bf16.mxu0 0
      %1502 = vmatpush1.bf16.msra.mxu0 0
      %1503 = vmatprep.subr.bf16.mxu0 0
      %1504 = vmatpush1.bf16.msra.mxu0 0
      %1505 = vmatprep.subr.bf16.mxu0 0
      %1506 = vmatpush1.bf16.msra.mxu0 0
      %1507 = vmatprep.subr.bf16.mxu0 0
      %1508 = vmatpush1.bf16.msra.mxu0 0
      %1509 = vmatprep.subr.bf16.mxu0 0
      %1510 = vmatpush1.bf16.msra.mxu0 0
      %1511 = vmatprep.subr.bf16.mxu0 0
      %1512 = vmatpush1.bf16.msra.mxu0 0
      %1513 = vmatprep.subr.bf16.mxu0 0
      %1514 = vmatpush1.bf16.msra.mxu0 0
      %1515 = vmatprep.subr.bf16.mxu0 0
      %1516 = vmatpush1.bf16.msra.mxu0 0
      %1517 = vmatprep.subr.bf16.mxu0 0
      %1518 = vmatpush1.bf16.msra.mxu0 0
      %1519 = vmatprep.subr.bf16.mxu0 0
      %1520 = vmatpush1.bf16.msra.mxu0 0
      %1521 = vmatprep.subr.bf16.mxu0 0
      %1522 = vmatpush1.bf16.msra.mxu0 0
      %1523 = vmatprep.subr.bf16.mxu0 0
      %1524 = vmatpush1.bf16.msra.mxu0 0
      %1525 = vmatprep.subr.bf16.mxu0 0
      %1526 = vmatpush1.bf16.msra.mxu0 0
      %1527 = vmatprep.mubr.bf16.mxu0 0
      %1528 = vmatmul.mubr.bf16.gmra.mrb[0].mxu0 %v1469
      %v1529 = vpop.f32.mrb[0].mxu0
      %v1530 = vadd.f32 0.0, %v1529
      %v1531 = vpop.f32.mrb[0].mxu0
      %v1532 = vpop.f32.mrb[0].mxu0
      %v1533 = vadd.f32 0.0, %v1532
      %v1534 = vpop.f32.mrb[0].mxu0
      %1535 = vmatprep.mubr.bf16.mxu0 0
      %1536 = vmatmul.mubr.bf16.gmra.mrb[0].mxu0 %v1472
      %v1537 = vpop.f32.mrb[0].mxu0
      %v1538 = vadd.f32 0.0, %v1537
      %v1539 = vpop.f32.mrb[0].mxu0
      %v1540 = vpop.f32.mrb[0].mxu0
      %v1541 = vadd.f32 0.0, %v1540
      %v1542 = vpop.f32.mrb[0].mxu0
      %1543 = vmatprep.mubr.bf16.mxu0 0
      %1544 = vmatmul.mubr.bf16.gmra.mrb[0].mxu0 %v1475
      %v1545 = vpop.f32.mrb[0].mxu0
      %v1546 = vadd.f32 0.0, %v1545
      %v1547 = vpop.f32.mrb[0].mxu0
      %v1548 = vpop.f32.mrb[0].mxu0
      %v1549 = vadd.f32 0.0, %v1548
      %v1550 = vpop.f32.mrb[0].mxu0
      %1551 = vmatprep.mubr.bf16.mxu0 0
      %1552 = vmatmul.mubr.bf16.gmra.mrb[0].mxu0 %v1478
      %v1553 = vpop.f32.mrb[0].mxu0
      %v1554 = vadd.f32 0.0, %v1553
      %v1555 = vpop.f32.mrb[0].mxu0
      %v1556 = vpop.f32.mrb[0].mxu0
      %v1557 = vadd.f32 0.0, %v1556
      %v1558 = vpop.f32.mrb[0].mxu0
      %1559 = vmatprep.mubr.bf16.mxu0 0
      %1560 = vmatmul.mubr.bf16.gmra.mrb[0].mxu0 %v1481
      %v1561 = vpop.f32.mrb[0].mxu0
      %v1562 = vadd.f32 0.0, %v1561
      %v1563 = vpop.f32.mrb[0].mxu0
      %v1564 = vpop.f32.mrb[0].mxu0
      %v1565 = vadd.f32 0.0, %v1564
      %v1566 = vpop.f32.mrb[0].mxu0
      %1567 = vmatprep.mubr.bf16.mxu0 0
      %1568 = vmatmul.mubr.bf16.gmra.mrb[0].mxu0 %v1484
      %v1569 = vpop.f32.mrb[0].mxu0
      %v1570 = vadd.f32 0.0, %v1569
      %v1571 = vpop.f32.mrb[0].mxu0
      %v1572 = vpop.f32.mrb[0].mxu0
      %v1573 = vadd.f32 0.0, %v1572
      %v1574 = vpop.f32.mrb[0].mxu0
      %1575 = vmatprep.mubr.bf16.mxu0 0
      %1576 = vmatmul.mubr.bf16.gmra.mrb[0].mxu0 %v1487
      %v1577 = vpop.f32.mrb[0].mxu0
      %v1578 = vadd.f32 0.0, %v1577
      %v1579 = vpop.f32.mrb[0].mxu0
      %v1580 = vpop.f32.mrb[0].mxu0
      %v1581 = vadd.f32 0.0, %v1580
      %v1582 = vpop.f32.mrb[0].mxu0
      %1583 = vmatprep.mubr.bf16.mxu0 0
      %1584 = vmatmul.mubr.bf16.gmra.mrb[0].mxu0 %v1490
      %v1585 = vpop.f32.mrb[0].mxu0
      %v1586 = vadd.f32 0.0, %v1585
      %v1587 = vpop.f32.mrb[0].mxu0
      %v1588 = vpop.f32.mrb[0].mxu0
      %v1589 = vadd.f32 0.0, %v1588
      %v1590 = vpop.f32.mrb[0].mxu0
      %1591 = vdwg.mxu0
      %v1592 = vadd.f32 %v1426, %v1530
      %v1593 = vadd.f32 %v1427, %v1533
      %v1594 = vadd.f32 %v1428, %v1538
      %v1595 = vadd.f32 %v1429, %v1541
      %v1596 = vadd.f32 %v1430, %v1546
      %v1597 = vadd.f32 %v1431, %v1549
      %v1598 = vadd.f32 %v1432, %v1554
      %v1599 = vadd.f32 %v1433, %v1557
      %v1600 = vadd.f32 %v1434, %v1562
      %v1601 = vadd.f32 %v1435, %v1565
      %v1602 = vadd.f32 %v1436, %v1570
      %v1603 = vadd.f32 %v1437, %v1573
      %v1604 = vadd.f32 %v1438, %v1578
      %v1605 = vadd.f32 %v1439, %v1581
      %v1606 = vadd.f32 %v1440, %v1586
      %v1607 = vadd.f32 %v1441, %v1589
      %v1608 = vld [vmem:[%s1275 + $0x2] sm:$0xff]
      %v1609 = vld [vmem:[%s1275 + $0xa] sm:$0xff]
      %v1610 = vld [vmem:[%s1275 + $0x1a] sm:$0xff]
      %v1611 = vld [vmem:[%s1275 + $0x22] sm:$0xff]
      %v1612 = vld [vmem:[%s1275 + $0x32] sm:$0xff]
      %v1613 = vld [vmem:[%s1275 + $0x3a] sm:$0xff]
      %v1614 = vld [vmem:[%s1275 + $0x4a] sm:$0xff]
      %v1615 = vld [vmem:[%s1275 + $0x52] sm:$0xff]
      %v1616 = vld [vmem:[%s1275 + $0x62] sm:$0xff]
      %v1617 = vld [vmem:[%s1275 + $0x6a] sm:$0xff]
      %v1618 = vld [vmem:[%s1275 + $0x7a] sm:$0xff]
      %v1619 = vld [vmem:[%s1275 + $0x82] sm:$0xff]
      %v1620 = vld [vmem:[%s1275 + $0x92] sm:$0xff]
      %v1621 = vld [vmem:[%s1275 + $0x9a] sm:$0xff]
      %v1622 = vld [vmem:[%s1275 + $0xaa] sm:$0xff]
      %v1623 = vld [vmem:[%s1275 + $0xb2] sm:$0xff]
      %v1624 = vpack.c.bf16 %v1609, %v1608
      %v1625 = vpack.c.bf16 %v1611, %v1610
      %v1626 = vpack.c.bf16 %v1613, %v1612
      %v1627 = vpack.c.bf16 %v1615, %v1614
      %v1628 = vpack.c.bf16 %v1617, %v1616
      %v1629 = vpack.c.bf16 %v1619, %v1618
      %v1630 = vpack.c.bf16 %v1621, %v1620
      %v1631 = vpack.c.bf16 %v1623, %v1622
      %s1632 = scalar_lea.vmem %s1, 8
      %v1633 = vld [vmem:[%s1632] sm:$0x1]
      %v1635 = vsel %vm356, %v1624, 0
      %v1638 = vsel %vm356, %v1625, 0
      %v1641 = vsel %vm356, %v1626, 0
      %v1644 = vsel %vm356, %v1627, 0
      %v1647 = vsel %vm356, %v1628, 0
      %v1650 = vsel %vm356, %v1629, 0
      %v1653 = vsel %vm356, %v1630, 0
      %v1656 = vsel %vm356, %v1631, 0
      %v1659 = vsel %vm381, %v1633, 0
      %1661 = vmatprep.subr.bf16.mxu0 0
      %1662 = vmatpush1.bf16.msra.mxu0 %v1659
      %1663 = vmatprep.subr.bf16.mxu0 0
      %1664 = vmatpush1.bf16.msra.mxu0 0
      %1665 = vmatprep.subr.bf16.mxu0 0
      %1666 = vmatpush1.bf16.msra.mxu0 0
      %1667 = vmatprep.subr.bf16.mxu0 0
      %1668 = vmatpush1.bf16.msra.mxu0 0
      %1669 = vmatprep.subr.bf16.mxu0 0
      %1670 = vmatpush1.bf16.msra.mxu0 0
      %1671 = vmatprep.subr.bf16.mxu0 0
      %1672 = vmatpush1.bf16.msra.mxu0 0
      %1673 = vmatprep.subr.bf16.mxu0 0
      %1674 = vmatpush1.bf16.msra.mxu0 0
      %1675 = vmatprep.subr.bf16.mxu0 0
      %1676 = vmatpush1.bf16.msra.mxu0 0
      %1677 = vmatprep.subr.bf16.mxu0 0
      %1678 = vmatpush1.bf16.msra.mxu0 0
      %1679 = vmatprep.subr.bf16.mxu0 0
      %1680 = vmatpush1.bf16.msra.mxu0 0
      %1681 = vmatprep.subr.bf16.mxu0 0
      %1682 = vmatpush1.bf16.msra.mxu0 0
      %1683 = vmatprep.subr.bf16.mxu0 0
      %1684 = vmatpush1.bf16.msra.mxu0 0
      %1685 = vmatprep.subr.bf16.mxu0 0
      %1686 = vmatpush1.bf16.msra.mxu0 0
      %1687 = vmatprep.subr.bf16.mxu0 0
      %1688 = vmatpush1.bf16.msra.mxu0 0
      %1689 = vmatprep.subr.bf16.mxu0 0
      %1690 = vmatpush1.bf16.msra.mxu0 0
      %1691 = vmatprep.subr.bf16.mxu0 0
      %1692 = vmatpush1.bf16.msra.mxu0 0
      %1693 = vmatprep.mubr.bf16.mxu0 0
      %1694 = vmatmul.mubr.bf16.gmra.mrb[0].mxu0 %v1635
      %v1695 = vpop.f32.mrb[0].mxu0
      %v1696 = vadd.f32 0.0, %v1695
      %v1697 = vpop.f32.mrb[0].mxu0
      %v1698 = vpop.f32.mrb[0].mxu0
      %v1699 = vadd.f32 0.0, %v1698
      %v1700 = vpop.f32.mrb[0].mxu0
      %1701 = vmatprep.mubr.bf16.mxu0 0
      %1702 = vmatmul.mubr.bf16.gmra.mrb[0].mxu0 %v1638
      %v1703 = vpop.f32.mrb[0].mxu0
      %v1704 = vadd.f32 0.0, %v1703
      %v1705 = vpop.f32.mrb[0].mxu0
      %v1706 = vpop.f32.mrb[0].mxu0
      %v1707 = vadd.f32 0.0, %v1706
      %v1708 = vpop.f32.mrb[0].mxu0
      %1709 = vmatprep.mubr.bf16.mxu0 0
      %1710 = vmatmul.mubr.bf16.gmra.mrb[0].mxu0 %v1641
      %v1711 = vpop.f32.mrb[0].mxu0
      %v1712 = vadd.f32 0.0, %v1711
      %v1713 = vpop.f32.mrb[0].mxu0
      %v1714 = vpop.f32.mrb[0].mxu0
      %v1715 = vadd.f32 0.0, %v1714
      %v1716 = vpop.f32.mrb[0].mxu0
      %1717 = vmatprep.mubr.bf16.mxu0 0
      %1718 = vmatmul.mubr.bf16.gmra.mrb[0].mxu0 %v1644
      %v1719 = vpop.f32.mrb[0].mxu0
      %v1720 = vadd.f32 0.0, %v1719
      %v1721 = vpop.f32.mrb[0].mxu0
      %v1722 = vpop.f32.mrb[0].mxu0
      %v1723 = vadd.f32 0.0, %v1722
      %v1724 = vpop.f32.mrb[0].mxu0
      %1725 = vmatprep.mubr.bf16.mxu0 0
      %1726 = vmatmul.mubr.bf16.gmra.mrb[0].mxu0 %v1647
      %v1727 = vpop.f32.mrb[0].mxu0
      %v1728 = vadd.f32 0.0, %v1727
      %v1729 = vpop.f32.mrb[0].mxu0
      %v1730 = vpop.f32.mrb[0].mxu0
      %v1731 = vadd.f32 0.0, %v1730
      %v1732 = vpop.f32.mrb[0].mxu0
      %1733 = vmatprep.mubr.bf16.mxu0 0
      %1734 = vmatmul.mubr.bf16.gmra.mrb[0].mxu0 %v1650
      %v1735 = vpop.f32.mrb[0].mxu0
      %v1736 = vadd.f32 0.0, %v1735
      %v1737 = vpop.f32.mrb[0].mxu0
      %v1738 = vpop.f32.mrb[0].mxu0
      %v1739 = vadd.f32 0.0, %v1738
      %v1740 = vpop.f32.mrb[0].mxu0
      %1741 = vmatprep.mubr.bf16.mxu0 0
      %1742 = vmatmul.mubr.bf16.gmra.mrb[0].mxu0 %v1653
      %v1743 = vpop.f32.mrb[0].mxu0
      %v1744 = vadd.f32 0.0, %v1743
      %v1745 = vpop.f32.mrb[0].mxu0
      %v1746 = vpop.f32.mrb[0].mxu0
      %v1747 = vadd.f32 0.0, %v1746
      %v1748 = vpop.f32.mrb[0].mxu0
      %1749 = vmatprep.mubr.bf16.mxu0 0
      %1750 = vmatmul.mubr.bf16.gmra.mrb[0].mxu0 %v1656
      %v1751 = vpop.f32.mrb[0].mxu0
      %v1752 = vadd.f32 0.0, %v1751
      %v1753 = vpop.f32.mrb[0].mxu0
      %v1754 = vpop.f32.mrb[0].mxu0
      %v1755 = vadd.f32 0.0, %v1754
      %v1756 = vpop.f32.mrb[0].mxu0
      %1757 = vdwg.mxu0
      %v1758 = vadd.f32 %v1592, %v1696
      %v1759 = vadd.f32 %v1593, %v1699
      %v1760 = vadd.f32 %v1594, %v1704
      %v1761 = vadd.f32 %v1595, %v1707
      %v1762 = vadd.f32 %v1596, %v1712
      %v1763 = vadd.f32 %v1597, %v1715
      %v1764 = vadd.f32 %v1598, %v1720
      %v1765 = vadd.f32 %v1599, %v1723
      %v1766 = vadd.f32 %v1600, %v1728
      %v1767 = vadd.f32 %v1601, %v1731
      %v1768 = vadd.f32 %v1602, %v1736
      %v1769 = vadd.f32 %v1603, %v1739
      %v1770 = vadd.f32 %v1604, %v1744
      %v1771 = vadd.f32 %v1605, %v1747
      %v1772 = vadd.f32 %v1606, %v1752
      %v1773 = vadd.f32 %v1607, %v1755
      %vm1774 = vcmask 261120
      %1775 = vst.msk [vmem:[%s167] sm:$0xff] %vm1774, %v1758
      %1776 = vst.msk [vmem:[%s167 + $0x8] sm:$0xff] %vm1774, %v1759
      %1777 = vst.msk [vmem:[%s167 + $0x10] sm:$0xff] %vm1774, %v1760
      %1778 = vst.msk [vmem:[%s167 + $0x18] sm:$0xff] %vm1774, %v1761
      %1779 = vst.msk [vmem:[%s167 + $0x20] sm:$0xff] %vm1774, %v1762
      %1780 = vst.msk [vmem:[%s167 + $0x28] sm:$0xff] %vm1774, %v1763
      %1781 = vst.msk [vmem:[%s167 + $0x30] sm:$0xff] %vm1774, %v1764
      %1782 = vst.msk [vmem:[%s167 + $0x38] sm:$0xff] %vm1774, %v1765
      %1783 = vst.msk [vmem:[%s167 + $0x40] sm:$0xff] %vm1774, %v1766
      %1784 = vst.msk [vmem:[%s167 + $0x48] sm:$0xff] %vm1774, %v1767
      %1785 = vst.msk [vmem:[%s167 + $0x50] sm:$0xff] %vm1774, %v1768
      %1786 = vst.msk [vmem:[%s167 + $0x58] sm:$0xff] %vm1774, %v1769
      %1787 = vst.msk [vmem:[%s167 + $0x60] sm:$0xff] %vm1774, %v1770
      %1788 = vst.msk [vmem:[%s167 + $0x68] sm:$0xff] %vm1774, %v1771
      %1789 = vst.msk [vmem:[%s167 + $0x70] sm:$0xff] %vm1774, %v1772
      %1790 = vst.msk [vmem:[%s167 + $0x78] sm:$0xff] %vm1774, %v1773
      %s1791 = smul.u32 8, %s18
      %p1792 = scmp.lt.s32.totalorder %s17, 1
      %s1793 = scalar_select %p1792, %s17, 1
      %p1794 = scmp.lt.s32.totalorder %s1791, 15
      %s1795 = scalar_select %p1794, %s1791, 15
      %s1796 = smul.addr %s1795, 2
      %s1797 = smul.addr %s1793, 32
      %s1798 = sadd.s32 %s1796, %s1797
      %s1799 = smul.addr %s1798, 8
      %s1800 = scalar_lea.vmem %s2, %s1799
      // Predicated region
      $region33: #{resnet_forward.5} parent=27 // pred_check
        %p1801 = pneg %p92
      $region34: #{resnet_forward.5} parent=27 // pred_check_branch
        %1803 = sbr.rel (%p1801) target = $region36
      $region35: #{resnet_forward.5} parent=27 // pred_region
        %s1804 = smul.u32 8, %s18
      $region36: #{resnet_forward.5} parent=27 // pred_fallthru
        _
    $region28: #{resnet_forward.5} parent=5 // pred_fallthru
      _
    %p1805 = scmp.le.s32.totalorder 2, %s8
    // Predicated region
    $region37: #{resnet_forward.5} parent=5 // pred_check
      %p1806 = pneg %p1805
    $region38: #{resnet_forward.5} parent=5 // pred_check_branch
      %1808 = sbr.rel (%p1806) target = $region40
    $region39: #{resnet_forward.5} parent=5 // pred_region
      %s1809 = ssub.s32 %s8, 2
      // Predicated region
      $region41: #{resnet_forward.5} parent=39 // pred_check
        %p1810 = pneg %p98
      $region42: #{resnet_forward.5} parent=39 // pred_check_branch
        %1812 = sbr.rel (%p1810) target = $region44
      $region43: #{resnet_forward.5} parent=39 // pred_region
        %s1813 = smul.u32 8, %s20
        %p1814 = scmp.lt.s32.totalorder %s19, 1
        %s1815 = scalar_select %p1814, %s19, 1
        %p1816 = scmp.lt.s32.totalorder %s1813, 15
        %s1817 = scalar_select %p1816, %s1813, 15
        %s1818 = smul.addr %s1817, 2
        %s1819 = smul.addr %s1815, 32
        %s1820 = sadd.s32 %s1818, %s1819
        %s1821 = smul.addr %s1820, 8
        %s1822 = scalar_lea.vmem %s2, %s1821
      $region44: #{resnet_forward.5} parent=39 // pred_fallthru
        _
    $region40: #{resnet_forward.5} parent=5 // pred_fallthru
      _
  $region6: #{resnet_forward.5} parent=0 // loop_footer
    %s12 = sadd.s32 1, %s8
  $region7: #{resnet_forward.5} parent=0 // loop_footer_branch
    %7 = sbr.rel target = $region3
  $region8: #{resnet_forward.5} parent=0 // loop_exit
    _

// kernel: resnet_forward.8
$region0: #{resnet_forward.8}
  #allocation0 [shape = 'u32[]', space=smem, size = 0x4, offset = 0x4, fixed_abs, tag = 'smem constant byte address 0x4 - core index']
  #allocation1 [shape = 'u32[144,128]{1,0:T(1,128)}', space=vmem, size = 0x12000, scoped, tag = 'internal scratch']
  #allocation2 [shape = 'f32[20,18,32]{2,1,0:T(8,128)}', space=vmem, size = 0x3c000, scoped, tag = 'scratch operand']
  %s0 = inlined_call_operand.vmem [shape: f32[2,16,16,32], index: 0, kind: input, shape index: {}]
  %s1 = inlined_call_operand.vmem [shape: bf16[9,32,32], index: 1, kind: input, shape index: {}]
  %s2 = inlined_call_operand.vmem [shape: f32[2,16,16,32], index: 2, kind: input, shape index: {}, may-alias: {2,3}]
  %s3 = inlined_call_operand.vmem [shape: f32[2,16,16,32], index: 3, kind: output, shape index: {}, may-alias: {2,3}]
  %s4 = sld [smem:[#allocation0]]
  $region49: #{resnet_forward.8} parent=0
    _
  %s6 = ssub.s32 1, %s4
  %s7 = scalar_select 0, %s6, %s4
  loop: start=0, step=1, limit=6
  $region2: #{resnet_forward.8} parent=0 // loop_pre_header
    _
  $region3: #{resnet_forward.8} parent=0 // loop_header
    %s9 = sphi 0, %s13
    %p10 = scmp.ge.s32.totalorder %s9, 6
    %s16 = sphi 0, %s28
    %s17 = sphi 0, %s24
    %s18 = sphi 0, %s16
    %s19 = sphi 0, %s17
    %s20 = sphi 0, %s18
    %s21 = sphi 0, %s19
    %s31 = sphi 0, %s33
    %s34 = sphi 0, %s31
    %s35 = sphi 0, %s34
    %s51 = sphi 0, %s35
    %s55 = sphi 0, %s55
    %s57 = sphi 0, %s55
    %s58 = sphi 0, %s57
    %s72 = sphi 0, %s58
    %s80 = sphi 0, %s82
    %s83 = sphi 0, %s80
    %s84 = sphi 0, %s83
    %s100 = sphi 0, %s84
    %s108 = sphi 0, %s110
    %s111 = sphi 0, %s108
    %s112 = sphi 0, %s111
    %s128 = sphi 0, %s112
  $region4: #{resnet_forward.8} parent=0 // loop_header_branch
    %12 = sbr.rel (%p10) target = $region8
  $region5: #{resnet_forward.8} parent=0 // loop_body
    %s14 = ssub.s32 %s9, 1
    %s15 = ssub.s32 %s9, 2
    %s22 = sadd.s32 1, %s17
    %p23 = scmp.ge.s32.totalorder %s22, 2
    %s24 = scalar_select %p23, 0, %s22
    %s25 = sadd.s32 1, %s16
    %s26 = scalar_select %p23, %s25, %s16
    %p27 = scmp.ge.s32.totalorder %s26, 2
    %s28 = scalar_select %p27, 0, %s26
    %s29 = ssub.s32 %s16, %s28
    %p30 = scmp.eq.s32.totalorder %s29, 0
    %s32 = sadd.s32 %s31, 1
    %s33 = scalar_select %p30, %s31, %s32
    %p36 = pneg %p30
    %p37 = scmp.eq.s32.totalorder %s9, 3
    %p38 = por %p36, %p37
    %p39 = scmp.ne.s32.totalorder %s31, %s34
    %p40 = scmp.eq.s32.totalorder %s9, 0
    %p41 = por %p39, %p40
    %p42 = scmp.ne.s32.totalorder %s31, %s34
    %p43 = scmp.eq.s32.totalorder %s14, 3
    %p44 = por %p42, %p43
    %p45 = scmp.ne.s32.totalorder %s34, %s35
    %p46 = scmp.eq.s32.totalorder %s14, 0
    %p47 = por %p45, %p46
    %p48 = scmp.ne.s32.totalorder %s34, %s35
    %p49 = scmp.eq.s32.totalorder %s15, 3
    %p50 = por %p48, %p49
    %p52 = scmp.ne.s32.totalorder %s35, %s51
    %p53 = scmp.eq.s32.totalorder %s15, 0
    %p54 = por %p52, %p53
    %s56 = sadd.s32 %s55, 1
    %p59 = scmp.eq.s32.totalorder %s9, 3
    %p60 = scmp.ne.s32.totalorder %s55, %s57
    %p61 = scmp.eq.s32.totalorder %s9, 0
    %p62 = por %p60, %p61
    %p63 = scmp.ne.s32.totalorder %s55, %s57
    %p64 = scmp.eq.s32.totalorder %s14, 3
    %p65 = por %p63, %p64
    %p66 = scmp.ne.s32.totalorder %s57, %s58
    %p67 = scmp.eq.s32.totalorder %s14, 0
    %p68 = por %p66, %p67
    %p69 = scmp.ne.s32.totalorder %s57, %s58
    %p70 = scmp.eq.s32.totalorder %s15, 3
    %p71 = por %p69, %p70
    %p73 = scmp.ne.s32.totalorder %s58, %s72
    %p74 = scmp.eq.s32.totalorder %s15, 0
    %p75 = por %p73, %p74
    %s76 = ssub.s32 %s16, %s28
    %s77 = ssub.s32 %s17, %s24
    %s78 = sor.u32 %s76, %s77
    %p79 = scmp.eq.s32.totalorder %s78, 0
    %s81 = sadd.s32 %s80, 1
    %s82 = scalar_select %p79, %s80, %s81
    %p85 = pneg %p79
    %p86 = scmp.eq.s32.totalorder %s9, 3
    %p87 = por %p85, %p86
    %p88 = scmp.ne.s32.totalorder %s80, %s83
    %p89 = scmp.eq.s32.totalorder %s9, 0
    %p90 = por %p88, %p89
    %p91 = scmp.ne.s32.totalorder %s80, %s83
    %p92 = scmp.eq.s32.totalorder %s14, 3
    %p93 = por %p91, %p92
    %p94 = scmp.ne.s32.totalorder %s83, %s84
    %p95 = scmp.eq.s32.totalorder %s14, 0
    %p96 = por %p94, %p95
    %p97 = scmp.ne.s32.totalorder %s83, %s84
    %p98 = scmp.eq.s32.totalorder %s15, 3
    %p99 = por %p97, %p98
    %p101 = scmp.ne.s32.totalorder %s84, %s100
    %p102 = scmp.eq.s32.totalorder %s15, 0
    %p103 = por %p101, %p102
    %s104 = ssub.s32 %s16, %s28
    %s105 = ssub.s32 %s17, %s24
    %s106 = sor.u32 %s104, %s105
    %p107 = scmp.eq.s32.totalorder %s106, 0
    %s109 = sadd.s32 %s108, 1
    %s110 = scalar_select %p107, %s108, %s109
    %p113 = pneg %p107
    %p114 = scmp.eq.s32.totalorder %s9, 3
    %p115 = por %p113, %p114
    %p116 = scmp.ne.s32.totalorder %s108, %s111
    %p117 = scmp.eq.s32.totalorder %s9, 0
    %p118 = por %p116, %p117
    %p119 = scmp.ne.s32.totalorder %s108, %s111
    %p120 = scmp.eq.s32.totalorder %s14, 3
    %p121 = por %p119, %p120
    %p122 = scmp.ne.s32.totalorder %s111, %s112
    %p123 = scmp.eq.s32.totalorder %s14, 0
    %p124 = por %p122, %p123
    %p125 = scmp.ne.s32.totalorder %s111, %s112
    %p126 = scmp.eq.s32.totalorder %s15, 3
    %p127 = por %p125, %p126
    %p129 = scmp.ne.s32.totalorder %s112, %s128
    %p130 = scmp.eq.s32.totalorder %s15, 0
    %p131 = por %p129, %p130
    %p132 = scmp.le.s32.totalorder 1, %s9
    %p133 = scmp.lt.s32.totalorder %s9, 5
    %p134 = pnand %p132, %p133
    %p135 = pneg %p134
    // Predicated region
    $region9: #{resnet_forward.8} parent=5 // pred_check
      _
    $region10: #{resnet_forward.8} parent=5 // pred_check_branch
      %137 = sbr.rel (%p134) target = $region12
    $region11: #{resnet_forward.8} parent=5 // pred_region
      %s138 = ssub.s32 %s9, 1
      // Predicated region
      $region13: #{resnet_forward.8} parent=11 // pred_check
        %p139 = pneg %p68
      $region14: #{resnet_forward.8} parent=11 // pred_check_branch
        %141 = sbr.rel (%p139) target = $region16
      $region15: #{resnet_forward.8} parent=11 // pred_region
        _
      $region16: #{resnet_forward.8} parent=11 // pred_fallthru
        _
    $region12: #{resnet_forward.8} parent=5 // pred_fallthru
      _
    %p142 = scmp.lt.s32.totalorder %s9, 4
    // Predicated region
    $region17: #{resnet_forward.8} parent=5 // pred_check
      %p143 = pneg %p142
    $region18: #{resnet_forward.8} parent=5 // pred_check_branch
      %145 = sbr.rel (%p143) target = $region20
    $region19: #{resnet_forward.8} parent=5 // pred_region
      // Predicated region
      $region21: #{resnet_forward.8} parent=19 // pred_check
        %p146 = pneg %p41
      $region22: #{resnet_forward.8} parent=19 // pred_check_branch
        %148 = sbr.rel (%p146) target = $region24
      $region23: #{resnet_forward.8} parent=19 // pred_region
        %p149 = scmp.lt.s32.totalorder %s16, 1
        %s150 = scalar_select %p149, %s16, 1
        %s151 = smul.addr %s150, 32
        %s152 = smul.addr %s151, 8
        %s153 = scalar_lea.vmem %s0, %s152
      $region24: #{resnet_forward.8} parent=19 // pred_fallthru
        _
      // Predicated region
      $region25: #{resnet_forward.8} parent=19 // pred_check
        %p154 = pneg %p90
      $region26: #{resnet_forward.8} parent=19 // pred_check_branch
        %156 = sbr.rel (%p154) target = $region28
      $region27: #{resnet_forward.8} parent=19 // pred_region
        %s157 = smul.u32 8, %s17
        %p158 = scmp.lt.s32.totalorder %s16, 1
        %s159 = scalar_select %p158, %s16, 1
        %p160 = scmp.lt.s32.totalorder %s157, 15
        %s161 = scalar_select %p160, %s157, 15
        %s162 = smul.addr %s161, 2
        %s163 = smul.addr %s159, 32
        %s164 = sadd.s32 %s162, %s163
        %s165 = smul.addr %s164, 8
        %s166 = scalar_lea.vmem %s2, %s165
        %s167 = smul.u32 8, %s17
      $region28: #{resnet_forward.8} parent=19 // pred_fallthru
        _
    $region20: #{resnet_forward.8} parent=5 // pred_fallthru
      _
    %p168 = scmp.le.s32.totalorder 1, %s9
    %p169 = scmp.lt.s32.totalorder %s9, 5
    %p170 = pnand %p168, %p169
    %p171 = pneg %p170
    // Predicated region
    $region29: #{resnet_forward.8} parent=5 // pred_check
      _
    $region30: #{resnet_forward.8} parent=5 // pred_check_branch
      %173 = sbr.rel (%p170) target = $region32
    $region31: #{resnet_forward.8} parent=5 // pred_region
      %s174 = ssub.s32 %s9, 1
      %p175 = scmp.lt.s32.totalorder %s18, 1
      %s176 = scalar_select %p175, %s18, 1
      %s177 = smul.addr %s176, 32
      %s178 = smul.addr %s177, 8
      %s179 = scalar_lea.vmem %s0, %s178
      %p180 = pneg %p47
      %p181 = pneg %p44
      %p182 = pneg %p68
      %p183 = pneg %p65
      %s184 = smul.u32 8, %s19
      %p185 = scmp.lt.s32.totalorder %s18, 1
      %s186 = scalar_select %p185, %s18, 1
      %p187 = scmp.lt.s32.totalorder %s184, 15
      %s188 = scalar_select %p187, %s184, 15
      %s189 = smul.addr %s188, 2
      %s190 = smul.addr %s186, 32
      %s191 = sadd.s32 %s189, %s190
      %s192 = smul.addr %s191, 8
      %s193 = scalar_lea.vmem %s2, %s192
      %p194 = pneg %p96
      %p195 = pneg %p93
      %p196 = pneg %p124
      %p197 = pneg %p121
      %s198 = smul.u32 8, %s19
      %p199 = scmp.lt.s32.totalorder %s18, 1
      %s200 = scalar_select %p199, %s18, 1
      %p201 = scmp.lt.s32.totalorder %s198, 15
      %s202 = scalar_select %p201, %s198, 15
      %s203 = smul.addr %s202, 2
      %s204 = smul.addr %s200, 32
      %s205 = sadd.s32 %s203, %s204
      %s206 = smul.addr %s205, 8
      %s207 = scalar_lea.vmem %s3, %s206
      %p208 = scmp.lt.s32.totalorder %s18, 1
      %s209 = scalar_select %p208, %s18, 1
      %s210 = smul.addr %s209, 32
      %s211 = smul.addr %s210, 8
      %s212 = scalar_lea.vmem %s0, %s211
      %s213 = smul.u32 8, %s19
      %p214 = scmp.lt.s32.totalorder %s18, 1
      %s215 = scalar_select %p214, %s18, 1
      %p216 = scmp.lt.s32.totalorder %s213, 15
      %s217 = scalar_select %p216, %s213, 15
      %s218 = smul.addr %s217, 2
      %s219 = smul.addr %s215, 32
      %s220 = sadd.s32 %s218, %s219
      %s221 = smul.addr %s220, 8
      %s222 = scalar_lea.vmem %s2, %s221
      %s223 = smul.u32 8, %s19
      %s224 = smul.u32 8, %s19
      %p225 = scmp.lt.s32.totalorder %s18, 1
      %s226 = scalar_select %p225, %s18, 1
      %p227 = scmp.lt.s32.totalorder %s224, 15
      %s228 = scalar_select %p227, %s224, 15
      %s229 = smul.addr %s228, 2
      %s230 = smul.addr %s226, 32
      %s231 = sadd.s32 %s229, %s230
      %s232 = smul.addr %s231, 8
      %s233 = scalar_lea.vmem %s3, %s232
      %s234 = smul.u32 8, %s19
      %p236 = scmp.eq.s32.totalorder %s19, 0
      // Predicated region
      $region33: #{resnet_forward.8} parent=31 // pred_check
        %p237 = pneg %p236
      $region34: #{resnet_forward.8} parent=31 // pred_check_branch
        %239 = sbr.rel (%p237) target = $region36
      $region35: #{resnet_forward.8} parent=31 // pred_region
        %vm240 = vcmask 261120
        %241 = vst.msk [vmem:[#allocation2] sm:$0xff] %vm240, 0.0
        %242 = vst.msk [vmem:[#allocation2 + $0x8] sm:$0xff] %vm240, 0.0
        %vm243 = vcmask 254976
        %244 = vst.msk [vmem:[#allocation2 + $0x10] sm:$0x3] %vm243, 0.0
        %245 = vst.msk [vmem:[#allocation2 + $0x18] sm:$0xff] %vm240, 0.0
        %246 = vst.msk [vmem:[#allocation2 + $0x20] sm:$0xff] %vm240, 0.0
        %247 = vst.msk [vmem:[#allocation2 + $0x28] sm:$0x3] %vm243, 0.0
        %248 = vst.msk [vmem:[#allocation2 + $0x30] sm:$0xff] %vm240, 0.0
        %249 = vst.msk [vmem:[#allocation2 + $0x38] sm:$0xff] %vm240, 0.0
        %250 = vst.msk [vmem:[#allocation2 + $0x40] sm:$0x3] %vm243, 0.0
        %251 = vst.msk [vmem:[#allocation2 + $0x48] sm:$0xff] %vm240, 0.0
        %252 = vst.msk [vmem:[#allocation2 + $0x50] sm:$0xff] %vm240, 0.0
        %253 = vst.msk [vmem:[#allocation2 + $0x58] sm:$0x3] %vm243, 0.0
        %254 = vst.msk [vmem:[#allocation2 + $0x60] sm:$0xff] %vm240, 0.0
        %255 = vst.msk [vmem:[#allocation2 + $0x68] sm:$0xff] %vm240, 0.0
        %256 = vst.msk [vmem:[#allocation2 + $0x70] sm:$0x3] %vm243, 0.0
        %257 = vst.msk [vmem:[#allocation2 + $0x78] sm:$0xff] %vm240, 0.0
        %258 = vst.msk [vmem:[#allocation2 + $0x80] sm:$0xff] %vm240, 0.0
        %259 = vst.msk [vmem:[#allocation2 + $0x88] sm:$0x3] %vm243, 0.0
        %260 = vst.msk [vmem:[#allocation2 + $0x90] sm:$0xff] %vm240, 0.0
        %261 = vst.msk [vmem:[#allocation2 + $0x98] sm:$0xff] %vm240, 0.0
        %262 = vst.msk [vmem:[#allocation2 + $0xa0] sm:$0x3] %vm243, 0.0
        %263 = vst.msk [vmem:[#allocation2 + $0xa8] sm:$0xff] %vm240, 0.0
        %264 = vst.msk [vmem:[#allocation2 + $0xb0] sm:$0xff] %vm240, 0.0
        %265 = vst.msk [vmem:[#allocation2 + $0xb8] sm:$0x3] %vm243, 0.0
        %266 = vst.msk [vmem:[#allocation2 + $0xc0] sm:$0xff] %vm240, 0.0
        %267 = vst.msk [vmem:[#allocation2 + $0xc8] sm:$0xff] %vm240, 0.0
        %268 = vst.msk [vmem:[#allocation2 + $0xd0] sm:$0x3] %vm243, 0.0
        %269 = vst.msk [vmem:[#allocation2 + $0xd8] sm:$0xff] %vm240, 0.0
        %270 = vst.msk [vmem:[#allocation2 + $0xe0] sm:$0xff] %vm240, 0.0
        %271 = vst.msk [vmem:[#allocation2 + $0xe8] sm:$0x3] %vm243, 0.0
        %272 = vst.msk [vmem:[#allocation2 + $0xf0] sm:$0xff] %vm240, 0.0
        %273 = vst.msk [vmem:[#allocation2 + $0xf8] sm:$0xff] %vm240, 0.0
        %274 = vst.msk [vmem:[#allocation2 + $0x100] sm:$0x3] %vm243, 0.0
        %275 = vst.msk [vmem:[#allocation2 + $0x108] sm:$0xff] %vm240, 0.0
        %276 = vst.msk [vmem:[#allocation2 + $0x110] sm:$0xff] %vm240, 0.0
        %277 = vst.msk [vmem:[#allocation2 + $0x118] sm:$0x3] %vm243, 0.0
        %278 = vst.msk [vmem:[#allocation2 + $0x120] sm:$0xff] %vm240, 0.0
        %279 = vst.msk [vmem:[#allocation2 + $0x128] sm:$0xff] %vm240, 0.0
        %280 = vst.msk [vmem:[#allocation2 + $0x130] sm:$0x3] %vm243, 0.0
        %281 = vst.msk [vmem:[#allocation2 + $0x138] sm:$0xff] %vm240, 0.0
        %282 = vst.msk [vmem:[#allocation2 + $0x140] sm:$0xff] %vm240, 0.0
        %283 = vst.msk [vmem:[#allocation2 + $0x148] sm:$0x3] %vm243, 0.0
        %284 = vst.msk [vmem:[#allocation2 + $0x150] sm:$0xff] %vm240, 0.0
        %285 = vst.msk [vmem:[#allocation2 + $0x158] sm:$0xff] %vm240, 0.0
        %286 = vst.msk [vmem:[#allocation2 + $0x160] sm:$0x3] %vm243, 0.0
        %287 = vst.msk [vmem:[#allocation2 + $0x168] sm:$0xff] %vm240, 0.0
        %288 = vst.msk [vmem:[#allocation2 + $0x170] sm:$0xff] %vm240, 0.0
        %289 = vst.msk [vmem:[#allocation2 + $0x178] sm:$0x3] %vm243, 0.0
        %290 = vst.msk [vmem:[#allocation2 + $0x180] sm:$0xff] %vm240, 0.0
        %291 = vst.msk [vmem:[#allocation2 + $0x188] sm:$0xff] %vm240, 0.0
        %292 = vst.msk [vmem:[#allocation2 + $0x190] sm:$0x3] %vm243, 0.0
        %293 = vst.msk [vmem:[#allocation2 + $0x198] sm:$0xff] %vm240, 0.0
        %294 = vst.msk [vmem:[#allocation2 + $0x1a0] sm:$0xff] %vm240, 0.0
        %295 = vst.msk [vmem:[#allocation2 + $0x1a8] sm:$0x3] %vm243, 0.0
        %296 = vst.msk [vmem:[#allocation2 + $0x1b0] sm:$0xff] %vm240, 0.0
        %297 = vst.msk [vmem:[#allocation2 + $0x1b8] sm:$0xff] %vm240, 0.0
        %298 = vst.msk [vmem:[#allocation2 + $0x1c0] sm:$0x3] %vm243, 0.0
        %299 = vst.msk [vmem:[#allocation2 + $0x1c8] sm:$0xff] %vm240, 0.0
        %300 = vst.msk [vmem:[#allocation2 + $0x1d0] sm:$0xff] %vm240, 0.0
        %301 = vst.msk [vmem:[#allocation2 + $0x1d8] sm:$0x3] %vm243, 0.0
        %v302 = vld [vmem:[%s212] sm:$0xff]
        %v303 = vld [vmem:[%s212 + $0x8] sm:$0xff]
        %v304 = vld [vmem:[%s212 + $0x10] sm:$0xff]
        %v305 = vld [vmem:[%s212 + $0x18] sm:$0xff]
        %v306 = vld [vmem:[%s212 + $0x20] sm:$0xff]
        %v307 = vld [vmem:[%s212 + $0x28] sm:$0xff]
        %v308 = vld [vmem:[%s212 + $0x30] sm:$0xff]
        %v309 = vld [vmem:[%s212 + $0x38] sm:$0xff]
        %v310 = vld [vmem:[%s212 + $0x40] sm:$0xff]
        %v311 = vld [vmem:[%s212 + $0x48] sm:$0xff]
        %v312 = vld [vmem:[%s212 + $0x50] sm:$0xff]
        %v313 = vld [vmem:[%s212 + $0x58] sm:$0xff]
        %v314 = vld [vmem:[%s212 + $0x60] sm:$0xff]
        %v315 = vld [vmem:[%s212 + $0x68] sm:$0xff]
        %v316 = vld [vmem:[%s212 + $0x70] sm:$0xff]
        %v317 = vld [vmem:[%s212 + $0x78] sm:$0xff]
        %v318 = vld [vmem:[%s212 + $0x80] sm:$0xff]
        %v319 = vld [vmem:[%s212 + $0x88] sm:$0xff]
        %v320 = vld [vmem:[%s212 + $0x90] sm:$0xff]
        %v321 = vld [vmem:[%s212 + $0x98] sm:$0xff]
        %v322 = vld [vmem:[%s212 + $0xa0] sm:$0xff]
        %v323 = vld [vmem:[%s212 + $0xa8] sm:$0xff]
        %v324 = vld [vmem:[%s212 + $0xb0] sm:$0xff]
        %v325 = vld [vmem:[%s212 + $0xb8] sm:$0xff]
        %v326 = vld [vmem:[%s212 + $0xc0] sm:$0xff]
        %v327 = vld [vmem:[%s212 + $0xc8] sm:$0xff]
        %v328 = vld [vmem:[%s212 + $0xd0] sm:$0xff]
        %v329 = vld [vmem:[%s212 + $0xd8] sm:$0xff]
        %v330 = vld [vmem:[%s212 + $0xe0] sm:$0xff]
        %v331 = vld [vmem:[%s212 + $0xe8] sm:$0xff]
        %v332 = vld [vmem:[%s212 + $0xf0] sm:$0xff]
        %v333 = vld [vmem:[%s212 + $0xf8] sm:$0xff]
        %s334 = scalar_lea.vmem [#allocation2], 48
        %335 = vst.msk [vmem:[%s334 + $0x1] sm:$0xff] %vm240, %v302
        %336 = vst.msk [vmem:[%s334 + $0x9] sm:$0xff] %vm240, %v303
        %337 = vst.msk [vmem:[%s334 + $0x19] sm:$0xff] %vm240, %v304
        %338 = vst.msk [vmem:[%s334 + $0x21] sm:$0xff] %vm240, %v305
        %339 = vst.msk [vmem:[%s334 + $0x31] sm:$0xff] %vm240, %v306
        %340 = vst.msk [vmem:[%s334 + $0x39] sm:$0xff] %vm240, %v307
        %341 = vst.msk [vmem:[%s334 + $0x49] sm:$0xff] %vm240, %v308
        %342 = vst.msk [vmem:[%s334 + $0x51] sm:$0xff] %vm240, %v309
        %343 = vst.msk [vmem:[%s334 + $0x61] sm:$0xff] %vm240, %v310
        %344 = vst.msk [vmem:[%s334 + $0x69] sm:$0xff] %vm240, %v311
        %345 = vst.msk [vmem:[%s334 + $0x79] sm:$0xff] %vm240, %v312
        %346 = vst.msk [vmem:[%s334 + $0x81] sm:$0xff] %vm240, %v313
        %347 = vst.msk [vmem:[%s334 + $0x91] sm:$0xff] %vm240, %v314
        %348 = vst.msk [vmem:[%s334 + $0x99] sm:$0xff] %vm240, %v315
        %349 = vst.msk [vmem:[%s334 + $0xa9] sm:$0xff] %vm240, %v316
        %350 = vst.msk [vmem:[%s334 + $0xb1] sm:$0xff] %vm240, %v317
        %351 = vst.msk [vmem:[%s334 + $0xc1] sm:$0xff] %vm240, %v318
        %352 = vst.msk [vmem:[%s334 + $0xc9] sm:$0xff] %vm240, %v319
        %353 = vst.msk [vmem:[%s334 + $0xd9] sm:$0xff] %vm240, %v320
        %354 = vst.msk [vmem:[%s334 + $0xe1] sm:$0xff] %vm240, %v321
        %355 = vst.msk [vmem:[%s334 + $0xf1] sm:$0xff] %vm240, %v322
        %356 = vst.msk [vmem:[%s334 + $0xf9] sm:$0xff] %vm240, %v323
        %357 = vst.msk [vmem:[%s334 + $0x109] sm:$0xff] %vm240, %v324
        %358 = vst.msk [vmem:[%s334 + $0x111] sm:$0xff] %vm240, %v325
        %359 = vst.msk [vmem:[%s334 + $0x121] sm:$0xff] %vm240, %v326
        %360 = vst.msk [vmem:[%s334 + $0x129] sm:$0xff] %vm240, %v327
        %361 = vst.msk [vmem:[%s334 + $0x139] sm:$0xff] %vm240, %v328
        %362 = vst.msk [vmem:[%s334 + $0x141] sm:$0xff] %vm240, %v329
        %363 = vst.msk [vmem:[%s334 + $0x151] sm:$0xff] %vm240, %v330
        %364 = vst.msk [vmem:[%s334 + $0x159] sm:$0xff] %vm240, %v331
        %365 = vst.msk [vmem:[%s334 + $0x169] sm:$0xff] %vm240, %v332
        %366 = vst.msk [vmem:[%s334 + $0x171] sm:$0xff] %vm240, %v333
      $region36: #{resnet_forward.8} parent=31 // pred_fallthru
        _
      %s367 = smul.u32 %s19, 8
      %s368 = sadd.s32 %s367, 1
      %s369 = smul.u32 %s368, 24
      %s370 = scalar_lea.vmem [#allocation2], %s369
      %v371 = vld [vmem:[%s370] sm:$0xff]
      %v372 = vld [vmem:[%s370 + $0x8] sm:$0xff]
      %v373 = vld [vmem:[%s370 + $0x18] sm:$0xff]
      %v374 = vld [vmem:[%s370 + $0x20] sm:$0xff]
      %v375 = vld [vmem:[%s370 + $0x30] sm:$0xff]
      %v376 = vld [vmem:[%s370 + $0x38] sm:$0xff]
      %v377 = vld [vmem:[%s370 + $0x48] sm:$0xff]
      %v378 = vld [vmem:[%s370 + $0x50] sm:$0xff]
      %v379 = vld [vmem:[%s370 + $0x60] sm:$0xff]
      %v380 = vld [vmem:[%s370 + $0x68] sm:$0xff]
      %v381 = vld [vmem:[%s370 + $0x78] sm:$0xff]
      %v382 = vld [vmem:[%s370 + $0x80] sm:$0xff]
      %v383 = vld [vmem:[%s370 + $0x90] sm:$0xff]
      %v384 = vld [vmem:[%s370 + $0x98] sm:$0xff]
      %v385 = vld [vmem:[%s370 + $0xa8] sm:$0xff]
      %v386 = vld [vmem:[%s370 + $0xb0] sm:$0xff]
      %v387 = vpack.c.bf16 %v372, %v371
      %v388 = vpack.c.bf16 %v374, %v373
      %v389 = vpack.c.bf16 %v376, %v375
      %v390 = vpack.c.bf16 %v378, %v377
      %v391 = vpack.c.bf16 %v380, %v379
      %v392 = vpack.c.bf16 %v382, %v381
      %v393 = vpack.c.bf16 %v384, %v383
      %v394 = vpack.c.bf16 %v386, %v385
      %v395 = vld [vmem:[%s1] sm:$0xf]
      %v396 = vld [vmem:[%s1 + $0x4] sm:$0xf]
      %v397 = vld [vmem:[%s1 + $0x8] sm:$0xf]
      %v398 = vld [vmem:[%s1 + $0xc] sm:$0xf]
      %v399 = vld [vmem:[%s370 + $0x1] sm:$0xff]
      %v400 = vld [vmem:[%s370 + $0x9] sm:$0xff]
      %v401 = vld [vmem:[%s370 + $0x19] sm:$0xff]
      %v402 = vld [vmem:[%s370 + $0x21] sm:$0xff]
      %v403 = vld [vmem:[%s370 + $0x31] sm:$0xff]
      %v404 = vld [vmem:[%s370 + $0x39] sm:$0xff]
      %v405 = vld [vmem:[%s370 + $0x49] sm:$0xff]
      %v406 = vld [vmem:[%s370 + $0x51] sm:$0xff]
      %v407 = vld [vmem:[%s370 + $0x61] sm:$0xff]
      %v408 = vld [vmem:[%s370 + $0x69] sm:$0xff]
      %v409 = vld [vmem:[%s370 + $0x79] sm:$0xff]
      %v410 = vld [vmem:[%s370 + $0x81] sm:$0xff]
      %v411 = vld [vmem:[%s370 + $0x91] sm:$0xff]
      %v412 = vld [vmem:[%s370 + $0x99] sm:$0xff]
      %v413 = vld [vmem:[%s370 + $0xa9] sm:$0xff]
      %v414 = vld [vmem:[%s370 + $0xb1] sm:$0xff]
      %v415 = vpack.c.bf16 %v400, %v399
      %v416 = vpack.c.bf16 %v402, %v401
      %v417 = vpack.c.bf16 %v404, %v403
      %v418 = vpack.c.bf16 %v406, %v405
      %v419 = vpack.c.bf16 %v408, %v407
      %v420 = vpack.c.bf16 %v410, %v409
      %v421 = vpack.c.bf16 %v412, %v411
      %v422 = vpack.c.bf16 %v414, %v413
      %s423 = scalar_lea.vmem %s1, 16
      %v424 = vld [vmem:[%s423] sm:$0xf]
      %v425 = vld [vmem:[%s423 + $0x4] sm:$0xf]
      %v426 = vld [vmem:[%s423 + $0x8] sm:$0xf]
      %v427 = vld [vmem:[%s423 + $0xc] sm:$0xf]
      %v432 = vunpack.c.l.b16 %v424
      %v433 = vunpack.c.l.b16 %v425
      %v434 = vunpack.c.l.b16 %v426
      %v435 = vunpack.c.l.b16 %v427
      %v436 = vpack.c.b16 %v433, %v432
      %v437 = vpack.c.b16 %v435, %v434
      %vm440 = vcmask 261120
      %v442 = vsel %vm440, %v415, 0
      %v445 = vsel %vm440, %v416, 0
      %v448 = vsel %vm440, %v417, 0
      %v451 = vsel %vm440, %v418, 0
      %v454 = vsel %vm440, %v419, 0
      %v457 = vsel %vm440, %v420, 0
      %v460 = vsel %vm440, %v421, 0
      %v463 = vsel %vm440, %v422, 0
      %465 = vmatprep.subr.bf16.mxu0 0
      %466 = vmatpush1.bf16.msra.mxu0 %v436
      %467 = vmatprep.subr.bf16.mxu0 0
      %468 = vmatpush1.bf16.msra.mxu0 %v437
      %469 = vmatprep.subr.bf16.mxu0 0
      %470 = vmatpush1.bf16.msra.mxu0 0
      %471 = vmatprep.subr.bf16.mxu0 0
      %472 = vmatpush1.bf16.msra.mxu0 0
      %473 = vmatprep.subr.bf16.mxu0 0
      %474 = vmatpush1.bf16.msra.mxu0 0
      %475 = vmatprep.subr.bf16.mxu0 0
      %476 = vmatpush1.bf16.msra.mxu0 0
      %477 = vmatprep.subr.bf16.mxu0 0
      %478 = vmatpush1.bf16.msra.mxu0 0
      %479 = vmatprep.subr.bf16.mxu0 0
      %480 = vmatpush1.bf16.msra.mxu0 0
      %481 = vmatprep.subr.bf16.mxu0 0
      %482 = vmatpush1.bf16.msra.mxu0 0
      %483 = vmatprep.subr.bf16.mxu0 0
      %484 = vmatpush1.bf16.msra.mxu0 0
      %485 = vmatprep.subr.bf16.mxu0 0
      %486 = vmatpush1.bf16.msra.mxu0 0
      %487 = vmatprep.subr.bf16.mxu0 0
      %488 = vmatpush1.bf16.msra.mxu0 0
      %489 = vmatprep.subr.bf16.mxu0 0
      %490 = vmatpush1.bf16.msra.mxu0 0
      %491 = vmatprep.subr.bf16.mxu0 0
      %492 = vmatpush1.bf16.msra.mxu0 0
      %493 = vmatprep.subr.bf16.mxu0 0
      %494 = vmatpush1.bf16.msra.mxu0 0
      %495 = vmatprep.subr.bf16.mxu0 0
      %496 = vmatpush1.bf16.msra.mxu0 0
      %497 = vmatprep.mubr.bf16.mxu0 0
      %498 = vmatmul.mubr.bf16.gmra.mrb[0].mxu0 %v442
      %v499 = vpop.f32.mrb[0].mxu0
      %v500 = vadd.f32 0.0, %v499
      %v501 = vpop.f32.mrb[0].mxu0
      %v502 = vpop.f32.mrb[0].mxu0
      %v503 = vadd.f32 0.0, %v502
      %v504 = vpop.f32.mrb[0].mxu0
      %505 = vmatprep.mubr.bf16.mxu0 0
      %506 = vmatmul.mubr.bf16.gmra.mrb[0].mxu0 %v445
      %v507 = vpop.f32.mrb[0].mxu0
      %v508 = vadd.f32 0.0, %v507
      %v509 = vpop.f32.mrb[0].mxu0
      %v510 = vpop.f32.mrb[0].mxu0
      %v511 = vadd.f32 0.0, %v510
      %v512 = vpop.f32.mrb[0].mxu0
      %513 = vmatprep.mubr.bf16.mxu0 0
      %514 = vmatmul.mubr.bf16.gmra.mrb[0].mxu0 %v448
      %v515 = vpop.f32.mrb[0].mxu0
      %v516 = vadd.f32 0.0, %v515
      %v517 = vpop.f32.mrb[0].mxu0
      %v518 = vpop.f32.mrb[0].mxu0
      %v519 = vadd.f32 0.0, %v518
      %v520 = vpop.f32.mrb[0].mxu0
      %521 = vmatprep.mubr.bf16.mxu0 0
      %522 = vmatmul.mubr.bf16.gmra.mrb[0].mxu0 %v451
      %v523 = vpop.f32.mrb[0].mxu0
      %v524 = vadd.f32 0.0, %v523
      %v525 = vpop.f32.mrb[0].mxu0
      %v526 = vpop.f32.mrb[0].mxu0
      %v527 = vadd.f32 0.0, %v526
      %v528 = vpop.f32.mrb[0].mxu0
      %529 = vmatprep.mubr.bf16.mxu0 0
      %530 = vmatmul.mubr.bf16.gmra.mrb[0].mxu0 %v454
      %v531 = vpop.f32.mrb[0].mxu0
      %v532 = vadd.f32 0.0, %v531
      %v533 = vpop.f32.mrb[0].mxu0
      %v534 = vpop.f32.mrb[0].mxu0
      %v535 = vadd.f32 0.0, %v534
      %v536 = vpop.f32.mrb[0].mxu0
      %537 = vmatprep.mubr.bf16.mxu0 0
      %538 = vmatmul.mubr.bf16.gmra.mrb[0].mxu0 %v457
      %v539 = vpop.f32.mrb[0].mxu0
      %v540 = vadd.f32 0.0, %v539
      %v541 = vpop.f32.mrb[0].mxu0
      %v542 = vpop.f32.mrb[0].mxu0
      %v543 = vadd.f32 0.0, %v542
      %v544 = vpop.f32.mrb[0].mxu0
      %545 = vmatprep.mubr.bf16.mxu0 0
      %546 = vmatmul.mubr.bf16.gmra.mrb[0].mxu0 %v460
      %v547 = vpop.f32.mrb[0].mxu0
      %v548 = vadd.f32 0.0, %v547
      %v549 = vpop.f32.mrb[0].mxu0
      %v550 = vpop.f32.mrb[0].mxu0
      %v551 = vadd.f32 0.0, %v550
      %v552 = vpop.f32.mrb[0].mxu0
      %553 = vmatprep.mubr.bf16.mxu0 0
      %554 = vmatmul.mubr.bf16.gmra.mrb[0].mxu0 %v463
      %v555 = vpop.f32.mrb[0].mxu0
      %v556 = vadd.f32 0.0, %v555
      %v557 = vpop.f32.mrb[0].mxu0
      %v558 = vpop.f32.mrb[0].mxu0
      %v559 = vadd.f32 0.0, %v558
      %v560 = vpop.f32.mrb[0].mxu0
      %561 = vdwg.mxu0
      %v566 = vunpack.c.l.b16 %v395
      %v567 = vunpack.c.l.b16 %v396
      %v568 = vunpack.c.l.b16 %v397
      %v569 = vunpack.c.l.b16 %v398
      %v570 = vpack.c.b16 %v567, %v566
      %v571 = vpack.c.b16 %v569, %v568
      %v575 = vsel %vm440, %v387, 0
      %v578 = vsel %vm440, %v388, 0
      %v581 = vsel %vm440, %v389, 0
      %v584 = vsel %vm440, %v390, 0
      %v587 = vsel %vm440, %v391, 0
      %v590 = vsel %vm440, %v392, 0
      %v593 = vsel %vm440, %v393, 0
      %v596 = vsel %vm440, %v394, 0
      %598 = vmatprep.subr.bf16.mxu0 0
      %599 = vmatpush1.bf16.msra.mxu0 %v570
      %600 = vmatprep.subr.bf16.mxu0 0
      %601 = vmatpush1.bf16.msra.mxu0 %v571
      %602 = vmatprep.subr.bf16.mxu0 0
      %603 = vmatpush1.bf16.msra.mxu0 0
      %604 = vmatprep.subr.bf16.mxu0 0
      %605 = vmatpush1.bf16.msra.mxu0 0
      %606 = vmatprep.subr.bf16.mxu0 0
      %607 = vmatpush1.bf16.msra.mxu0 0
      %608 = vmatprep.subr.bf16.mxu0 0
      %609 = vmatpush1.bf16.msra.mxu0 0
      %610 = vmatprep.subr.bf16.mxu0 0
      %611 = vmatpush1.bf16.msra.mxu0 0
      %612 = vmatprep.subr.bf16.mxu0 0
      %613 = vmatpush1.bf16.msra.mxu0 0
      %614 = vmatprep.subr.bf16.mxu0 0
      %615 = vmatpush1.bf16.msra.mxu0 0
      %616 = vmatprep.subr.bf16.mxu0 0
      %617 = vmatpush1.bf16.msra.mxu0 0
      %618 = vmatprep.subr.bf16.mxu0 0
      %619 = vmatpush1.bf16.msra.mxu0 0
      %620 = vmatprep.subr.bf16.mxu0 0
      %621 = vmatpush1.bf16.msra.mxu0 0
      %622 = vmatprep.subr.bf16.mxu0 0
      %623 = vmatpush1.bf16.msra.mxu0 0
      %624 = vmatprep.subr.bf16.mxu0 0
      %625 = vmatpush1.bf16.msra.mxu0 0
      %626 = vmatprep.subr.bf16.mxu0 0
      %627 = vmatpush1.bf16.msra.mxu0 0
      %628 = vmatprep.subr.bf16.mxu0 0
      %629 = vmatpush1.bf16.msra.mxu0 0
      %630 = vmatprep.mubr.bf16.mxu0 0
      %631 = vmatmul.mubr.bf16.gmra.mrb[0].mxu0 %v575
      %v632 = vpop.f32.mrb[0].mxu0
      %v633 = vadd.f32 %v500, %v632
      %v634 = vpop.f32.mrb[0].mxu0
      %v635 = vpop.f32.mrb[0].mxu0
      %v636 = vadd.f32 %v503, %v635
      %v637 = vpop.f32.mrb[0].mxu0
      %638 = vmatprep.mubr.bf16.mxu0 0
      %639 = vmatmul.mubr.bf16.gmra.mrb[0].mxu0 %v578
      %v640 = vpop.f32.mrb[0].mxu0
      %v641 = vadd.f32 %v508, %v640
      %v642 = vpop.f32.mrb[0].mxu0
      %v643 = vpop.f32.mrb[0].mxu0
      %v644 = vadd.f32 %v511, %v643
      %v645 = vpop.f32.mrb[0].mxu0
      %646 = vmatprep.mubr.bf16.mxu0 0
      %647 = vmatmul.mubr.bf16.gmra.mrb[0].mxu0 %v581
      %v648 = vpop.f32.mrb[0].mxu0
      %v649 = vadd.f32 %v516, %v648
      %v650 = vpop.f32.mrb[0].mxu0
      %v651 = vpop.f32.mrb[0].mxu0
      %v652 = vadd.f32 %v519, %v651
      %v653 = vpop.f32.mrb[0].mxu0
      %654 = vmatprep.mubr.bf16.mxu0 0
      %655 = vmatmul.mubr.bf16.gmra.mrb[0].mxu0 %v584
      %v656 = vpop.f32.mrb[0].mxu0
      %v657 = vadd.f32 %v524, %v656
      %v658 = vpop.f32.mrb[0].mxu0
      %v659 = vpop.f32.mrb[0].mxu0
      %v660 = vadd.f32 %v527, %v659
      %v661 = vpop.f32.mrb[0].mxu0
      %662 = vmatprep.mubr.bf16.mxu0 0
      %663 = vmatmul.mubr.bf16.gmra.mrb[0].mxu0 %v587
      %v664 = vpop.f32.mrb[0].mxu0
      %v665 = vadd.f32 %v532, %v664
      %v666 = vpop.f32.mrb[0].mxu0
      %v667 = vpop.f32.mrb[0].mxu0
      %v668 = vadd.f32 %v535, %v667
      %v669 = vpop.f32.mrb[0].mxu0
      %670 = vmatprep.mubr.bf16.mxu0 0
      %671 = vmatmul.mubr.bf16.gmra.mrb[0].mxu0 %v590
      %v672 = vpop.f32.mrb[0].mxu0
      %v673 = vadd.f32 %v540, %v672
      %v674 = vpop.f32.mrb[0].mxu0
      %v675 = vpop.f32.mrb[0].mxu0
      %v676 = vadd.f32 %v543, %v675
      %v677 = vpop.f32.mrb[0].mxu0
      %678 = vmatprep.mubr.bf16.mxu0 0
      %679 = vmatmul.mubr.bf16.gmra.mrb[0].mxu0 %v593
      %v680 = vpop.f32.mrb[0].mxu0
      %v681 = vadd.f32 %v548, %v680
      %v682 = vpop.f32.mrb[0].mxu0
      %v683 = vpop.f32.mrb[0].mxu0
      %v684 = vadd.f32 %v551, %v683
      %v685 = vpop.f32.mrb[0].mxu0
      %686 = vmatprep.mubr.bf16.mxu0 0
      %687 = vmatmul.mubr.bf16.gmra.mrb[0].mxu0 %v596
      %v688 = vpop.f32.mrb[0].mxu0
      %v689 = vadd.f32 %v556, %v688
      %v690 = vpop.f32.mrb[0].mxu0
      %v691 = vpop.f32.mrb[0].mxu0
      %v692 = vadd.f32 %v559, %v691
      %v693 = vpop.f32.mrb[0].mxu0
      %694 = vdwg.mxu0
      %v695 = vld [vmem:[%s370 + $0x2] sm:$0xff]
      %v696 = vld [vmem:[%s370 + $0xa] sm:$0xff]
      %v697 = vld [vmem:[%s370 + $0x1a] sm:$0xff]
      %v698 = vld [vmem:[%s370 + $0x22] sm:$0xff]
      %v699 = vld [vmem:[%s370 + $0x32] sm:$0xff]
      %v700 = vld [vmem:[%s370 + $0x3a] sm:$0xff]
      %v701 = vld [vmem:[%s370 + $0x4a] sm:$0xff]
      %v702 = vld [vmem:[%s370 + $0x52] sm:$0xff]
      %v703 = vld [vmem:[%s370 + $0x62] sm:$0xff]
      %v704 = vld [vmem:[%s370 + $0x6a] sm:$0xff]
      %v705 = vld [vmem:[%s370 + $0x7a] sm:$0xff]
      %v706 = vld [vmem:[%s370 + $0x82] sm:$0xff]
      %v707 = vld [vmem:[%s370 + $0x92] sm:$0xff]
      %v708 = vld [vmem:[%s370 + $0x9a] sm:$0xff]
      %v709 = vld [vmem:[%s370 + $0xaa] sm:$0xff]
      %v710 = vld [vmem:[%s370 + $0xb2] sm:$0xff]
      %v711 = vpack.c.bf16 %v696, %v695
      %v712 = vpack.c.bf16 %v698, %v697
      %v713 = vpack.c.bf16 %v700, %v699
      %v714 = vpack.c.bf16 %v702, %v701
      %v715 = vpack.c.bf16 %v704, %v703
      %v716 = vpack.c.bf16 %v706, %v705
      %v717 = vpack.c.bf16 %v708, %v707
      %v718 = vpack.c.bf16 %v710, %v709
      %s719 = scalar_lea.vmem %s1, 32
      %v720 = vld [vmem:[%s719] sm:$0xf]
      %v721 = vld [vmem:[%s719 + $0x4] sm:$0xf]
      %v722 = vld [vmem:[%s719 + $0x8] sm:$0xf]
      %v723 = vld [vmem:[%s719 + $0xc] sm:$0xf]
      %v728 = vunpack.c.l.b16 %v720
      %v729 = vunpack.c.l.b16 %v721
      %v730 = vunpack.c.l.b16 %v722
      %v731 = vunpack.c.l.b16 %v723
      %v732 = vpack.c.b16 %v729, %v728
      %v733 = vpack.c.b16 %v731, %v730
      %v737 = vsel %vm440, %v711, 0
      %v740 = vsel %vm440, %v712, 0
      %v743 = vsel %vm440, %v713, 0
      %v746 = vsel %vm440, %v714, 0
      %v749 = vsel %vm440, %v715, 0
      %v752 = vsel %vm440, %v716, 0
      %v755 = vsel %vm440, %v717, 0
      %v758 = vsel %vm440, %v718, 0
      %760 = vmatprep.subr.bf16.mxu0 0
      %761 = vmatpush1.bf16.msra.mxu0 %v732
      %762 = vmatprep.subr.bf16.mxu0 0
      %763 = vmatpush1.bf16.msra.mxu0 %v733
      %764 = vmatprep.subr.bf16.mxu0 0
      %765 = vmatpush1.bf16.msra.mxu0 0
      %766 = vmatprep.subr.bf16.mxu0 0
      %767 = vmatpush1.bf16.msra.mxu0 0
      %768 = vmatprep.subr.bf16.mxu0 0
      %769 = vmatpush1.bf16.msra.mxu0 0
      %770 = vmatprep.subr.bf16.mxu0 0
      %771 = vmatpush1.bf16.msra.mxu0 0
      %772 = vmatprep.subr.bf16.mxu0 0
      %773 = vmatpush1.bf16.msra.mxu0 0
      %774 = vmatprep.subr.bf16.mxu0 0
      %775 = vmatpush1.bf16.msra.mxu0 0
      %776 = vmatprep.subr.bf16.mxu0 0
      %777 = vmatpush1.bf16.msra.mxu0 0
      %778 = vmatprep.subr.bf16.mxu0 0
      %779 = vmatpush1.bf16.msra.mxu0 0
      %780 = vmatprep.subr.bf16.mxu0 0
      %781 = vmatpush1.bf16.msra.mxu0 0
      %782 = vmatprep.subr.bf16.mxu0 0
      %783 = vmatpush1.bf16.msra.mxu0 0
      %784 = vmatprep.subr.bf16.mxu0 0
      %785 = vmatpush1.bf16.msra.mxu0 0
      %786 = vmatprep.subr.bf16.mxu0 0
      %787 = vmatpush1.bf16.msra.mxu0 0
      %788 = vmatprep.subr.bf16.mxu0 0
      %789 = vmatpush1.bf16.msra.mxu0 0
      %790 = vmatprep.subr.bf16.mxu0 0
      %791 = vmatpush1.bf16.msra.mxu0 0
      %792 = vmatprep.mubr.bf16.mxu0 0
      %793 = vmatmul.mubr.bf16.gmra.mrb[0].mxu0 %v737
      %v794 = vpop.f32.mrb[0].mxu0
      %v795 = vadd.f32 0.0, %v794
      %v796 = vpop.f32.mrb[0].mxu0
      %v797 = vpop.f32.mrb[0].mxu0
      %v798 = vadd.f32 0.0, %v797
      %v799 = vpop.f32.mrb[0].mxu0
      %800 = vmatprep.mubr.bf16.mxu0 0
      %801 = vmatmul.mubr.bf16.gmra.mrb[0].mxu0 %v740
      %v802 = vpop.f32.mrb[0].mxu0
      %v803 = vadd.f32 0.0, %v802
      %v804 = vpop.f32.mrb[0].mxu0
      %v805 = vpop.f32.mrb[0].mxu0
      %v806 = vadd.f32 0.0, %v805
      %v807 = vpop.f32.mrb[0].mxu0
      %808 = vmatprep.mubr.bf16.mxu0 0
      %809 = vmatmul.mubr.bf16.gmra.mrb[0].mxu0 %v743
      %v810 = vpop.f32.mrb[0].mxu0
      %v811 = vadd.f32 0.0, %v810
      %v812 = vpop.f32.mrb[0].mxu0
      %v813 = vpop.f32.mrb[0].mxu0
      %v814 = vadd.f32 0.0, %v813
      %v815 = vpop.f32.mrb[0].mxu0
      %816 = vmatprep.mubr.bf16.mxu0 0
      %817 = vmatmul.mubr.bf16.gmra.mrb[0].mxu0 %v746
      %v818 = vpop.f32.mrb[0].mxu0
      %v819 = vadd.f32 0.0, %v818
      %v820 = vpop.f32.mrb[0].mxu0
      %v821 = vpop.f32.mrb[0].mxu0
      %v822 = vadd.f32 0.0, %v821
      %v823 = vpop.f32.mrb[0].mxu0
      %824 = vmatprep.mubr.bf16.mxu0 0
      %825 = vmatmul.mubr.bf16.gmra.mrb[0].mxu0 %v749
      %v826 = vpop.f32.mrb[0].mxu0
      %v827 = vadd.f32 0.0, %v826
      %v828 = vpop.f32.mrb[0].mxu0
      %v829 = vpop.f32.mrb[0].mxu0
      %v830 = vadd.f32 0.0, %v829
      %v831 = vpop.f32.mrb[0].mxu0
      %832 = vmatprep.mubr.bf16.mxu0 0
      %833 = vmatmul.mubr.bf16.gmra.mrb[0].mxu0 %v752
      %v834 = vpop.f32.mrb[0].mxu0
      %v835 = vadd.f32 0.0, %v834
      %v836 = vpop.f32.mrb[0].mxu0
      %v837 = vpop.f32.mrb[0].mxu0
      %v838 = vadd.f32 0.0, %v837
      %v839 = vpop.f32.mrb[0].mxu0
      %840 = vmatprep.mubr.bf16.mxu0 0
      %841 = vmatmul.mubr.bf16.gmra.mrb[0].mxu0 %v755
      %v842 = vpop.f32.mrb[0].mxu0
      %v843 = vadd.f32 0.0, %v842
      %v844 = vpop.f32.mrb[0].mxu0
      %v845 = vpop.f32.mrb[0].mxu0
      %v846 = vadd.f32 0.0, %v845
      %v847 = vpop.f32.mrb[0].mxu0
      %848 = vmatprep.mubr.bf16.mxu0 0
      %849 = vmatmul.mubr.bf16.gmra.mrb[0].mxu0 %v758
      %v850 = vpop.f32.mrb[0].mxu0
      %v851 = vadd.f32 0.0, %v850
      %v852 = vpop.f32.mrb[0].mxu0
      %v853 = vpop.f32.mrb[0].mxu0
      %v854 = vadd.f32 0.0, %v853
      %v855 = vpop.f32.mrb[0].mxu0
      %856 = vdwg.mxu0
      %v857 = vadd.f32 %v633, %v795
      %v858 = vadd.f32 %v636, %v798
      %v859 = vadd.f32 %v641, %v803
      %v860 = vadd.f32 %v644, %v806
      %v861 = vadd.f32 %v649, %v811
      %v862 = vadd.f32 %v652, %v814
      %v863 = vadd.f32 %v657, %v819
      %v864 = vadd.f32 %v660, %v822
      %v865 = vadd.f32 %v665, %v827
      %v866 = vadd.f32 %v668, %v830
      %v867 = vadd.f32 %v673, %v835
      %v868 = vadd.f32 %v676, %v838
      %v869 = vadd.f32 %v681, %v843
      %v870 = vadd.f32 %v684, %v846
      %v871 = vadd.f32 %v689, %v851
      %v872 = vadd.f32 %v692, %v854
      %s873 = sadd.s32 %s367, 2
      %s874 = smul.u32 %s873, 24
      %s875 = scalar_lea.vmem [#allocation2], %s874
      %v876 = vld [vmem:[%s875] sm:$0xff]
      %v877 = vld [vmem:[%s875 + $0x8] sm:$0xff]
      %v878 = vld [vmem:[%s875 + $0x18] sm:$0xff]
      %v879 = vld [vmem:[%s875 + $0x20] sm:$0xff]
      %v880 = vld [vmem:[%s875 + $0x30] sm:$0xff]
      %v881 = vld [vmem:[%s875 + $0x38] sm:$0xff]
      %v882 = vld [vmem:[%s875 + $0x48] sm:$0xff]
      %v883 = vld [vmem:[%s875 + $0x50] sm:$0xff]
      %v884 = vld [vmem:[%s875 + $0x60] sm:$0xff]
      %v885 = vld [vmem:[%s875 + $0x68] sm:$0xff]
      %v886 = vld [vmem:[%s875 + $0x78] sm:$0xff]
      %v887 = vld [vmem:[%s875 + $0x80] sm:$0xff]
      %v888 = vld [vmem:[%s875 + $0x90] sm:$0xff]
      %v889 = vld [vmem:[%s875 + $0x98] sm:$0xff]
      %v890 = vld [vmem:[%s875 + $0xa8] sm:$0xff]
      %v891 = vld [vmem:[%s875 + $0xb0] sm:$0xff]
      %v892 = vpack.c.bf16 %v877, %v876
      %v893 = vpack.c.bf16 %v879, %v878
      %v894 = vpack.c.bf16 %v881, %v880
      %v895 = vpack.c.bf16 %v883, %v882
      %v896 = vpack.c.bf16 %v885, %v884
      %v897 = vpack.c.bf16 %v887, %v886
      %v898 = vpack.c.bf16 %v889, %v888
      %v899 = vpack.c.bf16 %v891, %v890
      %s900 = scalar_lea.vmem %s1, 48
      %v901 = vld [vmem:[%s900] sm:$0xf]
      %v902 = vld [vmem:[%s900 + $0x4] sm:$0xf]
      %v903 = vld [vmem:[%s900 + $0x8] sm:$0xf]
      %v904 = vld [vmem:[%s900 + $0xc] sm:$0xf]
      %v909 = vunpack.c.l.b16 %v901
      %v910 = vunpack.c.l.b16 %v902
      %v911 = vunpack.c.l.b16 %v903
      %v912 = vunpack.c.l.b16 %v904
      %v913 = vpack.c.b16 %v910, %v909
      %v914 = vpack.c.b16 %v912, %v911
      %v918 = vsel %vm440, %v892, 0
      %v921 = vsel %vm440, %v893, 0
      %v924 = vsel %vm440, %v894, 0
      %v927 = vsel %vm440, %v895, 0
      %v930 = vsel %vm440, %v896, 0
      %v933 = vsel %vm440, %v897, 0
      %v936 = vsel %vm440, %v898, 0
      %v939 = vsel %vm440, %v899, 0
      %941 = vmatprep.subr.bf16.mxu0 0
      %942 = vmatpush1.bf16.msra.mxu0 %v913
      %943 = vmatprep.subr.bf16.mxu0 0
      %944 = vmatpush1.bf16.msra.mxu0 %v914
      %945 = vmatprep.subr.bf16.mxu0 0
      %946 = vmatpush1.bf16.msra.mxu0 0
      %947 = vmatprep.subr.bf16.mxu0 0
      %948 = vmatpush1.bf16.msra.mxu0 0
      %949 = vmatprep.subr.bf16.mxu0 0
      %950 = vmatpush1.bf16.msra.mxu0 0
      %951 = vmatprep.subr.bf16.mxu0 0
      %952 = vmatpush1.bf16.msra.mxu0 0
      %953 = vmatprep.subr.bf16.mxu0 0
      %954 = vmatpush1.bf16.msra.mxu0 0
      %955 = vmatprep.subr.bf16.mxu0 0
      %956 = vmatpush1.bf16.msra.mxu0 0
      %957 = vmatprep.subr.bf16.mxu0 0
      %958 = vmatpush1.bf16.msra.mxu0 0
      %959 = vmatprep.subr.bf16.mxu0 0
      %960 = vmatpush1.bf16.msra.mxu0 0
      %961 = vmatprep.subr.bf16.mxu0 0
      %962 = vmatpush1.bf16.msra.mxu0 0
      %963 = vmatprep.subr.bf16.mxu0 0
      %964 = vmatpush1.bf16.msra.mxu0 0
      %965 = vmatprep.subr.bf16.mxu0 0
      %966 = vmatpush1.bf16.msra.mxu0 0
      %967 = vmatprep.subr.bf16.mxu0 0
      %968 = vmatpush1.bf16.msra.mxu0 0
      %969 = vmatprep.subr.bf16.mxu0 0
      %970 = vmatpush1.bf16.msra.mxu0 0
      %971 = vmatprep.subr.bf16.mxu0 0
      %972 = vmatpush1.bf16.msra.mxu0 0
      %973 = vmatprep.mubr.bf16.mxu0 0
      %974 = vmatmul.mubr.bf16.gmra.mrb[0].mxu0 %v918
      %v975 = vpop.f32.mrb[0].mxu0
      %v976 = vadd.f32 0.0, %v975
      %v977 = vpop.f32.mrb[0].mxu0
      %v978 = vpop.f32.mrb[0].mxu0
      %v979 = vadd.f32 0.0, %v978
      %v980 = vpop.f32.mrb[0].mxu0
      %981 = vmatprep.mubr.bf16.mxu0 0
      %982 = vmatmul.mubr.bf16.gmra.mrb[0].mxu0 %v921
      %v983 = vpop.f32.mrb[0].mxu0
      %v984 = vadd.f32 0.0, %v983
      %v985 = vpop.f32.mrb[0].mxu0
      %v986 = vpop.f32.mrb[0].mxu0
      %v987 = vadd.f32 0.0, %v986
      %v988 = vpop.f32.mrb[0].mxu0
      %989 = vmatprep.mubr.bf16.mxu0 0
      %990 = vmatmul.mubr.bf16.gmra.mrb[0].mxu0 %v924
      %v991 = vpop.f32.mrb[0].mxu0
      %v992 = vadd.f32 0.0, %v991
      %v993 = vpop.f32.mrb[0].mxu0
      %v994 = vpop.f32.mrb[0].mxu0
      %v995 = vadd.f32 0.0, %v994
      %v996 = vpop.f32.mrb[0].mxu0
      %997 = vmatprep.mubr.bf16.mxu0 0
      %998 = vmatmul.mubr.bf16.gmra.mrb[0].mxu0 %v927
      %v999 = vpop.f32.mrb[0].mxu0
      %v1000 = vadd.f32 0.0, %v999
      %v1001 = vpop.f32.mrb[0].mxu0
      %v1002 = vpop.f32.mrb[0].mxu0
      %v1003 = vadd.f32 0.0, %v1002
      %v1004 = vpop.f32.mrb[0].mxu0
      %1005 = vmatprep.mubr.bf16.mxu0 0
      %1006 = vmatmul.mubr.bf16.gmra.mrb[0].mxu0 %v930
      %v1007 = vpop.f32.mrb[0].mxu0
      %v1008 = vadd.f32 0.0, %v1007
      %v1009 = vpop.f32.mrb[0].mxu0
      %v1010 = vpop.f32.mrb[0].mxu0
      %v1011 = vadd.f32 0.0, %v1010
      %v1012 = vpop.f32.mrb[0].mxu0
      %1013 = vmatprep.mubr.bf16.mxu0 0
      %1014 = vmatmul.mubr.bf16.gmra.mrb[0].mxu0 %v933
      %v1015 = vpop.f32.mrb[0].mxu0
      %v1016 = vadd.f32 0.0, %v1015
      %v1017 = vpop.f32.mrb[0].mxu0
      %v1018 = vpop.f32.mrb[0].mxu0
      %v1019 = vadd.f32 0.0, %v1018
      %v1020 = vpop.f32.mrb[0].mxu0
      %1021 = vmatprep.mubr.bf16.mxu0 0
      %1022 = vmatmul.mubr.bf16.gmra.mrb[0].mxu0 %v936
      %v1023 = vpop.f32.mrb[0].mxu0
      %v1024 = vadd.f32 0.0, %v1023
      %v1025 = vpop.f32.mrb[0].mxu0
      %v1026 = vpop.f32.mrb[0].mxu0
      %v1027 = vadd.f32 0.0, %v1026
      %v1028 = vpop.f32.mrb[0].mxu0
      %1029 = vmatprep.mubr.bf16.mxu0 0
      %1030 = vmatmul.mubr.bf16.gmra.mrb[0].mxu0 %v939
      %v1031 = vpop.f32.mrb[0].mxu0
      %v1032 = vadd.f32 0.0, %v1031
      %v1033 = vpop.f32.mrb[0].mxu0
      %v1034 = vpop.f32.mrb[0].mxu0
      %v1035 = vadd.f32 0.0, %v1034
      %v1036 = vpop.f32.mrb[0].mxu0
      %1037 = vdwg.mxu0
      %v1038 = vadd.f32 %v857, %v976
      %v1039 = vadd.f32 %v858, %v979
      %v1040 = vadd.f32 %v859, %v984
      %v1041 = vadd.f32 %v860, %v987
      %v1042 = vadd.f32 %v861, %v992
      %v1043 = vadd.f32 %v862, %v995
      %v1044 = vadd.f32 %v863, %v1000
      %v1045 = vadd.f32 %v864, %v1003
      %v1046 = vadd.f32 %v865, %v1008
      %v1047 = vadd.f32 %v866, %v1011
      %v1048 = vadd.f32 %v867, %v1016
      %v1049 = vadd.f32 %v868, %v1019
      %v1050 = vadd.f32 %v869, %v1024
      %v1051 = vadd.f32 %v870, %v1027
      %v1052 = vadd.f32 %v871, %v1032
      %v1053 = vadd.f32 %v872, %v1035
      %v1054 = vld [vmem:[%s875 + $0x1] sm:$0xff]
      %v1055 = vld [vmem:[%s875 + $0x9] sm:$0xff]
      %v1056 = vld [vmem:[%s875 + $0x19] sm:$0xff]
      %v1057 = vld [vmem:[%s875 + $0x21] sm:$0xff]
      %v1058 = vld [vmem:[%s875 + $0x31] sm:$0xff]
      %v1059 = vld [vmem:[%s875 + $0x39] sm:$0xff]
      %v1060 = vld [vmem:[%s875 + $0x49] sm:$0xff]
      %v1061 = vld [vmem:[%s875 + $0x51] sm:$0xff]
      %v1062 = vld [vmem:[%s875 + $0x61] sm:$0xff]
      %v1063 = vld [vmem:[%s875 + $0x69] sm:$0xff]
      %v1064 = vld [vmem:[%s875 + $0x79] sm:$0xff]
      %v1065 = vld [vmem:[%s875 + $0x81] sm:$0xff]
      %v1066 = vld [vmem:[%s875 + $0x91] sm:$0xff]
      %v1067 = vld [vmem:[%s875 + $0x99] sm:$0xff]
      %v1068 = vld [vmem:[%s875 + $0xa9] sm:$0xff]
      %v1069 = vld [vmem:[%s875 + $0xb1] sm:$0xff]
      %v1070 = vpack.c.bf16 %v1055, %v1054
      %v1071 = vpack.c.bf16 %v1057, %v1056
      %v1072 = vpack.c.bf16 %v1059, %v1058
      %v1073 = vpack.c.bf16 %v1061, %v1060
      %v1074 = vpack.c.bf16 %v1063, %v1062
      %v1075 = vpack.c.bf16 %v1065, %v1064
      %v1076 = vpack.c.bf16 %v1067, %v1066
      %v1077 = vpack.c.bf16 %v1069, %v1068
      %s1078 = scalar_lea.vmem %s1, 64
      %v1079 = vld [vmem:[%s1078] sm:$0xf]
      %v1080 = vld [vmem:[%s1078 + $0x4] sm:$0xf]
      %v1081 = vld [vmem:[%s1078 + $0x8] sm:$0xf]
      %v1082 = vld [vmem:[%s1078 + $0xc] sm:$0xf]
      %v1087 = vunpack.c.l.b16 %v1079
      %v1088 = vunpack.c.l.b16 %v1080
      %v1089 = vunpack.c.l.b16 %v1081
      %v1090 = vunpack.c.l.b16 %v1082
      %v1091 = vpack.c.b16 %v1088, %v1087
      %v1092 = vpack.c.b16 %v1090, %v1089
      %v1096 = vsel %vm440, %v1070, 0
      %v1099 = vsel %vm440, %v1071, 0
      %v1102 = vsel %vm440, %v1072, 0
      %v1105 = vsel %vm440, %v1073, 0
      %v1108 = vsel %vm440, %v1074, 0
      %v1111 = vsel %vm440, %v1075, 0
      %v1114 = vsel %vm440, %v1076, 0
      %v1117 = vsel %vm440, %v1077, 0
      %1119 = vmatprep.subr.bf16.mxu0 0
      %1120 = vmatpush1.bf16.msra.mxu0 %v1091
      %1121 = vmatprep.subr.bf16.mxu0 0
      %1122 = vmatpush1.bf16.msra.mxu0 %v1092
      %1123 = vmatprep.subr.bf16.mxu0 0
      %1124 = vmatpush1.bf16.msra.mxu0 0
      %1125 = vmatprep.subr.bf16.mxu0 0
      %1126 = vmatpush1.bf16.msra.mxu0 0
      %1127 = vmatprep.subr.bf16.mxu0 0
      %1128 = vmatpush1.bf16.msra.mxu0 0
      %1129 = vmatprep.subr.bf16.mxu0 0
      %1130 = vmatpush1.bf16.msra.mxu0 0
      %1131 = vmatprep.subr.bf16.mxu0 0
      %1132 = vmatpush1.bf16.msra.mxu0 0
      %1133 = vmatprep.subr.bf16.mxu0 0
      %1134 = vmatpush1.bf16.msra.mxu0 0
      %1135 = vmatprep.subr.bf16.mxu0 0
      %1136 = vmatpush1.bf16.msra.mxu0 0
      %1137 = vmatprep.subr.bf16.mxu0 0
      %1138 = vmatpush1.bf16.msra.mxu0 0
      %1139 = vmatprep.subr.bf16.mxu0 0
      %1140 = vmatpush1.bf16.msra.mxu0 0
      %1141 = vmatprep.subr.bf16.mxu0 0
      %1142 = vmatpush1.bf16.msra.mxu0 0
      %1143 = vmatprep.subr.bf16.mxu0 0
      %1144 = vmatpush1.bf16.msra.mxu0 0
      %1145 = vmatprep.subr.bf16.mxu0 0
      %1146 = vmatpush1.bf16.msra.mxu0 0
      %1147 = vmatprep.subr.bf16.mxu0 0
      %1148 = vmatpush1.bf16.msra.mxu0 0
      %1149 = vmatprep.subr.bf16.mxu0 0
      %1150 = vmatpush1.bf16.msra.mxu0 0
      %1151 = vmatprep.mubr.bf16.mxu0 0
      %1152 = vmatmul.mubr.bf16.gmra.mrb[0].mxu0 %v1096
      %v1153 = vpop.f32.mrb[0].mxu0
      %v1154 = vadd.f32 0.0, %v1153
      %v1155 = vpop.f32.mrb[0].mxu0
      %v1156 = vpop.f32.mrb[0].mxu0
      %v1157 = vadd.f32 0.0, %v1156
      %v1158 = vpop.f32.mrb[0].mxu0
      %1159 = vmatprep.mubr.bf16.mxu0 0
      %1160 = vmatmul.mubr.bf16.gmra.mrb[0].mxu0 %v1099
      %v1161 = vpop.f32.mrb[0].mxu0
      %v1162 = vadd.f32 0.0, %v1161
      %v1163 = vpop.f32.mrb[0].mxu0
      %v1164 = vpop.f32.mrb[0].mxu0
      %v1165 = vadd.f32 0.0, %v1164
      %v1166 = vpop.f32.mrb[0].mxu0
      %1167 = vmatprep.mubr.bf16.mxu0 0
      %1168 = vmatmul.mubr.bf16.gmra.mrb[0].mxu0 %v1102
      %v1169 = vpop.f32.mrb[0].mxu0
      %v1170 = vadd.f32 0.0, %v1169
      %v1171 = vpop.f32.mrb[0].mxu0
      %v1172 = vpop.f32.mrb[0].mxu0
      %v1173 = vadd.f32 0.0, %v1172
      %v1174 = vpop.f32.mrb[0].mxu0
      %1175 = vmatprep.mubr.bf16.mxu0 0
      %1176 = vmatmul.mubr.bf16.gmra.mrb[0].mxu0 %v1105
      %v1177 = vpop.f32.mrb[0].mxu0
      %v1178 = vadd.f32 0.0, %v1177
      %v1179 = vpop.f32.mrb[0].mxu0
      %v1180 = vpop.f32.mrb[0].mxu0
      %v1181 = vadd.f32 0.0, %v1180
      %v1182 = vpop.f32.mrb[0].mxu0
      %1183 = vmatprep.mubr.bf16.mxu0 0
      %1184 = vmatmul.mubr.bf16.gmra.mrb[0].mxu0 %v1108
      %v1185 = vpop.f32.mrb[0].mxu0
      %v1186 = vadd.f32 0.0, %v1185
      %v1187 = vpop.f32.mrb[0].mxu0
      %v1188 = vpop.f32.mrb[0].mxu0
      %v1189 = vadd.f32 0.0, %v1188
      %v1190 = vpop.f32.mrb[0].mxu0
      %1191 = vmatprep.mubr.bf16.mxu0 0
      %1192 = vmatmul.mubr.bf16.gmra.mrb[0].mxu0 %v1111
      %v1193 = vpop.f32.mrb[0].mxu0
      %v1194 = vadd.f32 0.0, %v1193
      %v1195 = vpop.f32.mrb[0].mxu0
      %v1196 = vpop.f32.mrb[0].mxu0
      %v1197 = vadd.f32 0.0, %v1196
      %v1198 = vpop.f32.mrb[0].mxu0
      %1199 = vmatprep.mubr.bf16.mxu0 0
      %1200 = vmatmul.mubr.bf16.gmra.mrb[0].mxu0 %v1114
      %v1201 = vpop.f32.mrb[0].mxu0
      %v1202 = vadd.f32 0.0, %v1201
      %v1203 = vpop.f32.mrb[0].mxu0
      %v1204 = vpop.f32.mrb[0].mxu0
      %v1205 = vadd.f32 0.0, %v1204
      %v1206 = vpop.f32.mrb[0].mxu0
      %1207 = vmatprep.mubr.bf16.mxu0 0
      %1208 = vmatmul.mubr.bf16.gmra.mrb[0].mxu0 %v1117
      %v1209 = vpop.f32.mrb[0].mxu0
      %v1210 = vadd.f32 0.0, %v1209
      %v1211 = vpop.f32.mrb[0].mxu0
      %v1212 = vpop.f32.mrb[0].mxu0
      %v1213 = vadd.f32 0.0, %v1212
      %v1214 = vpop.f32.mrb[0].mxu0
      %1215 = vdwg.mxu0
      %v1216 = vadd.f32 %v1038, %v1154
      %v1217 = vadd.f32 %v1039, %v1157
      %v1218 = vadd.f32 %v1040, %v1162
      %v1219 = vadd.f32 %v1041, %v1165
      %v1220 = vadd.f32 %v1042, %v1170
      %v1221 = vadd.f32 %v1043, %v1173
      %v1222 = vadd.f32 %v1044, %v1178
      %v1223 = vadd.f32 %v1045, %v1181
      %v1224 = vadd.f32 %v1046, %v1186
      %v1225 = vadd.f32 %v1047, %v1189
      %v1226 = vadd.f32 %v1048, %v1194
      %v1227 = vadd.f32 %v1049, %v1197
      %v1228 = vadd.f32 %v1050, %v1202
      %v1229 = vadd.f32 %v1051, %v1205
      %v1230 = vadd.f32 %v1052, %v1210
      %v1231 = vadd.f32 %v1053, %v1213
      %v1232 = vld [vmem:[%s875 + $0x2] sm:$0xff]
      %v1233 = vld [vmem:[%s875 + $0xa] sm:$0xff]
      %v1234 = vld [vmem:[%s875 + $0x1a] sm:$0xff]
      %v1235 = vld [vmem:[%s875 + $0x22] sm:$0xff]
      %v1236 = vld [vmem:[%s875 + $0x32] sm:$0xff]
      %v1237 = vld [vmem:[%s875 + $0x3a] sm:$0xff]
      %v1238 = vld [vmem:[%s875 + $0x4a] sm:$0xff]
      %v1239 = vld [vmem:[%s875 + $0x52] sm:$0xff]
      %v1240 = vld [vmem:[%s875 + $0x62] sm:$0xff]
      %v1241 = vld [vmem:[%s875 + $0x6a] sm:$0xff]
      %v1242 = vld [vmem:[%s875 + $0x7a] sm:$0xff]
      %v1243 = vld [vmem:[%s875 + $0x82] sm:$0xff]
      %v1244 = vld [vmem:[%s875 + $0x92] sm:$0xff]
      %v1245 = vld [vmem:[%s875 + $0x9a] sm:$0xff]
      %v1246 = vld [vmem:[%s875 + $0xaa] sm:$0xff]
      %v1247 = vld [vmem:[%s875 + $0xb2] sm:$0xff]
      %v1248 = vpack.c.bf16 %v1233, %v1232
      %v1249 = vpack.c.bf16 %v1235, %v1234
      %v1250 = vpack.c.bf16 %v1237, %v1236
      %v1251 = vpack.c.bf16 %v1239, %v1238
      %v1252 = vpack.c.bf16 %v1241, %v1240
      %v1253 = vpack.c.bf16 %v1243, %v1242
      %v1254 = vpack.c.bf16 %v1245, %v1244
      %v1255 = vpack.c.bf16 %v1247, %v1246
      %s1256 = scalar_lea.vmem %s1, 80
      %v1257 = vld [vmem:[%s1256] sm:$0xf]
      %v1258 = vld [vmem:[%s1256 + $0x4] sm:$0xf]
      %v1259 = vld [vmem:[%s1256 + $0x8] sm:$0xf]
      %v1260 = vld [vmem:[%s1256 + $0xc] sm:$0xf]
      %v1265 = vunpack.c.l.b16 %v1257
      %v1266 = vunpack.c.l.b16 %v1258
      %v1267 = vunpack.c.l.b16 %v1259
      %v1268 = vunpack.c.l.b16 %v1260
      %v1269 = vpack.c.b16 %v1266, %v1265
      %v1270 = vpack.c.b16 %v1268, %v1267
      %v1274 = vsel %vm440, %v1248, 0
      %v1277 = vsel %vm440, %v1249, 0
      %v1280 = vsel %vm440, %v1250, 0
      %v1283 = vsel %vm440, %v1251, 0
      %v1286 = vsel %vm440, %v1252, 0
      %v1289 = vsel %vm440, %v1253, 0
      %v1292 = vsel %vm440, %v1254, 0
      %v1295 = vsel %vm440, %v1255, 0
      %1297 = vmatprep.subr.bf16.mxu0 0
      %1298 = vmatpush1.bf16.msra.mxu0 %v1269
      %1299 = vmatprep.subr.bf16.mxu0 0
      %1300 = vmatpush1.bf16.msra.mxu0 %v1270
      %1301 = vmatprep.subr.bf16.mxu0 0
      %1302 = vmatpush1.bf16.msra.mxu0 0
      %1303 = vmatprep.subr.bf16.mxu0 0
      %1304 = vmatpush1.bf16.msra.mxu0 0
      %1305 = vmatprep.subr.bf16.mxu0 0
      %1306 = vmatpush1.bf16.msra.mxu0 0
      %1307 = vmatprep.subr.bf16.mxu0 0
      %1308 = vmatpush1.bf16.msra.mxu0 0
      %1309 = vmatprep.subr.bf16.mxu0 0
      %1310 = vmatpush1.bf16.msra.mxu0 0
      %1311 = vmatprep.subr.bf16.mxu0 0
      %1312 = vmatpush1.bf16.msra.mxu0 0
      %1313 = vmatprep.subr.bf16.mxu0 0
      %1314 = vmatpush1.bf16.msra.mxu0 0
      %1315 = vmatprep.subr.bf16.mxu0 0
      %1316 = vmatpush1.bf16.msra.mxu0 0
      %1317 = vmatprep.subr.bf16.mxu0 0
      %1318 = vmatpush1.bf16.msra.mxu0 0
      %1319 = vmatprep.subr.bf16.mxu0 0
      %1320 = vmatpush1.bf16.msra.mxu0 0
      %1321 = vmatprep.subr.bf16.mxu0 0
      %1322 = vmatpush1.bf16.msra.mxu0 0
      %1323 = vmatprep.subr.bf16.mxu0 0
      %1324 = vmatpush1.bf16.msra.mxu0 0
      %1325 = vmatprep.subr.bf16.mxu0 0
      %1326 = vmatpush1.bf16.msra.mxu0 0
      %1327 = vmatprep.subr.bf16.mxu0 0
      %1328 = vmatpush1.bf16.msra.mxu0 0
      %1329 = vmatprep.mubr.bf16.mxu0 0
      %1330 = vmatmul.mubr.bf16.gmra.mrb[0].mxu0 %v1274
      %v1331 = vpop.f32.mrb[0].mxu0
      %v1332 = vadd.f32 0.0, %v1331
      %v1333 = vpop.f32.mrb[0].mxu0
      %v1334 = vpop.f32.mrb[0].mxu0
      %v1335 = vadd.f32 0.0, %v1334
      %v1336 = vpop.f32.mrb[0].mxu0
      %1337 = vmatprep.mubr.bf16.mxu0 0
      %1338 = vmatmul.mubr.bf16.gmra.mrb[0].mxu0 %v1277
      %v1339 = vpop.f32.mrb[0].mxu0
      %v1340 = vadd.f32 0.0, %v1339
      %v1341 = vpop.f32.mrb[0].mxu0
      %v1342 = vpop.f32.mrb[0].mxu0
      %v1343 = vadd.f32 0.0, %v1342
      %v1344 = vpop.f32.mrb[0].mxu0
      %1345 = vmatprep.mubr.bf16.mxu0 0
      %1346 = vmatmul.mubr.bf16.gmra.mrb[0].mxu0 %v1280
      %v1347 = vpop.f32.mrb[0].mxu0
      %v1348 = vadd.f32 0.0, %v1347
      %v1349 = vpop.f32.mrb[0].mxu0
      %v1350 = vpop.f32.mrb[0].mxu0
      %v1351 = vadd.f32 0.0, %v1350
      %v1352 = vpop.f32.mrb[0].mxu0
      %1353 = vmatprep.mubr.bf16.mxu0 0
      %1354 = vmatmul.mubr.bf16.gmra.mrb[0].mxu0 %v1283
      %v1355 = vpop.f32.mrb[0].mxu0
      %v1356 = vadd.f32 0.0, %v1355
      %v1357 = vpop.f32.mrb[0].mxu0
      %v1358 = vpop.f32.mrb[0].mxu0
      %v1359 = vadd.f32 0.0, %v1358
      %v1360 = vpop.f32.mrb[0].mxu0
      %1361 = vmatprep.mubr.bf16.mxu0 0
      %1362 = vmatmul.mubr.bf16.gmra.mrb[0].mxu0 %v1286
      %v1363 = vpop.f32.mrb[0].mxu0
      %v1364 = vadd.f32 0.0, %v1363
      %v1365 = vpop.f32.mrb[0].mxu0
      %v1366 = vpop.f32.mrb[0].mxu0
      %v1367 = vadd.f32 0.0, %v1366
      %v1368 = vpop.f32.mrb[0].mxu0
      %1369 = vmatprep.mubr.bf16.mxu0 0
      %1370 = vmatmul.mubr.bf16.gmra.mrb[0].mxu0 %v1289
      %v1371 = vpop.f32.mrb[0].mxu0
      %v1372 = vadd.f32 0.0, %v1371
      %v1373 = vpop.f32.mrb[0].mxu0
      %v1374 = vpop.f32.mrb[0].mxu0
      %v1375 = vadd.f32 0.0, %v1374
      %v1376 = vpop.f32.mrb[0].mxu0
      %1377 = vmatprep.mubr.bf16.mxu0 0
      %1378 = vmatmul.mubr.bf16.gmra.mrb[0].mxu0 %v1292
      %v1379 = vpop.f32.mrb[0].mxu0
      %v1380 = vadd.f32 0.0, %v1379
      %v1381 = vpop.f32.mrb[0].mxu0
      %v1382 = vpop.f32.mrb[0].mxu0
      %v1383 = vadd.f32 0.0, %v1382
      %v1384 = vpop.f32.mrb[0].mxu0
      %1385 = vmatprep.mubr.bf16.mxu0 0
      %1386 = vmatmul.mubr.bf16.gmra.mrb[0].mxu0 %v1295
      %v1387 = vpop.f32.mrb[0].mxu0
      %v1388 = vadd.f32 0.0, %v1387
      %v1389 = vpop.f32.mrb[0].mxu0
      %v1390 = vpop.f32.mrb[0].mxu0
      %v1391 = vadd.f32 0.0, %v1390
      %v1392 = vpop.f32.mrb[0].mxu0
      %1393 = vdwg.mxu0
      %v1394 = vadd.f32 %v1216, %v1332
      %v1395 = vadd.f32 %v1217, %v1335
      %v1396 = vadd.f32 %v1218, %v1340
      %v1397 = vadd.f32 %v1219, %v1343
      %v1398 = vadd.f32 %v1220, %v1348
      %v1399 = vadd.f32 %v1221, %v1351
      %v1400 = vadd.f32 %v1222, %v1356
      %v1401 = vadd.f32 %v1223, %v1359
      %v1402 = vadd.f32 %v1224, %v1364
      %v1403 = vadd.f32 %v1225, %v1367
      %v1404 = vadd.f32 %v1226, %v1372
      %v1405 = vadd.f32 %v1227, %v1375
      %v1406 = vadd.f32 %v1228, %v1380
      %v1407 = vadd.f32 %v1229, %v1383
      %v1408 = vadd.f32 %v1230, %v1388
      %v1409 = vadd.f32 %v1231, %v1391
      %s1410 = sadd.s32 %s367, 3
      %s1411 = smul.u32 %s1410, 24
      %s1412 = scalar_lea.vmem [#allocation2], %s1411
      %v1413 = vld [vmem:[%s1412] sm:$0xff]
      %v1414 = vld [vmem:[%s1412 + $0x8] sm:$0xff]
      %v1415 = vld [vmem:[%s1412 + $0x18] sm:$0xff]
      %v1416 = vld [vmem:[%s1412 + $0x20] sm:$0xff]
      %v1417 = vld [vmem:[%s1412 + $0x30] sm:$0xff]
      %v1418 = vld [vmem:[%s1412 + $0x38] sm:$0xff]
      %v1419 = vld [vmem:[%s1412 + $0x48] sm:$0xff]
      %v1420 = vld [vmem:[%s1412 + $0x50] sm:$0xff]
      %v1421 = vld [vmem:[%s1412 + $0x60] sm:$0xff]
      %v1422 = vld [vmem:[%s1412 + $0x68] sm:$0xff]
      %v1423 = vld [vmem:[%s1412 + $0x78] sm:$0xff]
      %v1424 = vld [vmem:[%s1412 + $0x80] sm:$0xff]
      %v1425 = vld [vmem:[%s1412 + $0x90] sm:$0xff]
      %v1426 = vld [vmem:[%s1412 + $0x98] sm:$0xff]
      %v1427 = vld [vmem:[%s1412 + $0xa8] sm:$0xff]
      %v1428 = vld [vmem:[%s1412 + $0xb0] sm:$0xff]
      %v1429 = vpack.c.bf16 %v1414, %v1413
      %v1430 = vpack.c.bf16 %v1416, %v1415
      %v1431 = vpack.c.bf16 %v1418, %v1417
      %v1432 = vpack.c.bf16 %v1420, %v1419
      %v1433 = vpack.c.bf16 %v1422, %v1421
      %v1434 = vpack.c.bf16 %v1424, %v1423
      %v1435 = vpack.c.bf16 %v1426, %v1425
      %v1436 = vpack.c.bf16 %v1428, %v1427
      %s1437 = scalar_lea.vmem %s1, 96
      %v1438 = vld [vmem:[%s1437] sm:$0xf]
      %v1439 = vld [vmem:[%s1437 + $0x4] sm:$0xf]
      %v1440 = vld [vmem:[%s1437 + $0x8] sm:$0xf]
      %v1441 = vld [vmem:[%s1437 + $0xc] sm:$0xf]
      %v1446 = vunpack.c.l.b16 %v1438
      %v1447 = vunpack.c.l.b16 %v1439
      %v1448 = vunpack.c.l.b16 %v1440
      %v1449 = vunpack.c.l.b16 %v1441
      %v1450 = vpack.c.b16 %v1447, %v1446
      %v1451 = vpack.c.b16 %v1449, %v1448
      %v1455 = vsel %vm440, %v1429, 0
      %v1458 = vsel %vm440, %v1430, 0
      %v1461 = vsel %vm440, %v1431, 0
      %v1464 = vsel %vm440, %v1432, 0
      %v1467 = vsel %vm440, %v1433, 0
      %v1470 = vsel %vm440, %v1434, 0
      %v1473 = vsel %vm440, %v1435, 0
      %v1476 = vsel %vm440, %v1436, 0
      %1478 = vmatprep.subr.bf16.mxu0 0
      %1479 = vmatpush1.bf16.msra.mxu0 %v1450
      %1480 = vmatprep.subr.bf16.mxu0 0
      %1481 = vmatpush1.bf16.msra.mxu0 %v1451
      %1482 = vmatprep.subr.bf16.mxu0 0
      %1483 = vmatpush1.bf16.msra.mxu0 0
      %1484 = vmatprep.subr.bf16.mxu0 0
      %1485 = vmatpush1.bf16.msra.mxu0 0
      %1486 = vmatprep.subr.bf16.mxu0 0
      %1487 = vmatpush1.bf16.msra.mxu0 0
      %1488 = vmatprep.subr.bf16.mxu0 0
      %1489 = vmatpush1.bf16.msra.mxu0 0
      %1490 = vmatprep.subr.bf16.mxu0 0
      %1491 = vmatpush1.bf16.msra.mxu0 0
      %1492 = vmatprep.subr.bf16.mxu0 0
      %1493 = vmatpush1.bf16.msra.mxu0 0
      %1494 = vmatprep.subr.bf16.mxu0 0
      %1495 = vmatpush1.bf16.msra.mxu0 0
      %1496 = vmatprep.subr.bf16.mxu0 0
      %1497 = vmatpush1.bf16.msra.mxu0 0
      %1498 = vmatprep.subr.bf16.mxu0 0
      %1499 = vmatpush1.bf16.msra.mxu0 0
      %1500 = vmatprep.subr.bf16.mxu0 0
      %1501 = vmatpush1.bf16.msra.mxu0 0
      %1502 = vmatprep.subr.bf16.mxu0 0
      %1503 = vmatpush1.bf16.msra.mxu0 0
      %1504 = vmatprep.subr.bf16.mxu0 0
      %1505 = vmatpush1.bf16.msra.mxu0 0
      %1506 = vmatprep.subr.bf16.mxu0 0
      %1507 = vmatpush1.bf16.msra.mxu0 0
      %1508 = vmatprep.subr.bf16.mxu0 0
      %1509 = vmatpush1.bf16.msra.mxu0 0
      %1510 = vmatprep.mubr.bf16.mxu0 0
      %1511 = vmatmul.mubr.bf16.gmra.mrb[0].mxu0 %v1455
      %v1512 = vpop.f32.mrb[0].mxu0
      %v1513 = vadd.f32 0.0, %v1512
      %v1514 = vpop.f32.mrb[0].mxu0
      %v1515 = vpop.f32.mrb[0].mxu0
      %v1516 = vadd.f32 0.0, %v1515
      %v1517 = vpop.f32.mrb[0].mxu0
      %1518 = vmatprep.mubr.bf16.mxu0 0
      %1519 = vmatmul.mubr.bf16.gmra.mrb[0].mxu0 %v1458
      %v1520 = vpop.f32.mrb[0].mxu0
      %v1521 = vadd.f32 0.0, %v1520
      %v1522 = vpop.f32.mrb[0].mxu0
      %v1523 = vpop.f32.mrb[0].mxu0
      %v1524 = vadd.f32 0.0, %v1523
      %v1525 = vpop.f32.mrb[0].mxu0
      %1526 = vmatprep.mubr.bf16.mxu0 0
      %1527 = vmatmul.mubr.bf16.gmra.mrb[0].mxu0 %v1461
      %v1528 = vpop.f32.mrb[0].mxu0
      %v1529 = vadd.f32 0.0, %v1528
      %v1530 = vpop.f32.mrb[0].mxu0
      %v1531 = vpop.f32.mrb[0].mxu0
      %v1532 = vadd.f32 0.0, %v1531
      %v1533 = vpop.f32.mrb[0].mxu0
      %1534 = vmatprep.mubr.bf16.mxu0 0
      %1535 = vmatmul.mubr.bf16.gmra.mrb[0].mxu0 %v1464
      %v1536 = vpop.f32.mrb[0].mxu0
      %v1537 = vadd.f32 0.0, %v1536
      %v1538 = vpop.f32.mrb[0].mxu0
      %v1539 = vpop.f32.mrb[0].mxu0
      %v1540 = vadd.f32 0.0, %v1539
      %v1541 = vpop.f32.mrb[0].mxu0
      %1542 = vmatprep.mubr.bf16.mxu0 0
      %1543 = vmatmul.mubr.bf16.gmra.mrb[0].mxu0 %v1467
      %v1544 = vpop.f32.mrb[0].mxu0
      %v1545 = vadd.f32 0.0, %v1544
      %v1546 = vpop.f32.mrb[0].mxu0
      %v1547 = vpop.f32.mrb[0].mxu0
      %v1548 = vadd.f32 0.0, %v1547
      %v1549 = vpop.f32.mrb[0].mxu0
      %1550 = vmatprep.mubr.bf16.mxu0 0
      %1551 = vmatmul.mubr.bf16.gmra.mrb[0].mxu0 %v1470
      %v1552 = vpop.f32.mrb[0].mxu0
      %v1553 = vadd.f32 0.0, %v1552
      %v1554 = vpop.f32.mrb[0].mxu0
      %v1555 = vpop.f32.mrb[0].mxu0
      %v1556 = vadd.f32 0.0, %v1555
      %v1557 = vpop.f32.mrb[0].mxu0
      %1558 = vmatprep.mubr.bf16.mxu0 0
      %1559 = vmatmul.mubr.bf16.gmra.mrb[0].mxu0 %v1473
      %v1560 = vpop.f32.mrb[0].mxu0
      %v1561 = vadd.f32 0.0, %v1560
      %v1562 = vpop.f32.mrb[0].mxu0
      %v1563 = vpop.f32.mrb[0].mxu0
      %v1564 = vadd.f32 0.0, %v1563
      %v1565 = vpop.f32.mrb[0].mxu0
      %1566 = vmatprep.mubr.bf16.mxu0 0
      %1567 = vmatmul.mubr.bf16.gmra.mrb[0].mxu0 %v1476
      %v1568 = vpop.f32.mrb[0].mxu0
      %v1569 = vadd.f32 0.0, %v1568
      %v1570 = vpop.f32.mrb[0].mxu0
      %v1571 = vpop.f32.mrb[0].mxu0
      %v1572 = vadd.f32 0.0, %v1571
      %v1573 = vpop.f32.mrb[0].mxu0
      %1574 = vdwg.mxu0
      %v1575 = vadd.f32 %v1394, %v1513
      %v1576 = vadd.f32 %v1395, %v1516
      %v1577 = vadd.f32 %v1396, %v1521
      %v1578 = vadd.f32 %v1397, %v1524
      %v1579 = vadd.f32 %v1398, %v1529
      %v1580 = vadd.f32 %v1399, %v1532
      %v1581 = vadd.f32 %v1400, %v1537
      %v1582 = vadd.f32 %v1401, %v1540
      %v1583 = vadd.f32 %v1402, %v1545
      %v1584 = vadd.f32 %v1403, %v1548
      %v1585 = vadd.f32 %v1404, %v1553
      %v1586 = vadd.f32 %v1405, %v1556
      %v1587 = vadd.f32 %v1406, %v1561
      %v1588 = vadd.f32 %v1407, %v1564
      %v1589 = vadd.f32 %v1408, %v1569
      %v1590 = vadd.f32 %v1409, %v1572
      %v1591 = vld [vmem:[%s1412 + $0x1] sm:$0xff]
      %v1592 = vld [vmem:[%s1412 + $0x9] sm:$0xff]
      %v1593 = vld [vmem:[%s1412 + $0x19] sm:$0xff]
      %v1594 = vld [vmem:[%s1412 + $0x21] sm:$0xff]
      %v1595 = vld [vmem:[%s1412 + $0x31] sm:$0xff]
      %v1596 = vld [vmem:[%s1412 + $0x39] sm:$0xff]
      %v1597 = vld [vmem:[%s1412 + $0x49] sm:$0xff]
      %v1598 = vld [vmem:[%s1412 + $0x51] sm:$0xff]
      %v1599 = vld [vmem:[%s1412 + $0x61] sm:$0xff]
      %v1600 = vld [vmem:[%s1412 + $0x69] sm:$0xff]
      %v1601 = vld [vmem:[%s1412 + $0x79] sm:$0xff]
      %v1602 = vld [vmem:[%s1412 + $0x81] sm:$0xff]
      %v1603 = vld [vmem:[%s1412 + $0x91] sm:$0xff]
      %v1604 = vld [vmem:[%s1412 + $0x99] sm:$0xff]
      %v1605 = vld [vmem:[%s1412 + $0xa9] sm:$0xff]
      %v1606 = vld [vmem:[%s1412 + $0xb1] sm:$0xff]
      %v1607 = vpack.c.bf16 %v1592, %v1591
      %v1608 = vpack.c.bf16 %v1594, %v1593
      %v1609 = vpack.c.bf16 %v1596, %v1595
      %v1610 = vpack.c.bf16 %v1598, %v1597
      %v1611 = vpack.c.bf16 %v1600, %v1599
      %v1612 = vpack.c.bf16 %v1602, %v1601
      %v1613 = vpack.c.bf16 %v1604, %v1603
      %v1614 = vpack.c.bf16 %v1606, %v1605
      %s1615 = scalar_lea.vmem %s1, 112
      %v1616 = vld [vmem:[%s1615] sm:$0xf]
      %v1617 = vld [vmem:[%s1615 + $0x4] sm:$0xf]
      %v1618 = vld [vmem:[%s1615 + $0x8] sm:$0xf]
      %v1619 = vld [vmem:[%s1615 + $0xc] sm:$0xf]
      %v1624 = vunpack.c.l.b16 %v1616
      %v1625 = vunpack.c.l.b16 %v1617
      %v1626 = vunpack.c.l.b16 %v1618
      %v1627 = vunpack.c.l.b16 %v1619
      %v1628 = vpack.c.b16 %v1625, %v1624
      %v1629 = vpack.c.b16 %v1627, %v1626
      %v1633 = vsel %vm440, %v1607, 0
      %v1636 = vsel %vm440, %v1608, 0
      %v1639 = vsel %vm440, %v1609, 0
      %v1642 = vsel %vm440, %v1610, 0
      %v1645 = vsel %vm440, %v1611, 0
      %v1648 = vsel %vm440, %v1612, 0
      %v1651 = vsel %vm440, %v1613, 0
      %v1654 = vsel %vm440, %v1614, 0
      %1656 = vmatprep.subr.bf16.mxu0 0
      %1657 = vmatpush1.bf16.msra.mxu0 %v1628
      %1658 = vmatprep.subr.bf16.mxu0 0
      %1659 = vmatpush1.bf16.msra.mxu0 %v1629
      %1660 = vmatprep.subr.bf16.mxu0 0
      %1661 = vmatpush1.bf16.msra.mxu0 0
      %1662 = vmatprep.subr.bf16.mxu0 0
      %1663 = vmatpush1.bf16.msra.mxu0 0
      %1664 = vmatprep.subr.bf16.mxu0 0
      %1665 = vmatpush1.bf16.msra.mxu0 0
      %1666 = vmatprep.subr.bf16.mxu0 0
      %1667 = vmatpush1.bf16.msra.mxu0 0
      %1668 = vmatprep.subr.bf16.mxu0 0
      %1669 = vmatpush1.bf16.msra.mxu0 0
      %1670 = vmatprep.subr.bf16.mxu0 0
      %1671 = vmatpush1.bf16.msra.mxu0 0
      %1672 = vmatprep.subr.bf16.mxu0 0
      %1673 = vmatpush1.bf16.msra.mxu0 0
      %1674 = vmatprep.subr.bf16.mxu0 0
      %1675 = vmatpush1.bf16.msra.mxu0 0
      %1676 = vmatprep.subr.bf16.mxu0 0
      %1677 = vmatpush1.bf16.msra.mxu0 0
      %1678 = vmatprep.subr.bf16.mxu0 0
      %1679 = vmatpush1.bf16.msra.mxu0 0
      %1680 = vmatprep.subr.bf16.mxu0 0
      %1681 = vmatpush1.bf16.msra.mxu0 0
      %1682 = vmatprep.subr.bf16.mxu0 0
      %1683 = vmatpush1.bf16.msra.mxu0 0
      %1684 = vmatprep.subr.bf16.mxu0 0
      %1685 = vmatpush1.bf16.msra.mxu0 0
      %1686 = vmatprep.subr.bf16.mxu0 0
      %1687 = vmatpush1.bf16.msra.mxu0 0
      %1688 = vmatprep.mubr.bf16.mxu0 0
      %1689 = vmatmul.mubr.bf16.gmra.mrb[0].mxu0 %v1633
      %v1690 = vpop.f32.mrb[0].mxu0
      %v1691 = vadd.f32 0.0, %v1690
      %v1692 = vpop.f32.mrb[0].mxu0
      %v1693 = vpop.f32.mrb[0].mxu0
      %v1694 = vadd.f32 0.0, %v1693
      %v1695 = vpop.f32.mrb[0].mxu0
      %1696 = vmatprep.mubr.bf16.mxu0 0
      %1697 = vmatmul.mubr.bf16.gmra.mrb[0].mxu0 %v1636
      %v1698 = vpop.f32.mrb[0].mxu0
      %v1699 = vadd.f32 0.0, %v1698
      %v1700 = vpop.f32.mrb[0].mxu0
      %v1701 = vpop.f32.mrb[0].mxu0
      %v1702 = vadd.f32 0.0, %v1701
      %v1703 = vpop.f32.mrb[0].mxu0
      %1704 = vmatprep.mubr.bf16.mxu0 0
      %1705 = vmatmul.mubr.bf16.gmra.mrb[0].mxu0 %v1639
      %v1706 = vpop.f32.mrb[0].mxu0
      %v1707 = vadd.f32 0.0, %v1706
      %v1708 = vpop.f32.mrb[0].mxu0
      %v1709 = vpop.f32.mrb[0].mxu0
      %v1710 = vadd.f32 0.0, %v1709
      %v1711 = vpop.f32.mrb[0].mxu0
      %1712 = vmatprep.mubr.bf16.mxu0 0
      %1713 = vmatmul.mubr.bf16.gmra.mrb[0].mxu0 %v1642
      %v1714 = vpop.f32.mrb[0].mxu0
      %v1715 = vadd.f32 0.0, %v1714
      %v1716 = vpop.f32.mrb[0].mxu0
      %v1717 = vpop.f32.mrb[0].mxu0
      %v1718 = vadd.f32 0.0, %v1717
      %v1719 = vpop.f32.mrb[0].mxu0
      %1720 = vmatprep.mubr.bf16.mxu0 0
      %1721 = vmatmul.mubr.bf16.gmra.mrb[0].mxu0 %v1645
      %v1722 = vpop.f32.mrb[0].mxu0
      %v1723 = vadd.f32 0.0, %v1722
      %v1724 = vpop.f32.mrb[0].mxu0
      %v1725 = vpop.f32.mrb[0].mxu0
      %v1726 = vadd.f32 0.0, %v1725
      %v1727 = vpop.f32.mrb[0].mxu0
      %1728 = vmatprep.mubr.bf16.mxu0 0
      %1729 = vmatmul.mubr.bf16.gmra.mrb[0].mxu0 %v1648
      %v1730 = vpop.f32.mrb[0].mxu0
      %v1731 = vadd.f32 0.0, %v1730
      %v1732 = vpop.f32.mrb[0].mxu0
      %v1733 = vpop.f32.mrb[0].mxu0
      %v1734 = vadd.f32 0.0, %v1733
      %v1735 = vpop.f32.mrb[0].mxu0
      %1736 = vmatprep.mubr.bf16.mxu0 0
      %1737 = vmatmul.mubr.bf16.gmra.mrb[0].mxu0 %v1651
      %v1738 = vpop.f32.mrb[0].mxu0
      %v1739 = vadd.f32 0.0, %v1738
      %v1740 = vpop.f32.mrb[0].mxu0
      %v1741 = vpop.f32.mrb[0].mxu0
      %v1742 = vadd.f32 0.0, %v1741
      %v1743 = vpop.f32.mrb[0].mxu0
      %1744 = vmatprep.mubr.bf16.mxu0 0
      %1745 = vmatmul.mubr.bf16.gmra.mrb[0].mxu0 %v1654
      %v1746 = vpop.f32.mrb[0].mxu0
      %v1747 = vadd.f32 0.0, %v1746
      %v1748 = vpop.f32.mrb[0].mxu0
      %v1749 = vpop.f32.mrb[0].mxu0
      %v1750 = vadd.f32 0.0, %v1749
      %v1751 = vpop.f32.mrb[0].mxu0
      %1752 = vdwg.mxu0
      %v1753 = vadd.f32 %v1575, %v1691
      %v1754 = vadd.f32 %v1576, %v1694
      %v1755 = vadd.f32 %v1577, %v1699
      %v1756 = vadd.f32 %v1578, %v1702
      %v1757 = vadd.f32 %v1579, %v1707
      %v1758 = vadd.f32 %v1580, %v1710
      %v1759 = vadd.f32 %v1581, %v1715
      %v1760 = vadd.f32 %v1582, %v1718
      %v1761 = vadd.f32 %v1583, %v1723
      %v1762 = vadd.f32 %v1584, %v1726
      %v1763 = vadd.f32 %v1585, %v1731
      %v1764 = vadd.f32 %v1586, %v1734
      %v1765 = vadd.f32 %v1587, %v1739
      %v1766 = vadd.f32 %v1588, %v1742
      %v1767 = vadd.f32 %v1589, %v1747
      %v1768 = vadd.f32 %v1590, %v1750
      %v1769 = vld [vmem:[%s1412 + $0x2] sm:$0xff]
      %v1770 = vld [vmem:[%s1412 + $0xa] sm:$0xff]
      %v1771 = vld [vmem:[%s1412 + $0x1a] sm:$0xff]
      %v1772 = vld [vmem:[%s1412 + $0x22] sm:$0xff]
      %v1773 = vld [vmem:[%s1412 + $0x32] sm:$0xff]
      %v1774 = vld [vmem:[%s1412 + $0x3a] sm:$0xff]
      %v1775 = vld [vmem:[%s1412 + $0x4a] sm:$0xff]
      %v1776 = vld [vmem:[%s1412 + $0x52] sm:$0xff]
      %v1777 = vld [vmem:[%s1412 + $0x62] sm:$0xff]
      %v1778 = vld [vmem:[%s1412 + $0x6a] sm:$0xff]
      %v1779 = vld [vmem:[%s1412 + $0x7a] sm:$0xff]
      %v1780 = vld [vmem:[%s1412 + $0x82] sm:$0xff]
      %v1781 = vld [vmem:[%s1412 + $0x92] sm:$0xff]
      %v1782 = vld [vmem:[%s1412 + $0x9a] sm:$0xff]
      %v1783 = vld [vmem:[%s1412 + $0xaa] sm:$0xff]
      %v1784 = vld [vmem:[%s1412 + $0xb2] sm:$0xff]
      %v1785 = vpack.c.bf16 %v1770, %v1769
      %v1786 = vpack.c.bf16 %v1772, %v1771
      %v1787 = vpack.c.bf16 %v1774, %v1773
      %v1788 = vpack.c.bf16 %v1776, %v1775
      %v1789 = vpack.c.bf16 %v1778, %v1777
      %v1790 = vpack.c.bf16 %v1780, %v1779
      %v1791 = vpack.c.bf16 %v1782, %v1781
      %v1792 = vpack.c.bf16 %v1784, %v1783
      %s1793 = scalar_lea.vmem %s1, 128
      %v1794 = vld [vmem:[%s1793] sm:$0xf]
      %v1795 = vld [vmem:[%s1793 + $0x4] sm:$0xf]
      %v1796 = vld [vmem:[%s1793 + $0x8] sm:$0xf]
      %v1797 = vld [vmem:[%s1793 + $0xc] sm:$0xf]
      %v1802 = vunpack.c.l.b16 %v1794
      %v1803 = vunpack.c.l.b16 %v1795
      %v1804 = vunpack.c.l.b16 %v1796
      %v1805 = vunpack.c.l.b16 %v1797
      %v1806 = vpack.c.b16 %v1803, %v1802
      %v1807 = vpack.c.b16 %v1805, %v1804
      %v1811 = vsel %vm440, %v1785, 0
      %v1814 = vsel %vm440, %v1786, 0
      %v1817 = vsel %vm440, %v1787, 0
      %v1820 = vsel %vm440, %v1788, 0
      %v1823 = vsel %vm440, %v1789, 0
      %v1826 = vsel %vm440, %v1790, 0
      %v1829 = vsel %vm440, %v1791, 0
      %v1832 = vsel %vm440, %v1792, 0
      %1834 = vmatprep.subr.bf16.mxu0 0
      %1835 = vmatpush1.bf16.msra.mxu0 %v1806
      %1836 = vmatprep.subr.bf16.mxu0 0
      %1837 = vmatpush1.bf16.msra.mxu0 %v1807
      %1838 = vmatprep.subr.bf16.mxu0 0
      %1839 = vmatpush1.bf16.msra.mxu0 0
      %1840 = vmatprep.subr.bf16.mxu0 0
      %1841 = vmatpush1.bf16.msra.mxu0 0
      %1842 = vmatprep.subr.bf16.mxu0 0
      %1843 = vmatpush1.bf16.msra.mxu0 0
      %1844 = vmatprep.subr.bf16.mxu0 0
      %1845 = vmatpush1.bf16.msra.mxu0 0
      %1846 = vmatprep.subr.bf16.mxu0 0
      %1847 = vmatpush1.bf16.msra.mxu0 0
      %1848 = vmatprep.subr.bf16.mxu0 0
      %1849 = vmatpush1.bf16.msra.mxu0 0
      %1850 = vmatprep.subr.bf16.mxu0 0
      %1851 = vmatpush1.bf16.msra.mxu0 0
      %1852 = vmatprep.subr.bf16.mxu0 0
      %1853 = vmatpush1.bf16.msra.mxu0 0
      %1854 = vmatprep.subr.bf16.mxu0 0
      %1855 = vmatpush1.bf16.msra.mxu0 0
      %1856 = vmatprep.subr.bf16.mxu0 0
      %1857 = vmatpush1.bf16.msra.mxu0 0
      %1858 = vmatprep.subr.bf16.mxu0 0
      %1859 = vmatpush1.bf16.msra.mxu0 0
      %1860 = vmatprep.subr.bf16.mxu0 0
      %1861 = vmatpush1.bf16.msra.mxu0 0
      %1862 = vmatprep.subr.bf16.mxu0 0
      %1863 = vmatpush1.bf16.msra.mxu0 0
      %1864 = vmatprep.subr.bf16.mxu0 0
      %1865 = vmatpush1.bf16.msra.mxu0 0
      %1866 = vmatprep.mubr.bf16.mxu0 0
      %1867 = vmatmul.mubr.bf16.gmra.mrb[0].mxu0 %v1811
      %v1868 = vpop.f32.mrb[0].mxu0
      %v1869 = vadd.f32 0.0, %v1868
      %v1870 = vpop.f32.mrb[0].mxu0
      %v1871 = vpop.f32.mrb[0].mxu0
      %v1872 = vadd.f32 0.0, %v1871
      %v1873 = vpop.f32.mrb[0].mxu0
      %1874 = vmatprep.mubr.bf16.mxu0 0
      %1875 = vmatmul.mubr.bf16.gmra.mrb[0].mxu0 %v1814
      %v1876 = vpop.f32.mrb[0].mxu0
      %v1877 = vadd.f32 0.0, %v1876
      %v1878 = vpop.f32.mrb[0].mxu0
      %v1879 = vpop.f32.mrb[0].mxu0
      %v1880 = vadd.f32 0.0, %v1879
      %v1881 = vpop.f32.mrb[0].mxu0
      %1882 = vmatprep.mubr.bf16.mxu0 0
      %1883 = vmatmul.mubr.bf16.gmra.mrb[0].mxu0 %v1817
      %v1884 = vpop.f32.mrb[0].mxu0
      %v1885 = vadd.f32 0.0, %v1884
      %v1886 = vpop.f32.mrb[0].mxu0
      %v1887 = vpop.f32.mrb[0].mxu0
      %v1888 = vadd.f32 0.0, %v1887
      %v1889 = vpop.f32.mrb[0].mxu0
      %1890 = vmatprep.mubr.bf16.mxu0 0
      %1891 = vmatmul.mubr.bf16.gmra.mrb[0].mxu0 %v1820
      %v1892 = vpop.f32.mrb[0].mxu0
      %v1893 = vadd.f32 0.0, %v1892
      %v1894 = vpop.f32.mrb[0].mxu0
      %v1895 = vpop.f32.mrb[0].mxu0
      %v1896 = vadd.f32 0.0, %v1895
      %v1897 = vpop.f32.mrb[0].mxu0
      %1898 = vmatprep.mubr.bf16.mxu0 0
      %1899 = vmatmul.mubr.bf16.gmra.mrb[0].mxu0 %v1823
      %v1900 = vpop.f32.mrb[0].mxu0
      %v1901 = vadd.f32 0.0, %v1900
      %v1902 = vpop.f32.mrb[0].mxu0
      %v1903 = vpop.f32.mrb[0].mxu0
      %v1904 = vadd.f32 0.0, %v1903
      %v1905 = vpop.f32.mrb[0].mxu0
      %1906 = vmatprep.mubr.bf16.mxu0 0
      %1907 = vmatmul.mubr.bf16.gmra.mrb[0].mxu0 %v1826
      %v1908 = vpop.f32.mrb[0].mxu0
      %v1909 = vadd.f32 0.0, %v1908
      %v1910 = vpop.f32.mrb[0].mxu0
      %v1911 = vpop.f32.mrb[0].mxu0
      %v1912 = vadd.f32 0.0, %v1911
      %v1913 = vpop.f32.mrb[0].mxu0
      %1914 = vmatprep.mubr.bf16.mxu0 0
      %1915 = vmatmul.mubr.bf16.gmra.mrb[0].mxu0 %v1829
      %v1916 = vpop.f32.mrb[0].mxu0
      %v1917 = vadd.f32 0.0, %v1916
      %v1918 = vpop.f32.mrb[0].mxu0
      %v1919 = vpop.f32.mrb[0].mxu0
      %v1920 = vadd.f32 0.0, %v1919
      %v1921 = vpop.f32.mrb[0].mxu0
      %1922 = vmatprep.mubr.bf16.mxu0 0
      %1923 = vmatmul.mubr.bf16.gmra.mrb[0].mxu0 %v1832
      %v1924 = vpop.f32.mrb[0].mxu0
      %v1925 = vadd.f32 0.0, %v1924
      %v1926 = vpop.f32.mrb[0].mxu0
      %v1927 = vpop.f32.mrb[0].mxu0
      %v1928 = vadd.f32 0.0, %v1927
      %v1929 = vpop.f32.mrb[0].mxu0
      %1930 = vdwg.mxu0
      %v1931 = vadd.f32 %v1753, %v1869
      %v1932 = vadd.f32 %v1754, %v1872
      %v1933 = vadd.f32 %v1755, %v1877
      %v1934 = vadd.f32 %v1756, %v1880
      %v1935 = vadd.f32 %v1757, %v1885
      %v1936 = vadd.f32 %v1758, %v1888
      %v1937 = vadd.f32 %v1759, %v1893
      %v1938 = vadd.f32 %v1760, %v1896
      %v1939 = vadd.f32 %v1761, %v1901
      %v1940 = vadd.f32 %v1762, %v1904
      %v1941 = vadd.f32 %v1763, %v1909
      %v1942 = vadd.f32 %v1764, %v1912
      %v1943 = vadd.f32 %v1765, %v1917
      %v1944 = vadd.f32 %v1766, %v1920
      %v1945 = vadd.f32 %v1767, %v1925
      %v1946 = vadd.f32 %v1768, %v1928
      %v1947 = vld [vmem:[%s222] sm:$0xff]
      %v1948 = vld [vmem:[%s222 + $0x8] sm:$0xff]
      %v1949 = vld [vmem:[%s222 + $0x10] sm:$0xff]
      %v1950 = vld [vmem:[%s222 + $0x18] sm:$0xff]
      %v1951 = vld [vmem:[%s222 + $0x20] sm:$0xff]
      %v1952 = vld [vmem:[%s222 + $0x28] sm:$0xff]
      %v1953 = vld [vmem:[%s222 + $0x30] sm:$0xff]
      %v1954 = vld [vmem:[%s222 + $0x38] sm:$0xff]
      %v1955 = vld [vmem:[%s222 + $0x40] sm:$0xff]
      %v1956 = vld [vmem:[%s222 + $0x48] sm:$0xff]
      %v1957 = vld [vmem:[%s222 + $0x50] sm:$0xff]
      %v1958 = vld [vmem:[%s222 + $0x58] sm:$0xff]
      %v1959 = vld [vmem:[%s222 + $0x60] sm:$0xff]
      %v1960 = vld [vmem:[%s222 + $0x68] sm:$0xff]
      %v1961 = vld [vmem:[%s222 + $0x70] sm:$0xff]
      %v1962 = vld [vmem:[%s222 + $0x78] sm:$0xff]
      %v1963 = vadd.f32 %v1947, %v1931
      %v1964 = vadd.f32 %v1948, %v1932
      %v1965 = vadd.f32 %v1949, %v1933
      %v1966 = vadd.f32 %v1950, %v1934
      %v1967 = vadd.f32 %v1951, %v1935
      %v1968 = vadd.f32 %v1952, %v1936
      %v1969 = vadd.f32 %v1953, %v1937
      %v1970 = vadd.f32 %v1954, %v1938
      %v1971 = vadd.f32 %v1955, %v1939
      %v1972 = vadd.f32 %v1956, %v1940
      %v1973 = vadd.f32 %v1957, %v1941
      %v1974 = vadd.f32 %v1958, %v1942
      %v1975 = vadd.f32 %v1959, %v1943
      %v1976 = vadd.f32 %v1960, %v1944
      %v1977 = vadd.f32 %v1961, %v1945
      %v1978 = vadd.f32 %v1962, %v1946
      %1979 = vst.msk [vmem:[%s233] sm:$0xff] %vm440, %v1963
      %1980 = vst.msk [vmem:[%s233 + $0x8] sm:$0xff] %vm440, %v1964
      %1981 = vst.msk [vmem:[%s233 + $0x10] sm:$0xff] %vm440, %v1965
      %1982 = vst.msk [vmem:[%s233 + $0x18] sm:$0xff] %vm440, %v1966
      %1983 = vst.msk [vmem:[%s233 + $0x20] sm:$0xff] %vm440, %v1967
      %1984 = vst.msk [vmem:[%s233 + $0x28] sm:$0xff] %vm440, %v1968
      %1985 = vst.msk [vmem:[%s233 + $0x30] sm:$0xff] %vm440, %v1969
      %1986 = vst.msk [vmem:[%s233 + $0x38] sm:$0xff] %vm440, %v1970
      %1987 = vst.msk [vmem:[%s233 + $0x40] sm:$0xff] %vm440, %v1971
      %1988 = vst.msk [vmem:[%s233 + $0x48] sm:$0xff] %vm440, %v1972
      %1989 = vst.msk [vmem:[%s233 + $0x50] sm:$0xff] %vm440, %v1973
      %1990 = vst.msk [vmem:[%s233 + $0x58] sm:$0xff] %vm440, %v1974
      %1991 = vst.msk [vmem:[%s233 + $0x60] sm:$0xff] %vm440, %v1975
      %1992 = vst.msk [vmem:[%s233 + $0x68] sm:$0xff] %vm440, %v1976
      %1993 = vst.msk [vmem:[%s233 + $0x70] sm:$0xff] %vm440, %v1977
      %1994 = vst.msk [vmem:[%s233 + $0x78] sm:$0xff] %vm440, %v1978
      %s1995 = smul.u32 8, %s19
      %p1996 = scmp.lt.s32.totalorder %s18, 1
      %s1997 = scalar_select %p1996, %s18, 1
      %p1998 = scmp.lt.s32.totalorder %s1995, 15
      %s1999 = scalar_select %p1998, %s1995, 15
      %s2000 = smul.addr %s1999, 2
      %s2001 = smul.addr %s1997, 32
      %s2002 = sadd.s32 %s2000, %s2001
      %s2003 = smul.addr %s2002, 8
      %s2004 = scalar_lea.vmem %s3, %s2003
      // Predicated region
      $region37: #{resnet_forward.8} parent=31 // pred_check
        %p2005 = pneg %p121
      $region38: #{resnet_forward.8} parent=31 // pred_check_branch
        %2007 = sbr.rel (%p2005) target = $region40
      $region39: #{resnet_forward.8} parent=31 // pred_region
        %s2008 = smul.u32 8, %s19
      $region40: #{resnet_forward.8} parent=31 // pred_fallthru
        _
    $region32: #{resnet_forward.8} parent=5 // pred_fallthru
      _
    %p2009 = scmp.le.s32.totalorder 2, %s9
    // Predicated region
    $region41: #{resnet_forward.8} parent=5 // pred_check
      %p2010 = pneg %p2009
    $region42: #{resnet_forward.8} parent=5 // pred_check_branch
      %2012 = sbr.rel (%p2010) target = $region44
    $region43: #{resnet_forward.8} parent=5 // pred_region
      %s2013 = ssub.s32 %s9, 2
      // Predicated region
      $region45: #{resnet_forward.8} parent=43 // pred_check
        %p2014 = pneg %p127
      $region46: #{resnet_forward.8} parent=43 // pred_check_branch
        %2016 = sbr.rel (%p2014) target = $region48
      $region47: #{resnet_forward.8} parent=43 // pred_region
        %s2017 = smul.u32 8, %s21
        %p2018 = scmp.lt.s32.totalorder %s20, 1
        %s2019 = scalar_select %p2018, %s20, 1
        %p2020 = scmp.lt.s32.totalorder %s2017, 15
        %s2021 = scalar_select %p2020, %s2017, 15
        %s2022 = smul.addr %s2021, 2
        %s2023 = smul.addr %s2019, 32
        %s2024 = sadd.s32 %s2022, %s2023
        %s2025 = smul.addr %s2024, 8
        %s2026 = scalar_lea.vmem %s3, %s2025
      $region48: #{resnet_forward.8} parent=43 // pred_fallthru
        _
    $region44: #{resnet_forward.8} parent=5 // pred_fallthru
      _
  $region6: #{resnet_forward.8} parent=0 // loop_footer
    %s13 = sadd.s32 1, %s9
  $region7: #{resnet_forward.8} parent=0 // loop_footer_branch
    %8 = sbr.rel target = $region3
  $region8: #{resnet_forward.8} parent=0 // loop_exit
    _

// kernel: resnet_forward.6
$region0: #{resnet_forward.6}
  #allocation0 [shape = 'u32[]', space=smem, size = 0x4, offset = 0x4, fixed_abs, tag = 'smem constant byte address 0x4 - core index']
  #allocation1 [shape = 'u32[144,128]{1,0:T(1,128)}', space=vmem, size = 0x12000, scoped, tag = 'internal scratch']
  #allocation2 [shape = 'f32[20,18,32]{2,1,0:T(8,128)}', space=vmem, size = 0x3c000, scoped, tag = 'scratch operand']
  #allocation3 [shape = 'f32[10,18,32]{2,1,0:T(8,128)}', space=vmem, size = 0x1e000, scoped, tag = 'scratch operand']
  %s0 = inlined_call_operand.vmem [shape: f32[2,16,16,32], index: 0, kind: input, shape index: {}]
  %s1 = inlined_call_operand.vmem [shape: bf16[9,32,32], index: 1, kind: input, shape index: {}]
  %s2 = inlined_call_operand.vmem [shape: bf16[9,32,32], index: 2, kind: input, shape index: {}]
  %s3 = inlined_call_operand.vmem [shape: f32[2,16,16,32], index: 3, kind: output, shape index: {}]
  %s4 = sld [smem:[#allocation0]]
  $region57: #{resnet_forward.6} parent=0
    _
  %s6 = ssub.s32 1, %s4
  %s7 = scalar_select 0, %s6, %s4
  loop: start=0, step=1, limit=6
  $region2: #{resnet_forward.6} parent=0 // loop_pre_header
    _
  $region3: #{resnet_forward.6} parent=0 // loop_header
    %s9 = sphi 0, %s13
    %p10 = scmp.ge.s32.totalorder %s9, 6
    %s16 = sphi 0, %s28
    %s17 = sphi 0, %s24
    %s18 = sphi 0, %s16
    %s19 = sphi 0, %s17
    %s20 = sphi 0, %s18
    %s21 = sphi 0, %s19
    %s31 = sphi 0, %s33
    %s34 = sphi 0, %s31
    %s35 = sphi 0, %s34
    %s51 = sphi 0, %s35
    %s55 = sphi 0, %s55
    %s57 = sphi 0, %s55
    %s58 = sphi 0, %s57
    %s72 = sphi 0, %s58
    %s76 = sphi 0, %s76
    %s78 = sphi 0, %s76
    %s79 = sphi 0, %s78
    %s93 = sphi 0, %s79
    %s101 = sphi 0, %s103
    %s104 = sphi 0, %s101
    %s105 = sphi 0, %s104
    %s121 = sphi 0, %s105
  $region4: #{resnet_forward.6} parent=0 // loop_header_branch
    %12 = sbr.rel (%p10) target = $region8
  $region5: #{resnet_forward.6} parent=0 // loop_body
    %s14 = ssub.s32 %s9, 1
    %s15 = ssub.s32 %s9, 2
    %s22 = sadd.s32 1, %s17
    %p23 = scmp.ge.s32.totalorder %s22, 2
    %s24 = scalar_select %p23, 0, %s22
    %s25 = sadd.s32 1, %s16
    %s26 = scalar_select %p23, %s25, %s16
    %p27 = scmp.ge.s32.totalorder %s26, 2
    %s28 = scalar_select %p27, 0, %s26
    %s29 = ssub.s32 %s16, %s28
    %p30 = scmp.eq.s32.totalorder %s29, 0
    %s32 = sadd.s32 %s31, 1
    %s33 = scalar_select %p30, %s31, %s32
    %p36 = pneg %p30
    %p37 = scmp.eq.s32.totalorder %s9, 3
    %p38 = por %p36, %p37
    %p39 = scmp.ne.s32.totalorder %s31, %s34
    %p40 = scmp.eq.s32.totalorder %s9, 0
    %p41 = por %p39, %p40
    %p42 = scmp.ne.s32.totalorder %s31, %s34
    %p43 = scmp.eq.s32.totalorder %s14, 3
    %p44 = por %p42, %p43
    %p45 = scmp.ne.s32.totalorder %s34, %s35
    %p46 = scmp.eq.s32.totalorder %s14, 0
    %p47 = por %p45, %p46
    %p48 = scmp.ne.s32.totalorder %s34, %s35
    %p49 = scmp.eq.s32.totalorder %s15, 3
    %p50 = por %p48, %p49
    %p52 = scmp.ne.s32.totalorder %s35, %s51
    %p53 = scmp.eq.s32.totalorder %s15, 0
    %p54 = por %p52, %p53
    %s56 = sadd.s32 %s55, 1
    %p59 = scmp.eq.s32.totalorder %s9, 3
    %p60 = scmp.ne.s32.totalorder %s55, %s57
    %p61 = scmp.eq.s32.totalorder %s9, 0
    %p62 = por %p60, %p61
    %p63 = scmp.ne.s32.totalorder %s55, %s57
    %p64 = scmp.eq.s32.totalorder %s14, 3
    %p65 = por %p63, %p64
    %p66 = scmp.ne.s32.totalorder %s57, %s58
    %p67 = scmp.eq.s32.totalorder %s14, 0
    %p68 = por %p66, %p67
    %p69 = scmp.ne.s32.totalorder %s57, %s58
    %p70 = scmp.eq.s32.totalorder %s15, 3
    %p71 = por %p69, %p70
    %p73 = scmp.ne.s32.totalorder %s58, %s72
    %p74 = scmp.eq.s32.totalorder %s15, 0
    %p75 = por %p73, %p74
    %s77 = sadd.s32 %s76, 1
    %p80 = scmp.eq.s32.totalorder %s9, 3
    %p81 = scmp.ne.s32.totalorder %s76, %s78
    %p82 = scmp.eq.s32.totalorder %s9, 0
    %p83 = por %p81, %p82
    %p84 = scmp.ne.s32.totalorder %s76, %s78
    %p85 = scmp.eq.s32.totalorder %s14, 3
    %p86 = por %p84, %p85
    %p87 = scmp.ne.s32.totalorder %s78, %s79
    %p88 = scmp.eq.s32.totalorder %s14, 0
    %p89 = por %p87, %p88
    %p90 = scmp.ne.s32.totalorder %s78, %s79
    %p91 = scmp.eq.s32.totalorder %s15, 3
    %p92 = por %p90, %p91
    %p94 = scmp.ne.s32.totalorder %s79, %s93
    %p95 = scmp.eq.s32.totalorder %s15, 0
    %p96 = por %p94, %p95
    %s97 = ssub.s32 %s16, %s28
    %s98 = ssub.s32 %s17, %s24
    %s99 = sor.u32 %s97, %s98
    %p100 = scmp.eq.s32.totalorder %s99, 0
    %s102 = sadd.s32 %s101, 1
    %s103 = scalar_select %p100, %s101, %s102
    %p106 = pneg %p100
    %p107 = scmp.eq.s32.totalorder %s9, 3
    %p108 = por %p106, %p107
    %p109 = scmp.ne.s32.totalorder %s101, %s104
    %p110 = scmp.eq.s32.totalorder %s9, 0
    %p111 = por %p109, %p110
    %p112 = scmp.ne.s32.totalorder %s101, %s104
    %p113 = scmp.eq.s32.totalorder %s14, 3
    %p114 = por %p112, %p113
    %p115 = scmp.ne.s32.totalorder %s104, %s105
    %p116 = scmp.eq.s32.totalorder %s14, 0
    %p117 = por %p115, %p116
    %p118 = scmp.ne.s32.totalorder %s104, %s105
    %p119 = scmp.eq.s32.totalorder %s15, 3
    %p120 = por %p118, %p119
    %p122 = scmp.ne.s32.totalorder %s105, %s121
    %p123 = scmp.eq.s32.totalorder %s15, 0
    %p124 = por %p122, %p123
    %p125 = scmp.le.s32.totalorder 1, %s9
    %p126 = scmp.lt.s32.totalorder %s9, 5
    %p127 = pnand %p125, %p126
    %p128 = pneg %p127
    // Predicated region
    $region9: #{resnet_forward.6} parent=5 // pred_check
      _
    $region10: #{resnet_forward.6} parent=5 // pred_check_branch
      %130 = sbr.rel (%p127) target = $region12
    $region11: #{resnet_forward.6} parent=5 // pred_region
      %s131 = ssub.s32 %s9, 1
      // Predicated region
      $region13: #{resnet_forward.6} parent=11 // pred_check
        %p132 = pneg %p68
      $region14: #{resnet_forward.6} parent=11 // pred_check_branch
        %134 = sbr.rel (%p132) target = $region16
      $region15: #{resnet_forward.6} parent=11 // pred_region
        _
      $region16: #{resnet_forward.6} parent=11 // pred_fallthru
        _
      // Predicated region
      $region17: #{resnet_forward.6} parent=11 // pred_check
        %p135 = pneg %p89
      $region18: #{resnet_forward.6} parent=11 // pred_check_branch
        %137 = sbr.rel (%p135) target = $region20
      $region19: #{resnet_forward.6} parent=11 // pred_region
        _
      $region20: #{resnet_forward.6} parent=11 // pred_fallthru
        _
    $region12: #{resnet_forward.6} parent=5 // pred_fallthru
      _
    %p138 = scmp.lt.s32.totalorder %s9, 4
    // Predicated region
    $region21: #{resnet_forward.6} parent=5 // pred_check
      %p139 = pneg %p138
    $region22: #{resnet_forward.6} parent=5 // pred_check_branch
      %141 = sbr.rel (%p139) target = $region24
    $region23: #{resnet_forward.6} parent=5 // pred_region
      // Predicated region
      $region25: #{resnet_forward.6} parent=23 // pred_check
        %p142 = pneg %p41
      $region26: #{resnet_forward.6} parent=23 // pred_check_branch
        %144 = sbr.rel (%p142) target = $region28
      $region27: #{resnet_forward.6} parent=23 // pred_region
        %p145 = scmp.lt.s32.totalorder %s16, 1
        %s146 = scalar_select %p145, %s16, 1
        %s147 = smul.addr %s146, 32
        %s148 = smul.addr %s147, 8
        %s149 = scalar_lea.vmem %s0, %s148
      $region28: #{resnet_forward.6} parent=23 // pred_fallthru
        _
    $region24: #{resnet_forward.6} parent=5 // pred_fallthru
      _
    %p150 = scmp.le.s32.totalorder 1, %s9
    %p151 = scmp.lt.s32.totalorder %s9, 5
    %p152 = pnand %p150, %p151
    %p153 = pneg %p152
    // Predicated region
    $region29: #{resnet_forward.6} parent=5 // pred_check
      _
    $region30: #{resnet_forward.6} parent=5 // pred_check_branch
      %155 = sbr.rel (%p152) target = $region32
    $region31: #{resnet_forward.6} parent=5 // pred_region
      %s156 = ssub.s32 %s9, 1
      %p157 = scmp.lt.s32.totalorder %s18, 1
      %s158 = scalar_select %p157, %s18, 1
      %s159 = smul.addr %s158, 32
      %s160 = smul.addr %s159, 8
      %s161 = scalar_lea.vmem %s0, %s160
      %p162 = pneg %p47
      %p163 = pneg %p44
      %p164 = pneg %p68
      %p165 = pneg %p65
      %p166 = pneg %p89
      %p167 = pneg %p86
      %p168 = pneg %p117
      %p169 = pneg %p114
      %s170 = smul.u32 8, %s19
      %p171 = scmp.lt.s32.totalorder %s18, 1
      %s172 = scalar_select %p171, %s18, 1
      %p173 = scmp.lt.s32.totalorder %s170, 15
      %s174 = scalar_select %p173, %s170, 15
      %s175 = smul.addr %s174, 2
      %s176 = smul.addr %s172, 32
      %s177 = sadd.s32 %s175, %s176
      %s178 = smul.addr %s177, 8
      %s179 = scalar_lea.vmem %s3, %s178
      %p180 = scmp.lt.s32.totalorder %s18, 1
      %s181 = scalar_select %p180, %s18, 1
      %s182 = smul.addr %s181, 32
      %s183 = smul.addr %s182, 8
      %s184 = scalar_lea.vmem %s0, %s183
      %s185 = smul.u32 8, %s19
      %p186 = scmp.lt.s32.totalorder %s18, 1
      %s187 = scalar_select %p186, %s18, 1
      %p188 = scmp.lt.s32.totalorder %s185, 15
      %s189 = scalar_select %p188, %s185, 15
      %s190 = smul.addr %s189, 2
      %s191 = smul.addr %s187, 32
      %s192 = sadd.s32 %s190, %s191
      %s193 = smul.addr %s192, 8
      %s194 = scalar_lea.vmem %s3, %s193
      %s195 = smul.u32 8, %s19
      %p197 = scmp.eq.s32.totalorder %s19, 0
      // Predicated region
      $region33: #{resnet_forward.6} parent=31 // pred_check
        %p198 = pneg %p197
      $region34: #{resnet_forward.6} parent=31 // pred_check_branch
        %200 = sbr.rel (%p198) target = $region36
      $region35: #{resnet_forward.6} parent=31 // pred_region
        %vm201 = vcmask 261120
        %202 = vst.msk [vmem:[#allocation2] sm:$0xff] %vm201, 0.0
        %203 = vst.msk [vmem:[#allocation2 + $0x8] sm:$0xff] %vm201, 0.0
        %vm204 = vcmask 254976
        %205 = vst.msk [vmem:[#allocation2 + $0x10] sm:$0x3] %vm204, 0.0
        %206 = vst.msk [vmem:[#allocation2 + $0x18] sm:$0xff] %vm201, 0.0
        %207 = vst.msk [vmem:[#allocation2 + $0x20] sm:$0xff] %vm201, 0.0
        %208 = vst.msk [vmem:[#allocation2 + $0x28] sm:$0x3] %vm204, 0.0
        %209 = vst.msk [vmem:[#allocation2 + $0x30] sm:$0xff] %vm201, 0.0
        %210 = vst.msk [vmem:[#allocation2 + $0x38] sm:$0xff] %vm201, 0.0
        %211 = vst.msk [vmem:[#allocation2 + $0x40] sm:$0x3] %vm204, 0.0
        %212 = vst.msk [vmem:[#allocation2 + $0x48] sm:$0xff] %vm201, 0.0
        %213 = vst.msk [vmem:[#allocation2 + $0x50] sm:$0xff] %vm201, 0.0
        %214 = vst.msk [vmem:[#allocation2 + $0x58] sm:$0x3] %vm204, 0.0
        %215 = vst.msk [vmem:[#allocation2 + $0x60] sm:$0xff] %vm201, 0.0
        %216 = vst.msk [vmem:[#allocation2 + $0x68] sm:$0xff] %vm201, 0.0
        %217 = vst.msk [vmem:[#allocation2 + $0x70] sm:$0x3] %vm204, 0.0
        %218 = vst.msk [vmem:[#allocation2 + $0x78] sm:$0xff] %vm201, 0.0
        %219 = vst.msk [vmem:[#allocation2 + $0x80] sm:$0xff] %vm201, 0.0
        %220 = vst.msk [vmem:[#allocation2 + $0x88] sm:$0x3] %vm204, 0.0
        %221 = vst.msk [vmem:[#allocation2 + $0x90] sm:$0xff] %vm201, 0.0
        %222 = vst.msk [vmem:[#allocation2 + $0x98] sm:$0xff] %vm201, 0.0
        %223 = vst.msk [vmem:[#allocation2 + $0xa0] sm:$0x3] %vm204, 0.0
        %224 = vst.msk [vmem:[#allocation2 + $0xa8] sm:$0xff] %vm201, 0.0
        %225 = vst.msk [vmem:[#allocation2 + $0xb0] sm:$0xff] %vm201, 0.0
        %226 = vst.msk [vmem:[#allocation2 + $0xb8] sm:$0x3] %vm204, 0.0
        %227 = vst.msk [vmem:[#allocation2 + $0xc0] sm:$0xff] %vm201, 0.0
        %228 = vst.msk [vmem:[#allocation2 + $0xc8] sm:$0xff] %vm201, 0.0
        %229 = vst.msk [vmem:[#allocation2 + $0xd0] sm:$0x3] %vm204, 0.0
        %230 = vst.msk [vmem:[#allocation2 + $0xd8] sm:$0xff] %vm201, 0.0
        %231 = vst.msk [vmem:[#allocation2 + $0xe0] sm:$0xff] %vm201, 0.0
        %232 = vst.msk [vmem:[#allocation2 + $0xe8] sm:$0x3] %vm204, 0.0
        %233 = vst.msk [vmem:[#allocation2 + $0xf0] sm:$0xff] %vm201, 0.0
        %234 = vst.msk [vmem:[#allocation2 + $0xf8] sm:$0xff] %vm201, 0.0
        %235 = vst.msk [vmem:[#allocation2 + $0x100] sm:$0x3] %vm204, 0.0
        %236 = vst.msk [vmem:[#allocation2 + $0x108] sm:$0xff] %vm201, 0.0
        %237 = vst.msk [vmem:[#allocation2 + $0x110] sm:$0xff] %vm201, 0.0
        %238 = vst.msk [vmem:[#allocation2 + $0x118] sm:$0x3] %vm204, 0.0
        %239 = vst.msk [vmem:[#allocation2 + $0x120] sm:$0xff] %vm201, 0.0
        %240 = vst.msk [vmem:[#allocation2 + $0x128] sm:$0xff] %vm201, 0.0
        %241 = vst.msk [vmem:[#allocation2 + $0x130] sm:$0x3] %vm204, 0.0
        %242 = vst.msk [vmem:[#allocation2 + $0x138] sm:$0xff] %vm201, 0.0
        %243 = vst.msk [vmem:[#allocation2 + $0x140] sm:$0xff] %vm201, 0.0
        %244 = vst.msk [vmem:[#allocation2 + $0x148] sm:$0x3] %vm204, 0.0
        %245 = vst.msk [vmem:[#allocation2 + $0x150] sm:$0xff] %vm201, 0.0
        %246 = vst.msk [vmem:[#allocation2 + $0x158] sm:$0xff] %vm201, 0.0
        %247 = vst.msk [vmem:[#allocation2 + $0x160] sm:$0x3] %vm204, 0.0
        %248 = vst.msk [vmem:[#allocation2 + $0x168] sm:$0xff] %vm201, 0.0
        %249 = vst.msk [vmem:[#allocation2 + $0x170] sm:$0xff] %vm201, 0.0
        %250 = vst.msk [vmem:[#allocation2 + $0x178] sm:$0x3] %vm204, 0.0
        %251 = vst.msk [vmem:[#allocation2 + $0x180] sm:$0xff] %vm201, 0.0
        %252 = vst.msk [vmem:[#allocation2 + $0x188] sm:$0xff] %vm201, 0.0
        %253 = vst.msk [vmem:[#allocation2 + $0x190] sm:$0x3] %vm204, 0.0
        %254 = vst.msk [vmem:[#allocation2 + $0x198] sm:$0xff] %vm201, 0.0
        %255 = vst.msk [vmem:[#allocation2 + $0x1a0] sm:$0xff] %vm201, 0.0
        %256 = vst.msk [vmem:[#allocation2 + $0x1a8] sm:$0x3] %vm204, 0.0
        %257 = vst.msk [vmem:[#allocation2 + $0x1b0] sm:$0xff] %vm201, 0.0
        %258 = vst.msk [vmem:[#allocation2 + $0x1b8] sm:$0xff] %vm201, 0.0
        %259 = vst.msk [vmem:[#allocation2 + $0x1c0] sm:$0x3] %vm204, 0.0
        %260 = vst.msk [vmem:[#allocation2 + $0x1c8] sm:$0xff] %vm201, 0.0
        %261 = vst.msk [vmem:[#allocation2 + $0x1d0] sm:$0xff] %vm201, 0.0
        %262 = vst.msk [vmem:[#allocation2 + $0x1d8] sm:$0x3] %vm204, 0.0
        %v263 = vld [vmem:[%s184] sm:$0xff]
        %v264 = vld [vmem:[%s184 + $0x8] sm:$0xff]
        %v265 = vld [vmem:[%s184 + $0x10] sm:$0xff]
        %v266 = vld [vmem:[%s184 + $0x18] sm:$0xff]
        %v267 = vld [vmem:[%s184 + $0x20] sm:$0xff]
        %v268 = vld [vmem:[%s184 + $0x28] sm:$0xff]
        %v269 = vld [vmem:[%s184 + $0x30] sm:$0xff]
        %v270 = vld [vmem:[%s184 + $0x38] sm:$0xff]
        %v271 = vld [vmem:[%s184 + $0x40] sm:$0xff]
        %v272 = vld [vmem:[%s184 + $0x48] sm:$0xff]
        %v273 = vld [vmem:[%s184 + $0x50] sm:$0xff]
        %v274 = vld [vmem:[%s184 + $0x58] sm:$0xff]
        %v275 = vld [vmem:[%s184 + $0x60] sm:$0xff]
        %v276 = vld [vmem:[%s184 + $0x68] sm:$0xff]
        %v277 = vld [vmem:[%s184 + $0x70] sm:$0xff]
        %v278 = vld [vmem:[%s184 + $0x78] sm:$0xff]
        %v279 = vld [vmem:[%s184 + $0x80] sm:$0xff]
        %v280 = vld [vmem:[%s184 + $0x88] sm:$0xff]
        %v281 = vld [vmem:[%s184 + $0x90] sm:$0xff]
        %v282 = vld [vmem:[%s184 + $0x98] sm:$0xff]
        %v283 = vld [vmem:[%s184 + $0xa0] sm:$0xff]
        %v284 = vld [vmem:[%s184 + $0xa8] sm:$0xff]
        %v285 = vld [vmem:[%s184 + $0xb0] sm:$0xff]
        %v286 = vld [vmem:[%s184 + $0xb8] sm:$0xff]
        %v287 = vld [vmem:[%s184 + $0xc0] sm:$0xff]
        %v288 = vld [vmem:[%s184 + $0xc8] sm:$0xff]
        %v289 = vld [vmem:[%s184 + $0xd0] sm:$0xff]
        %v290 = vld [vmem:[%s184 + $0xd8] sm:$0xff]
        %v291 = vld [vmem:[%s184 + $0xe0] sm:$0xff]
        %v292 = vld [vmem:[%s184 + $0xe8] sm:$0xff]
        %v293 = vld [vmem:[%s184 + $0xf0] sm:$0xff]
        %v294 = vld [vmem:[%s184 + $0xf8] sm:$0xff]
        %s295 = scalar_lea.vmem [#allocation2], 48
        %296 = vst.msk [vmem:[%s295 + $0x1] sm:$0xff] %vm201, %v263
        %297 = vst.msk [vmem:[%s295 + $0x9] sm:$0xff] %vm201, %v264
        %298 = vst.msk [vmem:[%s295 + $0x19] sm:$0xff] %vm201, %v265
        %299 = vst.msk [vmem:[%s295 + $0x21] sm:$0xff] %vm201, %v266
        %300 = vst.msk [vmem:[%s295 + $0x31] sm:$0xff] %vm201, %v267
        %301 = vst.msk [vmem:[%s295 + $0x39] sm:$0xff] %vm201, %v268
        %302 = vst.msk [vmem:[%s295 + $0x49] sm:$0xff] %vm201, %v269
        %303 = vst.msk [vmem:[%s295 + $0x51] sm:$0xff] %vm201, %v270
        %304 = vst.msk [vmem:[%s295 + $0x61] sm:$0xff] %vm201, %v271
        %305 = vst.msk [vmem:[%s295 + $0x69] sm:$0xff] %vm201, %v272
        %306 = vst.msk [vmem:[%s295 + $0x79] sm:$0xff] %vm201, %v273
        %307 = vst.msk [vmem:[%s295 + $0x81] sm:$0xff] %vm201, %v274
        %308 = vst.msk [vmem:[%s295 + $0x91] sm:$0xff] %vm201, %v275
        %309 = vst.msk [vmem:[%s295 + $0x99] sm:$0xff] %vm201, %v276
        %310 = vst.msk [vmem:[%s295 + $0xa9] sm:$0xff] %vm201, %v277
        %311 = vst.msk [vmem:[%s295 + $0xb1] sm:$0xff] %vm201, %v278
        %312 = vst.msk [vmem:[%s295 + $0xc1] sm:$0xff] %vm201, %v279
        %313 = vst.msk [vmem:[%s295 + $0xc9] sm:$0xff] %vm201, %v280
        %314 = vst.msk [vmem:[%s295 + $0xd9] sm:$0xff] %vm201, %v281
        %315 = vst.msk [vmem:[%s295 + $0xe1] sm:$0xff] %vm201, %v282
        %316 = vst.msk [vmem:[%s295 + $0xf1] sm:$0xff] %vm201, %v283
        %317 = vst.msk [vmem:[%s295 + $0xf9] sm:$0xff] %vm201, %v284
        %318 = vst.msk [vmem:[%s295 + $0x109] sm:$0xff] %vm201, %v285
        %319 = vst.msk [vmem:[%s295 + $0x111] sm:$0xff] %vm201, %v286
        %320 = vst.msk [vmem:[%s295 + $0x121] sm:$0xff] %vm201, %v287
        %321 = vst.msk [vmem:[%s295 + $0x129] sm:$0xff] %vm201, %v288
        %322 = vst.msk [vmem:[%s295 + $0x139] sm:$0xff] %vm201, %v289
        %323 = vst.msk [vmem:[%s295 + $0x141] sm:$0xff] %vm201, %v290
        %324 = vst.msk [vmem:[%s295 + $0x151] sm:$0xff] %vm201, %v291
        %325 = vst.msk [vmem:[%s295 + $0x159] sm:$0xff] %vm201, %v292
        %326 = vst.msk [vmem:[%s295 + $0x169] sm:$0xff] %vm201, %v293
        %327 = vst.msk [vmem:[%s295 + $0x171] sm:$0xff] %vm201, %v294
        %328 = vst.msk [vmem:[#allocation3] sm:$0xff] %vm201, 0.0
        %329 = vst.msk [vmem:[#allocation3 + $0x8] sm:$0xff] %vm201, 0.0
        %330 = vst.msk [vmem:[#allocation3 + $0x10] sm:$0x3] %vm204, 0.0
        %331 = vst.msk [vmem:[#allocation3 + $0x18] sm:$0xff] %vm201, 0.0
        %332 = vst.msk [vmem:[#allocation3 + $0x20] sm:$0xff] %vm201, 0.0
        %333 = vst.msk [vmem:[#allocation3 + $0x28] sm:$0x3] %vm204, 0.0
        %334 = vst.msk [vmem:[#allocation3 + $0x30] sm:$0xff] %vm201, 0.0
        %335 = vst.msk [vmem:[#allocation3 + $0x38] sm:$0xff] %vm201, 0.0
        %336 = vst.msk [vmem:[#allocation3 + $0x40] sm:$0x3] %vm204, 0.0
        %337 = vst.msk [vmem:[#allocation3 + $0x48] sm:$0xff] %vm201, 0.0
        %338 = vst.msk [vmem:[#allocation3 + $0x50] sm:$0xff] %vm201, 0.0
        %339 = vst.msk [vmem:[#allocation3 + $0x58] sm:$0x3] %vm204, 0.0
        %340 = vst.msk [vmem:[#allocation3 + $0x60] sm:$0xff] %vm201, 0.0
        %341 = vst.msk [vmem:[#allocation3 + $0x68] sm:$0xff] %vm201, 0.0
        %342 = vst.msk [vmem:[#allocation3 + $0x70] sm:$0x3] %vm204, 0.0
        %343 = vst.msk [vmem:[#allocation3 + $0x78] sm:$0xff] %vm201, 0.0
        %344 = vst.msk [vmem:[#allocation3 + $0x80] sm:$0xff] %vm201, 0.0
        %345 = vst.msk [vmem:[#allocation3 + $0x88] sm:$0x3] %vm204, 0.0
        %346 = vst.msk [vmem:[#allocation3 + $0x90] sm:$0xff] %vm201, 0.0
        %347 = vst.msk [vmem:[#allocation3 + $0x98] sm:$0xff] %vm201, 0.0
        %348 = vst.msk [vmem:[#allocation3 + $0xa0] sm:$0x3] %vm204, 0.0
        %349 = vst.msk [vmem:[#allocation3 + $0xa8] sm:$0xff] %vm201, 0.0
        %350 = vst.msk [vmem:[#allocation3 + $0xb0] sm:$0xff] %vm201, 0.0
        %351 = vst.msk [vmem:[#allocation3 + $0xb8] sm:$0x3] %vm204, 0.0
        %352 = vst.msk [vmem:[#allocation3 + $0xc0] sm:$0xff] %vm201, 0.0
        %353 = vst.msk [vmem:[#allocation3 + $0xc8] sm:$0xff] %vm201, 0.0
        %354 = vst.msk [vmem:[#allocation3 + $0xd0] sm:$0x3] %vm204, 0.0
        %355 = vst.msk [vmem:[#allocation3 + $0xd8] sm:$0xff] %vm201, 0.0
        %356 = vst.msk [vmem:[#allocation3 + $0xe0] sm:$0xff] %vm201, 0.0
        %357 = vst.msk [vmem:[#allocation3 + $0xe8] sm:$0x3] %vm204, 0.0
      $region36: #{resnet_forward.6} parent=31 // pred_fallthru
        _
      %s358 = smul.u32 %s19, 8
      %s359 = smul.u32 %s358, 24
      %s360 = scalar_lea.vmem [#allocation2], %s359
      %v361 = vld [vmem:[%s360] sm:$0xff]
      %v362 = vld [vmem:[%s360 + $0x8] sm:$0xff]
      %v363 = vld [vmem:[%s360 + $0x18] sm:$0xff]
      %v364 = vld [vmem:[%s360 + $0x20] sm:$0xff]
      %v365 = vld [vmem:[%s360 + $0x30] sm:$0xff]
      %v366 = vld [vmem:[%s360 + $0x38] sm:$0xff]
      %v367 = vld [vmem:[%s360 + $0x48] sm:$0xff]
      %v368 = vld [vmem:[%s360 + $0x50] sm:$0xff]
      %v369 = vld [vmem:[%s360 + $0x60] sm:$0xff]
      %v370 = vld [vmem:[%s360 + $0x68] sm:$0xff]
      %v371 = vld [vmem:[%s360 + $0x78] sm:$0xff]
      %v372 = vld [vmem:[%s360 + $0x80] sm:$0xff]
      %v373 = vld [vmem:[%s360 + $0x90] sm:$0xff]
      %v374 = vld [vmem:[%s360 + $0x98] sm:$0xff]
      %v375 = vld [vmem:[%s360 + $0xa8] sm:$0xff]
      %v376 = vld [vmem:[%s360 + $0xb0] sm:$0xff]
      %v377 = vld [vmem:[%s360 + $0xc0] sm:$0xff]
      %v378 = vld [vmem:[%s360 + $0xc8] sm:$0xff]
      %v379 = vld [vmem:[%s360 + $0xd8] sm:$0xff]
      %v380 = vld [vmem:[%s360 + $0xe0] sm:$0xff]
      %v381 = vpack.c.bf16 %v362, %v361
      %v382 = vpack.c.bf16 %v364, %v363
      %v383 = vpack.c.bf16 %v366, %v365
      %v384 = vpack.c.bf16 %v368, %v367
      %v385 = vpack.c.bf16 %v370, %v369
      %v386 = vpack.c.bf16 %v372, %v371
      %v387 = vpack.c.bf16 %v374, %v373
      %v388 = vpack.c.bf16 %v376, %v375
      %v389 = vpack.c.bf16 %v378, %v377
      %v390 = vpack.c.bf16 %v380, %v379
      %v391 = vld [vmem:[%s1] sm:$0xf]
      %v392 = vld [vmem:[%s1 + $0x4] sm:$0xf]
      %v393 = vld [vmem:[%s1 + $0x8] sm:$0xf]
      %v394 = vld [vmem:[%s1 + $0xc] sm:$0xf]
      %v395 = vld [vmem:[%s360 + $0x1] sm:$0xff]
      %v396 = vld [vmem:[%s360 + $0x9] sm:$0xff]
      %v397 = vld [vmem:[%s360 + $0x19] sm:$0xff]
      %v398 = vld [vmem:[%s360 + $0x21] sm:$0xff]
      %v399 = vld [vmem:[%s360 + $0x31] sm:$0xff]
      %v400 = vld [vmem:[%s360 + $0x39] sm:$0xff]
      %v401 = vld [vmem:[%s360 + $0x49] sm:$0xff]
      %v402 = vld [vmem:[%s360 + $0x51] sm:$0xff]
      %v403 = vld [vmem:[%s360 + $0x61] sm:$0xff]
      %v404 = vld [vmem:[%s360 + $0x69] sm:$0xff]
      %v405 = vld [vmem:[%s360 + $0x79] sm:$0xff]
      %v406 = vld [vmem:[%s360 + $0x81] sm:$0xff]
      %v407 = vld [vmem:[%s360 + $0x91] sm:$0xff]
      %v408 = vld [vmem:[%s360 + $0x99] sm:$0xff]
      %v409 = vld [vmem:[%s360 + $0xa9] sm:$0xff]
      %v410 = vld [vmem:[%s360 + $0xb1] sm:$0xff]
      %v411 = vld [vmem:[%s360 + $0xc1] sm:$0xff]
      %v412 = vld [vmem:[%s360 + $0xc9] sm:$0xff]
      %v413 = vld [vmem:[%s360 + $0xd9] sm:$0xff]
      %v414 = vld [vmem:[%s360 + $0xe1] sm:$0xff]
      %v415 = vpack.c.bf16 %v396, %v395
      %v416 = vpack.c.bf16 %v398, %v397
      %v417 = vpack.c.bf16 %v400, %v399
      %v418 = vpack.c.bf16 %v402, %v401
      %v419 = vpack.c.bf16 %v404, %v403
      %v420 = vpack.c.bf16 %v406, %v405
      %v421 = vpack.c.bf16 %v408, %v407
      %v422 = vpack.c.bf16 %v410, %v409
      %v423 = vpack.c.bf16 %v412, %v411
      %v424 = vpack.c.bf16 %v414, %v413
      %s425 = scalar_lea.vmem %s1, 16
      %v426 = vld [vmem:[%s425] sm:$0xf]
      %v427 = vld [vmem:[%s425 + $0x4] sm:$0xf]
      %v428 = vld [vmem:[%s425 + $0x8] sm:$0xf]
      %v429 = vld [vmem:[%s425 + $0xc] sm:$0xf]
      %v434 = vunpack.c.l.b16 %v426
      %v435 = vunpack.c.l.b16 %v427
      %v436 = vunpack.c.l.b16 %v428
      %v437 = vunpack.c.l.b16 %v429
      %v438 = vpack.c.b16 %v435, %v434
      %v439 = vpack.c.b16 %v437, %v436
      %vm442 = vcmask 261120
      %v444 = vsel %vm442, %v415, 0
      %v447 = vsel %vm442, %v416, 0
      %v450 = vsel %vm442, %v417, 0
      %v453 = vsel %vm442, %v418, 0
      %v456 = vsel %vm442, %v419, 0
      %v459 = vsel %vm442, %v420, 0
      %v462 = vsel %vm442, %v421, 0
      %v465 = vsel %vm442, %v422, 0
      %v468 = vsel %vm442, %v423, 0
      %v471 = vsel %vm442, %v424, 0
      %473 = vmatprep.subr.bf16.mxu0 0
      %474 = vmatpush1.bf16.msra.mxu0 %v438
      %475 = vmatprep.subr.bf16.mxu0 0
      %476 = vmatpush1.bf16.msra.mxu0 %v439
      %477 = vmatprep.subr.bf16.mxu0 0
      %478 = vmatpush1.bf16.msra.mxu0 0
      %479 = vmatprep.subr.bf16.mxu0 0
      %480 = vmatpush1.bf16.msra.mxu0 0
      %481 = vmatprep.subr.bf16.mxu0 0
      %482 = vmatpush1.bf16.msra.mxu0 0
      %483 = vmatprep.subr.bf16.mxu0 0
      %484 = vmatpush1.bf16.msra.mxu0 0
      %485 = vmatprep.subr.bf16.mxu0 0
      %486 = vmatpush1.bf16.msra.mxu0 0
      %487 = vmatprep.subr.bf16.mxu0 0
      %488 = vmatpush1.bf16.msra.mxu0 0
      %489 = vmatprep.subr.bf16.mxu0 0
      %490 = vmatpush1.bf16.msra.mxu0 0
      %491 = vmatprep.subr.bf16.mxu0 0
      %492 = vmatpush1.bf16.msra.mxu0 0
      %493 = vmatprep.subr.bf16.mxu0 0
      %494 = vmatpush1.bf16.msra.mxu0 0
      %495 = vmatprep.subr.bf16.mxu0 0
      %496 = vmatpush1.bf16.msra.mxu0 0
      %497 = vmatprep.subr.bf16.mxu0 0
      %498 = vmatpush1.bf16.msra.mxu0 0
      %499 = vmatprep.subr.bf16.mxu0 0
      %500 = vmatpush1.bf16.msra.mxu0 0
      %501 = vmatprep.subr.bf16.mxu0 0
      %502 = vmatpush1.bf16.msra.mxu0 0
      %503 = vmatprep.subr.bf16.mxu0 0
      %504 = vmatpush1.bf16.msra.mxu0 0
      %505 = vmatprep.mubr.bf16.mxu0 0
      %506 = vmatmul.mubr.bf16.gmra.mrb[0].mxu0 %v444
      %v507 = vpop.f32.mrb[0].mxu0
      %v508 = vadd.f32 0.0, %v507
      %v509 = vpop.f32.mrb[0].mxu0
      %v510 = vpop.f32.mrb[0].mxu0
      %v511 = vadd.f32 0.0, %v510
      %v512 = vpop.f32.mrb[0].mxu0
      %513 = vmatprep.mubr.bf16.mxu0 0
      %514 = vmatmul.mubr.bf16.gmra.mrb[0].mxu0 %v447
      %v515 = vpop.f32.mrb[0].mxu0
      %v516 = vadd.f32 0.0, %v515
      %v517 = vpop.f32.mrb[0].mxu0
      %v518 = vpop.f32.mrb[0].mxu0
      %v519 = vadd.f32 0.0, %v518
      %v520 = vpop.f32.mrb[0].mxu0
      %521 = vmatprep.mubr.bf16.mxu0 0
      %522 = vmatmul.mubr.bf16.gmra.mrb[0].mxu0 %v450
      %v523 = vpop.f32.mrb[0].mxu0
      %v524 = vadd.f32 0.0, %v523
      %v525 = vpop.f32.mrb[0].mxu0
      %v526 = vpop.f32.mrb[0].mxu0
      %v527 = vadd.f32 0.0, %v526
      %v528 = vpop.f32.mrb[0].mxu0
      %529 = vmatprep.mubr.bf16.mxu0 0
      %530 = vmatmul.mubr.bf16.gmra.mrb[0].mxu0 %v453
      %v531 = vpop.f32.mrb[0].mxu0
      %v532 = vadd.f32 0.0, %v531
      %v533 = vpop.f32.mrb[0].mxu0
      %v534 = vpop.f32.mrb[0].mxu0
      %v535 = vadd.f32 0.0, %v534
      %v536 = vpop.f32.mrb[0].mxu0
      %537 = vmatprep.mubr.bf16.mxu0 0
      %538 = vmatmul.mubr.bf16.gmra.mrb[0].mxu0 %v456
      %v539 = vpop.f32.mrb[0].mxu0
      %v540 = vadd.f32 0.0, %v539
      %v541 = vpop.f32.mrb[0].mxu0
      %v542 = vpop.f32.mrb[0].mxu0
      %v543 = vadd.f32 0.0, %v542
      %v544 = vpop.f32.mrb[0].mxu0
      %545 = vmatprep.mubr.bf16.mxu0 0
      %546 = vmatmul.mubr.bf16.gmra.mrb[0].mxu0 %v459
      %v547 = vpop.f32.mrb[0].mxu0
      %v548 = vadd.f32 0.0, %v547
      %v549 = vpop.f32.mrb[0].mxu0
      %v550 = vpop.f32.mrb[0].mxu0
      %v551 = vadd.f32 0.0, %v550
      %v552 = vpop.f32.mrb[0].mxu0
      %553 = vmatprep.mubr.bf16.mxu0 0
      %554 = vmatmul.mubr.bf16.gmra.mrb[0].mxu0 %v462
      %v555 = vpop.f32.mrb[0].mxu0
      %v556 = vadd.f32 0.0, %v555
      %v557 = vpop.f32.mrb[0].mxu0
      %v558 = vpop.f32.mrb[0].mxu0
      %v559 = vadd.f32 0.0, %v558
      %v560 = vpop.f32.mrb[0].mxu0
      %561 = vmatprep.mubr.bf16.mxu0 0
      %562 = vmatmul.mubr.bf16.gmra.mrb[0].mxu0 %v465
      %v563 = vpop.f32.mrb[0].mxu0
      %v564 = vadd.f32 0.0, %v563
      %v565 = vpop.f32.mrb[0].mxu0
      %v566 = vpop.f32.mrb[0].mxu0
      %v567 = vadd.f32 0.0, %v566
      %v568 = vpop.f32.mrb[0].mxu0
      %569 = vmatprep.mubr.bf16.mxu0 0
      %570 = vmatmul.mubr.bf16.gmra.mrb[0].mxu0 %v468
      %v571 = vpop.f32.mrb[0].mxu0
      %v572 = vadd.f32 0.0, %v571
      %v573 = vpop.f32.mrb[0].mxu0
      %v574 = vpop.f32.mrb[0].mxu0
      %v575 = vadd.f32 0.0, %v574
      %v576 = vpop.f32.mrb[0].mxu0
      %577 = vmatprep.mubr.bf16.mxu0 0
      %578 = vmatmul.mubr.bf16.gmra.mrb[0].mxu0 %v471
      %v579 = vpop.f32.mrb[0].mxu0
      %v580 = vadd.f32 0.0, %v579
      %v581 = vpop.f32.mrb[0].mxu0
      %v582 = vpop.f32.mrb[0].mxu0
      %v583 = vadd.f32 0.0, %v582
      %v584 = vpop.f32.mrb[0].mxu0
      %585 = vdwg.mxu0
      %v590 = vunpack.c.l.b16 %v391
      %v591 = vunpack.c.l.b16 %v392
      %v592 = vunpack.c.l.b16 %v393
      %v593 = vunpack.c.l.b16 %v394
      %v594 = vpack.c.b16 %v591, %v590
      %v595 = vpack.c.b16 %v593, %v592
      %v599 = vsel %vm442, %v381, 0
      %v602 = vsel %vm442, %v382, 0
      %v605 = vsel %vm442, %v383, 0
      %v608 = vsel %vm442, %v384, 0
      %v611 = vsel %vm442, %v385, 0
      %v614 = vsel %vm442, %v386, 0
      %v617 = vsel %vm442, %v387, 0
      %v620 = vsel %vm442, %v388, 0
      %v623 = vsel %vm442, %v389, 0
      %v626 = vsel %vm442, %v390, 0
      %628 = vmatprep.subr.bf16.mxu0 0
      %629 = vmatpush1.bf16.msra.mxu0 %v594
      %630 = vmatprep.subr.bf16.mxu0 0
      %631 = vmatpush1.bf16.msra.mxu0 %v595
      %632 = vmatprep.subr.bf16.mxu0 0
      %633 = vmatpush1.bf16.msra.mxu0 0
      %634 = vmatprep.subr.bf16.mxu0 0
      %635 = vmatpush1.bf16.msra.mxu0 0
      %636 = vmatprep.subr.bf16.mxu0 0
      %637 = vmatpush1.bf16.msra.mxu0 0
      %638 = vmatprep.subr.bf16.mxu0 0
      %639 = vmatpush1.bf16.msra.mxu0 0
      %640 = vmatprep.subr.bf16.mxu0 0
      %641 = vmatpush1.bf16.msra.mxu0 0
      %642 = vmatprep.subr.bf16.mxu0 0
      %643 = vmatpush1.bf16.msra.mxu0 0
      %644 = vmatprep.subr.bf16.mxu0 0
      %645 = vmatpush1.bf16.msra.mxu0 0
      %646 = vmatprep.subr.bf16.mxu0 0
      %647 = vmatpush1.bf16.msra.mxu0 0
      %648 = vmatprep.subr.bf16.mxu0 0
      %649 = vmatpush1.bf16.msra.mxu0 0
      %650 = vmatprep.subr.bf16.mxu0 0
      %651 = vmatpush1.bf16.msra.mxu0 0
      %652 = vmatprep.subr.bf16.mxu0 0
      %653 = vmatpush1.bf16.msra.mxu0 0
      %654 = vmatprep.subr.bf16.mxu0 0
      %655 = vmatpush1.bf16.msra.mxu0 0
      %656 = vmatprep.subr.bf16.mxu0 0
      %657 = vmatpush1.bf16.msra.mxu0 0
      %658 = vmatprep.subr.bf16.mxu0 0
      %659 = vmatpush1.bf16.msra.mxu0 0
      %660 = vmatprep.mubr.bf16.mxu0 0
      %661 = vmatmul.mubr.bf16.gmra.mrb[0].mxu0 %v599
      %v662 = vpop.f32.mrb[0].mxu0
      %v663 = vadd.f32 %v508, %v662
      %v664 = vpop.f32.mrb[0].mxu0
      %v665 = vpop.f32.mrb[0].mxu0
      %v666 = vadd.f32 %v511, %v665
      %v667 = vpop.f32.mrb[0].mxu0
      %668 = vmatprep.mubr.bf16.mxu0 0
      %669 = vmatmul.mubr.bf16.gmra.mrb[0].mxu0 %v602
      %v670 = vpop.f32.mrb[0].mxu0
      %v671 = vadd.f32 %v516, %v670
      %v672 = vpop.f32.mrb[0].mxu0
      %v673 = vpop.f32.mrb[0].mxu0
      %v674 = vadd.f32 %v519, %v673
      %v675 = vpop.f32.mrb[0].mxu0
      %676 = vmatprep.mubr.bf16.mxu0 0
      %677 = vmatmul.mubr.bf16.gmra.mrb[0].mxu0 %v605
      %v678 = vpop.f32.mrb[0].mxu0
      %v679 = vadd.f32 %v524, %v678
      %v680 = vpop.f32.mrb[0].mxu0
      %v681 = vpop.f32.mrb[0].mxu0
      %v682 = vadd.f32 %v527, %v681
      %v683 = vpop.f32.mrb[0].mxu0
      %684 = vmatprep.mubr.bf16.mxu0 0
      %685 = vmatmul.mubr.bf16.gmra.mrb[0].mxu0 %v608
      %v686 = vpop.f32.mrb[0].mxu0
      %v687 = vadd.f32 %v532, %v686
      %v688 = vpop.f32.mrb[0].mxu0
      %v689 = vpop.f32.mrb[0].mxu0
      %v690 = vadd.f32 %v535, %v689
      %v691 = vpop.f32.mrb[0].mxu0
      %692 = vmatprep.mubr.bf16.mxu0 0
      %693 = vmatmul.mubr.bf16.gmra.mrb[0].mxu0 %v611
      %v694 = vpop.f32.mrb[0].mxu0
      %v695 = vadd.f32 %v540, %v694
      %v696 = vpop.f32.mrb[0].mxu0
      %v697 = vpop.f32.mrb[0].mxu0
      %v698 = vadd.f32 %v543, %v697
      %v699 = vpop.f32.mrb[0].mxu0
      %700 = vmatprep.mubr.bf16.mxu0 0
      %701 = vmatmul.mubr.bf16.gmra.mrb[0].mxu0 %v614
      %v702 = vpop.f32.mrb[0].mxu0
      %v703 = vadd.f32 %v548, %v702
      %v704 = vpop.f32.mrb[0].mxu0
      %v705 = vpop.f32.mrb[0].mxu0
      %v706 = vadd.f32 %v551, %v705
      %v707 = vpop.f32.mrb[0].mxu0
      %708 = vmatprep.mubr.bf16.mxu0 0
      %709 = vmatmul.mubr.bf16.gmra.mrb[0].mxu0 %v617
      %v710 = vpop.f32.mrb[0].mxu0
      %v711 = vadd.f32 %v556, %v710
      %v712 = vpop.f32.mrb[0].mxu0
      %v713 = vpop.f32.mrb[0].mxu0
      %v714 = vadd.f32 %v559, %v713
      %v715 = vpop.f32.mrb[0].mxu0
      %716 = vmatprep.mubr.bf16.mxu0 0
      %717 = vmatmul.mubr.bf16.gmra.mrb[0].mxu0 %v620
      %v718 = vpop.f32.mrb[0].mxu0
      %v719 = vadd.f32 %v564, %v718
      %v720 = vpop.f32.mrb[0].mxu0
      %v721 = vpop.f32.mrb[0].mxu0
      %v722 = vadd.f32 %v567, %v721
      %v723 = vpop.f32.mrb[0].mxu0
      %724 = vmatprep.mubr.bf16.mxu0 0
      %725 = vmatmul.mubr.bf16.gmra.mrb[0].mxu0 %v623
      %v726 = vpop.f32.mrb[0].mxu0
      %v727 = vadd.f32 %v572, %v726
      %v728 = vpop.f32.mrb[0].mxu0
      %v729 = vpop.f32.mrb[0].mxu0
      %v730 = vadd.f32 %v575, %v729
      %v731 = vpop.f32.mrb[0].mxu0
      %732 = vmatprep.mubr.bf16.mxu0 0
      %733 = vmatmul.mubr.bf16.gmra.mrb[0].mxu0 %v626
      %v734 = vpop.f32.mrb[0].mxu0
      %v735 = vadd.f32 %v580, %v734
      %v736 = vpop.f32.mrb[0].mxu0
      %v737 = vpop.f32.mrb[0].mxu0
      %v738 = vadd.f32 %v583, %v737
      %v739 = vpop.f32.mrb[0].mxu0
      %740 = vdwg.mxu0
      %v741 = vld [vmem:[%s360 + $0x2] sm:$0xff]
      %v742 = vld [vmem:[%s360 + $0xa] sm:$0xff]
      %v743 = vld [vmem:[%s360 + $0x1a] sm:$0xff]
      %v744 = vld [vmem:[%s360 + $0x22] sm:$0xff]
      %v745 = vld [vmem:[%s360 + $0x32] sm:$0xff]
      %v746 = vld [vmem:[%s360 + $0x3a] sm:$0xff]
      %v747 = vld [vmem:[%s360 + $0x4a] sm:$0xff]
      %v748 = vld [vmem:[%s360 + $0x52] sm:$0xff]
      %v749 = vld [vmem:[%s360 + $0x62] sm:$0xff]
      %v750 = vld [vmem:[%s360 + $0x6a] sm:$0xff]
      %v751 = vld [vmem:[%s360 + $0x7a] sm:$0xff]
      %v752 = vld [vmem:[%s360 + $0x82] sm:$0xff]
      %v753 = vld [vmem:[%s360 + $0x92] sm:$0xff]
      %v754 = vld [vmem:[%s360 + $0x9a] sm:$0xff]
      %v755 = vld [vmem:[%s360 + $0xaa] sm:$0xff]
      %v756 = vld [vmem:[%s360 + $0xb2] sm:$0xff]
      %v757 = vld [vmem:[%s360 + $0xc2] sm:$0xff]
      %v758 = vld [vmem:[%s360 + $0xca] sm:$0xff]
      %v759 = vld [vmem:[%s360 + $0xda] sm:$0xff]
      %v760 = vld [vmem:[%s360 + $0xe2] sm:$0xff]
      %v761 = vpack.c.bf16 %v742, %v741
      %v762 = vpack.c.bf16 %v744, %v743
      %v763 = vpack.c.bf16 %v746, %v745
      %v764 = vpack.c.bf16 %v748, %v747
      %v765 = vpack.c.bf16 %v750, %v749
      %v766 = vpack.c.bf16 %v752, %v751
      %v767 = vpack.c.bf16 %v754, %v753
      %v768 = vpack.c.bf16 %v756, %v755
      %v769 = vpack.c.bf16 %v758, %v757
      %v770 = vpack.c.bf16 %v760, %v759
      %s771 = scalar_lea.vmem %s1, 32
      %v772 = vld [vmem:[%s771] sm:$0xf]
      %v773 = vld [vmem:[%s771 + $0x4] sm:$0xf]
      %v774 = vld [vmem:[%s771 + $0x8] sm:$0xf]
      %v775 = vld [vmem:[%s771 + $0xc] sm:$0xf]
      %v780 = vunpack.c.l.b16 %v772
      %v781 = vunpack.c.l.b16 %v773
      %v782 = vunpack.c.l.b16 %v774
      %v783 = vunpack.c.l.b16 %v775
      %v784 = vpack.c.b16 %v781, %v780
      %v785 = vpack.c.b16 %v783, %v782
      %v789 = vsel %vm442, %v761, 0
      %v792 = vsel %vm442, %v762, 0
      %v795 = vsel %vm442, %v763, 0
      %v798 = vsel %vm442, %v764, 0
      %v801 = vsel %vm442, %v765, 0
      %v804 = vsel %vm442, %v766, 0
      %v807 = vsel %vm442, %v767, 0
      %v810 = vsel %vm442, %v768, 0
      %v813 = vsel %vm442, %v769, 0
      %v816 = vsel %vm442, %v770, 0
      %818 = vmatprep.subr.bf16.mxu0 0
      %819 = vmatpush1.bf16.msra.mxu0 %v784
      %820 = vmatprep.subr.bf16.mxu0 0
      %821 = vmatpush1.bf16.msra.mxu0 %v785
      %822 = vmatprep.subr.bf16.mxu0 0
      %823 = vmatpush1.bf16.msra.mxu0 0
      %824 = vmatprep.subr.bf16.mxu0 0
      %825 = vmatpush1.bf16.msra.mxu0 0
      %826 = vmatprep.subr.bf16.mxu0 0
      %827 = vmatpush1.bf16.msra.mxu0 0
      %828 = vmatprep.subr.bf16.mxu0 0
      %829 = vmatpush1.bf16.msra.mxu0 0
      %830 = vmatprep.subr.bf16.mxu0 0
      %831 = vmatpush1.bf16.msra.mxu0 0
      %832 = vmatprep.subr.bf16.mxu0 0
      %833 = vmatpush1.bf16.msra.mxu0 0
      %834 = vmatprep.subr.bf16.mxu0 0
      %835 = vmatpush1.bf16.msra.mxu0 0
      %836 = vmatprep.subr.bf16.mxu0 0
      %837 = vmatpush1.bf16.msra.mxu0 0
      %838 = vmatprep.subr.bf16.mxu0 0
      %839 = vmatpush1.bf16.msra.mxu0 0
      %840 = vmatprep.subr.bf16.mxu0 0
      %841 = vmatpush1.bf16.msra.mxu0 0
      %842 = vmatprep.subr.bf16.mxu0 0
      %843 = vmatpush1.bf16.msra.mxu0 0
      %844 = vmatprep.subr.bf16.mxu0 0
      %845 = vmatpush1.bf16.msra.mxu0 0
      %846 = vmatprep.subr.bf16.mxu0 0
      %847 = vmatpush1.bf16.msra.mxu0 0
      %848 = vmatprep.subr.bf16.mxu0 0
      %849 = vmatpush1.bf16.msra.mxu0 0
      %850 = vmatprep.mubr.bf16.mxu0 0
      %851 = vmatmul.mubr.bf16.gmra.mrb[0].mxu0 %v789
      %v852 = vpop.f32.mrb[0].mxu0
      %v853 = vadd.f32 0.0, %v852
      %v854 = vpop.f32.mrb[0].mxu0
      %v855 = vpop.f32.mrb[0].mxu0
      %v856 = vadd.f32 0.0, %v855
      %v857 = vpop.f32.mrb[0].mxu0
      %858 = vmatprep.mubr.bf16.mxu0 0
      %859 = vmatmul.mubr.bf16.gmra.mrb[0].mxu0 %v792
      %v860 = vpop.f32.mrb[0].mxu0
      %v861 = vadd.f32 0.0, %v860
      %v862 = vpop.f32.mrb[0].mxu0
      %v863 = vpop.f32.mrb[0].mxu0
      %v864 = vadd.f32 0.0, %v863
      %v865 = vpop.f32.mrb[0].mxu0
      %866 = vmatprep.mubr.bf16.mxu0 0
      %867 = vmatmul.mubr.bf16.gmra.mrb[0].mxu0 %v795
      %v868 = vpop.f32.mrb[0].mxu0
      %v869 = vadd.f32 0.0, %v868
      %v870 = vpop.f32.mrb[0].mxu0
      %v871 = vpop.f32.mrb[0].mxu0
      %v872 = vadd.f32 0.0, %v871
      %v873 = vpop.f32.mrb[0].mxu0
      %874 = vmatprep.mubr.bf16.mxu0 0
      %875 = vmatmul.mubr.bf16.gmra.mrb[0].mxu0 %v798
      %v876 = vpop.f32.mrb[0].mxu0
      %v877 = vadd.f32 0.0, %v876
      %v878 = vpop.f32.mrb[0].mxu0
      %v879 = vpop.f32.mrb[0].mxu0
      %v880 = vadd.f32 0.0, %v879
      %v881 = vpop.f32.mrb[0].mxu0
      %882 = vmatprep.mubr.bf16.mxu0 0
      %883 = vmatmul.mubr.bf16.gmra.mrb[0].mxu0 %v801
      %v884 = vpop.f32.mrb[0].mxu0
      %v885 = vadd.f32 0.0, %v884
      %v886 = vpop.f32.mrb[0].mxu0
      %v887 = vpop.f32.mrb[0].mxu0
      %v888 = vadd.f32 0.0, %v887
      %v889 = vpop.f32.mrb[0].mxu0
      %890 = vmatprep.mubr.bf16.mxu0 0
      %891 = vmatmul.mubr.bf16.gmra.mrb[0].mxu0 %v804
      %v892 = vpop.f32.mrb[0].mxu0
      %v893 = vadd.f32 0.0, %v892
      %v894 = vpop.f32.mrb[0].mxu0
      %v895 = vpop.f32.mrb[0].mxu0
      %v896 = vadd.f32 0.0, %v895
      %v897 = vpop.f32.mrb[0].mxu0
      %898 = vmatprep.mubr.bf16.mxu0 0
      %899 = vmatmul.mubr.bf16.gmra.mrb[0].mxu0 %v807
      %v900 = vpop.f32.mrb[0].mxu0
      %v901 = vadd.f32 0.0, %v900
      %v902 = vpop.f32.mrb[0].mxu0
      %v903 = vpop.f32.mrb[0].mxu0
      %v904 = vadd.f32 0.0, %v903
      %v905 = vpop.f32.mrb[0].mxu0
      %906 = vmatprep.mubr.bf16.mxu0 0
      %907 = vmatmul.mubr.bf16.gmra.mrb[0].mxu0 %v810
      %v908 = vpop.f32.mrb[0].mxu0
      %v909 = vadd.f32 0.0, %v908
      %v910 = vpop.f32.mrb[0].mxu0
      %v911 = vpop.f32.mrb[0].mxu0
      %v912 = vadd.f32 0.0, %v911
      %v913 = vpop.f32.mrb[0].mxu0
      %914 = vmatprep.mubr.bf16.mxu0 0
      %915 = vmatmul.mubr.bf16.gmra.mrb[0].mxu0 %v813
      %v916 = vpop.f32.mrb[0].mxu0
      %v917 = vadd.f32 0.0, %v916
      %v918 = vpop.f32.mrb[0].mxu0
      %v919 = vpop.f32.mrb[0].mxu0
      %v920 = vadd.f32 0.0, %v919
      %v921 = vpop.f32.mrb[0].mxu0
      %922 = vmatprep.mubr.bf16.mxu0 0
      %923 = vmatmul.mubr.bf16.gmra.mrb[0].mxu0 %v816
      %v924 = vpop.f32.mrb[0].mxu0
      %v925 = vadd.f32 0.0, %v924
      %v926 = vpop.f32.mrb[0].mxu0
      %v927 = vpop.f32.mrb[0].mxu0
      %v928 = vadd.f32 0.0, %v927
      %v929 = vpop.f32.mrb[0].mxu0
      %930 = vdwg.mxu0
      %v931 = vadd.f32 %v663, %v853
      %v932 = vadd.f32 %v666, %v856
      %v933 = vadd.f32 %v671, %v861
      %v934 = vadd.f32 %v674, %v864
      %v935 = vadd.f32 %v679, %v869
      %v936 = vadd.f32 %v682, %v872
      %v937 = vadd.f32 %v687, %v877
      %v938 = vadd.f32 %v690, %v880
      %v939 = vadd.f32 %v695, %v885
      %v940 = vadd.f32 %v698, %v888
      %v941 = vadd.f32 %v703, %v893
      %v942 = vadd.f32 %v706, %v896
      %v943 = vadd.f32 %v711, %v901
      %v944 = vadd.f32 %v714, %v904
      %v945 = vadd.f32 %v719, %v909
      %v946 = vadd.f32 %v722, %v912
      %v947 = vadd.f32 %v727, %v917
      %v948 = vadd.f32 %v730, %v920
      %v949 = vadd.f32 %v735, %v925
      %v950 = vadd.f32 %v738, %v928
      %s951 = sadd.s32 %s358, 1
      %s952 = smul.u32 %s951, 24
      %s953 = scalar_lea.vmem [#allocation2], %s952
      %v954 = vld [vmem:[%s953] sm:$0xff]
      %v955 = vld [vmem:[%s953 + $0x8] sm:$0xff]
      %v956 = vld [vmem:[%s953 + $0x18] sm:$0xff]
      %v957 = vld [vmem:[%s953 + $0x20] sm:$0xff]
      %v958 = vld [vmem:[%s953 + $0x30] sm:$0xff]
      %v959 = vld [vmem:[%s953 + $0x38] sm:$0xff]
      %v960 = vld [vmem:[%s953 + $0x48] sm:$0xff]
      %v961 = vld [vmem:[%s953 + $0x50] sm:$0xff]
      %v962 = vld [vmem:[%s953 + $0x60] sm:$0xff]
      %v963 = vld [vmem:[%s953 + $0x68] sm:$0xff]
      %v964 = vld [vmem:[%s953 + $0x78] sm:$0xff]
      %v965 = vld [vmem:[%s953 + $0x80] sm:$0xff]
      %v966 = vld [vmem:[%s953 + $0x90] sm:$0xff]
      %v967 = vld [vmem:[%s953 + $0x98] sm:$0xff]
      %v968 = vld [vmem:[%s953 + $0xa8] sm:$0xff]
      %v969 = vld [vmem:[%s953 + $0xb0] sm:$0xff]
      %v970 = vld [vmem:[%s953 + $0xc0] sm:$0xff]
      %v971 = vld [vmem:[%s953 + $0xc8] sm:$0xff]
      %v972 = vld [vmem:[%s953 + $0xd8] sm:$0xff]
      %v973 = vld [vmem:[%s953 + $0xe0] sm:$0xff]
      %v974 = vpack.c.bf16 %v955, %v954
      %v975 = vpack.c.bf16 %v957, %v956
      %v976 = vpack.c.bf16 %v959, %v958
      %v977 = vpack.c.bf16 %v961, %v960
      %v978 = vpack.c.bf16 %v963, %v962
      %v979 = vpack.c.bf16 %v965, %v964
      %v980 = vpack.c.bf16 %v967, %v966
      %v981 = vpack.c.bf16 %v969, %v968
      %v982 = vpack.c.bf16 %v971, %v970
      %v983 = vpack.c.bf16 %v973, %v972
      %s984 = scalar_lea.vmem %s1, 48
      %v985 = vld [vmem:[%s984] sm:$0xf]
      %v986 = vld [vmem:[%s984 + $0x4] sm:$0xf]
      %v987 = vld [vmem:[%s984 + $0x8] sm:$0xf]
      %v988 = vld [vmem:[%s984 + $0xc] sm:$0xf]
      %v993 = vunpack.c.l.b16 %v985
      %v994 = vunpack.c.l.b16 %v986
      %v995 = vunpack.c.l.b16 %v987
      %v996 = vunpack.c.l.b16 %v988
      %v997 = vpack.c.b16 %v994, %v993
      %v998 = vpack.c.b16 %v996, %v995
      %v1002 = vsel %vm442, %v974, 0
      %v1005 = vsel %vm442, %v975, 0
      %v1008 = vsel %vm442, %v976, 0
      %v1011 = vsel %vm442, %v977, 0
      %v1014 = vsel %vm442, %v978, 0
      %v1017 = vsel %vm442, %v979, 0
      %v1020 = vsel %vm442, %v980, 0
      %v1023 = vsel %vm442, %v981, 0
      %v1026 = vsel %vm442, %v982, 0
      %v1029 = vsel %vm442, %v983, 0
      %1031 = vmatprep.subr.bf16.mxu0 0
      %1032 = vmatpush1.bf16.msra.mxu0 %v997
      %1033 = vmatprep.subr.bf16.mxu0 0
      %1034 = vmatpush1.bf16.msra.mxu0 %v998
      %1035 = vmatprep.subr.bf16.mxu0 0
      %1036 = vmatpush1.bf16.msra.mxu0 0
      %1037 = vmatprep.subr.bf16.mxu0 0
      %1038 = vmatpush1.bf16.msra.mxu0 0
      %1039 = vmatprep.subr.bf16.mxu0 0
      %1040 = vmatpush1.bf16.msra.mxu0 0
      %1041 = vmatprep.subr.bf16.mxu0 0
      %1042 = vmatpush1.bf16.msra.mxu0 0
      %1043 = vmatprep.subr.bf16.mxu0 0
      %1044 = vmatpush1.bf16.msra.mxu0 0
      %1045 = vmatprep.subr.bf16.mxu0 0
      %1046 = vmatpush1.bf16.msra.mxu0 0
      %1047 = vmatprep.subr.bf16.mxu0 0
      %1048 = vmatpush1.bf16.msra.mxu0 0
      %1049 = vmatprep.subr.bf16.mxu0 0
      %1050 = vmatpush1.bf16.msra.mxu0 0
      %1051 = vmatprep.subr.bf16.mxu0 0
      %1052 = vmatpush1.bf16.msra.mxu0 0
      %1053 = vmatprep.subr.bf16.mxu0 0
      %1054 = vmatpush1.bf16.msra.mxu0 0
      %1055 = vmatprep.subr.bf16.mxu0 0
      %1056 = vmatpush1.bf16.msra.mxu0 0
      %1057 = vmatprep.subr.bf16.mxu0 0
      %1058 = vmatpush1.bf16.msra.mxu0 0
      %1059 = vmatprep.subr.bf16.mxu0 0
      %1060 = vmatpush1.bf16.msra.mxu0 0
      %1061 = vmatprep.subr.bf16.mxu0 0
      %1062 = vmatpush1.bf16.msra.mxu0 0
      %1063 = vmatprep.mubr.bf16.mxu0 0
      %1064 = vmatmul.mubr.bf16.gmra.mrb[0].mxu0 %v1002
      %v1065 = vpop.f32.mrb[0].mxu0
      %v1066 = vadd.f32 0.0, %v1065
      %v1067 = vpop.f32.mrb[0].mxu0
      %v1068 = vpop.f32.mrb[0].mxu0
      %v1069 = vadd.f32 0.0, %v1068
      %v1070 = vpop.f32.mrb[0].mxu0
      %1071 = vmatprep.mubr.bf16.mxu0 0
      %1072 = vmatmul.mubr.bf16.gmra.mrb[0].mxu0 %v1005
      %v1073 = vpop.f32.mrb[0].mxu0
      %v1074 = vadd.f32 0.0, %v1073
      %v1075 = vpop.f32.mrb[0].mxu0
      %v1076 = vpop.f32.mrb[0].mxu0
      %v1077 = vadd.f32 0.0, %v1076
      %v1078 = vpop.f32.mrb[0].mxu0
      %1079 = vmatprep.mubr.bf16.mxu0 0
      %1080 = vmatmul.mubr.bf16.gmra.mrb[0].mxu0 %v1008
      %v1081 = vpop.f32.mrb[0].mxu0
      %v1082 = vadd.f32 0.0, %v1081
      %v1083 = vpop.f32.mrb[0].mxu0
      %v1084 = vpop.f32.mrb[0].mxu0
      %v1085 = vadd.f32 0.0, %v1084
      %v1086 = vpop.f32.mrb[0].mxu0
      %1087 = vmatprep.mubr.bf16.mxu0 0
      %1088 = vmatmul.mubr.bf16.gmra.mrb[0].mxu0 %v1011
      %v1089 = vpop.f32.mrb[0].mxu0
      %v1090 = vadd.f32 0.0, %v1089
      %v1091 = vpop.f32.mrb[0].mxu0
      %v1092 = vpop.f32.mrb[0].mxu0
      %v1093 = vadd.f32 0.0, %v1092
      %v1094 = vpop.f32.mrb[0].mxu0
      %1095 = vmatprep.mubr.bf16.mxu0 0
      %1096 = vmatmul.mubr.bf16.gmra.mrb[0].mxu0 %v1014
      %v1097 = vpop.f32.mrb[0].mxu0
      %v1098 = vadd.f32 0.0, %v1097
      %v1099 = vpop.f32.mrb[0].mxu0
      %v1100 = vpop.f32.mrb[0].mxu0
      %v1101 = vadd.f32 0.0, %v1100
      %v1102 = vpop.f32.mrb[0].mxu0
      %1103 = vmatprep.mubr.bf16.mxu0 0
      %1104 = vmatmul.mubr.bf16.gmra.mrb[0].mxu0 %v1017
      %v1105 = vpop.f32.mrb[0].mxu0
      %v1106 = vadd.f32 0.0, %v1105
      %v1107 = vpop.f32.mrb[0].mxu0
      %v1108 = vpop.f32.mrb[0].mxu0
      %v1109 = vadd.f32 0.0, %v1108
      %v1110 = vpop.f32.mrb[0].mxu0
      %1111 = vmatprep.mubr.bf16.mxu0 0
      %1112 = vmatmul.mubr.bf16.gmra.mrb[0].mxu0 %v1020
      %v1113 = vpop.f32.mrb[0].mxu0
      %v1114 = vadd.f32 0.0, %v1113
      %v1115 = vpop.f32.mrb[0].mxu0
      %v1116 = vpop.f32.mrb[0].mxu0
      %v1117 = vadd.f32 0.0, %v1116
      %v1118 = vpop.f32.mrb[0].mxu0
      %1119 = vmatprep.mubr.bf16.mxu0 0
      %1120 = vmatmul.mubr.bf16.gmra.mrb[0].mxu0 %v1023
      %v1121 = vpop.f32.mrb[0].mxu0
      %v1122 = vadd.f32 0.0, %v1121
      %v1123 = vpop.f32.mrb[0].mxu0
      %v1124 = vpop.f32.mrb[0].mxu0
      %v1125 = vadd.f32 0.0, %v1124
      %v1126 = vpop.f32.mrb[0].mxu0
      %1127 = vmatprep.mubr.bf16.mxu0 0
      %1128 = vmatmul.mubr.bf16.gmra.mrb[0].mxu0 %v1026
      %v1129 = vpop.f32.mrb[0].mxu0
      %v1130 = vadd.f32 0.0, %v1129
      %v1131 = vpop.f32.mrb[0].mxu0
      %v1132 = vpop.f32.mrb[0].mxu0
      %v1133 = vadd.f32 0.0, %v1132
      %v1134 = vpop.f32.mrb[0].mxu0
      %1135 = vmatprep.mubr.bf16.mxu0 0
      %1136 = vmatmul.mubr.bf16.gmra.mrb[0].mxu0 %v1029
      %v1137 = vpop.f32.mrb[0].mxu0
      %v1138 = vadd.f32 0.0, %v1137
      %v1139 = vpop.f32.mrb[0].mxu0
      %v1140 = vpop.f32.mrb[0].mxu0
      %v1141 = vadd.f32 0.0, %v1140
      %v1142 = vpop.f32.mrb[0].mxu0
      %1143 = vdwg.mxu0
      %v1144 = vadd.f32 %v931, %v1066
      %v1145 = vadd.f32 %v932, %v1069
      %v1146 = vadd.f32 %v933, %v1074
      %v1147 = vadd.f32 %v934, %v1077
      %v1148 = vadd.f32 %v935, %v1082
      %v1149 = vadd.f32 %v936, %v1085
      %v1150 = vadd.f32 %v937, %v1090
      %v1151 = vadd.f32 %v938, %v1093
      %v1152 = vadd.f32 %v939, %v1098
      %v1153 = vadd.f32 %v940, %v1101
      %v1154 = vadd.f32 %v941, %v1106
      %v1155 = vadd.f32 %v942, %v1109
      %v1156 = vadd.f32 %v943, %v1114
      %v1157 = vadd.f32 %v944, %v1117
      %v1158 = vadd.f32 %v945, %v1122
      %v1159 = vadd.f32 %v946, %v1125
      %v1160 = vadd.f32 %v947, %v1130
      %v1161 = vadd.f32 %v948, %v1133
      %v1162 = vadd.f32 %v949, %v1138
      %v1163 = vadd.f32 %v950, %v1141
      %v1164 = vld [vmem:[%s953 + $0x1] sm:$0xff]
      %v1165 = vld [vmem:[%s953 + $0x9] sm:$0xff]
      %v1166 = vld [vmem:[%s953 + $0x19] sm:$0xff]
      %v1167 = vld [vmem:[%s953 + $0x21] sm:$0xff]
      %v1168 = vld [vmem:[%s953 + $0x31] sm:$0xff]
      %v1169 = vld [vmem:[%s953 + $0x39] sm:$0xff]
      %v1170 = vld [vmem:[%s953 + $0x49] sm:$0xff]
      %v1171 = vld [vmem:[%s953 + $0x51] sm:$0xff]
      %v1172 = vld [vmem:[%s953 + $0x61] sm:$0xff]
      %v1173 = vld [vmem:[%s953 + $0x69] sm:$0xff]
      %v1174 = vld [vmem:[%s953 + $0x79] sm:$0xff]
      %v1175 = vld [vmem:[%s953 + $0x81] sm:$0xff]
      %v1176 = vld [vmem:[%s953 + $0x91] sm:$0xff]
      %v1177 = vld [vmem:[%s953 + $0x99] sm:$0xff]
      %v1178 = vld [vmem:[%s953 + $0xa9] sm:$0xff]
      %v1179 = vld [vmem:[%s953 + $0xb1] sm:$0xff]
      %v1180 = vld [vmem:[%s953 + $0xc1] sm:$0xff]
      %v1181 = vld [vmem:[%s953 + $0xc9] sm:$0xff]
      %v1182 = vld [vmem:[%s953 + $0xd9] sm:$0xff]
      %v1183 = vld [vmem:[%s953 + $0xe1] sm:$0xff]
      %v1184 = vpack.c.bf16 %v1165, %v1164
      %v1185 = vpack.c.bf16 %v1167, %v1166
      %v1186 = vpack.c.bf16 %v1169, %v1168
      %v1187 = vpack.c.bf16 %v1171, %v1170
      %v1188 = vpack.c.bf16 %v1173, %v1172
      %v1189 = vpack.c.bf16 %v1175, %v1174
      %v1190 = vpack.c.bf16 %v1177, %v1176
      %v1191 = vpack.c.bf16 %v1179, %v1178
      %v1192 = vpack.c.bf16 %v1181, %v1180
      %v1193 = vpack.c.bf16 %v1183, %v1182
      %s1194 = scalar_lea.vmem %s1, 64
      %v1195 = vld [vmem:[%s1194] sm:$0xf]
      %v1196 = vld [vmem:[%s1194 + $0x4] sm:$0xf]
      %v1197 = vld [vmem:[%s1194 + $0x8] sm:$0xf]
      %v1198 = vld [vmem:[%s1194 + $0xc] sm:$0xf]
      %v1203 = vunpack.c.l.b16 %v1195
      %v1204 = vunpack.c.l.b16 %v1196
      %v1205 = vunpack.c.l.b16 %v1197
      %v1206 = vunpack.c.l.b16 %v1198
      %v1207 = vpack.c.b16 %v1204, %v1203
      %v1208 = vpack.c.b16 %v1206, %v1205
      %v1212 = vsel %vm442, %v1184, 0
      %v1215 = vsel %vm442, %v1185, 0
      %v1218 = vsel %vm442, %v1186, 0
      %v1221 = vsel %vm442, %v1187, 0
      %v1224 = vsel %vm442, %v1188, 0
      %v1227 = vsel %vm442, %v1189, 0
      %v1230 = vsel %vm442, %v1190, 0
      %v1233 = vsel %vm442, %v1191, 0
      %v1236 = vsel %vm442, %v1192, 0
      %v1239 = vsel %vm442, %v1193, 0
      %1241 = vmatprep.subr.bf16.mxu0 0
      %1242 = vmatpush1.bf16.msra.mxu0 %v1207
      %1243 = vmatprep.subr.bf16.mxu0 0
      %1244 = vmatpush1.bf16.msra.mxu0 %v1208
      %1245 = vmatprep.subr.bf16.mxu0 0
      %1246 = vmatpush1.bf16.msra.mxu0 0
      %1247 = vmatprep.subr.bf16.mxu0 0
      %1248 = vmatpush1.bf16.msra.mxu0 0
      %1249 = vmatprep.subr.bf16.mxu0 0
      %1250 = vmatpush1.bf16.msra.mxu0 0
      %1251 = vmatprep.subr.bf16.mxu0 0
      %1252 = vmatpush1.bf16.msra.mxu0 0
      %1253 = vmatprep.subr.bf16.mxu0 0
      %1254 = vmatpush1.bf16.msra.mxu0 0
      %1255 = vmatprep.subr.bf16.mxu0 0
      %1256 = vmatpush1.bf16.msra.mxu0 0
      %1257 = vmatprep.subr.bf16.mxu0 0
      %1258 = vmatpush1.bf16.msra.mxu0 0
      %1259 = vmatprep.subr.bf16.mxu0 0
      %1260 = vmatpush1.bf16.msra.mxu0 0
      %1261 = vmatprep.subr.bf16.mxu0 0
      %1262 = vmatpush1.bf16.msra.mxu0 0
      %1263 = vmatprep.subr.bf16.mxu0 0
      %1264 = vmatpush1.bf16.msra.mxu0 0
      %1265 = vmatprep.subr.bf16.mxu0 0
      %1266 = vmatpush1.bf16.msra.mxu0 0
      %1267 = vmatprep.subr.bf16.mxu0 0
      %1268 = vmatpush1.bf16.msra.mxu0 0
      %1269 = vmatprep.subr.bf16.mxu0 0
      %1270 = vmatpush1.bf16.msra.mxu0 0
      %1271 = vmatprep.subr.bf16.mxu0 0
      %1272 = vmatpush1.bf16.msra.mxu0 0
      %1273 = vmatprep.mubr.bf16.mxu0 0
      %1274 = vmatmul.mubr.bf16.gmra.mrb[0].mxu0 %v1212
      %v1275 = vpop.f32.mrb[0].mxu0
      %v1276 = vadd.f32 0.0, %v1275
      %v1277 = vpop.f32.mrb[0].mxu0
      %v1278 = vpop.f32.mrb[0].mxu0
      %v1279 = vadd.f32 0.0, %v1278
      %v1280 = vpop.f32.mrb[0].mxu0
      %1281 = vmatprep.mubr.bf16.mxu0 0
      %1282 = vmatmul.mubr.bf16.gmra.mrb[0].mxu0 %v1215
      %v1283 = vpop.f32.mrb[0].mxu0
      %v1284 = vadd.f32 0.0, %v1283
      %v1285 = vpop.f32.mrb[0].mxu0
      %v1286 = vpop.f32.mrb[0].mxu0
      %v1287 = vadd.f32 0.0, %v1286
      %v1288 = vpop.f32.mrb[0].mxu0
      %1289 = vmatprep.mubr.bf16.mxu0 0
      %1290 = vmatmul.mubr.bf16.gmra.mrb[0].mxu0 %v1218
      %v1291 = vpop.f32.mrb[0].mxu0
      %v1292 = vadd.f32 0.0, %v1291
      %v1293 = vpop.f32.mrb[0].mxu0
      %v1294 = vpop.f32.mrb[0].mxu0
      %v1295 = vadd.f32 0.0, %v1294
      %v1296 = vpop.f32.mrb[0].mxu0
      %1297 = vmatprep.mubr.bf16.mxu0 0
      %1298 = vmatmul.mubr.bf16.gmra.mrb[0].mxu0 %v1221
      %v1299 = vpop.f32.mrb[0].mxu0
      %v1300 = vadd.f32 0.0, %v1299
      %v1301 = vpop.f32.mrb[0].mxu0
      %v1302 = vpop.f32.mrb[0].mxu0
      %v1303 = vadd.f32 0.0, %v1302
      %v1304 = vpop.f32.mrb[0].mxu0
      %1305 = vmatprep.mubr.bf16.mxu0 0
      %1306 = vmatmul.mubr.bf16.gmra.mrb[0].mxu0 %v1224
      %v1307 = vpop.f32.mrb[0].mxu0
      %v1308 = vadd.f32 0.0, %v1307
      %v1309 = vpop.f32.mrb[0].mxu0
      %v1310 = vpop.f32.mrb[0].mxu0
      %v1311 = vadd.f32 0.0, %v1310
      %v1312 = vpop.f32.mrb[0].mxu0
      %1313 = vmatprep.mubr.bf16.mxu0 0
      %1314 = vmatmul.mubr.bf16.gmra.mrb[0].mxu0 %v1227
      %v1315 = vpop.f32.mrb[0].mxu0
      %v1316 = vadd.f32 0.0, %v1315
      %v1317 = vpop.f32.mrb[0].mxu0
      %v1318 = vpop.f32.mrb[0].mxu0
      %v1319 = vadd.f32 0.0, %v1318
      %v1320 = vpop.f32.mrb[0].mxu0
      %1321 = vmatprep.mubr.bf16.mxu0 0
      %1322 = vmatmul.mubr.bf16.gmra.mrb[0].mxu0 %v1230
      %v1323 = vpop.f32.mrb[0].mxu0
      %v1324 = vadd.f32 0.0, %v1323
      %v1325 = vpop.f32.mrb[0].mxu0
      %v1326 = vpop.f32.mrb[0].mxu0
      %v1327 = vadd.f32 0.0, %v1326
      %v1328 = vpop.f32.mrb[0].mxu0
      %1329 = vmatprep.mubr.bf16.mxu0 0
      %1330 = vmatmul.mubr.bf16.gmra.mrb[0].mxu0 %v1233
      %v1331 = vpop.f32.mrb[0].mxu0
      %v1332 = vadd.f32 0.0, %v1331
      %v1333 = vpop.f32.mrb[0].mxu0
      %v1334 = vpop.f32.mrb[0].mxu0
      %v1335 = vadd.f32 0.0, %v1334
      %v1336 = vpop.f32.mrb[0].mxu0
      %1337 = vmatprep.mubr.bf16.mxu0 0
      %1338 = vmatmul.mubr.bf16.gmra.mrb[0].mxu0 %v1236
      %v1339 = vpop.f32.mrb[0].mxu0
      %v1340 = vadd.f32 0.0, %v1339
      %v1341 = vpop.f32.mrb[0].mxu0
      %v1342 = vpop.f32.mrb[0].mxu0
      %v1343 = vadd.f32 0.0, %v1342
      %v1344 = vpop.f32.mrb[0].mxu0
      %1345 = vmatprep.mubr.bf16.mxu0 0
      %1346 = vmatmul.mubr.bf16.gmra.mrb[0].mxu0 %v1239
      %v1347 = vpop.f32.mrb[0].mxu0
      %v1348 = vadd.f32 0.0, %v1347
      %v1349 = vpop.f32.mrb[0].mxu0
      %v1350 = vpop.f32.mrb[0].mxu0
      %v1351 = vadd.f32 0.0, %v1350
      %v1352 = vpop.f32.mrb[0].mxu0
      %1353 = vdwg.mxu0
      %v1354 = vadd.f32 %v1144, %v1276
      %v1355 = vadd.f32 %v1145, %v1279
      %v1356 = vadd.f32 %v1146, %v1284
      %v1357 = vadd.f32 %v1147, %v1287
      %v1358 = vadd.f32 %v1148, %v1292
      %v1359 = vadd.f32 %v1149, %v1295
      %v1360 = vadd.f32 %v1150, %v1300
      %v1361 = vadd.f32 %v1151, %v1303
      %v1362 = vadd.f32 %v1152, %v1308
      %v1363 = vadd.f32 %v1153, %v1311
      %v1364 = vadd.f32 %v1154, %v1316
      %v1365 = vadd.f32 %v1155, %v1319
      %v1366 = vadd.f32 %v1156, %v1324
      %v1367 = vadd.f32 %v1157, %v1327
      %v1368 = vadd.f32 %v1158, %v1332
      %v1369 = vadd.f32 %v1159, %v1335
      %v1370 = vadd.f32 %v1160, %v1340
      %v1371 = vadd.f32 %v1161, %v1343
      %v1372 = vadd.f32 %v1162, %v1348
      %v1373 = vadd.f32 %v1163, %v1351
      %v1374 = vld [vmem:[%s953 + $0x2] sm:$0xff]
      %v1375 = vld [vmem:[%s953 + $0xa] sm:$0xff]
      %v1376 = vld [vmem:[%s953 + $0x1a] sm:$0xff]
      %v1377 = vld [vmem:[%s953 + $0x22] sm:$0xff]
      %v1378 = vld [vmem:[%s953 + $0x32] sm:$0xff]
      %v1379 = vld [vmem:[%s953 + $0x3a] sm:$0xff]
      %v1380 = vld [vmem:[%s953 + $0x4a] sm:$0xff]
      %v1381 = vld [vmem:[%s953 + $0x52] sm:$0xff]
      %v1382 = vld [vmem:[%s953 + $0x62] sm:$0xff]
      %v1383 = vld [vmem:[%s953 + $0x6a] sm:$0xff]
      %v1384 = vld [vmem:[%s953 + $0x7a] sm:$0xff]
      %v1385 = vld [vmem:[%s953 + $0x82] sm:$0xff]
      %v1386 = vld [vmem:[%s953 + $0x92] sm:$0xff]
      %v1387 = vld [vmem:[%s953 + $0x9a] sm:$0xff]
      %v1388 = vld [vmem:[%s953 + $0xaa] sm:$0xff]
      %v1389 = vld [vmem:[%s953 + $0xb2] sm:$0xff]
      %v1390 = vld [vmem:[%s953 + $0xc2] sm:$0xff]
      %v1391 = vld [vmem:[%s953 + $0xca] sm:$0xff]
      %v1392 = vld [vmem:[%s953 + $0xda] sm:$0xff]
      %v1393 = vld [vmem:[%s953 + $0xe2] sm:$0xff]
      %v1394 = vpack.c.bf16 %v1375, %v1374
      %v1395 = vpack.c.bf16 %v1377, %v1376
      %v1396 = vpack.c.bf16 %v1379, %v1378
      %v1397 = vpack.c.bf16 %v1381, %v1380
      %v1398 = vpack.c.bf16 %v1383, %v1382
      %v1399 = vpack.c.bf16 %v1385, %v1384
      %v1400 = vpack.c.bf16 %v1387, %v1386
      %v1401 = vpack.c.bf16 %v1389, %v1388
      %v1402 = vpack.c.bf16 %v1391, %v1390
      %v1403 = vpack.c.bf16 %v1393, %v1392
      %s1404 = scalar_lea.vmem %s1, 80
      %v1405 = vld [vmem:[%s1404] sm:$0xf]
      %v1406 = vld [vmem:[%s1404 + $0x4] sm:$0xf]
      %v1407 = vld [vmem:[%s1404 + $0x8] sm:$0xf]
      %v1408 = vld [vmem:[%s1404 + $0xc] sm:$0xf]
      %v1413 = vunpack.c.l.b16 %v1405
      %v1414 = vunpack.c.l.b16 %v1406
      %v1415 = vunpack.c.l.b16 %v1407
      %v1416 = vunpack.c.l.b16 %v1408
      %v1417 = vpack.c.b16 %v1414, %v1413
      %v1418 = vpack.c.b16 %v1416, %v1415
      %v1422 = vsel %vm442, %v1394, 0
      %v1425 = vsel %vm442, %v1395, 0
      %v1428 = vsel %vm442, %v1396, 0
      %v1431 = vsel %vm442, %v1397, 0
      %v1434 = vsel %vm442, %v1398, 0
      %v1437 = vsel %vm442, %v1399, 0
      %v1440 = vsel %vm442, %v1400, 0
      %v1443 = vsel %vm442, %v1401, 0
      %v1446 = vsel %vm442, %v1402, 0
      %v1449 = vsel %vm442, %v1403, 0
      %1451 = vmatprep.subr.bf16.mxu0 0
      %1452 = vmatpush1.bf16.msra.mxu0 %v1417
      %1453 = vmatprep.subr.bf16.mxu0 0
      %1454 = vmatpush1.bf16.msra.mxu0 %v1418
      %1455 = vmatprep.subr.bf16.mxu0 0
      %1456 = vmatpush1.bf16.msra.mxu0 0
      %1457 = vmatprep.subr.bf16.mxu0 0
      %1458 = vmatpush1.bf16.msra.mxu0 0
      %1459 = vmatprep.subr.bf16.mxu0 0
      %1460 = vmatpush1.bf16.msra.mxu0 0
      %1461 = vmatprep.subr.bf16.mxu0 0
      %1462 = vmatpush1.bf16.msra.mxu0 0
      %1463 = vmatprep.subr.bf16.mxu0 0
      %1464 = vmatpush1.bf16.msra.mxu0 0
      %1465 = vmatprep.subr.bf16.mxu0 0
      %1466 = vmatpush1.bf16.msra.mxu0 0
      %1467 = vmatprep.subr.bf16.mxu0 0
      %1468 = vmatpush1.bf16.msra.mxu0 0
      %1469 = vmatprep.subr.bf16.mxu0 0
      %1470 = vmatpush1.bf16.msra.mxu0 0
      %1471 = vmatprep.subr.bf16.mxu0 0
      %1472 = vmatpush1.bf16.msra.mxu0 0
      %1473 = vmatprep.subr.bf16.mxu0 0
      %1474 = vmatpush1.bf16.msra.mxu0 0
      %1475 = vmatprep.subr.bf16.mxu0 0
      %1476 = vmatpush1.bf16.msra.mxu0 0
      %1477 = vmatprep.subr.bf16.mxu0 0
      %1478 = vmatpush1.bf16.msra.mxu0 0
      %1479 = vmatprep.subr.bf16.mxu0 0
      %1480 = vmatpush1.bf16.msra.mxu0 0
      %1481 = vmatprep.subr.bf16.mxu0 0
      %1482 = vmatpush1.bf16.msra.mxu0 0
      %1483 = vmatprep.mubr.bf16.mxu0 0
      %1484 = vmatmul.mubr.bf16.gmra.mrb[0].mxu0 %v1422
      %v1485 = vpop.f32.mrb[0].mxu0
      %v1486 = vadd.f32 0.0, %v1485
      %v1487 = vpop.f32.mrb[0].mxu0
      %v1488 = vpop.f32.mrb[0].mxu0
      %v1489 = vadd.f32 0.0, %v1488
      %v1490 = vpop.f32.mrb[0].mxu0
      %1491 = vmatprep.mubr.bf16.mxu0 0
      %1492 = vmatmul.mubr.bf16.gmra.mrb[0].mxu0 %v1425
      %v1493 = vpop.f32.mrb[0].mxu0
      %v1494 = vadd.f32 0.0, %v1493
      %v1495 = vpop.f32.mrb[0].mxu0
      %v1496 = vpop.f32.mrb[0].mxu0
      %v1497 = vadd.f32 0.0, %v1496
      %v1498 = vpop.f32.mrb[0].mxu0
      %1499 = vmatprep.mubr.bf16.mxu0 0
      %1500 = vmatmul.mubr.bf16.gmra.mrb[0].mxu0 %v1428
      %v1501 = vpop.f32.mrb[0].mxu0
      %v1502 = vadd.f32 0.0, %v1501
      %v1503 = vpop.f32.mrb[0].mxu0
      %v1504 = vpop.f32.mrb[0].mxu0
      %v1505 = vadd.f32 0.0, %v1504
      %v1506 = vpop.f32.mrb[0].mxu0
      %1507 = vmatprep.mubr.bf16.mxu0 0
      %1508 = vmatmul.mubr.bf16.gmra.mrb[0].mxu0 %v1431
      %v1509 = vpop.f32.mrb[0].mxu0
      %v1510 = vadd.f32 0.0, %v1509
      %v1511 = vpop.f32.mrb[0].mxu0
      %v1512 = vpop.f32.mrb[0].mxu0
      %v1513 = vadd.f32 0.0, %v1512
      %v1514 = vpop.f32.mrb[0].mxu0
      %1515 = vmatprep.mubr.bf16.mxu0 0
      %1516 = vmatmul.mubr.bf16.gmra.mrb[0].mxu0 %v1434
      %v1517 = vpop.f32.mrb[0].mxu0
      %v1518 = vadd.f32 0.0, %v1517
      %v1519 = vpop.f32.mrb[0].mxu0
      %v1520 = vpop.f32.mrb[0].mxu0
      %v1521 = vadd.f32 0.0, %v1520
      %v1522 = vpop.f32.mrb[0].mxu0
      %1523 = vmatprep.mubr.bf16.mxu0 0
      %1524 = vmatmul.mubr.bf16.gmra.mrb[0].mxu0 %v1437
      %v1525 = vpop.f32.mrb[0].mxu0
      %v1526 = vadd.f32 0.0, %v1525
      %v1527 = vpop.f32.mrb[0].mxu0
      %v1528 = vpop.f32.mrb[0].mxu0
      %v1529 = vadd.f32 0.0, %v1528
      %v1530 = vpop.f32.mrb[0].mxu0
      %1531 = vmatprep.mubr.bf16.mxu0 0
      %1532 = vmatmul.mubr.bf16.gmra.mrb[0].mxu0 %v1440
      %v1533 = vpop.f32.mrb[0].mxu0
      %v1534 = vadd.f32 0.0, %v1533
      %v1535 = vpop.f32.mrb[0].mxu0
      %v1536 = vpop.f32.mrb[0].mxu0
      %v1537 = vadd.f32 0.0, %v1536
      %v1538 = vpop.f32.mrb[0].mxu0
      %1539 = vmatprep.mubr.bf16.mxu0 0
      %1540 = vmatmul.mubr.bf16.gmra.mrb[0].mxu0 %v1443
      %v1541 = vpop.f32.mrb[0].mxu0
      %v1542 = vadd.f32 0.0, %v1541
      %v1543 = vpop.f32.mrb[0].mxu0
      %v1544 = vpop.f32.mrb[0].mxu0
      %v1545 = vadd.f32 0.0, %v1544
      %v1546 = vpop.f32.mrb[0].mxu0
      %1547 = vmatprep.mubr.bf16.mxu0 0
      %1548 = vmatmul.mubr.bf16.gmra.mrb[0].mxu0 %v1446
      %v1549 = vpop.f32.mrb[0].mxu0
      %v1550 = vadd.f32 0.0, %v1549
      %v1551 = vpop.f32.mrb[0].mxu0
      %v1552 = vpop.f32.mrb[0].mxu0
      %v1553 = vadd.f32 0.0, %v1552
      %v1554 = vpop.f32.mrb[0].mxu0
      %1555 = vmatprep.mubr.bf16.mxu0 0
      %1556 = vmatmul.mubr.bf16.gmra.mrb[0].mxu0 %v1449
      %v1557 = vpop.f32.mrb[0].mxu0
      %v1558 = vadd.f32 0.0, %v1557
      %v1559 = vpop.f32.mrb[0].mxu0
      %v1560 = vpop.f32.mrb[0].mxu0
      %v1561 = vadd.f32 0.0, %v1560
      %v1562 = vpop.f32.mrb[0].mxu0
      %1563 = vdwg.mxu0
      %v1564 = vadd.f32 %v1354, %v1486
      %v1565 = vadd.f32 %v1355, %v1489
      %v1566 = vadd.f32 %v1356, %v1494
      %v1567 = vadd.f32 %v1357, %v1497
      %v1568 = vadd.f32 %v1358, %v1502
      %v1569 = vadd.f32 %v1359, %v1505
      %v1570 = vadd.f32 %v1360, %v1510
      %v1571 = vadd.f32 %v1361, %v1513
      %v1572 = vadd.f32 %v1362, %v1518
      %v1573 = vadd.f32 %v1363, %v1521
      %v1574 = vadd.f32 %v1364, %v1526
      %v1575 = vadd.f32 %v1365, %v1529
      %v1576 = vadd.f32 %v1366, %v1534
      %v1577 = vadd.f32 %v1367, %v1537
      %v1578 = vadd.f32 %v1368, %v1542
      %v1579 = vadd.f32 %v1369, %v1545
      %v1580 = vadd.f32 %v1370, %v1550
      %v1581 = vadd.f32 %v1371, %v1553
      %v1582 = vadd.f32 %v1372, %v1558
      %v1583 = vadd.f32 %v1373, %v1561
      %s1584 = sadd.s32 %s358, 2
      %s1585 = smul.u32 %s1584, 24
      %s1586 = scalar_lea.vmem [#allocation2], %s1585
      %v1587 = vld [vmem:[%s1586] sm:$0xff]
      %v1588 = vld [vmem:[%s1586 + $0x8] sm:$0xff]
      %v1589 = vld [vmem:[%s1586 + $0x18] sm:$0xff]
      %v1590 = vld [vmem:[%s1586 + $0x20] sm:$0xff]
      %v1591 = vld [vmem:[%s1586 + $0x30] sm:$0xff]
      %v1592 = vld [vmem:[%s1586 + $0x38] sm:$0xff]
      %v1593 = vld [vmem:[%s1586 + $0x48] sm:$0xff]
      %v1594 = vld [vmem:[%s1586 + $0x50] sm:$0xff]
      %v1595 = vld [vmem:[%s1586 + $0x60] sm:$0xff]
      %v1596 = vld [vmem:[%s1586 + $0x68] sm:$0xff]
      %v1597 = vld [vmem:[%s1586 + $0x78] sm:$0xff]
      %v1598 = vld [vmem:[%s1586 + $0x80] sm:$0xff]
      %v1599 = vld [vmem:[%s1586 + $0x90] sm:$0xff]
      %v1600 = vld [vmem:[%s1586 + $0x98] sm:$0xff]
      %v1601 = vld [vmem:[%s1586 + $0xa8] sm:$0xff]
      %v1602 = vld [vmem:[%s1586 + $0xb0] sm:$0xff]
      %v1603 = vld [vmem:[%s1586 + $0xc0] sm:$0xff]
      %v1604 = vld [vmem:[%s1586 + $0xc8] sm:$0xff]
      %v1605 = vld [vmem:[%s1586 + $0xd8] sm:$0xff]
      %v1606 = vld [vmem:[%s1586 + $0xe0] sm:$0xff]
      %v1607 = vpack.c.bf16 %v1588, %v1587
      %v1608 = vpack.c.bf16 %v1590, %v1589
      %v1609 = vpack.c.bf16 %v1592, %v1591
      %v1610 = vpack.c.bf16 %v1594, %v1593
      %v1611 = vpack.c.bf16 %v1596, %v1595
      %v1612 = vpack.c.bf16 %v1598, %v1597
      %v1613 = vpack.c.bf16 %v1600, %v1599
      %v1614 = vpack.c.bf16 %v1602, %v1601
      %v1615 = vpack.c.bf16 %v1604, %v1603
      %v1616 = vpack.c.bf16 %v1606, %v1605
      %s1617 = scalar_lea.vmem %s1, 96
      %v1618 = vld [vmem:[%s1617] sm:$0xf]
      %v1619 = vld [vmem:[%s1617 + $0x4] sm:$0xf]
      %v1620 = vld [vmem:[%s1617 + $0x8] sm:$0xf]
      %v1621 = vld [vmem:[%s1617 + $0xc] sm:$0xf]
      %v1626 = vunpack.c.l.b16 %v1618
      %v1627 = vunpack.c.l.b16 %v1619
      %v1628 = vunpack.c.l.b16 %v1620
      %v1629 = vunpack.c.l.b16 %v1621
      %v1630 = vpack.c.b16 %v1627, %v1626
      %v1631 = vpack.c.b16 %v1629, %v1628
      %v1635 = vsel %vm442, %v1607, 0
      %v1638 = vsel %vm442, %v1608, 0
      %v1641 = vsel %vm442, %v1609, 0
      %v1644 = vsel %vm442, %v1610, 0
      %v1647 = vsel %vm442, %v1611, 0
      %v1650 = vsel %vm442, %v1612, 0
      %v1653 = vsel %vm442, %v1613, 0
      %v1656 = vsel %vm442, %v1614, 0
      %v1659 = vsel %vm442, %v1615, 0
      %v1662 = vsel %vm442, %v1616, 0
      %1664 = vmatprep.subr.bf16.mxu0 0
      %1665 = vmatpush1.bf16.msra.mxu0 %v1630
      %1666 = vmatprep.subr.bf16.mxu0 0
      %1667 = vmatpush1.bf16.msra.mxu0 %v1631
      %1668 = vmatprep.subr.bf16.mxu0 0
      %1669 = vmatpush1.bf16.msra.mxu0 0
      %1670 = vmatprep.subr.bf16.mxu0 0
      %1671 = vmatpush1.bf16.msra.mxu0 0
      %1672 = vmatprep.subr.bf16.mxu0 0
      %1673 = vmatpush1.bf16.msra.mxu0 0
      %1674 = vmatprep.subr.bf16.mxu0 0
      %1675 = vmatpush1.bf16.msra.mxu0 0
      %1676 = vmatprep.subr.bf16.mxu0 0
      %1677 = vmatpush1.bf16.msra.mxu0 0
      %1678 = vmatprep.subr.bf16.mxu0 0
      %1679 = vmatpush1.bf16.msra.mxu0 0
      %1680 = vmatprep.subr.bf16.mxu0 0
      %1681 = vmatpush1.bf16.msra.mxu0 0
      %1682 = vmatprep.subr.bf16.mxu0 0
      %1683 = vmatpush1.bf16.msra.mxu0 0
      %1684 = vmatprep.subr.bf16.mxu0 0
      %1685 = vmatpush1.bf16.msra.mxu0 0
      %1686 = vmatprep.subr.bf16.mxu0 0
      %1687 = vmatpush1.bf16.msra.mxu0 0
      %1688 = vmatprep.subr.bf16.mxu0 0
      %1689 = vmatpush1.bf16.msra.mxu0 0
      %1690 = vmatprep.subr.bf16.mxu0 0
      %1691 = vmatpush1.bf16.msra.mxu0 0
      %1692 = vmatprep.subr.bf16.mxu0 0
      %1693 = vmatpush1.bf16.msra.mxu0 0
      %1694 = vmatprep.subr.bf16.mxu0 0
      %1695 = vmatpush1.bf16.msra.mxu0 0
      %1696 = vmatprep.mubr.bf16.mxu0 0
      %1697 = vmatmul.mubr.bf16.gmra.mrb[0].mxu0 %v1635
      %v1698 = vpop.f32.mrb[0].mxu0
      %v1699 = vadd.f32 0.0, %v1698
      %v1700 = vpop.f32.mrb[0].mxu0
      %v1701 = vpop.f32.mrb[0].mxu0
      %v1702 = vadd.f32 0.0, %v1701
      %v1703 = vpop.f32.mrb[0].mxu0
      %1704 = vmatprep.mubr.bf16.mxu0 0
      %1705 = vmatmul.mubr.bf16.gmra.mrb[0].mxu0 %v1638
      %v1706 = vpop.f32.mrb[0].mxu0
      %v1707 = vadd.f32 0.0, %v1706
      %v1708 = vpop.f32.mrb[0].mxu0
      %v1709 = vpop.f32.mrb[0].mxu0
      %v1710 = vadd.f32 0.0, %v1709
      %v1711 = vpop.f32.mrb[0].mxu0
      %1712 = vmatprep.mubr.bf16.mxu0 0
      %1713 = vmatmul.mubr.bf16.gmra.mrb[0].mxu0 %v1641
      %v1714 = vpop.f32.mrb[0].mxu0
      %v1715 = vadd.f32 0.0, %v1714
      %v1716 = vpop.f32.mrb[0].mxu0
      %v1717 = vpop.f32.mrb[0].mxu0
      %v1718 = vadd.f32 0.0, %v1717
      %v1719 = vpop.f32.mrb[0].mxu0
      %1720 = vmatprep.mubr.bf16.mxu0 0
      %1721 = vmatmul.mubr.bf16.gmra.mrb[0].mxu0 %v1644
      %v1722 = vpop.f32.mrb[0].mxu0
      %v1723 = vadd.f32 0.0, %v1722
      %v1724 = vpop.f32.mrb[0].mxu0
      %v1725 = vpop.f32.mrb[0].mxu0
      %v1726 = vadd.f32 0.0, %v1725
      %v1727 = vpop.f32.mrb[0].mxu0
      %1728 = vmatprep.mubr.bf16.mxu0 0
      %1729 = vmatmul.mubr.bf16.gmra.mrb[0].mxu0 %v1647
      %v1730 = vpop.f32.mrb[0].mxu0
      %v1731 = vadd.f32 0.0, %v1730
      %v1732 = vpop.f32.mrb[0].mxu0
      %v1733 = vpop.f32.mrb[0].mxu0
      %v1734 = vadd.f32 0.0, %v1733
      %v1735 = vpop.f32.mrb[0].mxu0
      %1736 = vmatprep.mubr.bf16.mxu0 0
      %1737 = vmatmul.mubr.bf16.gmra.mrb[0].mxu0 %v1650
      %v1738 = vpop.f32.mrb[0].mxu0
      %v1739 = vadd.f32 0.0, %v1738
      %v1740 = vpop.f32.mrb[0].mxu0
      %v1741 = vpop.f32.mrb[0].mxu0
      %v1742 = vadd.f32 0.0, %v1741
      %v1743 = vpop.f32.mrb[0].mxu0
      %1744 = vmatprep.mubr.bf16.mxu0 0
      %1745 = vmatmul.mubr.bf16.gmra.mrb[0].mxu0 %v1653
      %v1746 = vpop.f32.mrb[0].mxu0
      %v1747 = vadd.f32 0.0, %v1746
      %v1748 = vpop.f32.mrb[0].mxu0
      %v1749 = vpop.f32.mrb[0].mxu0
      %v1750 = vadd.f32 0.0, %v1749
      %v1751 = vpop.f32.mrb[0].mxu0
      %1752 = vmatprep.mubr.bf16.mxu0 0
      %1753 = vmatmul.mubr.bf16.gmra.mrb[0].mxu0 %v1656
      %v1754 = vpop.f32.mrb[0].mxu0
      %v1755 = vadd.f32 0.0, %v1754
      %v1756 = vpop.f32.mrb[0].mxu0
      %v1757 = vpop.f32.mrb[0].mxu0
      %v1758 = vadd.f32 0.0, %v1757
      %v1759 = vpop.f32.mrb[0].mxu0
      %1760 = vmatprep.mubr.bf16.mxu0 0
      %1761 = vmatmul.mubr.bf16.gmra.mrb[0].mxu0 %v1659
      %v1762 = vpop.f32.mrb[0].mxu0
      %v1763 = vadd.f32 0.0, %v1762
      %v1764 = vpop.f32.mrb[0].mxu0
      %v1765 = vpop.f32.mrb[0].mxu0
      %v1766 = vadd.f32 0.0, %v1765
      %v1767 = vpop.f32.mrb[0].mxu0
      %1768 = vmatprep.mubr.bf16.mxu0 0
      %1769 = vmatmul.mubr.bf16.gmra.mrb[0].mxu0 %v1662
      %v1770 = vpop.f32.mrb[0].mxu0
      %v1771 = vadd.f32 0.0, %v1770
      %v1772 = vpop.f32.mrb[0].mxu0
      %v1773 = vpop.f32.mrb[0].mxu0
      %v1774 = vadd.f32 0.0, %v1773
      %v1775 = vpop.f32.mrb[0].mxu0
      %1776 = vdwg.mxu0
      %v1777 = vadd.f32 %v1564, %v1699
      %v1778 = vadd.f32 %v1565, %v1702
      %v1779 = vadd.f32 %v1566, %v1707
      %v1780 = vadd.f32 %v1567, %v1710
      %v1781 = vadd.f32 %v1568, %v1715
      %v1782 = vadd.f32 %v1569, %v1718
      %v1783 = vadd.f32 %v1570, %v1723
      %v1784 = vadd.f32 %v1571, %v1726
      %v1785 = vadd.f32 %v1572, %v1731
      %v1786 = vadd.f32 %v1573, %v1734
      %v1787 = vadd.f32 %v1574, %v1739
      %v1788 = vadd.f32 %v1575, %v1742
      %v1789 = vadd.f32 %v1576, %v1747
      %v1790 = vadd.f32 %v1577, %v1750
      %v1791 = vadd.f32 %v1578, %v1755
      %v1792 = vadd.f32 %v1579, %v1758
      %v1793 = vadd.f32 %v1580, %v1763
      %v1794 = vadd.f32 %v1581, %v1766
      %v1795 = vadd.f32 %v1582, %v1771
      %v1796 = vadd.f32 %v1583, %v1774
      %v1797 = vld [vmem:[%s1586 + $0x1] sm:$0xff]
      %v1798 = vld [vmem:[%s1586 + $0x9] sm:$0xff]
      %v1799 = vld [vmem:[%s1586 + $0x19] sm:$0xff]
      %v1800 = vld [vmem:[%s1586 + $0x21] sm:$0xff]
      %v1801 = vld [vmem:[%s1586 + $0x31] sm:$0xff]
      %v1802 = vld [vmem:[%s1586 + $0x39] sm:$0xff]
      %v1803 = vld [vmem:[%s1586 + $0x49] sm:$0xff]
      %v1804 = vld [vmem:[%s1586 + $0x51] sm:$0xff]
      %v1805 = vld [vmem:[%s1586 + $0x61] sm:$0xff]
      %v1806 = vld [vmem:[%s1586 + $0x69] sm:$0xff]
      %v1807 = vld [vmem:[%s1586 + $0x79] sm:$0xff]
      %v1808 = vld [vmem:[%s1586 + $0x81] sm:$0xff]
      %v1809 = vld [vmem:[%s1586 + $0x91] sm:$0xff]
      %v1810 = vld [vmem:[%s1586 + $0x99] sm:$0xff]
      %v1811 = vld [vmem:[%s1586 + $0xa9] sm:$0xff]
      %v1812 = vld [vmem:[%s1586 + $0xb1] sm:$0xff]
      %v1813 = vld [vmem:[%s1586 + $0xc1] sm:$0xff]
      %v1814 = vld [vmem:[%s1586 + $0xc9] sm:$0xff]
      %v1815 = vld [vmem:[%s1586 + $0xd9] sm:$0xff]
      %v1816 = vld [vmem:[%s1586 + $0xe1] sm:$0xff]
      %v1817 = vpack.c.bf16 %v1798, %v1797
      %v1818 = vpack.c.bf16 %v1800, %v1799
      %v1819 = vpack.c.bf16 %v1802, %v1801
      %v1820 = vpack.c.bf16 %v1804, %v1803
      %v1821 = vpack.c.bf16 %v1806, %v1805
      %v1822 = vpack.c.bf16 %v1808, %v1807
      %v1823 = vpack.c.bf16 %v1810, %v1809
      %v1824 = vpack.c.bf16 %v1812, %v1811
      %v1825 = vpack.c.bf16 %v1814, %v1813
      %v1826 = vpack.c.bf16 %v1816, %v1815
      %s1827 = scalar_lea.vmem %s1, 112
      %v1828 = vld [vmem:[%s1827] sm:$0xf]
      %v1829 = vld [vmem:[%s1827 + $0x4] sm:$0xf]
      %v1830 = vld [vmem:[%s1827 + $0x8] sm:$0xf]
      %v1831 = vld [vmem:[%s1827 + $0xc] sm:$0xf]
      %v1836 = vunpack.c.l.b16 %v1828
      %v1837 = vunpack.c.l.b16 %v1829
      %v1838 = vunpack.c.l.b16 %v1830
      %v1839 = vunpack.c.l.b16 %v1831
      %v1840 = vpack.c.b16 %v1837, %v1836
      %v1841 = vpack.c.b16 %v1839, %v1838
      %v1845 = vsel %vm442, %v1817, 0
      %v1848 = vsel %vm442, %v1818, 0
      %v1851 = vsel %vm442, %v1819, 0
      %v1854 = vsel %vm442, %v1820, 0
      %v1857 = vsel %vm442, %v1821, 0
      %v1860 = vsel %vm442, %v1822, 0
      %v1863 = vsel %vm442, %v1823, 0
      %v1866 = vsel %vm442, %v1824, 0
      %v1869 = vsel %vm442, %v1825, 0
      %v1872 = vsel %vm442, %v1826, 0
      %1874 = vmatprep.subr.bf16.mxu0 0
      %1875 = vmatpush1.bf16.msra.mxu0 %v1840
      %1876 = vmatprep.subr.bf16.mxu0 0
      %1877 = vmatpush1.bf16.msra.mxu0 %v1841
      %1878 = vmatprep.subr.bf16.mxu0 0
      %1879 = vmatpush1.bf16.msra.mxu0 0
      %1880 = vmatprep.subr.bf16.mxu0 0
      %1881 = vmatpush1.bf16.msra.mxu0 0
      %1882 = vmatprep.subr.bf16.mxu0 0
      %1883 = vmatpush1.bf16.msra.mxu0 0
      %1884 = vmatprep.subr.bf16.mxu0 0
      %1885 = vmatpush1.bf16.msra.mxu0 0
      %1886 = vmatprep.subr.bf16.mxu0 0
      %1887 = vmatpush1.bf16.msra.mxu0 0
      %1888 = vmatprep.subr.bf16.mxu0 0
      %1889 = vmatpush1.bf16.msra.mxu0 0
      %1890 = vmatprep.subr.bf16.mxu0 0
      %1891 = vmatpush1.bf16.msra.mxu0 0
      %1892 = vmatprep.subr.bf16.mxu0 0
      %1893 = vmatpush1.bf16.msra.mxu0 0
      %1894 = vmatprep.subr.bf16.mxu0 0
      %1895 = vmatpush1.bf16.msra.mxu0 0
      %1896 = vmatprep.subr.bf16.mxu0 0
      %1897 = vmatpush1.bf16.msra.mxu0 0
      %1898 = vmatprep.subr.bf16.mxu0 0
      %1899 = vmatpush1.bf16.msra.mxu0 0
      %1900 = vmatprep.subr.bf16.mxu0 0
      %1901 = vmatpush1.bf16.msra.mxu0 0
      %1902 = vmatprep.subr.bf16.mxu0 0
      %1903 = vmatpush1.bf16.msra.mxu0 0
      %1904 = vmatprep.subr.bf16.mxu0 0
      %1905 = vmatpush1.bf16.msra.mxu0 0
      %1906 = vmatprep.mubr.bf16.mxu0 0
      %1907 = vmatmul.mubr.bf16.gmra.mrb[0].mxu0 %v1845
      %v1908 = vpop.f32.mrb[0].mxu0
      %v1909 = vadd.f32 0.0, %v1908
      %v1910 = vpop.f32.mrb[0].mxu0
      %v1911 = vpop.f32.mrb[0].mxu0
      %v1912 = vadd.f32 0.0, %v1911
      %v1913 = vpop.f32.mrb[0].mxu0
      %1914 = vmatprep.mubr.bf16.mxu0 0
      %1915 = vmatmul.mubr.bf16.gmra.mrb[0].mxu0 %v1848
      %v1916 = vpop.f32.mrb[0].mxu0
      %v1917 = vadd.f32 0.0, %v1916
      %v1918 = vpop.f32.mrb[0].mxu0
      %v1919 = vpop.f32.mrb[0].mxu0
      %v1920 = vadd.f32 0.0, %v1919
      %v1921 = vpop.f32.mrb[0].mxu0
      %1922 = vmatprep.mubr.bf16.mxu0 0
      %1923 = vmatmul.mubr.bf16.gmra.mrb[0].mxu0 %v1851
      %v1924 = vpop.f32.mrb[0].mxu0
      %v1925 = vadd.f32 0.0, %v1924
      %v1926 = vpop.f32.mrb[0].mxu0
      %v1927 = vpop.f32.mrb[0].mxu0
      %v1928 = vadd.f32 0.0, %v1927
      %v1929 = vpop.f32.mrb[0].mxu0
      %1930 = vmatprep.mubr.bf16.mxu0 0
      %1931 = vmatmul.mubr.bf16.gmra.mrb[0].mxu0 %v1854
      %v1932 = vpop.f32.mrb[0].mxu0
      %v1933 = vadd.f32 0.0, %v1932
      %v1934 = vpop.f32.mrb[0].mxu0
      %v1935 = vpop.f32.mrb[0].mxu0
      %v1936 = vadd.f32 0.0, %v1935
      %v1937 = vpop.f32.mrb[0].mxu0
      %1938 = vmatprep.mubr.bf16.mxu0 0
      %1939 = vmatmul.mubr.bf16.gmra.mrb[0].mxu0 %v1857
      %v1940 = vpop.f32.mrb[0].mxu0
      %v1941 = vadd.f32 0.0, %v1940
      %v1942 = vpop.f32.mrb[0].mxu0
      %v1943 = vpop.f32.mrb[0].mxu0
      %v1944 = vadd.f32 0.0, %v1943
      %v1945 = vpop.f32.mrb[0].mxu0
      %1946 = vmatprep.mubr.bf16.mxu0 0
      %1947 = vmatmul.mubr.bf16.gmra.mrb[0].mxu0 %v1860
      %v1948 = vpop.f32.mrb[0].mxu0
      %v1949 = vadd.f32 0.0, %v1948
      %v1950 = vpop.f32.mrb[0].mxu0
      %v1951 = vpop.f32.mrb[0].mxu0
      %v1952 = vadd.f32 0.0, %v1951
      %v1953 = vpop.f32.mrb[0].mxu0
      %1954 = vmatprep.mubr.bf16.mxu0 0
      %1955 = vmatmul.mubr.bf16.gmra.mrb[0].mxu0 %v1863
      %v1956 = vpop.f32.mrb[0].mxu0
      %v1957 = vadd.f32 0.0, %v1956
      %v1958 = vpop.f32.mrb[0].mxu0
      %v1959 = vpop.f32.mrb[0].mxu0
      %v1960 = vadd.f32 0.0, %v1959
      %v1961 = vpop.f32.mrb[0].mxu0
      %1962 = vmatprep.mubr.bf16.mxu0 0
      %1963 = vmatmul.mubr.bf16.gmra.mrb[0].mxu0 %v1866
      %v1964 = vpop.f32.mrb[0].mxu0
      %v1965 = vadd.f32 0.0, %v1964
      %v1966 = vpop.f32.mrb[0].mxu0
      %v1967 = vpop.f32.mrb[0].mxu0
      %v1968 = vadd.f32 0.0, %v1967
      %v1969 = vpop.f32.mrb[0].mxu0
      %1970 = vmatprep.mubr.bf16.mxu0 0
      %1971 = vmatmul.mubr.bf16.gmra.mrb[0].mxu0 %v1869
      %v1972 = vpop.f32.mrb[0].mxu0
      %v1973 = vadd.f32 0.0, %v1972
      %v1974 = vpop.f32.mrb[0].mxu0
      %v1975 = vpop.f32.mrb[0].mxu0
      %v1976 = vadd.f32 0.0, %v1975
      %v1977 = vpop.f32.mrb[0].mxu0
      %1978 = vmatprep.mubr.bf16.mxu0 0
      %1979 = vmatmul.mubr.bf16.gmra.mrb[0].mxu0 %v1872
      %v1980 = vpop.f32.mrb[0].mxu0
      %v1981 = vadd.f32 0.0, %v1980
      %v1982 = vpop.f32.mrb[0].mxu0
      %v1983 = vpop.f32.mrb[0].mxu0
      %v1984 = vadd.f32 0.0, %v1983
      %v1985 = vpop.f32.mrb[0].mxu0
      %1986 = vdwg.mxu0
      %v1987 = vadd.f32 %v1777, %v1909
      %v1988 = vadd.f32 %v1778, %v1912
      %v1989 = vadd.f32 %v1779, %v1917
      %v1990 = vadd.f32 %v1780, %v1920
      %v1991 = vadd.f32 %v1781, %v1925
      %v1992 = vadd.f32 %v1782, %v1928
      %v1993 = vadd.f32 %v1783, %v1933
      %v1994 = vadd.f32 %v1784, %v1936
      %v1995 = vadd.f32 %v1785, %v1941
      %v1996 = vadd.f32 %v1786, %v1944
      %v1997 = vadd.f32 %v1787, %v1949
      %v1998 = vadd.f32 %v1788, %v1952
      %v1999 = vadd.f32 %v1789, %v1957
      %v2000 = vadd.f32 %v1790, %v1960
      %v2001 = vadd.f32 %v1791, %v1965
      %v2002 = vadd.f32 %v1792, %v1968
      %v2003 = vadd.f32 %v1793, %v1973
      %v2004 = vadd.f32 %v1794, %v1976
      %v2005 = vadd.f32 %v1795, %v1981
      %v2006 = vadd.f32 %v1796, %v1984
      %v2007 = vld [vmem:[%s1586 + $0x2] sm:$0xff]
      %v2008 = vld [vmem:[%s1586 + $0xa] sm:$0xff]
      %v2009 = vld [vmem:[%s1586 + $0x1a] sm:$0xff]
      %v2010 = vld [vmem:[%s1586 + $0x22] sm:$0xff]
      %v2011 = vld [vmem:[%s1586 + $0x32] sm:$0xff]
      %v2012 = vld [vmem:[%s1586 + $0x3a] sm:$0xff]
      %v2013 = vld [vmem:[%s1586 + $0x4a] sm:$0xff]
      %v2014 = vld [vmem:[%s1586 + $0x52] sm:$0xff]
      %v2015 = vld [vmem:[%s1586 + $0x62] sm:$0xff]
      %v2016 = vld [vmem:[%s1586 + $0x6a] sm:$0xff]
      %v2017 = vld [vmem:[%s1586 + $0x7a] sm:$0xff]
      %v2018 = vld [vmem:[%s1586 + $0x82] sm:$0xff]
      %v2019 = vld [vmem:[%s1586 + $0x92] sm:$0xff]
      %v2020 = vld [vmem:[%s1586 + $0x9a] sm:$0xff]
      %v2021 = vld [vmem:[%s1586 + $0xaa] sm:$0xff]
      %v2022 = vld [vmem:[%s1586 + $0xb2] sm:$0xff]
      %v2023 = vld [vmem:[%s1586 + $0xc2] sm:$0xff]
      %v2024 = vld [vmem:[%s1586 + $0xca] sm:$0xff]
      %v2025 = vld [vmem:[%s1586 + $0xda] sm:$0xff]
      %v2026 = vld [vmem:[%s1586 + $0xe2] sm:$0xff]
      %v2027 = vpack.c.bf16 %v2008, %v2007
      %v2028 = vpack.c.bf16 %v2010, %v2009
      %v2029 = vpack.c.bf16 %v2012, %v2011
      %v2030 = vpack.c.bf16 %v2014, %v2013
      %v2031 = vpack.c.bf16 %v2016, %v2015
      %v2032 = vpack.c.bf16 %v2018, %v2017
      %v2033 = vpack.c.bf16 %v2020, %v2019
      %v2034 = vpack.c.bf16 %v2022, %v2021
      %v2035 = vpack.c.bf16 %v2024, %v2023
      %v2036 = vpack.c.bf16 %v2026, %v2025
      %s2037 = scalar_lea.vmem %s1, 128
      %v2038 = vld [vmem:[%s2037] sm:$0xf]
      %v2039 = vld [vmem:[%s2037 + $0x4] sm:$0xf]
      %v2040 = vld [vmem:[%s2037 + $0x8] sm:$0xf]
      %v2041 = vld [vmem:[%s2037 + $0xc] sm:$0xf]
      %v2046 = vunpack.c.l.b16 %v2038
      %v2047 = vunpack.c.l.b16 %v2039
      %v2048 = vunpack.c.l.b16 %v2040
      %v2049 = vunpack.c.l.b16 %v2041
      %v2050 = vpack.c.b16 %v2047, %v2046
      %v2051 = vpack.c.b16 %v2049, %v2048
      %v2055 = vsel %vm442, %v2027, 0
      %v2058 = vsel %vm442, %v2028, 0
      %v2061 = vsel %vm442, %v2029, 0
      %v2064 = vsel %vm442, %v2030, 0
      %v2067 = vsel %vm442, %v2031, 0
      %v2070 = vsel %vm442, %v2032, 0
      %v2073 = vsel %vm442, %v2033, 0
      %v2076 = vsel %vm442, %v2034, 0
      %v2079 = vsel %vm442, %v2035, 0
      %v2082 = vsel %vm442, %v2036, 0
      %2084 = vmatprep.subr.bf16.mxu0 0
      %2085 = vmatpush1.bf16.msra.mxu0 %v2050
      %2086 = vmatprep.subr.bf16.mxu0 0
      %2087 = vmatpush1.bf16.msra.mxu0 %v2051
      %2088 = vmatprep.subr.bf16.mxu0 0
      %2089 = vmatpush1.bf16.msra.mxu0 0
      %2090 = vmatprep.subr.bf16.mxu0 0
      %2091 = vmatpush1.bf16.msra.mxu0 0
      %2092 = vmatprep.subr.bf16.mxu0 0
      %2093 = vmatpush1.bf16.msra.mxu0 0
      %2094 = vmatprep.subr.bf16.mxu0 0
      %2095 = vmatpush1.bf16.msra.mxu0 0
      %2096 = vmatprep.subr.bf16.mxu0 0
      %2097 = vmatpush1.bf16.msra.mxu0 0
      %2098 = vmatprep.subr.bf16.mxu0 0
      %2099 = vmatpush1.bf16.msra.mxu0 0
      %2100 = vmatprep.subr.bf16.mxu0 0
      %2101 = vmatpush1.bf16.msra.mxu0 0
      %2102 = vmatprep.subr.bf16.mxu0 0
      %2103 = vmatpush1.bf16.msra.mxu0 0
      %2104 = vmatprep.subr.bf16.mxu0 0
      %2105 = vmatpush1.bf16.msra.mxu0 0
      %2106 = vmatprep.subr.bf16.mxu0 0
      %2107 = vmatpush1.bf16.msra.mxu0 0
      %2108 = vmatprep.subr.bf16.mxu0 0
      %2109 = vmatpush1.bf16.msra.mxu0 0
      %2110 = vmatprep.subr.bf16.mxu0 0
      %2111 = vmatpush1.bf16.msra.mxu0 0
      %2112 = vmatprep.subr.bf16.mxu0 0
      %2113 = vmatpush1.bf16.msra.mxu0 0
      %2114 = vmatprep.subr.bf16.mxu0 0
      %2115 = vmatpush1.bf16.msra.mxu0 0
      %2116 = vmatprep.mubr.bf16.mxu0 0
      %2117 = vmatmul.mubr.bf16.gmra.mrb[0].mxu0 %v2055
      %v2118 = vpop.f32.mrb[0].mxu0
      %v2119 = vadd.f32 0.0, %v2118
      %v2120 = vpop.f32.mrb[0].mxu0
      %v2121 = vpop.f32.mrb[0].mxu0
      %v2122 = vadd.f32 0.0, %v2121
      %v2123 = vpop.f32.mrb[0].mxu0
      %2124 = vmatprep.mubr.bf16.mxu0 0
      %2125 = vmatmul.mubr.bf16.gmra.mrb[0].mxu0 %v2058
      %v2126 = vpop.f32.mrb[0].mxu0
      %v2127 = vadd.f32 0.0, %v2126
      %v2128 = vpop.f32.mrb[0].mxu0
      %v2129 = vpop.f32.mrb[0].mxu0
      %v2130 = vadd.f32 0.0, %v2129
      %v2131 = vpop.f32.mrb[0].mxu0
      %2132 = vmatprep.mubr.bf16.mxu0 0
      %2133 = vmatmul.mubr.bf16.gmra.mrb[0].mxu0 %v2061
      %v2134 = vpop.f32.mrb[0].mxu0
      %v2135 = vadd.f32 0.0, %v2134
      %v2136 = vpop.f32.mrb[0].mxu0
      %v2137 = vpop.f32.mrb[0].mxu0
      %v2138 = vadd.f32 0.0, %v2137
      %v2139 = vpop.f32.mrb[0].mxu0
      %2140 = vmatprep.mubr.bf16.mxu0 0
      %2141 = vmatmul.mubr.bf16.gmra.mrb[0].mxu0 %v2064
      %v2142 = vpop.f32.mrb[0].mxu0
      %v2143 = vadd.f32 0.0, %v2142
      %v2144 = vpop.f32.mrb[0].mxu0
      %v2145 = vpop.f32.mrb[0].mxu0
      %v2146 = vadd.f32 0.0, %v2145
      %v2147 = vpop.f32.mrb[0].mxu0
      %2148 = vmatprep.mubr.bf16.mxu0 0
      %2149 = vmatmul.mubr.bf16.gmra.mrb[0].mxu0 %v2067
      %v2150 = vpop.f32.mrb[0].mxu0
      %v2151 = vadd.f32 0.0, %v2150
      %v2152 = vpop.f32.mrb[0].mxu0
      %v2153 = vpop.f32.mrb[0].mxu0
      %v2154 = vadd.f32 0.0, %v2153
      %v2155 = vpop.f32.mrb[0].mxu0
      %2156 = vmatprep.mubr.bf16.mxu0 0
      %2157 = vmatmul.mubr.bf16.gmra.mrb[0].mxu0 %v2070
      %v2158 = vpop.f32.mrb[0].mxu0
      %v2159 = vadd.f32 0.0, %v2158
      %v2160 = vpop.f32.mrb[0].mxu0
      %v2161 = vpop.f32.mrb[0].mxu0
      %v2162 = vadd.f32 0.0, %v2161
      %v2163 = vpop.f32.mrb[0].mxu0
      %2164 = vmatprep.mubr.bf16.mxu0 0
      %2165 = vmatmul.mubr.bf16.gmra.mrb[0].mxu0 %v2073
      %v2166 = vpop.f32.mrb[0].mxu0
      %v2167 = vadd.f32 0.0, %v2166
      %v2168 = vpop.f32.mrb[0].mxu0
      %v2169 = vpop.f32.mrb[0].mxu0
      %v2170 = vadd.f32 0.0, %v2169
      %v2171 = vpop.f32.mrb[0].mxu0
      %2172 = vmatprep.mubr.bf16.mxu0 0
      %2173 = vmatmul.mubr.bf16.gmra.mrb[0].mxu0 %v2076
      %v2174 = vpop.f32.mrb[0].mxu0
      %v2175 = vadd.f32 0.0, %v2174
      %v2176 = vpop.f32.mrb[0].mxu0
      %v2177 = vpop.f32.mrb[0].mxu0
      %v2178 = vadd.f32 0.0, %v2177
      %v2179 = vpop.f32.mrb[0].mxu0
      %2180 = vmatprep.mubr.bf16.mxu0 0
      %2181 = vmatmul.mubr.bf16.gmra.mrb[0].mxu0 %v2079
      %v2182 = vpop.f32.mrb[0].mxu0
      %v2183 = vadd.f32 0.0, %v2182
      %v2184 = vpop.f32.mrb[0].mxu0
      %v2185 = vpop.f32.mrb[0].mxu0
      %v2186 = vadd.f32 0.0, %v2185
      %v2187 = vpop.f32.mrb[0].mxu0
      %2188 = vmatprep.mubr.bf16.mxu0 0
      %2189 = vmatmul.mubr.bf16.gmra.mrb[0].mxu0 %v2082
      %v2190 = vpop.f32.mrb[0].mxu0
      %v2191 = vadd.f32 0.0, %v2190
      %v2192 = vpop.f32.mrb[0].mxu0
      %v2193 = vpop.f32.mrb[0].mxu0
      %v2194 = vadd.f32 0.0, %v2193
      %v2195 = vpop.f32.mrb[0].mxu0
      %2196 = vdwg.mxu0
      %v2197 = vadd.f32 %v1987, %v2119
      %v2198 = vadd.f32 %v1988, %v2122
      %v2199 = vadd.f32 %v1989, %v2127
      %v2200 = vadd.f32 %v1990, %v2130
      %v2201 = vadd.f32 %v1991, %v2135
      %v2202 = vadd.f32 %v1992, %v2138
      %v2203 = vadd.f32 %v1993, %v2143
      %v2204 = vadd.f32 %v1994, %v2146
      %v2205 = vadd.f32 %v1995, %v2151
      %v2206 = vadd.f32 %v1996, %v2154
      %v2207 = vadd.f32 %v1997, %v2159
      %v2208 = vadd.f32 %v1998, %v2162
      %v2209 = vadd.f32 %v1999, %v2167
      %v2210 = vadd.f32 %v2000, %v2170
      %v2211 = vadd.f32 %v2001, %v2175
      %v2212 = vadd.f32 %v2002, %v2178
      %v2213 = vadd.f32 %v2003, %v2183
      %v2214 = vadd.f32 %v2004, %v2186
      %v2215 = vadd.f32 %v2005, %v2191
      %v2216 = vadd.f32 %v2006, %v2194
      %v2217 = vmax.f32 %v2197, 0.0
      %v2218 = vmax.f32 %v2198, 0.0
      %v2219 = vmax.f32 %v2199, 0.0
      %v2220 = vmax.f32 %v2200, 0.0
      %v2221 = vmax.f32 %v2201, 0.0
      %v2222 = vmax.f32 %v2202, 0.0
      %v2223 = vmax.f32 %v2203, 0.0
      %v2224 = vmax.f32 %v2204, 0.0
      %v2225 = vmax.f32 %v2205, 0.0
      %v2226 = vmax.f32 %v2206, 0.0
      %v2227 = vmax.f32 %v2207, 0.0
      %v2228 = vmax.f32 %v2208, 0.0
      %v2229 = vmax.f32 %v2209, 0.0
      %v2230 = vmax.f32 %v2210, 0.0
      %v2231 = vmax.f32 %v2211, 0.0
      %v2232 = vmax.f32 %v2212, 0.0
      %v2233 = vmax.f32 %v2213, 0.0
      %v2234 = vmax.f32 %v2214, 0.0
      %v2235 = vmax.f32 %v2215, 0.0
      %v2236 = vmax.f32 %v2216, 0.0
      %2237 = vst.msk [vmem:[#allocation3 + $0x1] sm:$0xff] %vm442, %v2217
      %2238 = vst.msk [vmem:[#allocation3 + $0x9] sm:$0xff] %vm442, %v2218
      %2239 = vst.msk [vmem:[#allocation3 + $0x19] sm:$0xff] %vm442, %v2219
      %2240 = vst.msk [vmem:[#allocation3 + $0x21] sm:$0xff] %vm442, %v2220
      %2241 = vst.msk [vmem:[#allocation3 + $0x31] sm:$0xff] %vm442, %v2221
      %2242 = vst.msk [vmem:[#allocation3 + $0x39] sm:$0xff] %vm442, %v2222
      %2243 = vst.msk [vmem:[#allocation3 + $0x49] sm:$0xff] %vm442, %v2223
      %2244 = vst.msk [vmem:[#allocation3 + $0x51] sm:$0xff] %vm442, %v2224
      %2245 = vst.msk [vmem:[#allocation3 + $0x61] sm:$0xff] %vm442, %v2225
      %2246 = vst.msk [vmem:[#allocation3 + $0x69] sm:$0xff] %vm442, %v2226
      %2247 = vst.msk [vmem:[#allocation3 + $0x79] sm:$0xff] %vm442, %v2227
      %2248 = vst.msk [vmem:[#allocation3 + $0x81] sm:$0xff] %vm442, %v2228
      %2249 = vst.msk [vmem:[#allocation3 + $0x91] sm:$0xff] %vm442, %v2229
      %2250 = vst.msk [vmem:[#allocation3 + $0x99] sm:$0xff] %vm442, %v2230
      %2251 = vst.msk [vmem:[#allocation3 + $0xa9] sm:$0xff] %vm442, %v2231
      %2252 = vst.msk [vmem:[#allocation3 + $0xb1] sm:$0xff] %vm442, %v2232
      %2253 = vst.msk [vmem:[#allocation3 + $0xc1] sm:$0xff] %vm442, %v2233
      %2254 = vst.msk [vmem:[#allocation3 + $0xc9] sm:$0xff] %vm442, %v2234
      %2255 = vst.msk [vmem:[#allocation3 + $0xd9] sm:$0xff] %vm442, %v2235
      %2256 = vst.msk [vmem:[#allocation3 + $0xe1] sm:$0xff] %vm442, %v2236
      // Predicated region
      $region37: #{resnet_forward.6} parent=31 // pred_check
        %p2257 = pneg %p197
      $region38: #{resnet_forward.6} parent=31 // pred_check_branch
        %2259 = sbr.rel (%p2257) target = $region40
      $region39: #{resnet_forward.6} parent=31 // pred_region
        %2260 = vst.msk [vmem:[#allocation3] sm:$0xff] %vm442, 0.0
        %2261 = vst.msk [vmem:[#allocation3 + $0x8] sm:$0xff] %vm442, 0.0
        %vm2262 = vcmask 254976
        %2263 = vst.msk [vmem:[#allocation3 + $0x10] sm:$0x3] %vm2262, 0.0
      $region40: #{resnet_forward.6} parent=31 // pred_fallthru
        _
      %p2264 = scmp.eq.s32.totalorder %s19, 1
      // Predicated region
      $region41: #{resnet_forward.6} parent=31 // pred_check
        %p2265 = pneg %p2264
      $region42: #{resnet_forward.6} parent=31 // pred_check_branch
        %2267 = sbr.rel (%p2265) target = $region44
      $region43: #{resnet_forward.6} parent=31 // pred_region
        %s2268 = scalar_lea.vmem [#allocation3], 216
        %2269 = vst.msk [vmem:[%s2268] sm:$0xff] %vm442, 0.0
        %2270 = vst.msk [vmem:[%s2268 + $0x8] sm:$0xff] %vm442, 0.0
        %vm2271 = vcmask 254976
        %2272 = vst.msk [vmem:[%s2268 + $0x10] sm:$0x3] %vm2271, 0.0
      $region44: #{resnet_forward.6} parent=31 // pred_fallthru
        _
      %v2273 = vld [vmem:[#allocation3] sm:$0xff]
      %v2274 = vld [vmem:[#allocation3 + $0x8] sm:$0xff]
      %v2275 = vld [vmem:[#allocation3 + $0x18] sm:$0xff]
      %v2276 = vld [vmem:[#allocation3 + $0x20] sm:$0xff]
      %v2277 = vld [vmem:[#allocation3 + $0x30] sm:$0xff]
      %v2278 = vld [vmem:[#allocation3 + $0x38] sm:$0xff]
      %v2279 = vld [vmem:[#allocation3 + $0x48] sm:$0xff]
      %v2280 = vld [vmem:[#allocation3 + $0x50] sm:$0xff]
      %v2281 = vld [vmem:[#allocation3 + $0x60] sm:$0xff]
      %v2282 = vld [vmem:[#allocation3 + $0x68] sm:$0xff]
      %v2283 = vld [vmem:[#allocation3 + $0x78] sm:$0xff]
      %v2284 = vld [vmem:[#allocation3 + $0x80] sm:$0xff]
      %v2285 = vld [vmem:[#allocation3 + $0x90] sm:$0xff]
      %v2286 = vld [vmem:[#allocation3 + $0x98] sm:$0xff]
      %v2287 = vld [vmem:[#allocation3 + $0xa8] sm:$0xff]
      %v2288 = vld [vmem:[#allocation3 + $0xb0] sm:$0xff]
      %v2289 = vpack.c.bf16 %v2274, %v2273
      %v2290 = vpack.c.bf16 %v2276, %v2275
      %v2291 = vpack.c.bf16 %v2278, %v2277
      %v2292 = vpack.c.bf16 %v2280, %v2279
      %v2293 = vpack.c.bf16 %v2282, %v2281
      %v2294 = vpack.c.bf16 %v2284, %v2283
      %v2295 = vpack.c.bf16 %v2286, %v2285
      %v2296 = vpack.c.bf16 %v2288, %v2287
      %v2297 = vld [vmem:[%s2] sm:$0xf]
      %v2298 = vld [vmem:[%s2 + $0x4] sm:$0xf]
      %v2299 = vld [vmem:[%s2 + $0x8] sm:$0xf]
      %v2300 = vld [vmem:[%s2 + $0xc] sm:$0xf]
      %v2301 = vld [vmem:[#allocation3 + $0x1] sm:$0xff]
      %v2302 = vld [vmem:[#allocation3 + $0x9] sm:$0xff]
      %v2303 = vld [vmem:[#allocation3 + $0x19] sm:$0xff]
      %v2304 = vld [vmem:[#allocation3 + $0x21] sm:$0xff]
      %v2305 = vld [vmem:[#allocation3 + $0x31] sm:$0xff]
      %v2306 = vld [vmem:[#allocation3 + $0x39] sm:$0xff]
      %v2307 = vld [vmem:[#allocation3 + $0x49] sm:$0xff]
      %v2308 = vld [vmem:[#allocation3 + $0x51] sm:$0xff]
      %v2309 = vld [vmem:[#allocation3 + $0x61] sm:$0xff]
      %v2310 = vld [vmem:[#allocation3 + $0x69] sm:$0xff]
      %v2311 = vld [vmem:[#allocation3 + $0x79] sm:$0xff]
      %v2312 = vld [vmem:[#allocation3 + $0x81] sm:$0xff]
      %v2313 = vld [vmem:[#allocation3 + $0x91] sm:$0xff]
      %v2314 = vld [vmem:[#allocation3 + $0x99] sm:$0xff]
      %v2315 = vld [vmem:[#allocation3 + $0xa9] sm:$0xff]
      %v2316 = vld [vmem:[#allocation3 + $0xb1] sm:$0xff]
      %v2317 = vpack.c.bf16 %v2302, %v2301
      %v2318 = vpack.c.bf16 %v2304, %v2303
      %v2319 = vpack.c.bf16 %v2306, %v2305
      %v2320 = vpack.c.bf16 %v2308, %v2307
      %v2321 = vpack.c.bf16 %v2310, %v2309
      %v2322 = vpack.c.bf16 %v2312, %v2311
      %v2323 = vpack.c.bf16 %v2314, %v2313
      %v2324 = vpack.c.bf16 %v2316, %v2315
      %s2325 = scalar_lea.vmem %s2, 16
      %v2326 = vld [vmem:[%s2325] sm:$0xf]
      %v2327 = vld [vmem:[%s2325 + $0x4] sm:$0xf]
      %v2328 = vld [vmem:[%s2325 + $0x8] sm:$0xf]
      %v2329 = vld [vmem:[%s2325 + $0xc] sm:$0xf]
      %v2334 = vunpack.c.l.b16 %v2326
      %v2335 = vunpack.c.l.b16 %v2327
      %v2336 = vunpack.c.l.b16 %v2328
      %v2337 = vunpack.c.l.b16 %v2329
      %v2338 = vpack.c.b16 %v2335, %v2334
      %v2339 = vpack.c.b16 %v2337, %v2336
      %v2343 = vsel %vm442, %v2317, 0
      %v2346 = vsel %vm442, %v2318, 0
      %v2349 = vsel %vm442, %v2319, 0
      %v2352 = vsel %vm442, %v2320, 0
      %v2355 = vsel %vm442, %v2321, 0
      %v2358 = vsel %vm442, %v2322, 0
      %v2361 = vsel %vm442, %v2323, 0
      %v2364 = vsel %vm442, %v2324, 0
      %2366 = vmatprep.subr.bf16.mxu0 0
      %2367 = vmatpush1.bf16.msra.mxu0 %v2338
      %2368 = vmatprep.subr.bf16.mxu0 0
      %2369 = vmatpush1.bf16.msra.mxu0 %v2339
      %2370 = vmatprep.subr.bf16.mxu0 0
      %2371 = vmatpush1.bf16.msra.mxu0 0
      %2372 = vmatprep.subr.bf16.mxu0 0
      %2373 = vmatpush1.bf16.msra.mxu0 0
      %2374 = vmatprep.subr.bf16.mxu0 0
      %2375 = vmatpush1.bf16.msra.mxu0 0
      %2376 = vmatprep.subr.bf16.mxu0 0
      %2377 = vmatpush1.bf16.msra.mxu0 0
      %2378 = vmatprep.subr.bf16.mxu0 0
      %2379 = vmatpush1.bf16.msra.mxu0 0
      %2380 = vmatprep.subr.bf16.mxu0 0
      %2381 = vmatpush1.bf16.msra.mxu0 0
      %2382 = vmatprep.subr.bf16.mxu0 0
      %2383 = vmatpush1.bf16.msra.mxu0 0
      %2384 = vmatprep.subr.bf16.mxu0 0
      %2385 = vmatpush1.bf16.msra.mxu0 0
      %2386 = vmatprep.subr.bf16.mxu0 0
      %2387 = vmatpush1.bf16.msra.mxu0 0
      %2388 = vmatprep.subr.bf16.mxu0 0
      %2389 = vmatpush1.bf16.msra.mxu0 0
      %2390 = vmatprep.subr.bf16.mxu0 0
      %2391 = vmatpush1.bf16.msra.mxu0 0
      %2392 = vmatprep.subr.bf16.mxu0 0
      %2393 = vmatpush1.bf16.msra.mxu0 0
      %2394 = vmatprep.subr.bf16.mxu0 0
      %2395 = vmatpush1.bf16.msra.mxu0 0
      %2396 = vmatprep.subr.bf16.mxu0 0
      %2397 = vmatpush1.bf16.msra.mxu0 0
      %2398 = vmatprep.mubr.bf16.mxu0 0
      %2399 = vmatmul.mubr.bf16.gmra.mrb[0].mxu0 %v2343
      %v2400 = vpop.f32.mrb[0].mxu0
      %v2401 = vadd.f32 0.0, %v2400
      %v2402 = vpop.f32.mrb[0].mxu0
      %v2403 = vpop.f32.mrb[0].mxu0
      %v2404 = vadd.f32 0.0, %v2403
      %v2405 = vpop.f32.mrb[0].mxu0
      %2406 = vmatprep.mubr.bf16.mxu0 0
      %2407 = vmatmul.mubr.bf16.gmra.mrb[0].mxu0 %v2346
      %v2408 = vpop.f32.mrb[0].mxu0
      %v2409 = vadd.f32 0.0, %v2408
      %v2410 = vpop.f32.mrb[0].mxu0
      %v2411 = vpop.f32.mrb[0].mxu0
      %v2412 = vadd.f32 0.0, %v2411
      %v2413 = vpop.f32.mrb[0].mxu0
      %2414 = vmatprep.mubr.bf16.mxu0 0
      %2415 = vmatmul.mubr.bf16.gmra.mrb[0].mxu0 %v2349
      %v2416 = vpop.f32.mrb[0].mxu0
      %v2417 = vadd.f32 0.0, %v2416
      %v2418 = vpop.f32.mrb[0].mxu0
      %v2419 = vpop.f32.mrb[0].mxu0
      %v2420 = vadd.f32 0.0, %v2419
      %v2421 = vpop.f32.mrb[0].mxu0
      %2422 = vmatprep.mubr.bf16.mxu0 0
      %2423 = vmatmul.mubr.bf16.gmra.mrb[0].mxu0 %v2352
      %v2424 = vpop.f32.mrb[0].mxu0
      %v2425 = vadd.f32 0.0, %v2424
      %v2426 = vpop.f32.mrb[0].mxu0
      %v2427 = vpop.f32.mrb[0].mxu0
      %v2428 = vadd.f32 0.0, %v2427
      %v2429 = vpop.f32.mrb[0].mxu0
      %2430 = vmatprep.mubr.bf16.mxu0 0
      %2431 = vmatmul.mubr.bf16.gmra.mrb[0].mxu0 %v2355
      %v2432 = vpop.f32.mrb[0].mxu0
      %v2433 = vadd.f32 0.0, %v2432
      %v2434 = vpop.f32.mrb[0].mxu0
      %v2435 = vpop.f32.mrb[0].mxu0
      %v2436 = vadd.f32 0.0, %v2435
      %v2437 = vpop.f32.mrb[0].mxu0
      %2438 = vmatprep.mubr.bf16.mxu0 0
      %2439 = vmatmul.mubr.bf16.gmra.mrb[0].mxu0 %v2358
      %v2440 = vpop.f32.mrb[0].mxu0
      %v2441 = vadd.f32 0.0, %v2440
      %v2442 = vpop.f32.mrb[0].mxu0
      %v2443 = vpop.f32.mrb[0].mxu0
      %v2444 = vadd.f32 0.0, %v2443
      %v2445 = vpop.f32.mrb[0].mxu0
      %2446 = vmatprep.mubr.bf16.mxu0 0
      %2447 = vmatmul.mubr.bf16.gmra.mrb[0].mxu0 %v2361
      %v2448 = vpop.f32.mrb[0].mxu0
      %v2449 = vadd.f32 0.0, %v2448
      %v2450 = vpop.f32.mrb[0].mxu0
      %v2451 = vpop.f32.mrb[0].mxu0
      %v2452 = vadd.f32 0.0, %v2451
      %v2453 = vpop.f32.mrb[0].mxu0
      %2454 = vmatprep.mubr.bf16.mxu0 0
      %2455 = vmatmul.mubr.bf16.gmra.mrb[0].mxu0 %v2364
      %v2456 = vpop.f32.mrb[0].mxu0
      %v2457 = vadd.f32 0.0, %v2456
      %v2458 = vpop.f32.mrb[0].mxu0
      %v2459 = vpop.f32.mrb[0].mxu0
      %v2460 = vadd.f32 0.0, %v2459
      %v2461 = vpop.f32.mrb[0].mxu0
      %2462 = vdwg.mxu0
      %v2467 = vunpack.c.l.b16 %v2297
      %v2468 = vunpack.c.l.b16 %v2298
      %v2469 = vunpack.c.l.b16 %v2299
      %v2470 = vunpack.c.l.b16 %v2300
      %v2471 = vpack.c.b16 %v2468, %v2467
      %v2472 = vpack.c.b16 %v2470, %v2469
      %v2476 = vsel %vm442, %v2289, 0
      %v2479 = vsel %vm442, %v2290, 0
      %v2482 = vsel %vm442, %v2291, 0
      %v2485 = vsel %vm442, %v2292, 0
      %v2488 = vsel %vm442, %v2293, 0
      %v2491 = vsel %vm442, %v2294, 0
      %v2494 = vsel %vm442, %v2295, 0
      %v2497 = vsel %vm442, %v2296, 0
      %2499 = vmatprep.subr.bf16.mxu0 0
      %2500 = vmatpush1.bf16.msra.mxu0 %v2471
      %2501 = vmatprep.subr.bf16.mxu0 0
      %2502 = vmatpush1.bf16.msra.mxu0 %v2472
      %2503 = vmatprep.subr.bf16.mxu0 0
      %2504 = vmatpush1.bf16.msra.mxu0 0
      %2505 = vmatprep.subr.bf16.mxu0 0
      %2506 = vmatpush1.bf16.msra.mxu0 0
      %2507 = vmatprep.subr.bf16.mxu0 0
      %2508 = vmatpush1.bf16.msra.mxu0 0
      %2509 = vmatprep.subr.bf16.mxu0 0
      %2510 = vmatpush1.bf16.msra.mxu0 0
      %2511 = vmatprep.subr.bf16.mxu0 0
      %2512 = vmatpush1.bf16.msra.mxu0 0
      %2513 = vmatprep.subr.bf16.mxu0 0
      %2514 = vmatpush1.bf16.msra.mxu0 0
      %2515 = vmatprep.subr.bf16.mxu0 0
      %2516 = vmatpush1.bf16.msra.mxu0 0
      %2517 = vmatprep.subr.bf16.mxu0 0
      %2518 = vmatpush1.bf16.msra.mxu0 0
      %2519 = vmatprep.subr.bf16.mxu0 0
      %2520 = vmatpush1.bf16.msra.mxu0 0
      %2521 = vmatprep.subr.bf16.mxu0 0
      %2522 = vmatpush1.bf16.msra.mxu0 0
      %2523 = vmatprep.subr.bf16.mxu0 0
      %2524 = vmatpush1.bf16.msra.mxu0 0
      %2525 = vmatprep.subr.bf16.mxu0 0
      %2526 = vmatpush1.bf16.msra.mxu0 0
      %2527 = vmatprep.subr.bf16.mxu0 0
      %2528 = vmatpush1.bf16.msra.mxu0 0
      %2529 = vmatprep.subr.bf16.mxu0 0
      %2530 = vmatpush1.bf16.msra.mxu0 0
      %2531 = vmatprep.mubr.bf16.mxu0 0
      %2532 = vmatmul.mubr.bf16.gmra.mrb[0].mxu0 %v2476
      %v2533 = vpop.f32.mrb[0].mxu0
      %v2534 = vadd.f32 %v2401, %v2533
      %v2535 = vpop.f32.mrb[0].mxu0
      %v2536 = vpop.f32.mrb[0].mxu0
      %v2537 = vadd.f32 %v2404, %v2536
      %v2538 = vpop.f32.mrb[0].mxu0
      %2539 = vmatprep.mubr.bf16.mxu0 0
      %2540 = vmatmul.mubr.bf16.gmra.mrb[0].mxu0 %v2479
      %v2541 = vpop.f32.mrb[0].mxu0
      %v2542 = vadd.f32 %v2409, %v2541
      %v2543 = vpop.f32.mrb[0].mxu0
      %v2544 = vpop.f32.mrb[0].mxu0
      %v2545 = vadd.f32 %v2412, %v2544
      %v2546 = vpop.f32.mrb[0].mxu0
      %2547 = vmatprep.mubr.bf16.mxu0 0
      %2548 = vmatmul.mubr.bf16.gmra.mrb[0].mxu0 %v2482
      %v2549 = vpop.f32.mrb[0].mxu0
      %v2550 = vadd.f32 %v2417, %v2549
      %v2551 = vpop.f32.mrb[0].mxu0
      %v2552 = vpop.f32.mrb[0].mxu0
      %v2553 = vadd.f32 %v2420, %v2552
      %v2554 = vpop.f32.mrb[0].mxu0
      %2555 = vmatprep.mubr.bf16.mxu0 0
      %2556 = vmatmul.mubr.bf16.gmra.mrb[0].mxu0 %v2485
      %v2557 = vpop.f32.mrb[0].mxu0
      %v2558 = vadd.f32 %v2425, %v2557
      %v2559 = vpop.f32.mrb[0].mxu0
      %v2560 = vpop.f32.mrb[0].mxu0
      %v2561 = vadd.f32 %v2428, %v2560
      %v2562 = vpop.f32.mrb[0].mxu0
      %2563 = vmatprep.mubr.bf16.mxu0 0
      %2564 = vmatmul.mubr.bf16.gmra.mrb[0].mxu0 %v2488
      %v2565 = vpop.f32.mrb[0].mxu0
      %v2566 = vadd.f32 %v2433, %v2565
      %v2567 = vpop.f32.mrb[0].mxu0
      %v2568 = vpop.f32.mrb[0].mxu0
      %v2569 = vadd.f32 %v2436, %v2568
      %v2570 = vpop.f32.mrb[0].mxu0
      %2571 = vmatprep.mubr.bf16.mxu0 0
      %2572 = vmatmul.mubr.bf16.gmra.mrb[0].mxu0 %v2491
      %v2573 = vpop.f32.mrb[0].mxu0
      %v2574 = vadd.f32 %v2441, %v2573
      %v2575 = vpop.f32.mrb[0].mxu0
      %v2576 = vpop.f32.mrb[0].mxu0
      %v2577 = vadd.f32 %v2444, %v2576
      %v2578 = vpop.f32.mrb[0].mxu0
      %2579 = vmatprep.mubr.bf16.mxu0 0
      %2580 = vmatmul.mubr.bf16.gmra.mrb[0].mxu0 %v2494
      %v2581 = vpop.f32.mrb[0].mxu0
      %v2582 = vadd.f32 %v2449, %v2581
      %v2583 = vpop.f32.mrb[0].mxu0
      %v2584 = vpop.f32.mrb[0].mxu0
      %v2585 = vadd.f32 %v2452, %v2584
      %v2586 = vpop.f32.mrb[0].mxu0
      %2587 = vmatprep.mubr.bf16.mxu0 0
      %2588 = vmatmul.mubr.bf16.gmra.mrb[0].mxu0 %v2497
      %v2589 = vpop.f32.mrb[0].mxu0
      %v2590 = vadd.f32 %v2457, %v2589
      %v2591 = vpop.f32.mrb[0].mxu0
      %v2592 = vpop.f32.mrb[0].mxu0
      %v2593 = vadd.f32 %v2460, %v2592
      %v2594 = vpop.f32.mrb[0].mxu0
      %2595 = vdwg.mxu0
      %v2596 = vld [vmem:[#allocation3 + $0x2] sm:$0xff]
      %v2597 = vld [vmem:[#allocation3 + $0xa] sm:$0xff]
      %v2598 = vld [vmem:[#allocation3 + $0x1a] sm:$0xff]
      %v2599 = vld [vmem:[#allocation3 + $0x22] sm:$0xff]
      %v2600 = vld [vmem:[#allocation3 + $0x32] sm:$0xff]
      %v2601 = vld [vmem:[#allocation3 + $0x3a] sm:$0xff]
      %v2602 = vld [vmem:[#allocation3 + $0x4a] sm:$0xff]
      %v2603 = vld [vmem:[#allocation3 + $0x52] sm:$0xff]
      %v2604 = vld [vmem:[#allocation3 + $0x62] sm:$0xff]
      %v2605 = vld [vmem:[#allocation3 + $0x6a] sm:$0xff]
      %v2606 = vld [vmem:[#allocation3 + $0x7a] sm:$0xff]
      %v2607 = vld [vmem:[#allocation3 + $0x82] sm:$0xff]
      %v2608 = vld [vmem:[#allocation3 + $0x92] sm:$0xff]
      %v2609 = vld [vmem:[#allocation3 + $0x9a] sm:$0xff]
      %v2610 = vld [vmem:[#allocation3 + $0xaa] sm:$0xff]
      %v2611 = vld [vmem:[#allocation3 + $0xb2] sm:$0xff]
      %v2612 = vpack.c.bf16 %v2597, %v2596
      %v2613 = vpack.c.bf16 %v2599, %v2598
      %v2614 = vpack.c.bf16 %v2601, %v2600
      %v2615 = vpack.c.bf16 %v2603, %v2602
      %v2616 = vpack.c.bf16 %v2605, %v2604
      %v2617 = vpack.c.bf16 %v2607, %v2606
      %v2618 = vpack.c.bf16 %v2609, %v2608
      %v2619 = vpack.c.bf16 %v2611, %v2610
      %s2620 = scalar_lea.vmem %s2, 32
      %v2621 = vld [vmem:[%s2620] sm:$0xf]
      %v2622 = vld [vmem:[%s2620 + $0x4] sm:$0xf]
      %v2623 = vld [vmem:[%s2620 + $0x8] sm:$0xf]
      %v2624 = vld [vmem:[%s2620 + $0xc] sm:$0xf]
      %v2629 = vunpack.c.l.b16 %v2621
      %v2630 = vunpack.c.l.b16 %v2622
      %v2631 = vunpack.c.l.b16 %v2623
      %v2632 = vunpack.c.l.b16 %v2624
      %v2633 = vpack.c.b16 %v2630, %v2629
      %v2634 = vpack.c.b16 %v2632, %v2631
      %v2638 = vsel %vm442, %v2612, 0
      %v2641 = vsel %vm442, %v2613, 0
      %v2644 = vsel %vm442, %v2614, 0
      %v2647 = vsel %vm442, %v2615, 0
      %v2650 = vsel %vm442, %v2616, 0
      %v2653 = vsel %vm442, %v2617, 0
      %v2656 = vsel %vm442, %v2618, 0
      %v2659 = vsel %vm442, %v2619, 0
      %2661 = vmatprep.subr.bf16.mxu0 0
      %2662 = vmatpush1.bf16.msra.mxu0 %v2633
      %2663 = vmatprep.subr.bf16.mxu0 0
      %2664 = vmatpush1.bf16.msra.mxu0 %v2634
      %2665 = vmatprep.subr.bf16.mxu0 0
      %2666 = vmatpush1.bf16.msra.mxu0 0
      %2667 = vmatprep.subr.bf16.mxu0 0
      %2668 = vmatpush1.bf16.msra.mxu0 0
      %2669 = vmatprep.subr.bf16.mxu0 0
      %2670 = vmatpush1.bf16.msra.mxu0 0
      %2671 = vmatprep.subr.bf16.mxu0 0
      %2672 = vmatpush1.bf16.msra.mxu0 0
      %2673 = vmatprep.subr.bf16.mxu0 0
      %2674 = vmatpush1.bf16.msra.mxu0 0
      %2675 = vmatprep.subr.bf16.mxu0 0
      %2676 = vmatpush1.bf16.msra.mxu0 0
      %2677 = vmatprep.subr.bf16.mxu0 0
      %2678 = vmatpush1.bf16.msra.mxu0 0
      %2679 = vmatprep.subr.bf16.mxu0 0
      %2680 = vmatpush1.bf16.msra.mxu0 0
      %2681 = vmatprep.subr.bf16.mxu0 0
      %2682 = vmatpush1.bf16.msra.mxu0 0
      %2683 = vmatprep.subr.bf16.mxu0 0
      %2684 = vmatpush1.bf16.msra.mxu0 0
      %2685 = vmatprep.subr.bf16.mxu0 0
      %2686 = vmatpush1.bf16.msra.mxu0 0
      %2687 = vmatprep.subr.bf16.mxu0 0
      %2688 = vmatpush1.bf16.msra.mxu0 0
      %2689 = vmatprep.subr.bf16.mxu0 0
      %2690 = vmatpush1.bf16.msra.mxu0 0
      %2691 = vmatprep.subr.bf16.mxu0 0
      %2692 = vmatpush1.bf16.msra.mxu0 0
      %2693 = vmatprep.mubr.bf16.mxu0 0
      %2694 = vmatmul.mubr.bf16.gmra.mrb[0].mxu0 %v2638
      %v2695 = vpop.f32.mrb[0].mxu0
      %v2696 = vadd.f32 0.0, %v2695
      %v2697 = vpop.f32.mrb[0].mxu0
      %v2698 = vpop.f32.mrb[0].mxu0
      %v2699 = vadd.f32 0.0, %v2698
      %v2700 = vpop.f32.mrb[0].mxu0
      %2701 = vmatprep.mubr.bf16.mxu0 0
      %2702 = vmatmul.mubr.bf16.gmra.mrb[0].mxu0 %v2641
      %v2703 = vpop.f32.mrb[0].mxu0
      %v2704 = vadd.f32 0.0, %v2703
      %v2705 = vpop.f32.mrb[0].mxu0
      %v2706 = vpop.f32.mrb[0].mxu0
      %v2707 = vadd.f32 0.0, %v2706
      %v2708 = vpop.f32.mrb[0].mxu0
      %2709 = vmatprep.mubr.bf16.mxu0 0
      %2710 = vmatmul.mubr.bf16.gmra.mrb[0].mxu0 %v2644
      %v2711 = vpop.f32.mrb[0].mxu0
      %v2712 = vadd.f32 0.0, %v2711
      %v2713 = vpop.f32.mrb[0].mxu0
      %v2714 = vpop.f32.mrb[0].mxu0
      %v2715 = vadd.f32 0.0, %v2714
      %v2716 = vpop.f32.mrb[0].mxu0
      %2717 = vmatprep.mubr.bf16.mxu0 0
      %2718 = vmatmul.mubr.bf16.gmra.mrb[0].mxu0 %v2647
      %v2719 = vpop.f32.mrb[0].mxu0
      %v2720 = vadd.f32 0.0, %v2719
      %v2721 = vpop.f32.mrb[0].mxu0
      %v2722 = vpop.f32.mrb[0].mxu0
      %v2723 = vadd.f32 0.0, %v2722
      %v2724 = vpop.f32.mrb[0].mxu0
      %2725 = vmatprep.mubr.bf16.mxu0 0
      %2726 = vmatmul.mubr.bf16.gmra.mrb[0].mxu0 %v2650
      %v2727 = vpop.f32.mrb[0].mxu0
      %v2728 = vadd.f32 0.0, %v2727
      %v2729 = vpop.f32.mrb[0].mxu0
      %v2730 = vpop.f32.mrb[0].mxu0
      %v2731 = vadd.f32 0.0, %v2730
      %v2732 = vpop.f32.mrb[0].mxu0
      %2733 = vmatprep.mubr.bf16.mxu0 0
      %2734 = vmatmul.mubr.bf16.gmra.mrb[0].mxu0 %v2653
      %v2735 = vpop.f32.mrb[0].mxu0
      %v2736 = vadd.f32 0.0, %v2735
      %v2737 = vpop.f32.mrb[0].mxu0
      %v2738 = vpop.f32.mrb[0].mxu0
      %v2739 = vadd.f32 0.0, %v2738
      %v2740 = vpop.f32.mrb[0].mxu0
      %2741 = vmatprep.mubr.bf16.mxu0 0
      %2742 = vmatmul.mubr.bf16.gmra.mrb[0].mxu0 %v2656
      %v2743 = vpop.f32.mrb[0].mxu0
      %v2744 = vadd.f32 0.0, %v2743
      %v2745 = vpop.f32.mrb[0].mxu0
      %v2746 = vpop.f32.mrb[0].mxu0
      %v2747 = vadd.f32 0.0, %v2746
      %v2748 = vpop.f32.mrb[0].mxu0
      %2749 = vmatprep.mubr.bf16.mxu0 0
      %2750 = vmatmul.mubr.bf16.gmra.mrb[0].mxu0 %v2659
      %v2751 = vpop.f32.mrb[0].mxu0
      %v2752 = vadd.f32 0.0, %v2751
      %v2753 = vpop.f32.mrb[0].mxu0
      %v2754 = vpop.f32.mrb[0].mxu0
      %v2755 = vadd.f32 0.0, %v2754
      %v2756 = vpop.f32.mrb[0].mxu0
      %2757 = vdwg.mxu0
      %v2758 = vadd.f32 %v2534, %v2696
      %v2759 = vadd.f32 %v2537, %v2699
      %v2760 = vadd.f32 %v2542, %v2704
      %v2761 = vadd.f32 %v2545, %v2707
      %v2762 = vadd.f32 %v2550, %v2712
      %v2763 = vadd.f32 %v2553, %v2715
      %v2764 = vadd.f32 %v2558, %v2720
      %v2765 = vadd.f32 %v2561, %v2723
      %v2766 = vadd.f32 %v2566, %v2728
      %v2767 = vadd.f32 %v2569, %v2731
      %v2768 = vadd.f32 %v2574, %v2736
      %v2769 = vadd.f32 %v2577, %v2739
      %v2770 = vadd.f32 %v2582, %v2744
      %v2771 = vadd.f32 %v2585, %v2747
      %v2772 = vadd.f32 %v2590, %v2752
      %v2773 = vadd.f32 %v2593, %v2755
      %s2774 = scalar_lea.vmem [#allocation3], 24
      %v2775 = vld [vmem:[%s2774] sm:$0xff]
      %v2776 = vld [vmem:[%s2774 + $0x8] sm:$0xff]
      %v2777 = vld [vmem:[%s2774 + $0x18] sm:$0xff]
      %v2778 = vld [vmem:[%s2774 + $0x20] sm:$0xff]
      %v2779 = vld [vmem:[%s2774 + $0x30] sm:$0xff]
      %v2780 = vld [vmem:[%s2774 + $0x38] sm:$0xff]
      %v2781 = vld [vmem:[%s2774 + $0x48] sm:$0xff]
      %v2782 = vld [vmem:[%s2774 + $0x50] sm:$0xff]
      %v2783 = vld [vmem:[%s2774 + $0x60] sm:$0xff]
      %v2784 = vld [vmem:[%s2774 + $0x68] sm:$0xff]
      %v2785 = vld [vmem:[%s2774 + $0x78] sm:$0xff]
      %v2786 = vld [vmem:[%s2774 + $0x80] sm:$0xff]
      %v2787 = vld [vmem:[%s2774 + $0x90] sm:$0xff]
      %v2788 = vld [vmem:[%s2774 + $0x98] sm:$0xff]
      %v2789 = vld [vmem:[%s2774 + $0xa8] sm:$0xff]
      %v2790 = vld [vmem:[%s2774 + $0xb0] sm:$0xff]
      %v2791 = vpack.c.bf16 %v2776, %v2775
      %v2792 = vpack.c.bf16 %v2778, %v2777
      %v2793 = vpack.c.bf16 %v2780, %v2779
      %v2794 = vpack.c.bf16 %v2782, %v2781
      %v2795 = vpack.c.bf16 %v2784, %v2783
      %v2796 = vpack.c.bf16 %v2786, %v2785
      %v2797 = vpack.c.bf16 %v2788, %v2787
      %v2798 = vpack.c.bf16 %v2790, %v2789
      %s2799 = scalar_lea.vmem %s2, 48
      %v2800 = vld [vmem:[%s2799] sm:$0xf]
      %v2801 = vld [vmem:[%s2799 + $0x4] sm:$0xf]
      %v2802 = vld [vmem:[%s2799 + $0x8] sm:$0xf]
      %v2803 = vld [vmem:[%s2799 + $0xc] sm:$0xf]
      %v2808 = vunpack.c.l.b16 %v2800
      %v2809 = vunpack.c.l.b16 %v2801
      %v2810 = vunpack.c.l.b16 %v2802
      %v2811 = vunpack.c.l.b16 %v2803
      %v2812 = vpack.c.b16 %v2809, %v2808
      %v2813 = vpack.c.b16 %v2811, %v2810
      %v2817 = vsel %vm442, %v2791, 0
      %v2820 = vsel %vm442, %v2792, 0
      %v2823 = vsel %vm442, %v2793, 0
      %v2826 = vsel %vm442, %v2794, 0
      %v2829 = vsel %vm442, %v2795, 0
      %v2832 = vsel %vm442, %v2796, 0
      %v2835 = vsel %vm442, %v2797, 0
      %v2838 = vsel %vm442, %v2798, 0
      %2840 = vmatprep.subr.bf16.mxu0 0
      %2841 = vmatpush1.bf16.msra.mxu0 %v2812
      %2842 = vmatprep.subr.bf16.mxu0 0
      %2843 = vmatpush1.bf16.msra.mxu0 %v2813
      %2844 = vmatprep.subr.bf16.mxu0 0
      %2845 = vmatpush1.bf16.msra.mxu0 0
      %2846 = vmatprep.subr.bf16.mxu0 0
      %2847 = vmatpush1.bf16.msra.mxu0 0
      %2848 = vmatprep.subr.bf16.mxu0 0
      %2849 = vmatpush1.bf16.msra.mxu0 0
      %2850 = vmatprep.subr.bf16.mxu0 0
      %2851 = vmatpush1.bf16.msra.mxu0 0
      %2852 = vmatprep.subr.bf16.mxu0 0
      %2853 = vmatpush1.bf16.msra.mxu0 0
      %2854 = vmatprep.subr.bf16.mxu0 0
      %2855 = vmatpush1.bf16.msra.mxu0 0
      %2856 = vmatprep.subr.bf16.mxu0 0
      %2857 = vmatpush1.bf16.msra.mxu0 0
      %2858 = vmatprep.subr.bf16.mxu0 0
      %2859 = vmatpush1.bf16.msra.mxu0 0
      %2860 = vmatprep.subr.bf16.mxu0 0
      %2861 = vmatpush1.bf16.msra.mxu0 0
      %2862 = vmatprep.subr.bf16.mxu0 0
      %2863 = vmatpush1.bf16.msra.mxu0 0
      %2864 = vmatprep.subr.bf16.mxu0 0
      %2865 = vmatpush1.bf16.msra.mxu0 0
      %2866 = vmatprep.subr.bf16.mxu0 0
      %2867 = vmatpush1.bf16.msra.mxu0 0
      %2868 = vmatprep.subr.bf16.mxu0 0
      %2869 = vmatpush1.bf16.msra.mxu0 0
      %2870 = vmatprep.subr.bf16.mxu0 0
      %2871 = vmatpush1.bf16.msra.mxu0 0
      %2872 = vmatprep.mubr.bf16.mxu0 0
      %2873 = vmatmul.mubr.bf16.gmra.mrb[0].mxu0 %v2817
      %v2874 = vpop.f32.mrb[0].mxu0
      %v2875 = vadd.f32 0.0, %v2874
      %v2876 = vpop.f32.mrb[0].mxu0
      %v2877 = vpop.f32.mrb[0].mxu0
      %v2878 = vadd.f32 0.0, %v2877
      %v2879 = vpop.f32.mrb[0].mxu0
      %2880 = vmatprep.mubr.bf16.mxu0 0
      %2881 = vmatmul.mubr.bf16.gmra.mrb[0].mxu0 %v2820
      %v2882 = vpop.f32.mrb[0].mxu0
      %v2883 = vadd.f32 0.0, %v2882
      %v2884 = vpop.f32.mrb[0].mxu0
      %v2885 = vpop.f32.mrb[0].mxu0
      %v2886 = vadd.f32 0.0, %v2885
      %v2887 = vpop.f32.mrb[0].mxu0
      %2888 = vmatprep.mubr.bf16.mxu0 0
      %2889 = vmatmul.mubr.bf16.gmra.mrb[0].mxu0 %v2823
      %v2890 = vpop.f32.mrb[0].mxu0
      %v2891 = vadd.f32 0.0, %v2890
      %v2892 = vpop.f32.mrb[0].mxu0
      %v2893 = vpop.f32.mrb[0].mxu0
      %v2894 = vadd.f32 0.0, %v2893
      %v2895 = vpop.f32.mrb[0].mxu0
      %2896 = vmatprep.mubr.bf16.mxu0 0
      %2897 = vmatmul.mubr.bf16.gmra.mrb[0].mxu0 %v2826
      %v2898 = vpop.f32.mrb[0].mxu0
      %v2899 = vadd.f32 0.0, %v2898
      %v2900 = vpop.f32.mrb[0].mxu0
      %v2901 = vpop.f32.mrb[0].mxu0
      %v2902 = vadd.f32 0.0, %v2901
      %v2903 = vpop.f32.mrb[0].mxu0
      %2904 = vmatprep.mubr.bf16.mxu0 0
      %2905 = vmatmul.mubr.bf16.gmra.mrb[0].mxu0 %v2829
      %v2906 = vpop.f32.mrb[0].mxu0
      %v2907 = vadd.f32 0.0, %v2906
      %v2908 = vpop.f32.mrb[0].mxu0
      %v2909 = vpop.f32.mrb[0].mxu0
      %v2910 = vadd.f32 0.0, %v2909
      %v2911 = vpop.f32.mrb[0].mxu0
      %2912 = vmatprep.mubr.bf16.mxu0 0
      %2913 = vmatmul.mubr.bf16.gmra.mrb[0].mxu0 %v2832
      %v2914 = vpop.f32.mrb[0].mxu0
      %v2915 = vadd.f32 0.0, %v2914
      %v2916 = vpop.f32.mrb[0].mxu0
      %v2917 = vpop.f32.mrb[0].mxu0
      %v2918 = vadd.f32 0.0, %v2917
      %v2919 = vpop.f32.mrb[0].mxu0
      %2920 = vmatprep.mubr.bf16.mxu0 0
      %2921 = vmatmul.mubr.bf16.gmra.mrb[0].mxu0 %v2835
      %v2922 = vpop.f32.mrb[0].mxu0
      %v2923 = vadd.f32 0.0, %v2922
      %v2924 = vpop.f32.mrb[0].mxu0
      %v2925 = vpop.f32.mrb[0].mxu0
      %v2926 = vadd.f32 0.0, %v2925
      %v2927 = vpop.f32.mrb[0].mxu0
      %2928 = vmatprep.mubr.bf16.mxu0 0
      %2929 = vmatmul.mubr.bf16.gmra.mrb[0].mxu0 %v2838
      %v2930 = vpop.f32.mrb[0].mxu0
      %v2931 = vadd.f32 0.0, %v2930
      %v2932 = vpop.f32.mrb[0].mxu0
      %v2933 = vpop.f32.mrb[0].mxu0
      %v2934 = vadd.f32 0.0, %v2933
      %v2935 = vpop.f32.mrb[0].mxu0
      %2936 = vdwg.mxu0
      %v2937 = vadd.f32 %v2758, %v2875
      %v2938 = vadd.f32 %v2759, %v2878
      %v2939 = vadd.f32 %v2760, %v2883
      %v2940 = vadd.f32 %v2761, %v2886
      %v2941 = vadd.f32 %v2762, %v2891
      %v2942 = vadd.f32 %v2763, %v2894
      %v2943 = vadd.f32 %v2764, %v2899
      %v2944 = vadd.f32 %v2765, %v2902
      %v2945 = vadd.f32 %v2766, %v2907
      %v2946 = vadd.f32 %v2767, %v2910
      %v2947 = vadd.f32 %v2768, %v2915
      %v2948 = vadd.f32 %v2769, %v2918
      %v2949 = vadd.f32 %v2770, %v2923
      %v2950 = vadd.f32 %v2771, %v2926
      %v2951 = vadd.f32 %v2772, %v2931
      %v2952 = vadd.f32 %v2773, %v2934
      %v2953 = vld [vmem:[%s2774 + $0x1] sm:$0xff]
      %v2954 = vld [vmem:[%s2774 + $0x9] sm:$0xff]
      %v2955 = vld [vmem:[%s2774 + $0x19] sm:$0xff]
      %v2956 = vld [vmem:[%s2774 + $0x21] sm:$0xff]
      %v2957 = vld [vmem:[%s2774 + $0x31] sm:$0xff]
      %v2958 = vld [vmem:[%s2774 + $0x39] sm:$0xff]
      %v2959 = vld [vmem:[%s2774 + $0x49] sm:$0xff]
      %v2960 = vld [vmem:[%s2774 + $0x51] sm:$0xff]
      %v2961 = vld [vmem:[%s2774 + $0x61] sm:$0xff]
      %v2962 = vld [vmem:[%s2774 + $0x69] sm:$0xff]
      %v2963 = vld [vmem:[%s2774 + $0x79] sm:$0xff]
      %v2964 = vld [vmem:[%s2774 + $0x81] sm:$0xff]
      %v2965 = vld [vmem:[%s2774 + $0x91] sm:$0xff]
      %v2966 = vld [vmem:[%s2774 + $0x99] sm:$0xff]
      %v2967 = vld [vmem:[%s2774 + $0xa9] sm:$0xff]
      %v2968 = vld [vmem:[%s2774 + $0xb1] sm:$0xff]
      %v2969 = vpack.c.bf16 %v2954, %v2953
      %v2970 = vpack.c.bf16 %v2956, %v2955
      %v2971 = vpack.c.bf16 %v2958, %v2957
      %v2972 = vpack.c.bf16 %v2960, %v2959
      %v2973 = vpack.c.bf16 %v2962, %v2961
      %v2974 = vpack.c.bf16 %v2964, %v2963
      %v2975 = vpack.c.bf16 %v2966, %v2965
      %v2976 = vpack.c.bf16 %v2968, %v2967
      %s2977 = scalar_lea.vmem %s2, 64
      %v2978 = vld [vmem:[%s2977] sm:$0xf]
      %v2979 = vld [vmem:[%s2977 + $0x4] sm:$0xf]
      %v2980 = vld [vmem:[%s2977 + $0x8] sm:$0xf]
      %v2981 = vld [vmem:[%s2977 + $0xc] sm:$0xf]
      %v2986 = vunpack.c.l.b16 %v2978
      %v2987 = vunpack.c.l.b16 %v2979
      %v2988 = vunpack.c.l.b16 %v2980
      %v2989 = vunpack.c.l.b16 %v2981
      %v2990 = vpack.c.b16 %v2987, %v2986
      %v2991 = vpack.c.b16 %v2989, %v2988
      %v2995 = vsel %vm442, %v2969, 0
      %v2998 = vsel %vm442, %v2970, 0
      %v3001 = vsel %vm442, %v2971, 0
      %v3004 = vsel %vm442, %v2972, 0
      %v3007 = vsel %vm442, %v2973, 0
      %v3010 = vsel %vm442, %v2974, 0
      %v3013 = vsel %vm442, %v2975, 0
      %v3016 = vsel %vm442, %v2976, 0
      %3018 = vmatprep.subr.bf16.mxu0 0
      %3019 = vmatpush1.bf16.msra.mxu0 %v2990
      %3020 = vmatprep.subr.bf16.mxu0 0
      %3021 = vmatpush1.bf16.msra.mxu0 %v2991
      %3022 = vmatprep.subr.bf16.mxu0 0
      %3023 = vmatpush1.bf16.msra.mxu0 0
      %3024 = vmatprep.subr.bf16.mxu0 0
      %3025 = vmatpush1.bf16.msra.mxu0 0
      %3026 = vmatprep.subr.bf16.mxu0 0
      %3027 = vmatpush1.bf16.msra.mxu0 0
      %3028 = vmatprep.subr.bf16.mxu0 0
      %3029 = vmatpush1.bf16.msra.mxu0 0
      %3030 = vmatprep.subr.bf16.mxu0 0
      %3031 = vmatpush1.bf16.msra.mxu0 0
      %3032 = vmatprep.subr.bf16.mxu0 0
      %3033 = vmatpush1.bf16.msra.mxu0 0
      %3034 = vmatprep.subr.bf16.mxu0 0
      %3035 = vmatpush1.bf16.msra.mxu0 0
      %3036 = vmatprep.subr.bf16.mxu0 0
      %3037 = vmatpush1.bf16.msra.mxu0 0
      %3038 = vmatprep.subr.bf16.mxu0 0
      %3039 = vmatpush1.bf16.msra.mxu0 0
      %3040 = vmatprep.subr.bf16.mxu0 0
      %3041 = vmatpush1.bf16.msra.mxu0 0
      %3042 = vmatprep.subr.bf16.mxu0 0
      %3043 = vmatpush1.bf16.msra.mxu0 0
      %3044 = vmatprep.subr.bf16.mxu0 0
      %3045 = vmatpush1.bf16.msra.mxu0 0
      %3046 = vmatprep.subr.bf16.mxu0 0
      %3047 = vmatpush1.bf16.msra.mxu0 0
      %3048 = vmatprep.subr.bf16.mxu0 0
      %3049 = vmatpush1.bf16.msra.mxu0 0
      %3050 = vmatprep.mubr.bf16.mxu0 0
      %3051 = vmatmul.mubr.bf16.gmra.mrb[0].mxu0 %v2995
      %v3052 = vpop.f32.mrb[0].mxu0
      %v3053 = vadd.f32 0.0, %v3052
      %v3054 = vpop.f32.mrb[0].mxu0
      %v3055 = vpop.f32.mrb[0].mxu0
      %v3056 = vadd.f32 0.0, %v3055
      %v3057 = vpop.f32.mrb[0].mxu0
      %3058 = vmatprep.mubr.bf16.mxu0 0
      %3059 = vmatmul.mubr.bf16.gmra.mrb[0].mxu0 %v2998
      %v3060 = vpop.f32.mrb[0].mxu0
      %v3061 = vadd.f32 0.0, %v3060
      %v3062 = vpop.f32.mrb[0].mxu0
      %v3063 = vpop.f32.mrb[0].mxu0
      %v3064 = vadd.f32 0.0, %v3063
      %v3065 = vpop.f32.mrb[0].mxu0
      %3066 = vmatprep.mubr.bf16.mxu0 0
      %3067 = vmatmul.mubr.bf16.gmra.mrb[0].mxu0 %v3001
      %v3068 = vpop.f32.mrb[0].mxu0
      %v3069 = vadd.f32 0.0, %v3068
      %v3070 = vpop.f32.mrb[0].mxu0
      %v3071 = vpop.f32.mrb[0].mxu0
      %v3072 = vadd.f32 0.0, %v3071
      %v3073 = vpop.f32.mrb[0].mxu0
      %3074 = vmatprep.mubr.bf16.mxu0 0
      %3075 = vmatmul.mubr.bf16.gmra.mrb[0].mxu0 %v3004
      %v3076 = vpop.f32.mrb[0].mxu0
      %v3077 = vadd.f32 0.0, %v3076
      %v3078 = vpop.f32.mrb[0].mxu0
      %v3079 = vpop.f32.mrb[0].mxu0
      %v3080 = vadd.f32 0.0, %v3079
      %v3081 = vpop.f32.mrb[0].mxu0
      %3082 = vmatprep.mubr.bf16.mxu0 0
      %3083 = vmatmul.mubr.bf16.gmra.mrb[0].mxu0 %v3007
      %v3084 = vpop.f32.mrb[0].mxu0
      %v3085 = vadd.f32 0.0, %v3084
      %v3086 = vpop.f32.mrb[0].mxu0
      %v3087 = vpop.f32.mrb[0].mxu0
      %v3088 = vadd.f32 0.0, %v3087
      %v3089 = vpop.f32.mrb[0].mxu0
      %3090 = vmatprep.mubr.bf16.mxu0 0
      %3091 = vmatmul.mubr.bf16.gmra.mrb[0].mxu0 %v3010
      %v3092 = vpop.f32.mrb[0].mxu0
      %v3093 = vadd.f32 0.0, %v3092
      %v3094 = vpop.f32.mrb[0].mxu0
      %v3095 = vpop.f32.mrb[0].mxu0
      %v3096 = vadd.f32 0.0, %v3095
      %v3097 = vpop.f32.mrb[0].mxu0
      %3098 = vmatprep.mubr.bf16.mxu0 0
      %3099 = vmatmul.mubr.bf16.gmra.mrb[0].mxu0 %v3013
      %v3100 = vpop.f32.mrb[0].mxu0
      %v3101 = vadd.f32 0.0, %v3100
      %v3102 = vpop.f32.mrb[0].mxu0
      %v3103 = vpop.f32.mrb[0].mxu0
      %v3104 = vadd.f32 0.0, %v3103
      %v3105 = vpop.f32.mrb[0].mxu0
      %3106 = vmatprep.mubr.bf16.mxu0 0
      %3107 = vmatmul.mubr.bf16.gmra.mrb[0].mxu0 %v3016
      %v3108 = vpop.f32.mrb[0].mxu0
      %v3109 = vadd.f32 0.0, %v3108
      %v3110 = vpop.f32.mrb[0].mxu0
      %v3111 = vpop.f32.mrb[0].mxu0
      %v3112 = vadd.f32 0.0, %v3111
      %v3113 = vpop.f32.mrb[0].mxu0
      %3114 = vdwg.mxu0
      %v3115 = vadd.f32 %v2937, %v3053
      %v3116 = vadd.f32 %v2938, %v3056
      %v3117 = vadd.f32 %v2939, %v3061
      %v3118 = vadd.f32 %v2940, %v3064
      %v3119 = vadd.f32 %v2941, %v3069
      %v3120 = vadd.f32 %v2942, %v3072
      %v3121 = vadd.f32 %v2943, %v3077
      %v3122 = vadd.f32 %v2944, %v3080
      %v3123 = vadd.f32 %v2945, %v3085
      %v3124 = vadd.f32 %v2946, %v3088
      %v3125 = vadd.f32 %v2947, %v3093
      %v3126 = vadd.f32 %v2948, %v3096
      %v3127 = vadd.f32 %v2949, %v3101
      %v3128 = vadd.f32 %v2950, %v3104
      %v3129 = vadd.f32 %v2951, %v3109
      %v3130 = vadd.f32 %v2952, %v3112
      %v3131 = vld [vmem:[%s2774 + $0x2] sm:$0xff]
      %v3132 = vld [vmem:[%s2774 + $0xa] sm:$0xff]
      %v3133 = vld [vmem:[%s2774 + $0x1a] sm:$0xff]
      %v3134 = vld [vmem:[%s2774 + $0x22] sm:$0xff]
      %v3135 = vld [vmem:[%s2774 + $0x32] sm:$0xff]
      %v3136 = vld [vmem:[%s2774 + $0x3a] sm:$0xff]
      %v3137 = vld [vmem:[%s2774 + $0x4a] sm:$0xff]
      %v3138 = vld [vmem:[%s2774 + $0x52] sm:$0xff]
      %v3139 = vld [vmem:[%s2774 + $0x62] sm:$0xff]
      %v3140 = vld [vmem:[%s2774 + $0x6a] sm:$0xff]
      %v3141 = vld [vmem:[%s2774 + $0x7a] sm:$0xff]
      %v3142 = vld [vmem:[%s2774 + $0x82] sm:$0xff]
      %v3143 = vld [vmem:[%s2774 + $0x92] sm:$0xff]
      %v3144 = vld [vmem:[%s2774 + $0x9a] sm:$0xff]
      %v3145 = vld [vmem:[%s2774 + $0xaa] sm:$0xff]
      %v3146 = vld [vmem:[%s2774 + $0xb2] sm:$0xff]
      %v3147 = vpack.c.bf16 %v3132, %v3131
      %v3148 = vpack.c.bf16 %v3134, %v3133
      %v3149 = vpack.c.bf16 %v3136, %v3135
      %v3150 = vpack.c.bf16 %v3138, %v3137
      %v3151 = vpack.c.bf16 %v3140, %v3139
      %v3152 = vpack.c.bf16 %v3142, %v3141
      %v3153 = vpack.c.bf16 %v3144, %v3143
      %v3154 = vpack.c.bf16 %v3146, %v3145
      %s3155 = scalar_lea.vmem %s2, 80
      %v3156 = vld [vmem:[%s3155] sm:$0xf]
      %v3157 = vld [vmem:[%s3155 + $0x4] sm:$0xf]
      %v3158 = vld [vmem:[%s3155 + $0x8] sm:$0xf]
      %v3159 = vld [vmem:[%s3155 + $0xc] sm:$0xf]
      %v3164 = vunpack.c.l.b16 %v3156
      %v3165 = vunpack.c.l.b16 %v3157
      %v3166 = vunpack.c.l.b16 %v3158
      %v3167 = vunpack.c.l.b16 %v3159
      %v3168 = vpack.c.b16 %v3165, %v3164
      %v3169 = vpack.c.b16 %v3167, %v3166
      %v3173 = vsel %vm442, %v3147, 0
      %v3176 = vsel %vm442, %v3148, 0
      %v3179 = vsel %vm442, %v3149, 0
      %v3182 = vsel %vm442, %v3150, 0
      %v3185 = vsel %vm442, %v3151, 0
      %v3188 = vsel %vm442, %v3152, 0
      %v3191 = vsel %vm442, %v3153, 0
      %v3194 = vsel %vm442, %v3154, 0
      %3196 = vmatprep.subr.bf16.mxu0 0
      %3197 = vmatpush1.bf16.msra.mxu0 %v3168
      %3198 = vmatprep.subr.bf16.mxu0 0
      %3199 = vmatpush1.bf16.msra.mxu0 %v3169
      %3200 = vmatprep.subr.bf16.mxu0 0
      %3201 = vmatpush1.bf16.msra.mxu0 0
      %3202 = vmatprep.subr.bf16.mxu0 0
      %3203 = vmatpush1.bf16.msra.mxu0 0
      %3204 = vmatprep.subr.bf16.mxu0 0
      %3205 = vmatpush1.bf16.msra.mxu0 0
      %3206 = vmatprep.subr.bf16.mxu0 0
      %3207 = vmatpush1.bf16.msra.mxu0 0
      %3208 = vmatprep.subr.bf16.mxu0 0
      %3209 = vmatpush1.bf16.msra.mxu0 0
      %3210 = vmatprep.subr.bf16.mxu0 0
      %3211 = vmatpush1.bf16.msra.mxu0 0
      %3212 = vmatprep.subr.bf16.mxu0 0
      %3213 = vmatpush1.bf16.msra.mxu0 0
      %3214 = vmatprep.subr.bf16.mxu0 0
      %3215 = vmatpush1.bf16.msra.mxu0 0
      %3216 = vmatprep.subr.bf16.mxu0 0
      %3217 = vmatpush1.bf16.msra.mxu0 0
      %3218 = vmatprep.subr.bf16.mxu0 0
      %3219 = vmatpush1.bf16.msra.mxu0 0
      %3220 = vmatprep.subr.bf16.mxu0 0
      %3221 = vmatpush1.bf16.msra.mxu0 0
      %3222 = vmatprep.subr.bf16.mxu0 0
      %3223 = vmatpush1.bf16.msra.mxu0 0
      %3224 = vmatprep.subr.bf16.mxu0 0
      %3225 = vmatpush1.bf16.msra.mxu0 0
      %3226 = vmatprep.subr.bf16.mxu0 0
      %3227 = vmatpush1.bf16.msra.mxu0 0
      %3228 = vmatprep.mubr.bf16.mxu0 0
      %3229 = vmatmul.mubr.bf16.gmra.mrb[0].mxu0 %v3173
      %v3230 = vpop.f32.mrb[0].mxu0
      %v3231 = vadd.f32 0.0, %v3230
      %v3232 = vpop.f32.mrb[0].mxu0
      %v3233 = vpop.f32.mrb[0].mxu0
      %v3234 = vadd.f32 0.0, %v3233
      %v3235 = vpop.f32.mrb[0].mxu0
      %3236 = vmatprep.mubr.bf16.mxu0 0
      %3237 = vmatmul.mubr.bf16.gmra.mrb[0].mxu0 %v3176
      %v3238 = vpop.f32.mrb[0].mxu0
      %v3239 = vadd.f32 0.0, %v3238
      %v3240 = vpop.f32.mrb[0].mxu0
      %v3241 = vpop.f32.mrb[0].mxu0
      %v3242 = vadd.f32 0.0, %v3241
      %v3243 = vpop.f32.mrb[0].mxu0
      %3244 = vmatprep.mubr.bf16.mxu0 0
      %3245 = vmatmul.mubr.bf16.gmra.mrb[0].mxu0 %v3179
      %v3246 = vpop.f32.mrb[0].mxu0
      %v3247 = vadd.f32 0.0, %v3246
      %v3248 = vpop.f32.mrb[0].mxu0
      %v3249 = vpop.f32.mrb[0].mxu0
      %v3250 = vadd.f32 0.0, %v3249
      %v3251 = vpop.f32.mrb[0].mxu0
      %3252 = vmatprep.mubr.bf16.mxu0 0
      %3253 = vmatmul.mubr.bf16.gmra.mrb[0].mxu0 %v3182
      %v3254 = vpop.f32.mrb[0].mxu0
      %v3255 = vadd.f32 0.0, %v3254
      %v3256 = vpop.f32.mrb[0].mxu0
      %v3257 = vpop.f32.mrb[0].mxu0
      %v3258 = vadd.f32 0.0, %v3257
      %v3259 = vpop.f32.mrb[0].mxu0
      %3260 = vmatprep.mubr.bf16.mxu0 0
      %3261 = vmatmul.mubr.bf16.gmra.mrb[0].mxu0 %v3185
      %v3262 = vpop.f32.mrb[0].mxu0
      %v3263 = vadd.f32 0.0, %v3262
      %v3264 = vpop.f32.mrb[0].mxu0
      %v3265 = vpop.f32.mrb[0].mxu0
      %v3266 = vadd.f32 0.0, %v3265
      %v3267 = vpop.f32.mrb[0].mxu0
      %3268 = vmatprep.mubr.bf16.mxu0 0
      %3269 = vmatmul.mubr.bf16.gmra.mrb[0].mxu0 %v3188
      %v3270 = vpop.f32.mrb[0].mxu0
      %v3271 = vadd.f32 0.0, %v3270
      %v3272 = vpop.f32.mrb[0].mxu0
      %v3273 = vpop.f32.mrb[0].mxu0
      %v3274 = vadd.f32 0.0, %v3273
      %v3275 = vpop.f32.mrb[0].mxu0
      %3276 = vmatprep.mubr.bf16.mxu0 0
      %3277 = vmatmul.mubr.bf16.gmra.mrb[0].mxu0 %v3191
      %v3278 = vpop.f32.mrb[0].mxu0
      %v3279 = vadd.f32 0.0, %v3278
      %v3280 = vpop.f32.mrb[0].mxu0
      %v3281 = vpop.f32.mrb[0].mxu0
      %v3282 = vadd.f32 0.0, %v3281
      %v3283 = vpop.f32.mrb[0].mxu0
      %3284 = vmatprep.mubr.bf16.mxu0 0
      %3285 = vmatmul.mubr.bf16.gmra.mrb[0].mxu0 %v3194
      %v3286 = vpop.f32.mrb[0].mxu0
      %v3287 = vadd.f32 0.0, %v3286
      %v3288 = vpop.f32.mrb[0].mxu0
      %v3289 = vpop.f32.mrb[0].mxu0
      %v3290 = vadd.f32 0.0, %v3289
      %v3291 = vpop.f32.mrb[0].mxu0
      %3292 = vdwg.mxu0
      %v3293 = vadd.f32 %v3115, %v3231
      %v3294 = vadd.f32 %v3116, %v3234
      %v3295 = vadd.f32 %v3117, %v3239
      %v3296 = vadd.f32 %v3118, %v3242
      %v3297 = vadd.f32 %v3119, %v3247
      %v3298 = vadd.f32 %v3120, %v3250
      %v3299 = vadd.f32 %v3121, %v3255
      %v3300 = vadd.f32 %v3122, %v3258
      %v3301 = vadd.f32 %v3123, %v3263
      %v3302 = vadd.f32 %v3124, %v3266
      %v3303 = vadd.f32 %v3125, %v3271
      %v3304 = vadd.f32 %v3126, %v3274
      %v3305 = vadd.f32 %v3127, %v3279
      %v3306 = vadd.f32 %v3128, %v3282
      %v3307 = vadd.f32 %v3129, %v3287
      %v3308 = vadd.f32 %v3130, %v3290
      %s3309 = scalar_lea.vmem [#allocation3], 48
      %v3310 = vld [vmem:[%s3309] sm:$0xff]
      %v3311 = vld [vmem:[%s3309 + $0x8] sm:$0xff]
      %v3312 = vld [vmem:[%s3309 + $0x18] sm:$0xff]
      %v3313 = vld [vmem:[%s3309 + $0x20] sm:$0xff]
      %v3314 = vld [vmem:[%s3309 + $0x30] sm:$0xff]
      %v3315 = vld [vmem:[%s3309 + $0x38] sm:$0xff]
      %v3316 = vld [vmem:[%s3309 + $0x48] sm:$0xff]
      %v3317 = vld [vmem:[%s3309 + $0x50] sm:$0xff]
      %v3318 = vld [vmem:[%s3309 + $0x60] sm:$0xff]
      %v3319 = vld [vmem:[%s3309 + $0x68] sm:$0xff]
      %v3320 = vld [vmem:[%s3309 + $0x78] sm:$0xff]
      %v3321 = vld [vmem:[%s3309 + $0x80] sm:$0xff]
      %v3322 = vld [vmem:[%s3309 + $0x90] sm:$0xff]
      %v3323 = vld [vmem:[%s3309 + $0x98] sm:$0xff]
      %v3324 = vld [vmem:[%s3309 + $0xa8] sm:$0xff]
      %v3325 = vld [vmem:[%s3309 + $0xb0] sm:$0xff]
      %v3326 = vpack.c.bf16 %v3311, %v3310
      %v3327 = vpack.c.bf16 %v3313, %v3312
      %v3328 = vpack.c.bf16 %v3315, %v3314
      %v3329 = vpack.c.bf16 %v3317, %v3316
      %v3330 = vpack.c.bf16 %v3319, %v3318
      %v3331 = vpack.c.bf16 %v3321, %v3320
      %v3332 = vpack.c.bf16 %v3323, %v3322
      %v3333 = vpack.c.bf16 %v3325, %v3324
      %s3334 = scalar_lea.vmem %s2, 96
      %v3335 = vld [vmem:[%s3334] sm:$0xf]
      %v3336 = vld [vmem:[%s3334 + $0x4] sm:$0xf]
      %v3337 = vld [vmem:[%s3334 + $0x8] sm:$0xf]
      %v3338 = vld [vmem:[%s3334 + $0xc] sm:$0xf]
      %v3343 = vunpack.c.l.b16 %v3335
      %v3344 = vunpack.c.l.b16 %v3336
      %v3345 = vunpack.c.l.b16 %v3337
      %v3346 = vunpack.c.l.b16 %v3338
      %v3347 = vpack.c.b16 %v3344, %v3343
      %v3348 = vpack.c.b16 %v3346, %v3345
      %v3352 = vsel %vm442, %v3326, 0
      %v3355 = vsel %vm442, %v3327, 0
      %v3358 = vsel %vm442, %v3328, 0
      %v3361 = vsel %vm442, %v3329, 0
      %v3364 = vsel %vm442, %v3330, 0
      %v3367 = vsel %vm442, %v3331, 0
      %v3370 = vsel %vm442, %v3332, 0
      %v3373 = vsel %vm442, %v3333, 0
      %3375 = vmatprep.subr.bf16.mxu0 0
      %3376 = vmatpush1.bf16.msra.mxu0 %v3347
      %3377 = vmatprep.subr.bf16.mxu0 0
      %3378 = vmatpush1.bf16.msra.mxu0 %v3348
      %3379 = vmatprep.subr.bf16.mxu0 0
      %3380 = vmatpush1.bf16.msra.mxu0 0
      %3381 = vmatprep.subr.bf16.mxu0 0
      %3382 = vmatpush1.bf16.msra.mxu0 0
      %3383 = vmatprep.subr.bf16.mxu0 0
      %3384 = vmatpush1.bf16.msra.mxu0 0
      %3385 = vmatprep.subr.bf16.mxu0 0
      %3386 = vmatpush1.bf16.msra.mxu0 0
      %3387 = vmatprep.subr.bf16.mxu0 0
      %3388 = vmatpush1.bf16.msra.mxu0 0
      %3389 = vmatprep.subr.bf16.mxu0 0
      %3390 = vmatpush1.bf16.msra.mxu0 0
      %3391 = vmatprep.subr.bf16.mxu0 0
      %3392 = vmatpush1.bf16.msra.mxu0 0
      %3393 = vmatprep.subr.bf16.mxu0 0
      %3394 = vmatpush1.bf16.msra.mxu0 0
      %3395 = vmatprep.subr.bf16.mxu0 0
      %3396 = vmatpush1.bf16.msra.mxu0 0
      %3397 = vmatprep.subr.bf16.mxu0 0
      %3398 = vmatpush1.bf16.msra.mxu0 0
      %3399 = vmatprep.subr.bf16.mxu0 0
      %3400 = vmatpush1.bf16.msra.mxu0 0
      %3401 = vmatprep.subr.bf16.mxu0 0
      %3402 = vmatpush1.bf16.msra.mxu0 0
      %3403 = vmatprep.subr.bf16.mxu0 0
      %3404 = vmatpush1.bf16.msra.mxu0 0
      %3405 = vmatprep.subr.bf16.mxu0 0
      %3406 = vmatpush1.bf16.msra.mxu0 0
      %3407 = vmatprep.mubr.bf16.mxu0 0
      %3408 = vmatmul.mubr.bf16.gmra.mrb[0].mxu0 %v3352
      %v3409 = vpop.f32.mrb[0].mxu0
      %v3410 = vadd.f32 0.0, %v3409
      %v3411 = vpop.f32.mrb[0].mxu0
      %v3412 = vpop.f32.mrb[0].mxu0
      %v3413 = vadd.f32 0.0, %v3412
      %v3414 = vpop.f32.mrb[0].mxu0
      %3415 = vmatprep.mubr.bf16.mxu0 0
      %3416 = vmatmul.mubr.bf16.gmra.mrb[0].mxu0 %v3355
      %v3417 = vpop.f32.mrb[0].mxu0
      %v3418 = vadd.f32 0.0, %v3417
      %v3419 = vpop.f32.mrb[0].mxu0
      %v3420 = vpop.f32.mrb[0].mxu0
      %v3421 = vadd.f32 0.0, %v3420
      %v3422 = vpop.f32.mrb[0].mxu0
      %3423 = vmatprep.mubr.bf16.mxu0 0
      %3424 = vmatmul.mubr.bf16.gmra.mrb[0].mxu0 %v3358
      %v3425 = vpop.f32.mrb[0].mxu0
      %v3426 = vadd.f32 0.0, %v3425
      %v3427 = vpop.f32.mrb[0].mxu0
      %v3428 = vpop.f32.mrb[0].mxu0
      %v3429 = vadd.f32 0.0, %v3428
      %v3430 = vpop.f32.mrb[0].mxu0
      %3431 = vmatprep.mubr.bf16.mxu0 0
      %3432 = vmatmul.mubr.bf16.gmra.mrb[0].mxu0 %v3361
      %v3433 = vpop.f32.mrb[0].mxu0
      %v3434 = vadd.f32 0.0, %v3433
      %v3435 = vpop.f32.mrb[0].mxu0
      %v3436 = vpop.f32.mrb[0].mxu0
      %v3437 = vadd.f32 0.0, %v3436
      %v3438 = vpop.f32.mrb[0].mxu0
      %3439 = vmatprep.mubr.bf16.mxu0 0
      %3440 = vmatmul.mubr.bf16.gmra.mrb[0].mxu0 %v3364
      %v3441 = vpop.f32.mrb[0].mxu0
      %v3442 = vadd.f32 0.0, %v3441
      %v3443 = vpop.f32.mrb[0].mxu0
      %v3444 = vpop.f32.mrb[0].mxu0
      %v3445 = vadd.f32 0.0, %v3444
      %v3446 = vpop.f32.mrb[0].mxu0
      %3447 = vmatprep.mubr.bf16.mxu0 0
      %3448 = vmatmul.mubr.bf16.gmra.mrb[0].mxu0 %v3367
      %v3449 = vpop.f32.mrb[0].mxu0
      %v3450 = vadd.f32 0.0, %v3449
      %v3451 = vpop.f32.mrb[0].mxu0
      %v3452 = vpop.f32.mrb[0].mxu0
      %v3453 = vadd.f32 0.0, %v3452
      %v3454 = vpop.f32.mrb[0].mxu0
      %3455 = vmatprep.mubr.bf16.mxu0 0
      %3456 = vmatmul.mubr.bf16.gmra.mrb[0].mxu0 %v3370
      %v3457 = vpop.f32.mrb[0].mxu0
      %v3458 = vadd.f32 0.0, %v3457
      %v3459 = vpop.f32.mrb[0].mxu0
      %v3460 = vpop.f32.mrb[0].mxu0
      %v3461 = vadd.f32 0.0, %v3460
      %v3462 = vpop.f32.mrb[0].mxu0
      %3463 = vmatprep.mubr.bf16.mxu0 0
      %3464 = vmatmul.mubr.bf16.gmra.mrb[0].mxu0 %v3373
      %v3465 = vpop.f32.mrb[0].mxu0
      %v3466 = vadd.f32 0.0, %v3465
      %v3467 = vpop.f32.mrb[0].mxu0
      %v3468 = vpop.f32.mrb[0].mxu0
      %v3469 = vadd.f32 0.0, %v3468
      %v3470 = vpop.f32.mrb[0].mxu0
      %3471 = vdwg.mxu0
      %v3472 = vadd.f32 %v3293, %v3410
      %v3473 = vadd.f32 %v3294, %v3413
      %v3474 = vadd.f32 %v3295, %v3418
      %v3475 = vadd.f32 %v3296, %v3421
      %v3476 = vadd.f32 %v3297, %v3426
      %v3477 = vadd.f32 %v3298, %v3429
      %v3478 = vadd.f32 %v3299, %v3434
      %v3479 = vadd.f32 %v3300, %v3437
      %v3480 = vadd.f32 %v3301, %v3442
      %v3481 = vadd.f32 %v3302, %v3445
      %v3482 = vadd.f32 %v3303, %v3450
      %v3483 = vadd.f32 %v3304, %v3453
      %v3484 = vadd.f32 %v3305, %v3458
      %v3485 = vadd.f32 %v3306, %v3461
      %v3486 = vadd.f32 %v3307, %v3466
      %v3487 = vadd.f32 %v3308, %v3469
      %v3488 = vld [vmem:[%s3309 + $0x1] sm:$0xff]
      %v3489 = vld [vmem:[%s3309 + $0x9] sm:$0xff]
      %v3490 = vld [vmem:[%s3309 + $0x19] sm:$0xff]
      %v3491 = vld [vmem:[%s3309 + $0x21] sm:$0xff]
      %v3492 = vld [vmem:[%s3309 + $0x31] sm:$0xff]
      %v3493 = vld [vmem:[%s3309 + $0x39] sm:$0xff]
      %v3494 = vld [vmem:[%s3309 + $0x49] sm:$0xff]
      %v3495 = vld [vmem:[%s3309 + $0x51] sm:$0xff]
      %v3496 = vld [vmem:[%s3309 + $0x61] sm:$0xff]
      %v3497 = vld [vmem:[%s3309 + $0x69] sm:$0xff]
      %v3498 = vld [vmem:[%s3309 + $0x79] sm:$0xff]
      %v3499 = vld [vmem:[%s3309 + $0x81] sm:$0xff]
      %v3500 = vld [vmem:[%s3309 + $0x91] sm:$0xff]
      %v3501 = vld [vmem:[%s3309 + $0x99] sm:$0xff]
      %v3502 = vld [vmem:[%s3309 + $0xa9] sm:$0xff]
      %v3503 = vld [vmem:[%s3309 + $0xb1] sm:$0xff]
      %v3504 = vpack.c.bf16 %v3489, %v3488
      %v3505 = vpack.c.bf16 %v3491, %v3490
      %v3506 = vpack.c.bf16 %v3493, %v3492
      %v3507 = vpack.c.bf16 %v3495, %v3494
      %v3508 = vpack.c.bf16 %v3497, %v3496
      %v3509 = vpack.c.bf16 %v3499, %v3498
      %v3510 = vpack.c.bf16 %v3501, %v3500
      %v3511 = vpack.c.bf16 %v3503, %v3502
      %s3512 = scalar_lea.vmem %s2, 112
      %v3513 = vld [vmem:[%s3512] sm:$0xf]
      %v3514 = vld [vmem:[%s3512 + $0x4] sm:$0xf]
      %v3515 = vld [vmem:[%s3512 + $0x8] sm:$0xf]
      %v3516 = vld [vmem:[%s3512 + $0xc] sm:$0xf]
      %v3521 = vunpack.c.l.b16 %v3513
      %v3522 = vunpack.c.l.b16 %v3514
      %v3523 = vunpack.c.l.b16 %v3515
      %v3524 = vunpack.c.l.b16 %v3516
      %v3525 = vpack.c.b16 %v3522, %v3521
      %v3526 = vpack.c.b16 %v3524, %v3523
      %v3530 = vsel %vm442, %v3504, 0
      %v3533 = vsel %vm442, %v3505, 0
      %v3536 = vsel %vm442, %v3506, 0
      %v3539 = vsel %vm442, %v3507, 0
      %v3542 = vsel %vm442, %v3508, 0
      %v3545 = vsel %vm442, %v3509, 0
      %v3548 = vsel %vm442, %v3510, 0
      %v3551 = vsel %vm442, %v3511, 0
      %3553 = vmatprep.subr.bf16.mxu0 0
      %3554 = vmatpush1.bf16.msra.mxu0 %v3525
      %3555 = vmatprep.subr.bf16.mxu0 0
      %3556 = vmatpush1.bf16.msra.mxu0 %v3526
      %3557 = vmatprep.subr.bf16.mxu0 0
      %3558 = vmatpush1.bf16.msra.mxu0 0
      %3559 = vmatprep.subr.bf16.mxu0 0
      %3560 = vmatpush1.bf16.msra.mxu0 0
      %3561 = vmatprep.subr.bf16.mxu0 0
      %3562 = vmatpush1.bf16.msra.mxu0 0
      %3563 = vmatprep.subr.bf16.mxu0 0
      %3564 = vmatpush1.bf16.msra.mxu0 0
      %3565 = vmatprep.subr.bf16.mxu0 0
      %3566 = vmatpush1.bf16.msra.mxu0 0
      %3567 = vmatprep.subr.bf16.mxu0 0
      %3568 = vmatpush1.bf16.msra.mxu0 0
      %3569 = vmatprep.subr.bf16.mxu0 0
      %3570 = vmatpush1.bf16.msra.mxu0 0
      %3571 = vmatprep.subr.bf16.mxu0 0
      %3572 = vmatpush1.bf16.msra.mxu0 0
      %3573 = vmatprep.subr.bf16.mxu0 0
      %3574 = vmatpush1.bf16.msra.mxu0 0
      %3575 = vmatprep.subr.bf16.mxu0 0
      %3576 = vmatpush1.bf16.msra.mxu0 0
      %3577 = vmatprep.subr.bf16.mxu0 0
      %3578 = vmatpush1.bf16.msra.mxu0 0
      %3579 = vmatprep.subr.bf16.mxu0 0
      %3580 = vmatpush1.bf16.msra.mxu0 0
      %3581 = vmatprep.subr.bf16.mxu0 0
      %3582 = vmatpush1.bf16.msra.mxu0 0
      %3583 = vmatprep.subr.bf16.mxu0 0
      %3584 = vmatpush1.bf16.msra.mxu0 0
      %3585 = vmatprep.mubr.bf16.mxu0 0
      %3586 = vmatmul.mubr.bf16.gmra.mrb[0].mxu0 %v3530
      %v3587 = vpop.f32.mrb[0].mxu0
      %v3588 = vadd.f32 0.0, %v3587
      %v3589 = vpop.f32.mrb[0].mxu0
      %v3590 = vpop.f32.mrb[0].mxu0
      %v3591 = vadd.f32 0.0, %v3590
      %v3592 = vpop.f32.mrb[0].mxu0
      %3593 = vmatprep.mubr.bf16.mxu0 0
      %3594 = vmatmul.mubr.bf16.gmra.mrb[0].mxu0 %v3533
      %v3595 = vpop.f32.mrb[0].mxu0
      %v3596 = vadd.f32 0.0, %v3595
      %v3597 = vpop.f32.mrb[0].mxu0
      %v3598 = vpop.f32.mrb[0].mxu0
      %v3599 = vadd.f32 0.0, %v3598
      %v3600 = vpop.f32.mrb[0].mxu0
      %3601 = vmatprep.mubr.bf16.mxu0 0
      %3602 = vmatmul.mubr.bf16.gmra.mrb[0].mxu0 %v3536
      %v3603 = vpop.f32.mrb[0].mxu0
      %v3604 = vadd.f32 0.0, %v3603
      %v3605 = vpop.f32.mrb[0].mxu0
      %v3606 = vpop.f32.mrb[0].mxu0
      %v3607 = vadd.f32 0.0, %v3606
      %v3608 = vpop.f32.mrb[0].mxu0
      %3609 = vmatprep.mubr.bf16.mxu0 0
      %3610 = vmatmul.mubr.bf16.gmra.mrb[0].mxu0 %v3539
      %v3611 = vpop.f32.mrb[0].mxu0
      %v3612 = vadd.f32 0.0, %v3611
      %v3613 = vpop.f32.mrb[0].mxu0
      %v3614 = vpop.f32.mrb[0].mxu0
      %v3615 = vadd.f32 0.0, %v3614
      %v3616 = vpop.f32.mrb[0].mxu0
      %3617 = vmatprep.mubr.bf16.mxu0 0
      %3618 = vmatmul.mubr.bf16.gmra.mrb[0].mxu0 %v3542
      %v3619 = vpop.f32.mrb[0].mxu0
      %v3620 = vadd.f32 0.0, %v3619
      %v3621 = vpop.f32.mrb[0].mxu0
      %v3622 = vpop.f32.mrb[0].mxu0
      %v3623 = vadd.f32 0.0, %v3622
      %v3624 = vpop.f32.mrb[0].mxu0
      %3625 = vmatprep.mubr.bf16.mxu0 0
      %3626 = vmatmul.mubr.bf16.gmra.mrb[0].mxu0 %v3545
      %v3627 = vpop.f32.mrb[0].mxu0
      %v3628 = vadd.f32 0.0, %v3627
      %v3629 = vpop.f32.mrb[0].mxu0
      %v3630 = vpop.f32.mrb[0].mxu0
      %v3631 = vadd.f32 0.0, %v3630
      %v3632 = vpop.f32.mrb[0].mxu0
      %3633 = vmatprep.mubr.bf16.mxu0 0
      %3634 = vmatmul.mubr.bf16.gmra.mrb[0].mxu0 %v3548
      %v3635 = vpop.f32.mrb[0].mxu0
      %v3636 = vadd.f32 0.0, %v3635
      %v3637 = vpop.f32.mrb[0].mxu0
      %v3638 = vpop.f32.mrb[0].mxu0
      %v3639 = vadd.f32 0.0, %v3638
      %v3640 = vpop.f32.mrb[0].mxu0
      %3641 = vmatprep.mubr.bf16.mxu0 0
      %3642 = vmatmul.mubr.bf16.gmra.mrb[0].mxu0 %v3551
      %v3643 = vpop.f32.mrb[0].mxu0
      %v3644 = vadd.f32 0.0, %v3643
      %v3645 = vpop.f32.mrb[0].mxu0
      %v3646 = vpop.f32.mrb[0].mxu0
      %v3647 = vadd.f32 0.0, %v3646
      %v3648 = vpop.f32.mrb[0].mxu0
      %3649 = vdwg.mxu0
      %v3650 = vadd.f32 %v3472, %v3588
      %v3651 = vadd.f32 %v3473, %v3591
      %v3652 = vadd.f32 %v3474, %v3596
      %v3653 = vadd.f32 %v3475, %v3599
      %v3654 = vadd.f32 %v3476, %v3604
      %v3655 = vadd.f32 %v3477, %v3607
      %v3656 = vadd.f32 %v3478, %v3612
      %v3657 = vadd.f32 %v3479, %v3615
      %v3658 = vadd.f32 %v3480, %v3620
      %v3659 = vadd.f32 %v3481, %v3623
      %v3660 = vadd.f32 %v3482, %v3628
      %v3661 = vadd.f32 %v3483, %v3631
      %v3662 = vadd.f32 %v3484, %v3636
      %v3663 = vadd.f32 %v3485, %v3639
      %v3664 = vadd.f32 %v3486, %v3644
      %v3665 = vadd.f32 %v3487, %v3647
      %v3666 = vld [vmem:[%s3309 + $0x2] sm:$0xff]
      %v3667 = vld [vmem:[%s3309 + $0xa] sm:$0xff]
      %v3668 = vld [vmem:[%s3309 + $0x1a] sm:$0xff]
      %v3669 = vld [vmem:[%s3309 + $0x22] sm:$0xff]
      %v3670 = vld [vmem:[%s3309 + $0x32] sm:$0xff]
      %v3671 = vld [vmem:[%s3309 + $0x3a] sm:$0xff]
      %v3672 = vld [vmem:[%s3309 + $0x4a] sm:$0xff]
      %v3673 = vld [vmem:[%s3309 + $0x52] sm:$0xff]
      %v3674 = vld [vmem:[%s3309 + $0x62] sm:$0xff]
      %v3675 = vld [vmem:[%s3309 + $0x6a] sm:$0xff]
      %v3676 = vld [vmem:[%s3309 + $0x7a] sm:$0xff]
      %v3677 = vld [vmem:[%s3309 + $0x82] sm:$0xff]
      %v3678 = vld [vmem:[%s3309 + $0x92] sm:$0xff]
      %v3679 = vld [vmem:[%s3309 + $0x9a] sm:$0xff]
      %v3680 = vld [vmem:[%s3309 + $0xaa] sm:$0xff]
      %v3681 = vld [vmem:[%s3309 + $0xb2] sm:$0xff]
      %v3682 = vpack.c.bf16 %v3667, %v3666
      %v3683 = vpack.c.bf16 %v3669, %v3668
      %v3684 = vpack.c.bf16 %v3671, %v3670
      %v3685 = vpack.c.bf16 %v3673, %v3672
      %v3686 = vpack.c.bf16 %v3675, %v3674
      %v3687 = vpack.c.bf16 %v3677, %v3676
      %v3688 = vpack.c.bf16 %v3679, %v3678
      %v3689 = vpack.c.bf16 %v3681, %v3680
      %s3690 = scalar_lea.vmem %s2, 128
      %v3691 = vld [vmem:[%s3690] sm:$0xf]
      %v3692 = vld [vmem:[%s3690 + $0x4] sm:$0xf]
      %v3693 = vld [vmem:[%s3690 + $0x8] sm:$0xf]
      %v3694 = vld [vmem:[%s3690 + $0xc] sm:$0xf]
      %v3699 = vunpack.c.l.b16 %v3691
      %v3700 = vunpack.c.l.b16 %v3692
      %v3701 = vunpack.c.l.b16 %v3693
      %v3702 = vunpack.c.l.b16 %v3694
      %v3703 = vpack.c.b16 %v3700, %v3699
      %v3704 = vpack.c.b16 %v3702, %v3701
      %v3708 = vsel %vm442, %v3682, 0
      %v3711 = vsel %vm442, %v3683, 0
      %v3714 = vsel %vm442, %v3684, 0
      %v3717 = vsel %vm442, %v3685, 0
      %v3720 = vsel %vm442, %v3686, 0
      %v3723 = vsel %vm442, %v3687, 0
      %v3726 = vsel %vm442, %v3688, 0
      %v3729 = vsel %vm442, %v3689, 0
      %3731 = vmatprep.subr.bf16.mxu0 0
      %3732 = vmatpush1.bf16.msra.mxu0 %v3703
      %3733 = vmatprep.subr.bf16.mxu0 0
      %3734 = vmatpush1.bf16.msra.mxu0 %v3704
      %3735 = vmatprep.subr.bf16.mxu0 0
      %3736 = vmatpush1.bf16.msra.mxu0 0
      %3737 = vmatprep.subr.bf16.mxu0 0
      %3738 = vmatpush1.bf16.msra.mxu0 0
      %3739 = vmatprep.subr.bf16.mxu0 0
      %3740 = vmatpush1.bf16.msra.mxu0 0
      %3741 = vmatprep.subr.bf16.mxu0 0
      %3742 = vmatpush1.bf16.msra.mxu0 0
      %3743 = vmatprep.subr.bf16.mxu0 0
      %3744 = vmatpush1.bf16.msra.mxu0 0
      %3745 = vmatprep.subr.bf16.mxu0 0
      %3746 = vmatpush1.bf16.msra.mxu0 0
      %3747 = vmatprep.subr.bf16.mxu0 0
      %3748 = vmatpush1.bf16.msra.mxu0 0
      %3749 = vmatprep.subr.bf16.mxu0 0
      %3750 = vmatpush1.bf16.msra.mxu0 0
      %3751 = vmatprep.subr.bf16.mxu0 0
      %3752 = vmatpush1.bf16.msra.mxu0 0
      %3753 = vmatprep.subr.bf16.mxu0 0
      %3754 = vmatpush1.bf16.msra.mxu0 0
      %3755 = vmatprep.subr.bf16.mxu0 0
      %3756 = vmatpush1.bf16.msra.mxu0 0
      %3757 = vmatprep.subr.bf16.mxu0 0
      %3758 = vmatpush1.bf16.msra.mxu0 0
      %3759 = vmatprep.subr.bf16.mxu0 0
      %3760 = vmatpush1.bf16.msra.mxu0 0
      %3761 = vmatprep.subr.bf16.mxu0 0
      %3762 = vmatpush1.bf16.msra.mxu0 0
      %3763 = vmatprep.mubr.bf16.mxu0 0
      %3764 = vmatmul.mubr.bf16.gmra.mrb[0].mxu0 %v3708
      %v3765 = vpop.f32.mrb[0].mxu0
      %v3766 = vadd.f32 0.0, %v3765
      %v3767 = vpop.f32.mrb[0].mxu0
      %v3768 = vpop.f32.mrb[0].mxu0
      %v3769 = vadd.f32 0.0, %v3768
      %v3770 = vpop.f32.mrb[0].mxu0
      %3771 = vmatprep.mubr.bf16.mxu0 0
      %3772 = vmatmul.mubr.bf16.gmra.mrb[0].mxu0 %v3711
      %v3773 = vpop.f32.mrb[0].mxu0
      %v3774 = vadd.f32 0.0, %v3773
      %v3775 = vpop.f32.mrb[0].mxu0
      %v3776 = vpop.f32.mrb[0].mxu0
      %v3777 = vadd.f32 0.0, %v3776
      %v3778 = vpop.f32.mrb[0].mxu0
      %3779 = vmatprep.mubr.bf16.mxu0 0
      %3780 = vmatmul.mubr.bf16.gmra.mrb[0].mxu0 %v3714
      %v3781 = vpop.f32.mrb[0].mxu0
      %v3782 = vadd.f32 0.0, %v3781
      %v3783 = vpop.f32.mrb[0].mxu0
      %v3784 = vpop.f32.mrb[0].mxu0
      %v3785 = vadd.f32 0.0, %v3784
      %v3786 = vpop.f32.mrb[0].mxu0
      %3787 = vmatprep.mubr.bf16.mxu0 0
      %3788 = vmatmul.mubr.bf16.gmra.mrb[0].mxu0 %v3717
      %v3789 = vpop.f32.mrb[0].mxu0
      %v3790 = vadd.f32 0.0, %v3789
      %v3791 = vpop.f32.mrb[0].mxu0
      %v3792 = vpop.f32.mrb[0].mxu0
      %v3793 = vadd.f32 0.0, %v3792
      %v3794 = vpop.f32.mrb[0].mxu0
      %3795 = vmatprep.mubr.bf16.mxu0 0
      %3796 = vmatmul.mubr.bf16.gmra.mrb[0].mxu0 %v3720
      %v3797 = vpop.f32.mrb[0].mxu0
      %v3798 = vadd.f32 0.0, %v3797
      %v3799 = vpop.f32.mrb[0].mxu0
      %v3800 = vpop.f32.mrb[0].mxu0
      %v3801 = vadd.f32 0.0, %v3800
      %v3802 = vpop.f32.mrb[0].mxu0
      %3803 = vmatprep.mubr.bf16.mxu0 0
      %3804 = vmatmul.mubr.bf16.gmra.mrb[0].mxu0 %v3723
      %v3805 = vpop.f32.mrb[0].mxu0
      %v3806 = vadd.f32 0.0, %v3805
      %v3807 = vpop.f32.mrb[0].mxu0
      %v3808 = vpop.f32.mrb[0].mxu0
      %v3809 = vadd.f32 0.0, %v3808
      %v3810 = vpop.f32.mrb[0].mxu0
      %3811 = vmatprep.mubr.bf16.mxu0 0
      %3812 = vmatmul.mubr.bf16.gmra.mrb[0].mxu0 %v3726
      %v3813 = vpop.f32.mrb[0].mxu0
      %v3814 = vadd.f32 0.0, %v3813
      %v3815 = vpop.f32.mrb[0].mxu0
      %v3816 = vpop.f32.mrb[0].mxu0
      %v3817 = vadd.f32 0.0, %v3816
      %v3818 = vpop.f32.mrb[0].mxu0
      %3819 = vmatprep.mubr.bf16.mxu0 0
      %3820 = vmatmul.mubr.bf16.gmra.mrb[0].mxu0 %v3729
      %v3821 = vpop.f32.mrb[0].mxu0
      %v3822 = vadd.f32 0.0, %v3821
      %v3823 = vpop.f32.mrb[0].mxu0
      %v3824 = vpop.f32.mrb[0].mxu0
      %v3825 = vadd.f32 0.0, %v3824
      %v3826 = vpop.f32.mrb[0].mxu0
      %3827 = vdwg.mxu0
      %v3828 = vadd.f32 %v3650, %v3766
      %v3829 = vadd.f32 %v3651, %v3769
      %v3830 = vadd.f32 %v3652, %v3774
      %v3831 = vadd.f32 %v3653, %v3777
      %v3832 = vadd.f32 %v3654, %v3782
      %v3833 = vadd.f32 %v3655, %v3785
      %v3834 = vadd.f32 %v3656, %v3790
      %v3835 = vadd.f32 %v3657, %v3793
      %v3836 = vadd.f32 %v3658, %v3798
      %v3837 = vadd.f32 %v3659, %v3801
      %v3838 = vadd.f32 %v3660, %v3806
      %v3839 = vadd.f32 %v3661, %v3809
      %v3840 = vadd.f32 %v3662, %v3814
      %v3841 = vadd.f32 %v3663, %v3817
      %v3842 = vadd.f32 %v3664, %v3822
      %v3843 = vadd.f32 %v3665, %v3825
      %v3844 = vld [vmem:[%s1586 + $0x1] sm:$0xff]
      %v3845 = vld [vmem:[%s1586 + $0x9] sm:$0xff]
      %v3846 = vld [vmem:[%s1586 + $0x19] sm:$0xff]
      %v3847 = vld [vmem:[%s1586 + $0x21] sm:$0xff]
      %v3848 = vld [vmem:[%s1586 + $0x31] sm:$0xff]
      %v3849 = vld [vmem:[%s1586 + $0x39] sm:$0xff]
      %v3850 = vld [vmem:[%s1586 + $0x49] sm:$0xff]
      %v3851 = vld [vmem:[%s1586 + $0x51] sm:$0xff]
      %v3852 = vld [vmem:[%s1586 + $0x61] sm:$0xff]
      %v3853 = vld [vmem:[%s1586 + $0x69] sm:$0xff]
      %v3854 = vld [vmem:[%s1586 + $0x79] sm:$0xff]
      %v3855 = vld [vmem:[%s1586 + $0x81] sm:$0xff]
      %v3856 = vld [vmem:[%s1586 + $0x91] sm:$0xff]
      %v3857 = vld [vmem:[%s1586 + $0x99] sm:$0xff]
      %v3858 = vld [vmem:[%s1586 + $0xa9] sm:$0xff]
      %v3859 = vld [vmem:[%s1586 + $0xb1] sm:$0xff]
      %v3860 = vmul.f32 %v3828, 0.1
      %v3861 = vmul.f32 %v3829, 0.1
      %v3862 = vmul.f32 %v3830, 0.1
      %v3863 = vmul.f32 %v3831, 0.1
      %v3864 = vmul.f32 %v3832, 0.1
      %v3865 = vmul.f32 %v3833, 0.1
      %v3866 = vmul.f32 %v3834, 0.1
      %v3867 = vmul.f32 %v3835, 0.1
      %v3868 = vmul.f32 %v3836, 0.1
      %v3869 = vmul.f32 %v3837, 0.1
      %v3870 = vmul.f32 %v3838, 0.1
      %v3871 = vmul.f32 %v3839, 0.1
      %v3872 = vmul.f32 %v3840, 0.1
      %v3873 = vmul.f32 %v3841, 0.1
      %v3874 = vmul.f32 %v3842, 0.1
      %v3875 = vmul.f32 %v3843, 0.1
      %v3876 = vadd.f32 %v3844, %v3860
      %v3877 = vadd.f32 %v3845, %v3861
      %v3878 = vadd.f32 %v3846, %v3862
      %v3879 = vadd.f32 %v3847, %v3863
      %v3880 = vadd.f32 %v3848, %v3864
      %v3881 = vadd.f32 %v3849, %v3865
      %v3882 = vadd.f32 %v3850, %v3866
      %v3883 = vadd.f32 %v3851, %v3867
      %v3884 = vadd.f32 %v3852, %v3868
      %v3885 = vadd.f32 %v3853, %v3869
      %v3886 = vadd.f32 %v3854, %v3870
      %v3887 = vadd.f32 %v3855, %v3871
      %v3888 = vadd.f32 %v3856, %v3872
      %v3889 = vadd.f32 %v3857, %v3873
      %v3890 = vadd.f32 %v3858, %v3874
      %v3891 = vadd.f32 %v3859, %v3875
      %3892 = vst.msk [vmem:[%s194] sm:$0xff] %vm442, %v3876
      %3893 = vst.msk [vmem:[%s194 + $0x8] sm:$0xff] %vm442, %v3877
      %3894 = vst.msk [vmem:[%s194 + $0x10] sm:$0xff] %vm442, %v3878
      %3895 = vst.msk [vmem:[%s194 + $0x18] sm:$0xff] %vm442, %v3879
      %3896 = vst.msk [vmem:[%s194 + $0x20] sm:$0xff] %vm442, %v3880
      %3897 = vst.msk [vmem:[%s194 + $0x28] sm:$0xff] %vm442, %v3881
      %3898 = vst.msk [vmem:[%s194 + $0x30] sm:$0xff] %vm442, %v3882
      %3899 = vst.msk [vmem:[%s194 + $0x38] sm:$0xff] %vm442, %v3883
      %3900 = vst.msk [vmem:[%s194 + $0x40] sm:$0xff] %vm442, %v3884
      %3901 = vst.msk [vmem:[%s194 + $0x48] sm:$0xff] %vm442, %v3885
      %3902 = vst.msk [vmem:[%s194 + $0x50] sm:$0xff] %vm442, %v3886
      %3903 = vst.msk [vmem:[%s194 + $0x58] sm:$0xff] %vm442, %v3887
      %3904 = vst.msk [vmem:[%s194 + $0x60] sm:$0xff] %vm442, %v3888
      %3905 = vst.msk [vmem:[%s194 + $0x68] sm:$0xff] %vm442, %v3889
      %3906 = vst.msk [vmem:[%s194 + $0x70] sm:$0xff] %vm442, %v3890
      %3907 = vst.msk [vmem:[%s194 + $0x78] sm:$0xff] %vm442, %v3891
      %s3908 = smul.u32 8, %s19
      %p3909 = scmp.lt.s32.totalorder %s18, 1
      %s3910 = scalar_select %p3909, %s18, 1
      %p3911 = scmp.lt.s32.totalorder %s3908, 15
      %s3912 = scalar_select %p3911, %s3908, 15
      %s3913 = smul.addr %s3912, 2
      %s3914 = smul.addr %s3910, 32
      %s3915 = sadd.s32 %s3913, %s3914
      %s3916 = smul.addr %s3915, 8
      %s3917 = scalar_lea.vmem %s3, %s3916
      // Predicated region
      $region45: #{resnet_forward.6} parent=31 // pred_check
        %p3918 = pneg %p114
      $region46: #{resnet_forward.6} parent=31 // pred_check_branch
        %3920 = sbr.rel (%p3918) target = $region48
      $region47: #{resnet_forward.6} parent=31 // pred_region
        %s3921 = smul.u32 8, %s19
      $region48: #{resnet_forward.6} parent=31 // pred_fallthru
        _
    $region32: #{resnet_forward.6} parent=5 // pred_fallthru
      _
    %p3922 = scmp.le.s32.totalorder 2, %s9
    // Predicated region
    $region49: #{resnet_forward.6} parent=5 // pred_check
      %p3923 = pneg %p3922
    $region50: #{resnet_forward.6} parent=5 // pred_check_branch
      %3925 = sbr.rel (%p3923) target = $region52
    $region51: #{resnet_forward.6} parent=5 // pred_region
      %s3926 = ssub.s32 %s9, 2
      // Predicated region
      $region53: #{resnet_forward.6} parent=51 // pred_check
        %p3927 = pneg %p120
      $region54: #{resnet_forward.6} parent=51 // pred_check_branch
        %3929 = sbr.rel (%p3927) target = $region56
      $region55: #{resnet_forward.6} parent=51 // pred_region
        %s3930 = smul.u32 8, %s21
        %p3931 = scmp.lt.s32.totalorder %s20, 1
        %s3932 = scalar_select %p3931, %s20, 1
        %p3933 = scmp.lt.s32.totalorder %s3930, 15
        %s3934 = scalar_select %p3933, %s3930, 15
        %s3935 = smul.addr %s3934, 2
        %s3936 = smul.addr %s3932, 32
        %s3937 = sadd.s32 %s3935, %s3936
        %s3938 = smul.addr %s3937, 8
        %s3939 = scalar_lea.vmem %s3, %s3938
      $region56: #{resnet_forward.6} parent=51 // pred_fallthru
        _
    $region52: #{resnet_forward.6} parent=5 // pred_fallthru
      _
  $region6: #{resnet_forward.6} parent=0 // loop_footer
    %s13 = sadd.s32 1, %s9
  $region7: #{resnet_forward.6} parent=0 // loop_footer_branch
    %8 = sbr.rel target = $region3
  $region8: #{resnet_forward.6} parent=0 // loop_exit
    _

</llo_original>
